<compile_context>
chip_gen: v6e
topology: v6e:2x2x1
jax: 0.10.0
libtpu: 0.0.40
codegen_flags: <defaults>
</compile_context>

<pallas_src>
import jax
import jax.numpy as jnp
from jax import lax
from jax.experimental import pallas as pl
from jax.experimental.pallas import tpu as pltpu

FEAT_DIM = 128        # feature / context extractor output channels (64 + 64)
HIDDEN_DIM = 64
CONTEXT_DIM = 64
GATE_W = 4 * HIDDEN_DIM          # z|r|q (192) padded to 256 for full MXU tiles
CORR_LEVELS = 3       # args.corr_levels
BASE_SCALE = 0.25     # args.base_scales
NUM_ITERS = 8
MAX_POINTS = 256      # self.args.max_points = 256
PAD_C = 128           # coords / flow padded to one full lane group
FLOW_LANES = PAD_C // NUM_ITERS  # 16 lanes per iteration in the packed output
ROW_BLOCKS = 2        # row-split grid axis (keeps both v7x TCs busy at B=1)


# --------------------------------------------------------------------------
# Fused forward kernel: MLPs + corr init + 8 GRU refinement iterations
# --------------------------------------------------------------------------
def _rsf1_kernel(x1_ref, x2_ref,
                 fw1_ref, fb1_ref, fw2_ref, fb2_ref,
                 cw1_ref, cb1_ref, cw2_ref, cb2_ref,
                 wi_ref, bz_ref, wfg_ref, whg_ref, wqh_ref, wc_ref,
                 wf1_ref, bf1_ref, wf2_ref, bf2_ref,
                 out_ref,
                 corr_s, net_s, c2_s, base_s, x2m_s, flows_s):
    x1 = x1_ref[...]                       # (NR, 128) coords, cols 3.. are zero
    x2 = x2_ref[...]                       # (N,  128)

    # ---- pointwise MLPs (stand-in for PointTransformerSeg), bf16 on MXU ----
    def mlp(x, w1, b1, w2, b2):
        h = jnp.maximum(
            jnp.dot(x.astype(jnp.bfloat16), w1,
                    preferred_element_type=jnp.float32) + b1, 0.0)
        return jnp.dot(h.astype(jnp.bfloat16), w2,
                       preferred_element_type=jnp.float32) + b2

    fmap1 = mlp(x1, fw1_ref[...], fb1_ref[...], fw2_ref[...], fb2_ref[...])
    fmap2 = mlp(x2, fw1_ref[...], fb1_ref[...], fw2_ref[...], fb2_ref[...])
    fct1 = mlp(x1, cw1_ref[...], cb1_ref[...], cw2_ref[...], cb2_ref[...])

    # ---- corr_block.init_module: corr[i, j] = <fmap1_i, fmap2_j>/sqrt(C) ----
    corr_s[...] = lax.dot_general(
        fmap1.astype(jnp.bfloat16), fmap2.astype(jnp.bfloat16),
        (((1,), (1,)), ((), ())),
        preferred_element_type=jnp.float32) * (FEAT_DIM ** -0.5)

    # ---- net, inp = split(fct1); net = tanh, inp = relu ----
    net_s[...] = jnp.tanh(fct1[:, :HIDDEN_DIM])
    inp = jnp.maximum(fct1[:, HIDDEN_DIM:2 * HIDDEN_DIM], 0.0)

    # loop-invariant gate contribution (inp projection + biases, z|r|q fused)
    base_s[...] = (jnp.dot(inp.astype(jnp.bfloat16), wi_ref[...],
                           preferred_element_type=jnp.float32) + bz_ref[...])

    # Homogeneous fold: rhs row j = [-2*xyz2_j (lanes 0:3) | ||xyz2_j||^2
    # (lane 3) | 0].  With coords2 lane 3 pinned to 1.0,
    #   coords2 @ rhs^T = -2<coords2, xyz2> + ||xyz2||^2.
    lane = lax.broadcasted_iota(jnp.int32, (1, PAD_C), 1)
    x2sq = jnp.sum(x2 * x2, axis=-1, keepdims=True)          # (N, 1)
    x2m_s[...] = jnp.where(lane == 3, x2sq, -2.0 * x2)
    # coords2 starts at coords1 == xyz1; lane 3 pinned to 1.0 (stays pinned:
    # the flow-head delta has zero pad columns).
    c2_s[...] = jnp.where(lane == 3, 1.0, x1)

    c1 = x1
    mask3 = (lane != 3).astype(jnp.float32)   # strip the pinned lane on output

    @pl.loop(0, NUM_ITERS)
    def _iteration(it):
        c2 = c2_s[...]                     # (NR, 128), lane 3 == 1
        net = net_s[...]                   # (NR, 64)
        corr = corr_s[...]                 # (NR, N)

        # pairwise squared distances up to a per-row constant; the row-min
        # subtraction below makes ||coords2||^2 irrelevant for the softmax.
        acc = lax.dot_general(c2, x2m_s[...], (((1,), (1,)), ((), ())),
                              preferred_element_type=jnp.float32)     # (NR, N)
        dd = acc - jnp.min(acc, axis=-1, keepdims=True)

        # multi-scale correlation lookup, coarse -> fine: one exp, finer
        # levels by squaring (VPU), deferred normalization.
        w = jnp.exp(dd * (-1.0 / (4.0 * BASE_SCALE)))                 # level 2
        gates = base_s[...]                                           # (NR, 256)
        wc = wc_ref[...]                                              # (3, 256)
        for i in range(CORR_LEVELS):
            lvl = CORR_LEVELS - 1 - i
            if i > 0:
                w = w * w                  # halve the scale each step
            num = jnp.sum(w * corr, axis=-1, keepdims=True)
            den = jnp.sum(w, axis=-1, keepdims=True)                  # >= 1
            feat = num * pl.reciprocal(den, approx=True)              # (NR, 1)
            gates = gates + feat * wc[lvl:lvl + 1, :]

        # GRU update: flow / hidden projections fused across z|r|q, bf16 MXU.
        flow = c2 - c1                                                # (NR, 128)
        gates = (gates
                 + jnp.dot(flow.astype(jnp.bfloat16), wfg_ref[...],
                           preferred_element_type=jnp.float32)
                 + jnp.dot(net.astype(jnp.bfloat16), whg_ref[...],
                           preferred_element_type=jnp.float32))
        z = jax.nn.sigmoid(gates[:, 0:HIDDEN_DIM])
        r = jax.nn.sigmoid(gates[:, HIDDEN_DIM:2 * HIDDEN_DIM])
        q = jnp.tanh(gates[:, 2 * HIDDEN_DIM:3 * HIDDEN_DIM]
                     + jnp.dot((r * net).astype(jnp.bfloat16), wqh_ref[...],
                               preferred_element_type=jnp.float32))
        net_new = (1.0 - z) * net + z * q

        # flow head; wf2/bf2 are column-padded to 128 so delta pad lanes are 0.
        h1 = jnp.maximum(
            jnp.dot(net_new.astype(jnp.bfloat16), wf1_ref[...],
                    preferred_element_type=jnp.float32) + bf1_ref[...], 0.0)
        delta = (jnp.dot(h1.astype(jnp.bfloat16), wf2_ref[...],
                         preferred_element_type=jnp.float32) + bf2_ref[...])
        c2_new = c2 + delta

        net_s[...] = net_new
        c2_s[...] = c2_new
        flows_s[it] = (c2_new - c1) * mask3       # dynamic leading-dim store

    # Pack the 8 iteration flows into ONE lane-dense (NR, 128) output slab:
    # lanes [i*16, i*16+3) hold iteration i's flow, remaining lanes are zero.
    for i in range(NUM_ITERS):
        out_ref[:, i * FLOW_LANES:(i + 1) * FLOW_LANES] = \
            flows_s[i, :, 0:FLOW_LANES]


def rsf1_fused(x1p, x2p, weights, row_blocks=ROW_BLOCKS):
    B, N, _ = x1p.shape
    NR = N // row_blocks
    xb1 = pl.BlockSpec((None, NR, PAD_C), lambda b, r: (b, r, 0))
    xb2 = pl.BlockSpec((None, N, PAD_C), lambda b, r: (b, 0, 0))
    rep = lambda a: pl.BlockSpec(a.shape, lambda b, r: (0,) * a.ndim)
    return pl.pallas_call(
        _rsf1_kernel,
        out_shape=jax.ShapeDtypeStruct((B, N, PAD_C), jnp.float32),
        grid_spec=pltpu.PrefetchScalarGridSpec(
            num_scalar_prefetch=0,
            grid=(B, row_blocks),
            in_specs=[xb1, xb2] + [rep(w) for w in weights],
            out_specs=pl.BlockSpec((None, NR, PAD_C), lambda b, r: (b, r, 0)),
            scratch_shapes=[
                pltpu.VMEM((NR, N), jnp.float32),            # corr rows
                pltpu.VMEM((NR, HIDDEN_DIM), jnp.float32),   # net (hidden)
                pltpu.VMEM((NR, PAD_C), jnp.float32),        # coords2 (lane3=1)
                pltpu.VMEM((NR, GATE_W), jnp.float32),       # inp proj + bias
                pltpu.VMEM((N, PAD_C), jnp.float32),         # [-2*xyz2 | ||xyz2||^2]
                pltpu.VMEM((NUM_ITERS, NR, PAD_C), jnp.float32),  # per-iter flows
            ]),
        compiler_params=pltpu.CompilerParams(
            dimension_semantics=("parallel", "parallel"),
            vmem_limit_bytes=32 * 1024 * 1024),
    )(x1p, x2p, *weights)


# --------------------------------------------------------------------------
# Parameter init (deterministic, synthetic) + packing for the fused kernel
# --------------------------------------------------------------------------
def init_params(key):
    ks = iter(jax.random.split(key, 64))

    def lin(fin, fout):
        w = jax.random.normal(next(ks), (fin, fout), jnp.float32) / jnp.sqrt(
            jnp.float32(fin))
        b = 0.01 * jax.random.normal(next(ks), (1, fout), jnp.float32)
        return w, b

    fw1, fb1 = lin(3, 64)
    fw2, fb2 = lin(64, FEAT_DIM)
    cw1, cb1 = lin(3, 64)
    cw2, cb2 = lin(64, FEAT_DIM)

    upd = {}
    for g in ("z", "r", "q"):
        upd[f"w{g}_c"], _ = lin(CORR_LEVELS, HIDDEN_DIM)
        upd[f"w{g}_f"], _ = lin(3, HIDDEN_DIM)
        upd[f"w{g}_i"], _ = lin(CONTEXT_DIM, HIDDEN_DIM)
        upd[f"w{g}_h"], upd[f"b{g}"] = lin(HIDDEN_DIM, HIDDEN_DIM)
    upd["wf1"], upd["bf1"] = lin(HIDDEN_DIM, HIDDEN_DIM)
    upd["wf2"], upd["bf2"] = lin(HIDDEN_DIM, 3)

    return {
        "feature": (fw1, fb1, fw2, fb2),
        "context": (cw1, cb1, cw2, cb2),
        "update": upd,
    }


def _pack_weights(params):
    """Zero-pad / concat / bf16-cast weights into MXU-friendly fused layouts."""
    fw1, fb1, fw2, fb2 = params["feature"]
    cw1, cb1, cw2, cb2 = params["context"]
    upd = params["update"]
    bf16 = jnp.bfloat16

    pad_rows = lambda w, r: jnp.pad(w, ((0, r - w.shape[0]), (0, 0)))
    pad_cols = lambda w, c: jnp.pad(w, ((0, 0), (0, c - w.shape[1])))

    fw1p = pad_rows(fw1, PAD_C).astype(bf16)                      # (128, 64)
    cw1p = pad_rows(cw1, PAD_C).astype(bf16)                      # (128, 64)

    wi_zrq = pad_cols(
        jnp.concatenate([upd["wz_i"], upd["wr_i"], upd["wq_i"]], 1),
        GATE_W).astype(bf16)                                      # (64, 256)
    b_zrq = pad_cols(
        jnp.concatenate([upd["bz"], upd["br"], upd["bq"]], 1), GATE_W)  # (1,256)
    wc_zrq = pad_cols(
        jnp.concatenate([upd["wz_c"], upd["wr_c"], upd["wq_c"]], 1),
        GATE_W)                                                   # (3, 256) f32
    wf_g = pad_cols(pad_rows(
        jnp.concatenate([upd["wz_f"], upd["wr_f"], upd["wq_f"]], 1), PAD_C),
        GATE_W).astype(bf16)                                      # (128, 256)
    wh_g = pad_cols(
        jnp.concatenate([upd["wz_h"], upd["wr_h"]], 1), GATE_W).astype(bf16)  # (64,256)
    wq_h = upd["wq_h"].astype(bf16)                               # (64, 64)
    wf1 = upd["wf1"].astype(bf16)                                 # (64, 64)
    wf2p = pad_cols(upd["wf2"], PAD_C).astype(bf16)               # (64, 128)
    bf2p = pad_cols(upd["bf2"], PAD_C)                            # (1, 128)

    return (fw1p, fb1, fw2.astype(bf16), fb2,
            cw1p, cb1, cw2.astype(bf16), cb2,
            wi_zrq, b_zrq, wf_g, wh_g, wq_h, wc_zrq,
            wf1, upd["bf1"], wf2p, bf2p)


# --------------------------------------------------------------------------
# RSF1.forward
# --------------------------------------------------------------------------
@jax.jit
def rsf1_forward(xyz1, xyz2, interval, params):
    del interval  # present in the PyTorch signature but unused in forward()
    B, N, _ = xyz1.shape
    assert N % (ROW_BLOCKS * 8) == 0, "point count must be sublane-aligned"

    # B_N_xyz2pxo / pt_fmap_trans: bookkeeping for the point-transformer
    # backbone; we keep everything points-major (B, N, C) and pad the 3-D
    # coordinates to a full 128-lane group so every kernel I/O is lane-dense.
    x1p = jnp.pad(xyz1, ((0, 0), (0, 0), (0, PAD_C - 3)))
    x2p = jnp.pad(xyz2, ((0, 0), (0, 0), (0, PAD_C - 3)))

    weights = _pack_weights(params)
    flow_pack = rsf1_fused(x1p, x2p, weights)       # (B, N, 128) packed slab
    return [flow_pack[:, :, i * FLOW_LANES:i * FLOW_LANES + 3]
            for i in range(NUM_ITERS)]


if __name__ == "__main__":
    B, N = 2, MAX_POINTS
    key = jax.random.PRNGKey(0)
    k1, k2, kp = jax.random.split(key, 3)
    xyz1 = jax.random.normal(k1, (B, N, 3), jnp.float32)
    xyz2 = xyz1 + 0.05 * jax.random.normal(k2, (B, N, 3), jnp.float32)
    interval = jnp.float32(0.1)
    params = init_params(kp)

    flow_predictions = rsf1_forward(xyz1, xyz2, interval, params)
    jax.block_until_ready(flow_predictions)
    assert len(flow_predictions) == NUM_ITERS
    assert flow_predictions[0].shape == (B, N, 3)
    print("KERNEL_OK")
</pallas_src>

<mosaic_0001>
module attributes {stable_mosaic.version = 11 : i64} {
  func.func @_rsf1_kernel(%arg0: i32, %arg1: i32, %arg2: memref<1x128x128xf32, #tpu.memory_space<vmem>>, %arg3: memref<1x256x128xf32, #tpu.memory_space<vmem>>, %arg4: memref<128x64xbf16, #tpu.memory_space<vmem>>, %arg5: memref<1x64xf32, #tpu.memory_space<vmem>>, %arg6: memref<64x128xbf16, #tpu.memory_space<vmem>>, %arg7: memref<1x128xf32, #tpu.memory_space<vmem>>, %arg8: memref<128x64xbf16, #tpu.memory_space<vmem>>, %arg9: memref<1x64xf32, #tpu.memory_space<vmem>>, %arg10: memref<64x128xbf16, #tpu.memory_space<vmem>>, %arg11: memref<1x128xf32, #tpu.memory_space<vmem>>, %arg12: memref<64x256xbf16, #tpu.memory_space<vmem>>, %arg13: memref<1x256xf32, #tpu.memory_space<vmem>>, %arg14: memref<128x256xbf16, #tpu.memory_space<vmem>>, %arg15: memref<64x256xbf16, #tpu.memory_space<vmem>>, %arg16: memref<64x64xbf16, #tpu.memory_space<vmem>>, %arg17: memref<3x256xf32, #tpu.memory_space<vmem>>, %arg18: memref<64x64xbf16, #tpu.memory_space<vmem>>, %arg19: memref<1x64xf32, #tpu.memory_space<vmem>>, %arg20: memref<64x128xbf16, #tpu.memory_space<vmem>>, %arg21: memref<1x128xf32, #tpu.memory_space<vmem>>, %arg22: memref<1x128x128xf32, #tpu.memory_space<vmem>>, %arg23: memref<128x256xf32, #tpu.memory_space<vmem>>, %arg24: memref<128x64xf32, #tpu.memory_space<vmem>>, %arg25: memref<128x128xf32, #tpu.memory_space<vmem>>, %arg26: memref<128x256xf32, #tpu.memory_space<vmem>>, %arg27: memref<256x128xf32, #tpu.memory_space<vmem>>, %arg28: memref<8x128x128xf32, #tpu.memory_space<vmem>>) attributes {dimension_semantics = [#tpu.dimension_semantics<parallel>, #tpu.dimension_semantics<parallel>], iteration_bounds = array<i64: 2, 2>, scalar_prefetch = 0 : i64, scratch_operands = 6 : i64, tpu.core_type = #tpu.core_type<tc>, window_params = [{transform_indices = @transform_0, window_bounds = array<i64: 1, 128, 128>}, {transform_indices = @transform_1, window_bounds = array<i64: 1, 256, 128>}, {pipeline_mode = #tpu.pipeline_mode<synchronous>, transform_indices = @transform_2, window_bounds = array<i64: 128, 64>}, {pipeline_mode = #tpu.pipeline_mode<synchronous>, transform_indices = @transform_3, window_bounds = array<i64: 1, 64>}, {pipeline_mode = #tpu.pipeline_mode<synchronous>, transform_indices = @transform_4, window_bounds = array<i64: 64, 128>}, {pipeline_mode = #tpu.pipeline_mode<synchronous>, transform_indices = @transform_5, window_bounds = array<i64: 1, 128>}, {pipeline_mode = #tpu.pipeline_mode<synchronous>, transform_indices = @transform_6, window_bounds = array<i64: 128, 64>}, {pipeline_mode = #tpu.pipeline_mode<synchronous>, transform_indices = @transform_7, window_bounds = array<i64: 1, 64>}, {pipeline_mode = #tpu.pipeline_mode<synchronous>, transform_indices = @transform_8, window_bounds = array<i64: 64, 128>}, {pipeline_mode = #tpu.pipeline_mode<synchronous>, transform_indices = @transform_9, window_bounds = array<i64: 1, 128>}, {pipeline_mode = #tpu.pipeline_mode<synchronous>, transform_indices = @transform_10, window_bounds = array<i64: 64, 256>}, {pipeline_mode = #tpu.pipeline_mode<synchronous>, transform_indices = @transform_11, window_bounds = array<i64: 1, 256>}, {pipeline_mode = #tpu.pipeline_mode<synchronous>, transform_indices = @transform_12, window_bounds = array<i64: 128, 256>}, {pipeline_mode = #tpu.pipeline_mode<synchronous>, transform_indices = @transform_13, window_bounds = array<i64: 64, 256>}, {pipeline_mode = #tpu.pipeline_mode<synchronous>, transform_indices = @transform_14, window_bounds = array<i64: 64, 64>}, {pipeline_mode = #tpu.pipeline_mode<synchronous>, transform_indices = @transform_15, window_bounds = array<i64: 3, 256>}, {pipeline_mode = #tpu.pipeline_mode<synchronous>, transform_indices = @transform_16, window_bounds = array<i64: 64, 64>}, {pipeline_mode = #tpu.pipeline_mode<synchronous>, transform_indices = @transform_17, window_bounds = array<i64: 1, 64>}, {pipeline_mode = #tpu.pipeline_mode<synchronous>, transform_indices = @transform_18, window_bounds = array<i64: 64, 128>}, {pipeline_mode = #tpu.pipeline_mode<synchronous>, transform_indices = @transform_19, window_bounds = array<i64: 1, 128>}, {transform_indices = @transform_20, window_bounds = array<i64: 1, 128, 128>}]} {
    %c0 = arith.constant 0 : index
    %c0_0 = arith.constant 0 : index
    %c0_1 = arith.constant 0 : index
    %0 = vector.load %arg2[%c0, %c0_0, %c0_1] : memref<1x128x128xf32, #tpu.memory_space<vmem>>, vector<1x128x128xf32>
    %1 = vector.shape_cast %0 : vector<1x128x128xf32> to vector<128x128xf32>
    %c0_2 = arith.constant 0 : index
    %c0_3 = arith.constant 0 : index
    %c0_4 = arith.constant 0 : index
    %2 = vector.load %arg3[%c0_2, %c0_3, %c0_4] : memref<1x256x128xf32, #tpu.memory_space<vmem>>, vector<1x256x128xf32>
    %3 = vector.shape_cast %2 : vector<1x256x128xf32> to vector<256x128xf32>
    %c0_5 = arith.constant 0 : index
    %c0_6 = arith.constant 0 : index
    %4 = vector.load %arg4[%c0_5, %c0_6] : memref<128x64xbf16, #tpu.memory_space<vmem>>, vector<128x64xbf16>
    %c0_7 = arith.constant 0 : index
    %c0_8 = arith.constant 0 : index
    %5 = vector.load %arg5[%c0_7, %c0_8] : memref<1x64xf32, #tpu.memory_space<vmem>>, vector<1x64xf32>
    %c0_9 = arith.constant 0 : index
    %c0_10 = arith.constant 0 : index
    %6 = vector.load %arg6[%c0_9, %c0_10] : memref<64x128xbf16, #tpu.memory_space<vmem>>, vector<64x128xbf16>
    %c0_11 = arith.constant 0 : index
    %c0_12 = arith.constant 0 : index
    %7 = vector.load %arg7[%c0_11, %c0_12] : memref<1x128xf32, #tpu.memory_space<vmem>>, vector<1x128xf32>
    %8 = arith.truncf %1 : vector<128x128xf32> to vector<128x128xbf16>
    %cst = arith.constant dense<0.000000e+00> : vector<128x64xf32>
    %9 = tpu.matmul %8, %4, %cst {dimension_numbers = #tpu.dot_dimension_numbers<[1], [0], [0], [1], [0, 0, 1, 1], [], []>} : vector<128x128xbf16>, vector<128x64xbf16>, vector<128x64xf32> -> vector<128x64xf32>
    %10 = vector.broadcast %5 : vector<1x64xf32> to vector<128x64xf32>
    %11 = arith.addf %9, %10 : vector<128x64xf32>
    %cst_13 = arith.constant 0.000000e+00 : f32
    %12 = vector.broadcast %cst_13 : f32 to vector<128x64xf32>
    %13 = arith.maximumf %11, %12 : vector<128x64xf32>
    %14 = arith.truncf %13 : vector<128x64xf32> to vector<128x64xbf16>
    %cst_14 = arith.constant dense<0.000000e+00> : vector<128x128xf32>
    %15 = tpu.matmul %14, %6, %cst_14 {dimension_numbers = #tpu.dot_dimension_numbers<[1], [0], [0], [1], [0, 0, 1, 1], [], []>} : vector<128x64xbf16>, vector<64x128xbf16>, vector<128x128xf32> -> vector<128x128xf32>
    %16 = vector.broadcast %7 : vector<1x128xf32> to vector<128x128xf32>
    %17 = arith.addf %15, %16 : vector<128x128xf32>
    %c0_15 = arith.constant 0 : index
    %c0_16 = arith.constant 0 : index
    %18 = vector.load %arg4[%c0_15, %c0_16] : memref<128x64xbf16, #tpu.memory_space<vmem>>, vector<128x64xbf16>
    %c0_17 = arith.constant 0 : index
    %c0_18 = arith.constant 0 : index
    %19 = vector.load %arg5[%c0_17, %c0_18] : memref<1x64xf32, #tpu.memory_space<vmem>>, vector<1x64xf32>
    %c0_19 = arith.constant 0 : index
    %c0_20 = arith.constant 0 : index
    %20 = vector.load %arg6[%c0_19, %c0_20] : memref<64x128xbf16, #tpu.memory_space<vmem>>, vector<64x128xbf16>
    %c0_21 = arith.constant 0 : index
    %c0_22 = arith.constant 0 : index
    %21 = vector.load %arg7[%c0_21, %c0_22] : memref<1x128xf32, #tpu.memory_space<vmem>>, vector<1x128xf32>
    %22 = arith.truncf %3 : vector<256x128xf32> to vector<256x128xbf16>
    %cst_23 = arith.constant dense<0.000000e+00> : vector<256x64xf32>
    %23 = tpu.matmul %22, %18, %cst_23 {dimension_numbers = #tpu.dot_dimension_numbers<[1], [0], [0], [1], [0, 0, 1, 1], [], []>} : vector<256x128xbf16>, vector<128x64xbf16>, vector<256x64xf32> -> vector<256x64xf32>
    %24 = vector.broadcast %19 : vector<1x64xf32> to vector<256x64xf32>
    %25 = arith.addf %23, %24 : vector<256x64xf32>
    %cst_24 = arith.constant 0.000000e+00 : f32
    %26 = vector.broadcast %cst_24 : f32 to vector<256x64xf32>
    %27 = arith.maximumf %25, %26 : vector<256x64xf32>
    %28 = arith.truncf %27 : vector<256x64xf32> to vector<256x64xbf16>
    %cst_25 = arith.constant dense<0.000000e+00> : vector<256x128xf32>
    %29 = tpu.matmul %28, %20, %cst_25 {dimension_numbers = #tpu.dot_dimension_numbers<[1], [0], [0], [1], [0, 0, 1, 1], [], []>} : vector<256x64xbf16>, vector<64x128xbf16>, vector<256x128xf32> -> vector<256x128xf32>
    %30 = vector.broadcast %21 : vector<1x128xf32> to vector<256x128xf32>
    %31 = arith.addf %29, %30 : vector<256x128xf32>
    %c0_26 = arith.constant 0 : index
    %c0_27 = arith.constant 0 : index
    %32 = vector.load %arg8[%c0_26, %c0_27] : memref<128x64xbf16, #tpu.memory_space<vmem>>, vector<128x64xbf16>
    %c0_28 = arith.constant 0 : index
    %c0_29 = arith.constant 0 : index
    %33 = vector.load %arg9[%c0_28, %c0_29] : memref<1x64xf32, #tpu.memory_space<vmem>>, vector<1x64xf32>
    %c0_30 = arith.constant 0 : index
    %c0_31 = arith.constant 0 : index
    %34 = vector.load %arg10[%c0_30, %c0_31] : memref<64x128xbf16, #tpu.memory_space<vmem>>, vector<64x128xbf16>
    %c0_32 = arith.constant 0 : index
    %c0_33 = arith.constant 0 : index
    %35 = vector.load %arg11[%c0_32, %c0_33] : memref<1x128xf32, #tpu.memory_space<vmem>>, vector<1x128xf32>
    %36 = arith.truncf %1 : vector<128x128xf32> to vector<128x128xbf16>
    %cst_34 = arith.constant dense<0.000000e+00> : vector<128x64xf32>
    %37 = tpu.matmul %36, %32, %cst_34 {dimension_numbers = #tpu.dot_dimension_numbers<[1], [0], [0], [1], [0, 0, 1, 1], [], []>} : vector<128x128xbf16>, vector<128x64xbf16>, vector<128x64xf32> -> vector<128x64xf32>
    %38 = vector.broadcast %33 : vector<1x64xf32> to vector<128x64xf32>
    %39 = arith.addf %37, %38 : vector<128x64xf32>
    %cst_35 = arith.constant 0.000000e+00 : f32
    %40 = vector.broadcast %cst_35 : f32 to vector<128x64xf32>
    %41 = arith.maximumf %39, %40 : vector<128x64xf32>
    %42 = arith.truncf %41 : vector<128x64xf32> to vector<128x64xbf16>
    %cst_36 = arith.constant dense<0.000000e+00> : vector<128x128xf32>
    %43 = tpu.matmul %42, %34, %cst_36 {dimension_numbers = #tpu.dot_dimension_numbers<[1], [0], [0], [1], [0, 0, 1, 1], [], []>} : vector<128x64xbf16>, vector<64x128xbf16>, vector<128x128xf32> -> vector<128x128xf32>
    %44 = vector.broadcast %35 : vector<1x128xf32> to vector<128x128xf32>
    %45 = arith.addf %43, %44 : vector<128x128xf32>
    %46 = arith.truncf %17 : vector<128x128xf32> to vector<128x128xbf16>
    %47 = arith.truncf %31 : vector<256x128xf32> to vector<256x128xbf16>
    %cst_37 = arith.constant dense<0.000000e+00> : vector<128x256xf32>
    %48 = tpu.matmul %46, %47, %cst_37 {dimension_numbers = #tpu.dot_dimension_numbers<[1], [1], [0], [0], [0, 0, 1, 0], [], []>} : vector<128x128xbf16>, vector<256x128xbf16>, vector<128x256xf32> -> vector<128x256xf32>
    %cst_38 = arith.constant 0.0883883461 : f32
    %49 = vector.broadcast %cst_38 : f32 to vector<128x256xf32>
    %50 = arith.mulf %48, %49 : vector<128x256xf32>
    %c0_39 = arith.constant 0 : index
    %c0_40 = arith.constant 0 : index
    %51 = vector.load %arg23[%c0_39, %c0_40] : memref<128x256xf32, #tpu.memory_space<vmem>>, vector<128x256xf32>
    tpu.vector_store %arg23[%c0_39, %c0_40], %50 {strides = array<i32>} : memref<128x256xf32, #tpu.memory_space<vmem>>, vector<128x256xf32>,
    %52 = vector.extract_strided_slice %45 {offsets = [0, 0], sizes = [128, 64], strides = [1, 1]} : vector<128x128xf32> to vector<128x64xf32>
    %53 = math.tanh %52 : vector<128x64xf32>
    %c0_41 = arith.constant 0 : index
    %c0_42 = arith.constant 0 : index
    %54 = vector.load %arg24[%c0_41, %c0_42] : memref<128x64xf32, #tpu.memory_space<vmem>>, vector<128x64xf32>
    tpu.vector_store %arg24[%c0_41, %c0_42], %53 {strides = array<i32>} : memref<128x64xf32, #tpu.memory_space<vmem>>, vector<128x64xf32>,
    %55 = vector.extract_strided_slice %45 {offsets = [0, 64], sizes = [128, 64], strides = [1, 1]} : vector<128x128xf32> to vector<128x64xf32>
    %cst_43 = arith.constant 0.000000e+00 : f32
    %56 = vector.broadcast %cst_43 : f32 to vector<128x64xf32>
    %57 = arith.maximumf %55, %56 : vector<128x64xf32>
    %58 = arith.truncf %57 : vector<128x64xf32> to vector<128x64xbf16>
    %c0_44 = arith.constant 0 : index
    %c0_45 = arith.constant 0 : index
    %59 = vector.load %arg12[%c0_44, %c0_45] : memref<64x256xbf16, #tpu.memory_space<vmem>>, vector<64x256xbf16>
    %cst_46 = arith.constant dense<0.000000e+00> : vector<128x256xf32>
    %60 = tpu.matmul %58, %59, %cst_46 {dimension_numbers = #tpu.dot_dimension_numbers<[1], [0], [0], [1], [0, 0, 1, 1], [], []>} : vector<128x64xbf16>, vector<64x256xbf16>, vector<128x256xf32> -> vector<128x256xf32>
    %c0_47 = arith.constant 0 : index
    %c0_48 = arith.constant 0 : index
    %61 = vector.load %arg13[%c0_47, %c0_48] : memref<1x256xf32, #tpu.memory_space<vmem>>, vector<1x256xf32>
    %62 = vector.broadcast %61 : vector<1x256xf32> to vector<128x256xf32>
    %63 = arith.addf %60, %62 : vector<128x256xf32>
    %c0_49 = arith.constant 0 : index
    %c0_50 = arith.constant 0 : index
    %64 = vector.load %arg26[%c0_49, %c0_50] : memref<128x256xf32, #tpu.memory_space<vmem>>, vector<128x256xf32>
    tpu.vector_store %arg26[%c0_49, %c0_50], %63 {strides = array<i32>} : memref<128x256xf32, #tpu.memory_space<vmem>>, vector<128x256xf32>,
    %65 = tpu.iota {dimensions = array<i32: 1>} : vector<1x128xi32>
    %66 = arith.mulf %3, %3 : vector<256x128xf32>
    %cst_51 = arith.constant dense<0.000000e+00> : vector<256xf32>
    %67 = vector.multi_reduction <add>, %66, %cst_51 [1] : vector<256x128xf32> to vector<256xf32>
    %68 = vector.shape_cast %67 : vector<256xf32> to vector<256x1xf32>
    %c3_i32 = arith.constant 3 : i32
    %69 = vector.broadcast %c3_i32 : i32 to vector<1x128xi32>
    %70 = arith.cmpi eq, %65, %69 : vector<1x128xi32>
    %cst_52 = arith.constant -2.000000e+00 : f32
    %71 = vector.broadcast %cst_52 : f32 to vector<256x128xf32>
    %72 = arith.mulf %71, %3 : vector<256x128xf32>
    %73 = vector.shape_cast %70 : vector<1x128xi1> to vector<1x128xi1>
    %74 = vector.broadcast %73 : vector<1x128xi1> to vector<256x128xi1>
    %75 = vector.shape_cast %68 : vector<256x1xf32> to vector<256x1xf32>
    %76 = vector.broadcast %75 : vector<256x1xf32> to vector<256x128xf32>
    %77 = arith.select %74, %76, %72 : vector<256x128xi1>, vector<256x128xf32>
    %c0_53 = arith.constant 0 : index
    %c0_54 = arith.constant 0 : index
    %78 = vector.load %arg27[%c0_53, %c0_54] : memref<256x128xf32, #tpu.memory_space<vmem>>, vector<256x128xf32>
    tpu.vector_store %arg27[%c0_53, %c0_54], %77 {strides = array<i32>} : memref<256x128xf32, #tpu.memory_space<vmem>>, vector<256x128xf32>,
    %c3_i32_55 = arith.constant 3 : i32
    %79 = vector.broadcast %c3_i32_55 : i32 to vector<1x128xi32>
    %80 = arith.cmpi eq, %65, %79 : vector<1x128xi32>
    %cst_56 = arith.constant 1.000000e+00 : f32
    %81 = vector.shape_cast %80 : vector<1x128xi1> to vector<1x128xi1>
    %82 = vector.broadcast %81 : vector<1x128xi1> to vector<128x128xi1>
    %83 = vector.broadcast %cst_56 : f32 to vector<128x128xf32>
    %84 = arith.select %82, %83, %1 : vector<128x128xi1>, vector<128x128xf32>
    %c0_57 = arith.constant 0 : index
    %c0_58 = arith.constant 0 : index
    %85 = vector.load %arg25[%c0_57, %c0_58] : memref<128x128xf32, #tpu.memory_space<vmem>>, vector<128x128xf32>
    tpu.vector_store %arg25[%c0_57, %c0_58], %84 {strides = array<i32>} : memref<128x128xf32, #tpu.memory_space<vmem>>, vector<128x128xf32>,
    %c3_i32_59 = arith.constant 3 : i32
    %86 = vector.broadcast %c3_i32_59 : i32 to vector<1x128xi32>
    %87 = arith.cmpi ne, %65, %86 : vector<1x128xi32>
    %88 = arith.extui %87 : vector<1x128xi1> to vector<1x128xi32>
    %89 = arith.sitofp %88 : vector<1x128xi32> to vector<1x128xf32>
    %c0_i32 = arith.constant 0 : i32
    %c8_i32 = arith.constant 8 : i32
    %90 = arith.addi %c0_i32, %c8_i32 : i32
    %c1_i32 = arith.constant 1 : i32
    scf.for %arg29 = %c0_i32 to %90 step %c1_i32  : i32 {
      %c1_i32_95 = arith.constant 1 : i32
      %131 = arith.muli %arg29, %c1_i32_95 : i32
      %c0_i32_96 = arith.constant 0 : i32
      %132 = arith.addi %c0_i32_96, %131 : i32
      %c0_97 = arith.constant 0 : index
      %c0_98 = arith.constant 0 : index
      %133 = vector.load %arg25[%c0_97, %c0_98] : memref<128x128xf32, #tpu.memory_space<vmem>>, vector<128x128xf32>
      %c0_99 = arith.constant 0 : index
      %c0_100 = arith.constant 0 : index
      %134 = vector.load %arg24[%c0_99, %c0_100] : memref<128x64xf32, #tpu.memory_space<vmem>>, vector<128x64xf32>
      %c0_101 = arith.constant 0 : index
      %c0_102 = arith.constant 0 : index
      %135 = vector.load %arg23[%c0_101, %c0_102] : memref<128x256xf32, #tpu.memory_space<vmem>>, vector<128x256xf32>
      %c0_103 = arith.constant 0 : index
      %c0_104 = arith.constant 0 : index
      %136 = vector.load %arg27[%c0_103, %c0_104] : memref<256x128xf32, #tpu.memory_space<vmem>>, vector<256x128xf32>
      %cst_105 = arith.constant dense<0.000000e+00> : vector<128x256xf32>
      %137 = tpu.matmul %133, %136, %cst_105 {dimension_numbers = #tpu.dot_dimension_numbers<[1], [1], [0], [0], [0, 0, 1, 0], [], []>} : vector<128x128xf32>, vector<256x128xf32>, vector<128x256xf32> -> vector<128x256xf32>
      %cst_106 = arith.constant dense<0x7F800000> : vector<128xf32>
      %138 = vector.multi_reduction <minimumf>, %137, %cst_106 [1] : vector<128x256xf32> to vector<128xf32>
      %139 = vector.shape_cast %138 : vector<128xf32> to vector<128x1xf32>
      %140 = vector.broadcast %139 : vector<128x1xf32> to vector<128x256xf32>
      %141 = arith.subf %137, %140 : vector<128x256xf32>
      %cst_107 = arith.constant -1.000000e+00 : f32
      %142 = vector.broadcast %cst_107 : f32 to vector<128x256xf32>
      %143 = arith.mulf %141, %142 : vector<128x256xf32>
      %144 = math.exp %143 : vector<128x256xf32>
      %c0_108 = arith.constant 0 : index
      %c0_109 = arith.constant 0 : index
      %145 = vector.load %arg26[%c0_108, %c0_109] : memref<128x256xf32, #tpu.memory_space<vmem>>, vector<128x256xf32>
      %c0_110 = arith.constant 0 : index
      %c0_111 = arith.constant 0 : index
      %146 = vector.load %arg17[%c0_110, %c0_111] : memref<3x256xf32, #tpu.memory_space<vmem>>, vector<3x256xf32>
      %147 = arith.mulf %144, %135 : vector<128x256xf32>
      %cst_112 = arith.constant dense<0.000000e+00> : vector<128xf32>
      %148 = vector.multi_reduction <add>, %147, %cst_112 [1] : vector<128x256xf32> to vector<128xf32>
      %149 = vector.shape_cast %148 : vector<128xf32> to vector<128x1xf32>
      %cst_113 = arith.constant dense<0.000000e+00> : vector<128xf32>
      %150 = vector.multi_reduction <add>, %144, %cst_113 [1] : vector<128x256xf32> to vector<128xf32>
      %151 = vector.shape_cast %150 : vector<128xf32> to vector<128x1xf32>
      %152 = tpu.reciprocal %151 {approx = true} : vector<128x1xf32> -> vector<128x1xf32>
      %153 = arith.mulf %149, %152 : vector<128x1xf32>
      %154 = vector.extract_strided_slice %146 {offsets = [2, 0], sizes = [1, 256], strides = [1, 1]} : vector<3x256xf32> to vector<1x256xf32>
      %155 = vector.broadcast %153 : vector<128x1xf32> to vector<128x256xf32>
      %156 = vector.broadcast %154 : vector<1x256xf32> to vector<128x256xf32>
      %157 = arith.mulf %155, %156 : vector<128x256xf32>
      %158 = arith.addf %145, %157 : vector<128x256xf32>
      %159 = arith.mulf %144, %144 : vector<128x256xf32>
      %160 = arith.mulf %159, %135 : vector<128x256xf32>
      %cst_114 = arith.constant dense<0.000000e+00> : vector<128xf32>
      %161 = vector.multi_reduction <add>, %160, %cst_114 [1] : vector<128x256xf32> to vector<128xf32>
      %162 = vector.shape_cast %161 : vector<128xf32> to vector<128x1xf32>
      %cst_115 = arith.constant dense<0.000000e+00> : vector<128xf32>
      %163 = vector.multi_reduction <add>, %159, %cst_115 [1] : vector<128x256xf32> to vector<128xf32>
      %164 = vector.shape_cast %163 : vector<128xf32> to vector<128x1xf32>
      %165 = tpu.reciprocal %164 {approx = true} : vector<128x1xf32> -> vector<128x1xf32>
      %166 = arith.mulf %162, %165 : vector<128x1xf32>
      %167 = vector.extract_strided_slice %146 {offsets = [1, 0], sizes = [1, 256], strides = [1, 1]} : vector<3x256xf32> to vector<1x256xf32>
      %168 = vector.broadcast %166 : vector<128x1xf32> to vector<128x256xf32>
      %169 = vector.broadcast %167 : vector<1x256xf32> to vector<128x256xf32>
      %170 = arith.mulf %168, %169 : vector<128x256xf32>
      %171 = arith.addf %158, %170 : vector<128x256xf32>
      %172 = arith.mulf %159, %159 : vector<128x256xf32>
      %173 = arith.mulf %172, %135 : vector<128x256xf32>
      %cst_116 = arith.constant dense<0.000000e+00> : vector<128xf32>
      %174 = vector.multi_reduction <add>, %173, %cst_116 [1] : vector<128x256xf32> to vector<128xf32>
      %175 = vector.shape_cast %174 : vector<128xf32> to vector<128x1xf32>
      %cst_117 = arith.constant dense<0.000000e+00> : vector<128xf32>
      %176 = vector.multi_reduction <add>, %172, %cst_117 [1] : vector<128x256xf32> to vector<128xf32>
      %177 = vector.shape_cast %176 : vector<128xf32> to vector<128x1xf32>
      %178 = tpu.reciprocal %177 {approx = true} : vector<128x1xf32> -> vector<128x1xf32>
      %179 = arith.mulf %175, %178 : vector<128x1xf32>
      %180 = vector.extract_strided_slice %146 {offsets = [0, 0], sizes = [1, 256], strides = [1, 1]} : vector<3x256xf32> to vector<1x256xf32>
      %181 = vector.broadcast %179 : vector<128x1xf32> to vector<128x256xf32>
      %182 = vector.broadcast %180 : vector<1x256xf32> to vector<128x256xf32>
      %183 = arith.mulf %181, %182 : vector<128x256xf32>
      %184 = arith.addf %171, %183 : vector<128x256xf32>
      %185 = arith.subf %133, %1 : vector<128x128xf32>
      %186 = arith.truncf %185 : vector<128x128xf32> to vector<128x128xbf16>
      %c0_118 = arith.constant 0 : index
      %c0_119 = arith.constant 0 : index
      %187 = vector.load %arg14[%c0_118, %c0_119] : memref<128x256xbf16, #tpu.memory_space<vmem>>, vector<128x256xbf16>
      %cst_120 = arith.constant dense<0.000000e+00> : vector<128x256xf32>
      %188 = tpu.matmul %186, %187, %cst_120 {dimension_numbers = #tpu.dot_dimension_numbers<[1], [0], [0], [1], [0, 0, 1, 1], [], []>} : vector<128x128xbf16>, vector<128x256xbf16>, vector<128x256xf32> -> vector<128x256xf32>
      %189 = arith.addf %184, %188 : vector<128x256xf32>
      %190 = arith.truncf %134 : vector<128x64xf32> to vector<128x64xbf16>
      %c0_121 = arith.constant 0 : index
      %c0_122 = arith.constant 0 : index
      %191 = vector.load %arg15[%c0_121, %c0_122] : memref<64x256xbf16, #tpu.memory_space<vmem>>, vector<64x256xbf16>
      %cst_123 = arith.constant dense<0.000000e+00> : vector<128x256xf32>
      %192 = tpu.matmul %190, %191, %cst_123 {dimension_numbers = #tpu.dot_dimension_numbers<[1], [0], [0], [1], [0, 0, 1, 1], [], []>} : vector<128x64xbf16>, vector<64x256xbf16>, vector<128x256xf32> -> vector<128x256xf32>
      %193 = arith.addf %189, %192 : vector<128x256xf32>
      %194 = vector.extract_strided_slice %193 {offsets = [0, 0], sizes = [128, 64], strides = [1, 1]} : vector<128x256xf32> to vector<128x64xf32>
      %195 = arith.negf %194 : vector<128x64xf32>
      %196 = math.exp %195 : vector<128x64xf32>
      %cst_124 = arith.constant 1.000000e+00 : f32
      %197 = vector.broadcast %cst_124 : f32 to vector<128x64xf32>
      %198 = arith.addf %197, %196 : vector<128x64xf32>
      %199 = arith.divf %197, %198 : vector<128x64xf32>
      %200 = vector.extract_strided_slice %193 {offsets = [0, 64], sizes = [128, 64], strides = [1, 1]} : vector<128x256xf32> to vector<128x64xf32>
      %201 = arith.negf %200 : vector<128x64xf32>
      %202 = math.exp %201 : vector<128x64xf32>
      %cst_125 = arith.constant 1.000000e+00 : f32
      %203 = vector.broadcast %cst_125 : f32 to vector<128x64xf32>
      %204 = arith.addf %203, %202 : vector<128x64xf32>
      %205 = arith.divf %203, %204 : vector<128x64xf32>
      %206 = vector.extract_strided_slice %193 {offsets = [0, 128], sizes = [128, 64], strides = [1, 1]} : vector<128x256xf32> to vector<128x64xf32>
      %207 = arith.mulf %205, %134 : vector<128x64xf32>
      %208 = arith.truncf %207 : vector<128x64xf32> to vector<128x64xbf16>
      %c0_126 = arith.constant 0 : index
      %c0_127 = arith.constant 0 : index
      %209 = vector.load %arg16[%c0_126, %c0_127] : memref<64x64xbf16, #tpu.memory_space<vmem>>, vector<64x64xbf16>
      %cst_128 = arith.constant dense<0.000000e+00> : vector<128x64xf32>
      %210 = tpu.matmul %208, %209, %cst_128 {dimension_numbers = #tpu.dot_dimension_numbers<[1], [0], [0], [1], [0, 0, 1, 1], [], []>} : vector<128x64xbf16>, vector<64x64xbf16>, vector<128x64xf32> -> vector<128x64xf32>
      %211 = arith.addf %206, %210 : vector<128x64xf32>
      %212 = math.tanh %211 : vector<128x64xf32>
      %cst_129 = arith.constant 1.000000e+00 : f32
      %213 = vector.broadcast %cst_129 : f32 to vector<128x64xf32>
      %214 = arith.subf %213, %199 : vector<128x64xf32>
      %215 = arith.mulf %214, %134 : vector<128x64xf32>
      %216 = arith.mulf %199, %212 : vector<128x64xf32>
      %217 = arith.addf %215, %216 : vector<128x64xf32>
      %218 = arith.truncf %217 : vector<128x64xf32> to vector<128x64xbf16>
      %c0_130 = arith.constant 0 : index
      %c0_131 = arith.constant 0 : index
      %219 = vector.load %arg18[%c0_130, %c0_131] : memref<64x64xbf16, #tpu.memory_space<vmem>>, vector<64x64xbf16>
      %cst_132 = arith.constant dense<0.000000e+00> : vector<128x64xf32>
      %220 = tpu.matmul %218, %219, %cst_132 {dimension_numbers = #tpu.dot_dimension_numbers<[1], [0], [0], [1], [0, 0, 1, 1], [], []>} : vector<128x64xbf16>, vector<64x64xbf16>, vector<128x64xf32> -> vector<128x64xf32>
      %c0_133 = arith.constant 0 : index
      %c0_134 = arith.constant 0 : index
      %221 = vector.load %arg19[%c0_133, %c0_134] : memref<1x64xf32, #tpu.memory_space<vmem>>, vector<1x64xf32>
      %222 = vector.broadcast %221 : vector<1x64xf32> to vector<128x64xf32>
      %223 = arith.addf %220, %222 : vector<128x64xf32>
      %cst_135 = arith.constant 0.000000e+00 : f32
      %224 = vector.broadcast %cst_135 : f32 to vector<128x64xf32>
      %225 = arith.maximumf %223, %224 : vector<128x64xf32>
      %226 = arith.truncf %225 : vector<128x64xf32> to vector<128x64xbf16>
      %c0_136 = arith.constant 0 : index
      %c0_137 = arith.constant 0 : index
      %227 = vector.load %arg20[%c0_136, %c0_137] : memref<64x128xbf16, #tpu.memory_space<vmem>>, vector<64x128xbf16>
      %cst_138 = arith.constant dense<0.000000e+00> : vector<128x128xf32>
      %228 = tpu.matmul %226, %227, %cst_138 {dimension_numbers = #tpu.dot_dimension_numbers<[1], [0], [0], [1], [0, 0, 1, 1], [], []>} : vector<128x64xbf16>, vector<64x128xbf16>, vector<128x128xf32> -> vector<128x128xf32>
      %c0_139 = arith.constant 0 : index
      %c0_140 = arith.constant 0 : index
      %229 = vector.load %arg21[%c0_139, %c0_140] : memref<1x128xf32, #tpu.memory_space<vmem>>, vector<1x128xf32>
      %230 = vector.broadcast %229 : vector<1x128xf32> to vector<128x128xf32>
      %231 = arith.addf %228, %230 : vector<128x128xf32>
      %232 = arith.addf %133, %231 : vector<128x128xf32>
      %c0_141 = arith.constant 0 : index
      %c0_142 = arith.constant 0 : index
      %233 = vector.load %arg24[%c0_141, %c0_142] : memref<128x64xf32, #tpu.memory_space<vmem>>, vector<128x64xf32>
      tpu.vector_store %arg24[%c0_141, %c0_142], %217 {strides = array<i32>} : memref<128x64xf32, #tpu.memory_space<vmem>>, vector<128x64xf32>,
      %c0_143 = arith.constant 0 : index
      %c0_144 = arith.constant 0 : index
      %234 = vector.load %arg25[%c0_143, %c0_144] : memref<128x128xf32, #tpu.memory_space<vmem>>, vector<128x128xf32>
      tpu.vector_store %arg25[%c0_143, %c0_144], %232 {strides = array<i32>} : memref<128x128xf32, #tpu.memory_space<vmem>>, vector<128x128xf32>,
      %235 = arith.subf %232, %1 : vector<128x128xf32>
      %236 = vector.broadcast %89 : vector<1x128xf32> to vector<128x128xf32>
      %237 = arith.mulf %235, %236 : vector<128x128xf32>
      %238 = arith.index_cast %132 : i32 to index
      %c0_145 = arith.constant 0 : index
      %c0_146 = arith.constant 0 : index
      %239 = vector.load %arg28[%238, %c0_145, %c0_146] : memref<8x128x128xf32, #tpu.memory_space<vmem>>, vector<1x128x128xf32>
      %240 = vector.shape_cast %239 : vector<1x128x128xf32> to vector<128x128xf32>
      %241 = vector.shape_cast %237 : vector<128x128xf32> to vector<1x128x128xf32>
      tpu.vector_store %arg28[%238, %c0_145, %c0_146], %241 {strides = array<i32>} : memref<8x128x128xf32, #tpu.memory_space<vmem>>, vector<1x128x128xf32>,
    }
    %c8_i32_60 = arith.constant 8 : i32
    %c0_61 = arith.constant 0 : index
    %c0_62 = arith.constant 0 : index
    %c0_63 = arith.constant 0 : index
    %91 = vector.load %arg28[%c0_61, %c0_62, %c0_63] : memref<8x128x128xf32, #tpu.memory_space<vmem>>, vector<1x128x16xf32>
    %92 = vector.shape_cast %91 : vector<1x128x16xf32> to vector<128x16xf32>
    %c0_64 = arith.constant 0 : index
    %c0_65 = arith.constant 0 : index
    %c0_66 = arith.constant 0 : index
    %93 = vector.load %arg22[%c0_64, %c0_65, %c0_66] : memref<1x128x128xf32, #tpu.memory_space<vmem>>, vector<1x128x16xf32>
    %94 = vector.shape_cast %93 : vector<1x128x16xf32> to vector<128x16xf32>
    %95 = vector.shape_cast %92 : vector<128x16xf32> to vector<1x128x16xf32>
    tpu.vector_store %arg22[%c0_64, %c0_65, %c0_66], %95 {strides = array<i32>} : memref<1x128x128xf32, #tpu.memory_space<vmem>>, vector<1x128x16xf32>,
    %c1 = arith.constant 1 : index
    %c0_67 = arith.constant 0 : index
    %c0_68 = arith.constant 0 : index
    %96 = vector.load %arg28[%c1, %c0_67, %c0_68] : memref<8x128x128xf32, #tpu.memory_space<vmem>>, vector<1x128x16xf32>
    %97 = vector.shape_cast %96 : vector<1x128x16xf32> to vector<128x16xf32>
    %c0_69 = arith.constant 0 : index
    %c0_70 = arith.constant 0 : index
    %c16 = arith.constant 16 : index
    %98 = vector.load %arg22[%c0_69, %c0_70, %c16] : memref<1x128x128xf32, #tpu.memory_space<vmem>>, vector<1x128x16xf32>
    %99 = vector.shape_cast %98 : vector<1x128x16xf32> to vector<128x16xf32>
    %100 = vector.shape_cast %97 : vector<128x16xf32> to vector<1x128x16xf32>
    tpu.vector_store %arg22[%c0_69, %c0_70, %c16], %100 {strides = array<i32>} : memref<1x128x128xf32, #tpu.memory_space<vmem>>, vector<1x128x16xf32>,
    %c2 = arith.constant 2 : index
    %c0_71 = arith.constant 0 : index
    %c0_72 = arith.constant 0 : index
    %101 = vector.load %arg28[%c2, %c0_71, %c0_72] : memref<8x128x128xf32, #tpu.memory_space<vmem>>, vector<1x128x16xf32>
    %102 = vector.shape_cast %101 : vector<1x128x16xf32> to vector<128x16xf32>
    %c0_73 = arith.constant 0 : index
    %c0_74 = arith.constant 0 : index
    %c32 = arith.constant 32 : index
    %103 = vector.load %arg22[%c0_73, %c0_74, %c32] : memref<1x128x128xf32, #tpu.memory_space<vmem>>, vector<1x128x16xf32>
    %104 = vector.shape_cast %103 : vector<1x128x16xf32> to vector<128x16xf32>
    %105 = vector.shape_cast %102 : vector<128x16xf32> to vector<1x128x16xf32>
    tpu.vector_store %arg22[%c0_73, %c0_74, %c32], %105 {strides = array<i32>} : memref<1x128x128xf32, #tpu.memory_space<vmem>>, vector<1x128x16xf32>,
    %c3 = arith.constant 3 : index
    %c0_75 = arith.constant 0 : index
    %c0_76 = arith.constant 0 : index
    %106 = vector.load %arg28[%c3, %c0_75, %c0_76] : memref<8x128x128xf32, #tpu.memory_space<vmem>>, vector<1x128x16xf32>
    %107 = vector.shape_cast %106 : vector<1x128x16xf32> to vector<128x16xf32>
    %c0_77 = arith.constant 0 : index
    %c0_78 = arith.constant 0 : index
    %c48 = arith.constant 48 : index
    %108 = vector.load %arg22[%c0_77, %c0_78, %c48] : memref<1x128x128xf32, #tpu.memory_space<vmem>>, vector<1x128x16xf32>
    %109 = vector.shape_cast %108 : vector<1x128x16xf32> to vector<128x16xf32>
    %110 = vector.shape_cast %107 : vector<128x16xf32> to vector<1x128x16xf32>
    tpu.vector_store %arg22[%c0_77, %c0_78, %c48], %110 {strides = array<i32>} : memref<1x128x128xf32, #tpu.memory_space<vmem>>, vector<1x128x16xf32>,
    %c4 = arith.constant 4 : index
    %c0_79 = arith.constant 0 : index
    %c0_80 = arith.constant 0 : index
    %111 = vector.load %arg28[%c4, %c0_79, %c0_80] : memref<8x128x128xf32, #tpu.memory_space<vmem>>, vector<1x128x16xf32>
    %112 = vector.shape_cast %111 : vector<1x128x16xf32> to vector<128x16xf32>
    %c0_81 = arith.constant 0 : index
    %c0_82 = arith.constant 0 : index
    %c64 = arith.constant 64 : index
    %113 = vector.load %arg22[%c0_81, %c0_82, %c64] : memref<1x128x128xf32, #tpu.memory_space<vmem>>, vector<1x128x16xf32>
    %114 = vector.shape_cast %113 : vector<1x128x16xf32> to vector<128x16xf32>
    %115 = vector.shape_cast %112 : vector<128x16xf32> to vector<1x128x16xf32>
    tpu.vector_store %arg22[%c0_81, %c0_82, %c64], %115 {strides = array<i32>} : memref<1x128x128xf32, #tpu.memory_space<vmem>>, vector<1x128x16xf32>,
    %c5 = arith.constant 5 : index
    %c0_83 = arith.constant 0 : index
    %c0_84 = arith.constant 0 : index
    %116 = vector.load %arg28[%c5, %c0_83, %c0_84] : memref<8x128x128xf32, #tpu.memory_space<vmem>>, vector<1x128x16xf32>
    %117 = vector.shape_cast %116 : vector<1x128x16xf32> to vector<128x16xf32>
    %c0_85 = arith.constant 0 : index
    %c0_86 = arith.constant 0 : index
    %c80 = arith.constant 80 : index
    %118 = vector.load %arg22[%c0_85, %c0_86, %c80] : memref<1x128x128xf32, #tpu.memory_space<vmem>>, vector<1x128x16xf32>
    %119 = vector.shape_cast %118 : vector<1x128x16xf32> to vector<128x16xf32>
    %120 = vector.shape_cast %117 : vector<128x16xf32> to vector<1x128x16xf32>
    tpu.vector_store %arg22[%c0_85, %c0_86, %c80], %120 {strides = array<i32>} : memref<1x128x128xf32, #tpu.memory_space<vmem>>, vector<1x128x16xf32>,
    %c6 = arith.constant 6 : index
    %c0_87 = arith.constant 0 : index
    %c0_88 = arith.constant 0 : index
    %121 = vector.load %arg28[%c6, %c0_87, %c0_88] : memref<8x128x128xf32, #tpu.memory_space<vmem>>, vector<1x128x16xf32>
    %122 = vector.shape_cast %121 : vector<1x128x16xf32> to vector<128x16xf32>
    %c0_89 = arith.constant 0 : index
    %c0_90 = arith.constant 0 : index
    %c96 = arith.constant 96 : index
    %123 = vector.load %arg22[%c0_89, %c0_90, %c96] : memref<1x128x128xf32, #tpu.memory_space<vmem>>, vector<1x128x16xf32>
    %124 = vector.shape_cast %123 : vector<1x128x16xf32> to vector<128x16xf32>
    %125 = vector.shape_cast %122 : vector<128x16xf32> to vector<1x128x16xf32>
    tpu.vector_store %arg22[%c0_89, %c0_90, %c96], %125 {strides = array<i32>} : memref<1x128x128xf32, #tpu.memory_space<vmem>>, vector<1x128x16xf32>,
    %c7 = arith.constant 7 : index
    %c0_91 = arith.constant 0 : index
    %c0_92 = arith.constant 0 : index
    %126 = vector.load %arg28[%c7, %c0_91, %c0_92] : memref<8x128x128xf32, #tpu.memory_space<vmem>>, vector<1x128x16xf32>
    %127 = vector.shape_cast %126 : vector<1x128x16xf32> to vector<128x16xf32>
    %c0_93 = arith.constant 0 : index
    %c0_94 = arith.constant 0 : index
    %c112 = arith.constant 112 : index
    %128 = vector.load %arg22[%c0_93, %c0_94, %c112] : memref<1x128x128xf32, #tpu.memory_space<vmem>>, vector<1x128x16xf32>
    %129 = vector.shape_cast %128 : vector<1x128x16xf32> to vector<128x16xf32>
    %130 = vector.shape_cast %127 : vector<128x16xf32> to vector<1x128x16xf32>
    tpu.vector_store %arg22[%c0_93, %c0_94, %c112], %130 {strides = array<i32>} : memref<1x128x128xf32, #tpu.memory_space<vmem>>, vector<1x128x16xf32>,
    return
  }
  func.func @transform_0(%arg0: i32, %arg1: i32) -> (i32, i32, i32) {
    %c0_i32 = arith.constant 0 : i32
    %c0_i32_0 = arith.constant 0 : i32
    return %arg0, %arg1, %c0_i32 : i32, i32, i32
  }
  func.func @transform_1(%arg0: i32, %arg1: i32) -> (i32, i32, i32) {
    %c0_i32 = arith.constant 0 : i32
    %c0_i32_0 = arith.constant 0 : i32
    %c0_i32_1 = arith.constant 0 : i32
    return %arg0, %c0_i32, %c0_i32_0 : i32, i32, i32
  }
  func.func @transform_2(%arg0: i32, %arg1: i32) -> (i32, i32) {
    %c0_i32 = arith.constant 0 : i32
    %c0_i32_0 = arith.constant 0 : i32
    %c0_i32_1 = arith.constant 0 : i32
    return %c0_i32, %c0_i32_0 : i32, i32
  }
  func.func @transform_3(%arg0: i32, %arg1: i32) -> (i32, i32) {
    %c0_i32 = arith.constant 0 : i32
    %c0_i32_0 = arith.constant 0 : i32
    %c0_i32_1 = arith.constant 0 : i32
    return %c0_i32, %c0_i32_0 : i32, i32
  }
  func.func @transform_4(%arg0: i32, %arg1: i32) -> (i32, i32) {
    %c0_i32 = arith.constant 0 : i32
    %c0_i32_0 = arith.constant 0 : i32
    %c0_i32_1 = arith.constant 0 : i32
    return %c0_i32, %c0_i32_0 : i32, i32
  }
  func.func @transform_5(%arg0: i32, %arg1: i32) -> (i32, i32) {
    %c0_i32 = arith.constant 0 : i32
    %c0_i32_0 = arith.constant 0 : i32
    %c0_i32_1 = arith.constant 0 : i32
    return %c0_i32, %c0_i32_0 : i32, i32
  }
  func.func @transform_6(%arg0: i32, %arg1: i32) -> (i32, i32) {
    %c0_i32 = arith.constant 0 : i32
    %c0_i32_0 = arith.constant 0 : i32
    %c0_i32_1 = arith.constant 0 : i32
    return %c0_i32, %c0_i32_0 : i32, i32
  }
  func.func @transform_7(%arg0: i32, %arg1: i32) -> (i32, i32) {
    %c0_i32 = arith.constant 0 : i32
    %c0_i32_0 = arith.constant 0 : i32
    %c0_i32_1 = arith.constant 0 : i32
    return %c0_i32, %c0_i32_0 : i32, i32
  }
  func.func @transform_8(%arg0: i32, %arg1: i32) -> (i32, i32) {
    %c0_i32 = arith.constant 0 : i32
    %c0_i32_0 = arith.constant 0 : i32
    %c0_i32_1 = arith.constant 0 : i32
    return %c0_i32, %c0_i32_0 : i32, i32
  }
  func.func @transform_9(%arg0: i32, %arg1: i32) -> (i32, i32) {
    %c0_i32 = arith.constant 0 : i32
    %c0_i32_0 = arith.constant 0 : i32
    %c0_i32_1 = arith.constant 0 : i32
    return %c0_i32, %c0_i32_0 : i32, i32
  }
  func.func @transform_10(%arg0: i32, %arg1: i32) -> (i32, i32) {
    %c0_i32 = arith.constant 0 : i32
    %c0_i32_0 = arith.constant 0 : i32
    %c0_i32_1 = arith.constant 0 : i32
    return %c0_i32, %c0_i32_0 : i32, i32
  }
  func.func @transform_11(%arg0: i32, %arg1: i32) -> (i32, i32) {
    %c0_i32 = arith.constant 0 : i32
    %c0_i32_0 = arith.constant 0 : i32
    %c0_i32_1 = arith.constant 0 : i32
    return %c0_i32, %c0_i32_0 : i32, i32
  }
  func.func @transform_12(%arg0: i32, %arg1: i32) -> (i32, i32) {
    %c0_i32 = arith.constant 0 : i32
    %c0_i32_0 = arith.constant 0 : i32
    %c0_i32_1 = arith.constant 0 : i32
    return %c0_i32, %c0_i32_0 : i32, i32
  }
  func.func @transform_13(%arg0: i32, %arg1: i32) -> (i32, i32) {
    %c0_i32 = arith.constant 0 : i32
    %c0_i32_0 = arith.constant 0 : i32
    %c0_i32_1 = arith.constant 0 : i32
    return %c0_i32, %c0_i32_0 : i32, i32
  }
  func.func @transform_14(%arg0: i32, %arg1: i32) -> (i32, i32) {
    %c0_i32 = arith.constant 0 : i32
    %c0_i32_0 = arith.constant 0 : i32
    %c0_i32_1 = arith.constant 0 : i32
    return %c0_i32, %c0_i32_0 : i32, i32
  }
  func.func @transform_15(%arg0: i32, %arg1: i32) -> (i32, i32) {
    %c0_i32 = arith.constant 0 : i32
    %c0_i32_0 = arith.constant 0 : i32
    %c0_i32_1 = arith.constant 0 : i32
    return %c0_i32, %c0_i32_0 : i32, i32
  }
  func.func @transform_16(%arg0: i32, %arg1: i32) -> (i32, i32) {
    %c0_i32 = arith.constant 0 : i32
    %c0_i32_0 = arith.constant 0 : i32
    %c0_i32_1 = arith.constant 0 : i32
    return %c0_i32, %c0_i32_0 : i32, i32
  }
  func.func @transform_17(%arg0: i32, %arg1: i32) -> (i32, i32) {
    %c0_i32 = arith.constant 0 : i32
    %c0_i32_0 = arith.constant 0 : i32
    %c0_i32_1 = arith.constant 0 : i32
    return %c0_i32, %c0_i32_0 : i32, i32
  }
  func.func @transform_18(%arg0: i32, %arg1: i32) -> (i32, i32) {
    %c0_i32 = arith.constant 0 : i32
    %c0_i32_0 = arith.constant 0 : i32
    %c0_i32_1 = arith.constant 0 : i32
    return %c0_i32, %c0_i32_0 : i32, i32
  }
  func.func @transform_19(%arg0: i32, %arg1: i32) -> (i32, i32) {
    %c0_i32 = arith.constant 0 : i32
    %c0_i32_0 = arith.constant 0 : i32
    %c0_i32_1 = arith.constant 0 : i32
    return %c0_i32, %c0_i32_0 : i32, i32
  }
  func.func @transform_20(%arg0: i32, %arg1: i32) -> (i32, i32, i32) {
    %c0_i32 = arith.constant 0 : i32
    %c0_i32_0 = arith.constant 0 : i32
    return %arg0, %arg1, %c0_i32 : i32, i32, i32
  }
}

</mosaic_0001>

<llo_original>
// kernel: rsf1_forward.1
$region0: #{rsf1_forward.1}
  #allocation0 [shape = 'u32[]', space=smem, size = 0x4, offset = 0x4, fixed_abs, tag = 'smem constant byte address 0x4 - core index']
  #allocation1 [shape = 'u32[144,128]{1,0:T(1,128)}', space=vmem, size = 0x12000, scoped, tag = 'internal scratch']
  #allocation2 [shape = 'f32[128,256]{1,0:T(8,128)}', space=vmem, size = 0x20000, scoped, tag = 'scratch operand']
  #allocation3 [shape = 'f32[128,64]{1,0:T(8,128)}', space=vmem, size = 0x10000, scoped, tag = 'scratch operand']
  #allocation4 [shape = 'f32[128,128]{1,0:T(8,128)}', space=vmem, size = 0x10000, scoped, tag = 'scratch operand']
  #allocation5 [shape = 'f32[128,256]{1,0:T(8,128)}', space=vmem, size = 0x20000, scoped, tag = 'scratch operand']
  #allocation6 [shape = 'f32[256,128]{1,0:T(8,128)}', space=vmem, size = 0x20000, scoped, tag = 'scratch operand']
  #allocation7 [shape = 'f32[8,128,128]{2,1,0:T(8,128)}', space=vmem, size = 0x80000, scoped, tag = 'scratch operand']
  %s0 = inlined_call_operand.vmem [shape: f32[2,256,128], index: 0, kind: input, shape index: {}]
  %s1 = inlined_call_operand.vmem [shape: f32[2,256,128], index: 1, kind: input, shape index: {}]
  %s2 = inlined_call_operand.vmem [shape: bf16[128,64], index: 2, kind: input, shape index: {}]
  %s3 = inlined_call_operand.vmem [shape: f32[1,64], index: 3, kind: input, shape index: {}]
  %s4 = inlined_call_operand.vmem [shape: bf16[64,128], index: 4, kind: input, shape index: {}]
  %s5 = inlined_call_operand.vmem [shape: f32[1,128], index: 5, kind: input, shape index: {}]
  %s6 = inlined_call_operand.vmem [shape: bf16[128,64], index: 6, kind: input, shape index: {}]
  %s7 = inlined_call_operand.vmem [shape: f32[1,64], index: 7, kind: input, shape index: {}]
  %s8 = inlined_call_operand.vmem [shape: bf16[64,128], index: 8, kind: input, shape index: {}]
  %s9 = inlined_call_operand.vmem [shape: f32[1,128], index: 9, kind: input, shape index: {}]
  %s10 = inlined_call_operand.vmem [shape: bf16[64,256], index: 10, kind: input, shape index: {}]
  %s11 = inlined_call_operand.vmem [shape: f32[1,256], index: 11, kind: input, shape index: {}]
  %s12 = inlined_call_operand.vmem [shape: bf16[128,256], index: 12, kind: input, shape index: {}]
  %s13 = inlined_call_operand.vmem [shape: bf16[64,256], index: 13, kind: input, shape index: {}]
  %s14 = inlined_call_operand.vmem [shape: bf16[64,64], index: 14, kind: input, shape index: {}]
  %s15 = inlined_call_operand.vmem [shape: f32[3,256], index: 15, kind: input, shape index: {}]
  %s16 = inlined_call_operand.vmem [shape: bf16[64,64], index: 16, kind: input, shape index: {}]
  %s17 = inlined_call_operand.vmem [shape: f32[1,64], index: 17, kind: input, shape index: {}]
  %s18 = inlined_call_operand.vmem [shape: bf16[64,128], index: 18, kind: input, shape index: {}]
  %s19 = inlined_call_operand.vmem [shape: f32[1,128], index: 19, kind: input, shape index: {}]
  %s20 = inlined_call_operand.vmem [shape: f32[2,256,128], index: 20, kind: output, shape index: {}]
  %s21 = sld [smem:[#allocation0]]
  $region120: #{rsf1_forward.1} parent=0
    _
  %s23 = ssub.s32 1, %s21
  %s24 = scalar_select 0, %s23, %s21
  loop: start=0, step=1, limit=6
  $region2: #{rsf1_forward.1} parent=0 // loop_pre_header
    _
  $region3: #{rsf1_forward.1} parent=0 // loop_header
    %s26 = sphi 0, %s30
    %p27 = scmp.ge.s32.totalorder %s26, 6
    %s33 = sphi 0, %s45
    %s34 = sphi 0, %s41
    %s35 = sphi 0, %s33
    %s36 = sphi 0, %s34
    %s37 = sphi 0, %s35
    %s38 = sphi 0, %s36
    %s50 = sphi 0, %s52
    %s53 = sphi 0, %s50
    %s54 = sphi 0, %s53
    %s70 = sphi 0, %s54
    %s76 = sphi 0, %s78
    %s79 = sphi 0, %s76
    %s80 = sphi 0, %s79
    %s96 = sphi 0, %s80
    %s100 = sphi 0, %s100
    %s102 = sphi 0, %s100
    %s103 = sphi 0, %s102
    %s117 = sphi 0, %s103
    %s121 = sphi 0, %s121
    %s123 = sphi 0, %s121
    %s124 = sphi 0, %s123
    %s138 = sphi 0, %s124
    %s142 = sphi 0, %s142
    %s144 = sphi 0, %s142
    %s145 = sphi 0, %s144
    %s159 = sphi 0, %s145
    %s163 = sphi 0, %s163
    %s165 = sphi 0, %s163
    %s166 = sphi 0, %s165
    %s180 = sphi 0, %s166
    %s184 = sphi 0, %s184
    %s186 = sphi 0, %s184
    %s187 = sphi 0, %s186
    %s201 = sphi 0, %s187
    %s205 = sphi 0, %s205
    %s207 = sphi 0, %s205
    %s208 = sphi 0, %s207
    %s222 = sphi 0, %s208
    %s226 = sphi 0, %s226
    %s228 = sphi 0, %s226
    %s229 = sphi 0, %s228
    %s243 = sphi 0, %s229
    %s247 = sphi 0, %s247
    %s249 = sphi 0, %s247
    %s250 = sphi 0, %s249
    %s264 = sphi 0, %s250
    %s268 = sphi 0, %s268
    %s270 = sphi 0, %s268
    %s271 = sphi 0, %s270
    %s285 = sphi 0, %s271
    %s289 = sphi 0, %s289
    %s291 = sphi 0, %s289
    %s292 = sphi 0, %s291
    %s306 = sphi 0, %s292
    %s310 = sphi 0, %s310
    %s312 = sphi 0, %s310
    %s313 = sphi 0, %s312
    %s327 = sphi 0, %s313
    %s331 = sphi 0, %s331
    %s333 = sphi 0, %s331
    %s334 = sphi 0, %s333
    %s348 = sphi 0, %s334
    %s352 = sphi 0, %s352
    %s354 = sphi 0, %s352
    %s355 = sphi 0, %s354
    %s369 = sphi 0, %s355
    %s373 = sphi 0, %s373
    %s375 = sphi 0, %s373
    %s376 = sphi 0, %s375
    %s390 = sphi 0, %s376
    %s394 = sphi 0, %s394
    %s396 = sphi 0, %s394
    %s397 = sphi 0, %s396
    %s411 = sphi 0, %s397
    %s415 = sphi 0, %s415
    %s417 = sphi 0, %s415
    %s418 = sphi 0, %s417
    %s432 = sphi 0, %s418
    %s436 = sphi 0, %s436
    %s438 = sphi 0, %s436
    %s439 = sphi 0, %s438
    %s453 = sphi 0, %s439
    %s457 = sphi 0, %s457
    %s459 = sphi 0, %s457
    %s460 = sphi 0, %s459
    %s474 = sphi 0, %s460
    %s482 = sphi 0, %s484
    %s485 = sphi 0, %s482
    %s486 = sphi 0, %s485
    %s502 = sphi 0, %s486
  $region4: #{rsf1_forward.1} parent=0 // loop_header_branch
    %29 = sbr.rel (%p27) target = $region8
  $region5: #{rsf1_forward.1} parent=0 // loop_body
    %s31 = ssub.s32 %s26, 1
    %s32 = ssub.s32 %s26, 2
    %s39 = sadd.s32 1, %s34
    %p40 = scmp.ge.s32.totalorder %s39, 2
    %s41 = scalar_select %p40, 0, %s39
    %s42 = sadd.s32 1, %s33
    %s43 = scalar_select %p40, %s42, %s33
    %p44 = scmp.ge.s32.totalorder %s43, 2
    %s45 = scalar_select %p44, 0, %s43
    %s46 = ssub.s32 %s33, %s45
    %s47 = ssub.s32 %s34, %s41
    %s48 = sor.u32 %s46, %s47
    %p49 = scmp.eq.s32.totalorder %s48, 0
    %s51 = sadd.s32 %s50, 1
    %s52 = scalar_select %p49, %s50, %s51
    %p55 = pneg %p49
    %p56 = scmp.eq.s32.totalorder %s26, 3
    %p57 = por %p55, %p56
    %p58 = scmp.ne.s32.totalorder %s50, %s53
    %p59 = scmp.eq.s32.totalorder %s26, 0
    %p60 = por %p58, %p59
    %p61 = scmp.ne.s32.totalorder %s50, %s53
    %p62 = scmp.eq.s32.totalorder %s31, 3
    %p63 = por %p61, %p62
    %p64 = scmp.ne.s32.totalorder %s53, %s54
    %p65 = scmp.eq.s32.totalorder %s31, 0
    %p66 = por %p64, %p65
    %p67 = scmp.ne.s32.totalorder %s53, %s54
    %p68 = scmp.eq.s32.totalorder %s32, 3
    %p69 = por %p67, %p68
    %p71 = scmp.ne.s32.totalorder %s54, %s70
    %p72 = scmp.eq.s32.totalorder %s32, 0
    %p73 = por %p71, %p72
    %s74 = ssub.s32 %s33, %s45
    %p75 = scmp.eq.s32.totalorder %s74, 0
    %s77 = sadd.s32 %s76, 1
    %s78 = scalar_select %p75, %s76, %s77
    %p81 = pneg %p75
    %p82 = scmp.eq.s32.totalorder %s26, 3
    %p83 = por %p81, %p82
    %p84 = scmp.ne.s32.totalorder %s76, %s79
    %p85 = scmp.eq.s32.totalorder %s26, 0
    %p86 = por %p84, %p85
    %p87 = scmp.ne.s32.totalorder %s76, %s79
    %p88 = scmp.eq.s32.totalorder %s31, 3
    %p89 = por %p87, %p88
    %p90 = scmp.ne.s32.totalorder %s79, %s80
    %p91 = scmp.eq.s32.totalorder %s31, 0
    %p92 = por %p90, %p91
    %p93 = scmp.ne.s32.totalorder %s79, %s80
    %p94 = scmp.eq.s32.totalorder %s32, 3
    %p95 = por %p93, %p94
    %p97 = scmp.ne.s32.totalorder %s80, %s96
    %p98 = scmp.eq.s32.totalorder %s32, 0
    %p99 = por %p97, %p98
    %s101 = sadd.s32 %s100, 1
    %p104 = scmp.eq.s32.totalorder %s26, 3
    %p105 = scmp.ne.s32.totalorder %s100, %s102
    %p106 = scmp.eq.s32.totalorder %s26, 0
    %p107 = por %p105, %p106
    %p108 = scmp.ne.s32.totalorder %s100, %s102
    %p109 = scmp.eq.s32.totalorder %s31, 3
    %p110 = por %p108, %p109
    %p111 = scmp.ne.s32.totalorder %s102, %s103
    %p112 = scmp.eq.s32.totalorder %s31, 0
    %p113 = por %p111, %p112
    %p114 = scmp.ne.s32.totalorder %s102, %s103
    %p115 = scmp.eq.s32.totalorder %s32, 3
    %p116 = por %p114, %p115
    %p118 = scmp.ne.s32.totalorder %s103, %s117
    %p119 = scmp.eq.s32.totalorder %s32, 0
    %p120 = por %p118, %p119
    %s122 = sadd.s32 %s121, 1
    %p125 = scmp.eq.s32.totalorder %s26, 3
    %p126 = scmp.ne.s32.totalorder %s121, %s123
    %p127 = scmp.eq.s32.totalorder %s26, 0
    %p128 = por %p126, %p127
    %p129 = scmp.ne.s32.totalorder %s121, %s123
    %p130 = scmp.eq.s32.totalorder %s31, 3
    %p131 = por %p129, %p130
    %p132 = scmp.ne.s32.totalorder %s123, %s124
    %p133 = scmp.eq.s32.totalorder %s31, 0
    %p134 = por %p132, %p133
    %p135 = scmp.ne.s32.totalorder %s123, %s124
    %p136 = scmp.eq.s32.totalorder %s32, 3
    %p137 = por %p135, %p136
    %p139 = scmp.ne.s32.totalorder %s124, %s138
    %p140 = scmp.eq.s32.totalorder %s32, 0
    %p141 = por %p139, %p140
    %s143 = sadd.s32 %s142, 1
    %p146 = scmp.eq.s32.totalorder %s26, 3
    %p147 = scmp.ne.s32.totalorder %s142, %s144
    %p148 = scmp.eq.s32.totalorder %s26, 0
    %p149 = por %p147, %p148
    %p150 = scmp.ne.s32.totalorder %s142, %s144
    %p151 = scmp.eq.s32.totalorder %s31, 3
    %p152 = por %p150, %p151
    %p153 = scmp.ne.s32.totalorder %s144, %s145
    %p154 = scmp.eq.s32.totalorder %s31, 0
    %p155 = por %p153, %p154
    %p156 = scmp.ne.s32.totalorder %s144, %s145
    %p157 = scmp.eq.s32.totalorder %s32, 3
    %p158 = por %p156, %p157
    %p160 = scmp.ne.s32.totalorder %s145, %s159
    %p161 = scmp.eq.s32.totalorder %s32, 0
    %p162 = por %p160, %p161
    %s164 = sadd.s32 %s163, 1
    %p167 = scmp.eq.s32.totalorder %s26, 3
    %p168 = scmp.ne.s32.totalorder %s163, %s165
    %p169 = scmp.eq.s32.totalorder %s26, 0
    %p170 = por %p168, %p169
    %p171 = scmp.ne.s32.totalorder %s163, %s165
    %p172 = scmp.eq.s32.totalorder %s31, 3
    %p173 = por %p171, %p172
    %p174 = scmp.ne.s32.totalorder %s165, %s166
    %p175 = scmp.eq.s32.totalorder %s31, 0
    %p176 = por %p174, %p175
    %p177 = scmp.ne.s32.totalorder %s165, %s166
    %p178 = scmp.eq.s32.totalorder %s32, 3
    %p179 = por %p177, %p178
    %p181 = scmp.ne.s32.totalorder %s166, %s180
    %p182 = scmp.eq.s32.totalorder %s32, 0
    %p183 = por %p181, %p182
    %s185 = sadd.s32 %s184, 1
    %p188 = scmp.eq.s32.totalorder %s26, 3
    %p189 = scmp.ne.s32.totalorder %s184, %s186
    %p190 = scmp.eq.s32.totalorder %s26, 0
    %p191 = por %p189, %p190
    %p192 = scmp.ne.s32.totalorder %s184, %s186
    %p193 = scmp.eq.s32.totalorder %s31, 3
    %p194 = por %p192, %p193
    %p195 = scmp.ne.s32.totalorder %s186, %s187
    %p196 = scmp.eq.s32.totalorder %s31, 0
    %p197 = por %p195, %p196
    %p198 = scmp.ne.s32.totalorder %s186, %s187
    %p199 = scmp.eq.s32.totalorder %s32, 3
    %p200 = por %p198, %p199
    %p202 = scmp.ne.s32.totalorder %s187, %s201
    %p203 = scmp.eq.s32.totalorder %s32, 0
    %p204 = por %p202, %p203
    %s206 = sadd.s32 %s205, 1
    %p209 = scmp.eq.s32.totalorder %s26, 3
    %p210 = scmp.ne.s32.totalorder %s205, %s207
    %p211 = scmp.eq.s32.totalorder %s26, 0
    %p212 = por %p210, %p211
    %p213 = scmp.ne.s32.totalorder %s205, %s207
    %p214 = scmp.eq.s32.totalorder %s31, 3
    %p215 = por %p213, %p214
    %p216 = scmp.ne.s32.totalorder %s207, %s208
    %p217 = scmp.eq.s32.totalorder %s31, 0
    %p218 = por %p216, %p217
    %p219 = scmp.ne.s32.totalorder %s207, %s208
    %p220 = scmp.eq.s32.totalorder %s32, 3
    %p221 = por %p219, %p220
    %p223 = scmp.ne.s32.totalorder %s208, %s222
    %p224 = scmp.eq.s32.totalorder %s32, 0
    %p225 = por %p223, %p224
    %s227 = sadd.s32 %s226, 1
    %p230 = scmp.eq.s32.totalorder %s26, 3
    %p231 = scmp.ne.s32.totalorder %s226, %s228
    %p232 = scmp.eq.s32.totalorder %s26, 0
    %p233 = por %p231, %p232
    %p234 = scmp.ne.s32.totalorder %s226, %s228
    %p235 = scmp.eq.s32.totalorder %s31, 3
    %p236 = por %p234, %p235
    %p237 = scmp.ne.s32.totalorder %s228, %s229
    %p238 = scmp.eq.s32.totalorder %s31, 0
    %p239 = por %p237, %p238
    %p240 = scmp.ne.s32.totalorder %s228, %s229
    %p241 = scmp.eq.s32.totalorder %s32, 3
    %p242 = por %p240, %p241
    %p244 = scmp.ne.s32.totalorder %s229, %s243
    %p245 = scmp.eq.s32.totalorder %s32, 0
    %p246 = por %p244, %p245
    %s248 = sadd.s32 %s247, 1
    %p251 = scmp.eq.s32.totalorder %s26, 3
    %p252 = scmp.ne.s32.totalorder %s247, %s249
    %p253 = scmp.eq.s32.totalorder %s26, 0
    %p254 = por %p252, %p253
    %p255 = scmp.ne.s32.totalorder %s247, %s249
    %p256 = scmp.eq.s32.totalorder %s31, 3
    %p257 = por %p255, %p256
    %p258 = scmp.ne.s32.totalorder %s249, %s250
    %p259 = scmp.eq.s32.totalorder %s31, 0
    %p260 = por %p258, %p259
    %p261 = scmp.ne.s32.totalorder %s249, %s250
    %p262 = scmp.eq.s32.totalorder %s32, 3
    %p263 = por %p261, %p262
    %p265 = scmp.ne.s32.totalorder %s250, %s264
    %p266 = scmp.eq.s32.totalorder %s32, 0
    %p267 = por %p265, %p266
    %s269 = sadd.s32 %s268, 1
    %p272 = scmp.eq.s32.totalorder %s26, 3
    %p273 = scmp.ne.s32.totalorder %s268, %s270
    %p274 = scmp.eq.s32.totalorder %s26, 0
    %p275 = por %p273, %p274
    %p276 = scmp.ne.s32.totalorder %s268, %s270
    %p277 = scmp.eq.s32.totalorder %s31, 3
    %p278 = por %p276, %p277
    %p279 = scmp.ne.s32.totalorder %s270, %s271
    %p280 = scmp.eq.s32.totalorder %s31, 0
    %p281 = por %p279, %p280
    %p282 = scmp.ne.s32.totalorder %s270, %s271
    %p283 = scmp.eq.s32.totalorder %s32, 3
    %p284 = por %p282, %p283
    %p286 = scmp.ne.s32.totalorder %s271, %s285
    %p287 = scmp.eq.s32.totalorder %s32, 0
    %p288 = por %p286, %p287
    %s290 = sadd.s32 %s289, 1
    %p293 = scmp.eq.s32.totalorder %s26, 3
    %p294 = scmp.ne.s32.totalorder %s289, %s291
    %p295 = scmp.eq.s32.totalorder %s26, 0
    %p296 = por %p294, %p295
    %p297 = scmp.ne.s32.totalorder %s289, %s291
    %p298 = scmp.eq.s32.totalorder %s31, 3
    %p299 = por %p297, %p298
    %p300 = scmp.ne.s32.totalorder %s291, %s292
    %p301 = scmp.eq.s32.totalorder %s31, 0
    %p302 = por %p300, %p301
    %p303 = scmp.ne.s32.totalorder %s291, %s292
    %p304 = scmp.eq.s32.totalorder %s32, 3
    %p305 = por %p303, %p304
    %p307 = scmp.ne.s32.totalorder %s292, %s306
    %p308 = scmp.eq.s32.totalorder %s32, 0
    %p309 = por %p307, %p308
    %s311 = sadd.s32 %s310, 1
    %p314 = scmp.eq.s32.totalorder %s26, 3
    %p315 = scmp.ne.s32.totalorder %s310, %s312
    %p316 = scmp.eq.s32.totalorder %s26, 0
    %p317 = por %p315, %p316
    %p318 = scmp.ne.s32.totalorder %s310, %s312
    %p319 = scmp.eq.s32.totalorder %s31, 3
    %p320 = por %p318, %p319
    %p321 = scmp.ne.s32.totalorder %s312, %s313
    %p322 = scmp.eq.s32.totalorder %s31, 0
    %p323 = por %p321, %p322
    %p324 = scmp.ne.s32.totalorder %s312, %s313
    %p325 = scmp.eq.s32.totalorder %s32, 3
    %p326 = por %p324, %p325
    %p328 = scmp.ne.s32.totalorder %s313, %s327
    %p329 = scmp.eq.s32.totalorder %s32, 0
    %p330 = por %p328, %p329
    %s332 = sadd.s32 %s331, 1
    %p335 = scmp.eq.s32.totalorder %s26, 3
    %p336 = scmp.ne.s32.totalorder %s331, %s333
    %p337 = scmp.eq.s32.totalorder %s26, 0
    %p338 = por %p336, %p337
    %p339 = scmp.ne.s32.totalorder %s331, %s333
    %p340 = scmp.eq.s32.totalorder %s31, 3
    %p341 = por %p339, %p340
    %p342 = scmp.ne.s32.totalorder %s333, %s334
    %p343 = scmp.eq.s32.totalorder %s31, 0
    %p344 = por %p342, %p343
    %p345 = scmp.ne.s32.totalorder %s333, %s334
    %p346 = scmp.eq.s32.totalorder %s32, 3
    %p347 = por %p345, %p346
    %p349 = scmp.ne.s32.totalorder %s334, %s348
    %p350 = scmp.eq.s32.totalorder %s32, 0
    %p351 = por %p349, %p350
    %s353 = sadd.s32 %s352, 1
    %p356 = scmp.eq.s32.totalorder %s26, 3
    %p357 = scmp.ne.s32.totalorder %s352, %s354
    %p358 = scmp.eq.s32.totalorder %s26, 0
    %p359 = por %p357, %p358
    %p360 = scmp.ne.s32.totalorder %s352, %s354
    %p361 = scmp.eq.s32.totalorder %s31, 3
    %p362 = por %p360, %p361
    %p363 = scmp.ne.s32.totalorder %s354, %s355
    %p364 = scmp.eq.s32.totalorder %s31, 0
    %p365 = por %p363, %p364
    %p366 = scmp.ne.s32.totalorder %s354, %s355
    %p367 = scmp.eq.s32.totalorder %s32, 3
    %p368 = por %p366, %p367
    %p370 = scmp.ne.s32.totalorder %s355, %s369
    %p371 = scmp.eq.s32.totalorder %s32, 0
    %p372 = por %p370, %p371
    %s374 = sadd.s32 %s373, 1
    %p377 = scmp.eq.s32.totalorder %s26, 3
    %p378 = scmp.ne.s32.totalorder %s373, %s375
    %p379 = scmp.eq.s32.totalorder %s26, 0
    %p380 = por %p378, %p379
    %p381 = scmp.ne.s32.totalorder %s373, %s375
    %p382 = scmp.eq.s32.totalorder %s31, 3
    %p383 = por %p381, %p382
    %p384 = scmp.ne.s32.totalorder %s375, %s376
    %p385 = scmp.eq.s32.totalorder %s31, 0
    %p386 = por %p384, %p385
    %p387 = scmp.ne.s32.totalorder %s375, %s376
    %p388 = scmp.eq.s32.totalorder %s32, 3
    %p389 = por %p387, %p388
    %p391 = scmp.ne.s32.totalorder %s376, %s390
    %p392 = scmp.eq.s32.totalorder %s32, 0
    %p393 = por %p391, %p392
    %s395 = sadd.s32 %s394, 1
    %p398 = scmp.eq.s32.totalorder %s26, 3
    %p399 = scmp.ne.s32.totalorder %s394, %s396
    %p400 = scmp.eq.s32.totalorder %s26, 0
    %p401 = por %p399, %p400
    %p402 = scmp.ne.s32.totalorder %s394, %s396
    %p403 = scmp.eq.s32.totalorder %s31, 3
    %p404 = por %p402, %p403
    %p405 = scmp.ne.s32.totalorder %s396, %s397
    %p406 = scmp.eq.s32.totalorder %s31, 0
    %p407 = por %p405, %p406
    %p408 = scmp.ne.s32.totalorder %s396, %s397
    %p409 = scmp.eq.s32.totalorder %s32, 3
    %p410 = por %p408, %p409
    %p412 = scmp.ne.s32.totalorder %s397, %s411
    %p413 = scmp.eq.s32.totalorder %s32, 0
    %p414 = por %p412, %p413
    %s416 = sadd.s32 %s415, 1
    %p419 = scmp.eq.s32.totalorder %s26, 3
    %p420 = scmp.ne.s32.totalorder %s415, %s417
    %p421 = scmp.eq.s32.totalorder %s26, 0
    %p422 = por %p420, %p421
    %p423 = scmp.ne.s32.totalorder %s415, %s417
    %p424 = scmp.eq.s32.totalorder %s31, 3
    %p425 = por %p423, %p424
    %p426 = scmp.ne.s32.totalorder %s417, %s418
    %p427 = scmp.eq.s32.totalorder %s31, 0
    %p428 = por %p426, %p427
    %p429 = scmp.ne.s32.totalorder %s417, %s418
    %p430 = scmp.eq.s32.totalorder %s32, 3
    %p431 = por %p429, %p430
    %p433 = scmp.ne.s32.totalorder %s418, %s432
    %p434 = scmp.eq.s32.totalorder %s32, 0
    %p435 = por %p433, %p434
    %s437 = sadd.s32 %s436, 1
    %p440 = scmp.eq.s32.totalorder %s26, 3
    %p441 = scmp.ne.s32.totalorder %s436, %s438
    %p442 = scmp.eq.s32.totalorder %s26, 0
    %p443 = por %p441, %p442
    %p444 = scmp.ne.s32.totalorder %s436, %s438
    %p445 = scmp.eq.s32.totalorder %s31, 3
    %p446 = por %p444, %p445
    %p447 = scmp.ne.s32.totalorder %s438, %s439
    %p448 = scmp.eq.s32.totalorder %s31, 0
    %p449 = por %p447, %p448
    %p450 = scmp.ne.s32.totalorder %s438, %s439
    %p451 = scmp.eq.s32.totalorder %s32, 3
    %p452 = por %p450, %p451
    %p454 = scmp.ne.s32.totalorder %s439, %s453
    %p455 = scmp.eq.s32.totalorder %s32, 0
    %p456 = por %p454, %p455
    %s458 = sadd.s32 %s457, 1
    %p461 = scmp.eq.s32.totalorder %s26, 3
    %p462 = scmp.ne.s32.totalorder %s457, %s459
    %p463 = scmp.eq.s32.totalorder %s26, 0
    %p464 = por %p462, %p463
    %p465 = scmp.ne.s32.totalorder %s457, %s459
    %p466 = scmp.eq.s32.totalorder %s31, 3
    %p467 = por %p465, %p466
    %p468 = scmp.ne.s32.totalorder %s459, %s460
    %p469 = scmp.eq.s32.totalorder %s31, 0
    %p470 = por %p468, %p469
    %p471 = scmp.ne.s32.totalorder %s459, %s460
    %p472 = scmp.eq.s32.totalorder %s32, 3
    %p473 = por %p471, %p472
    %p475 = scmp.ne.s32.totalorder %s460, %s474
    %p476 = scmp.eq.s32.totalorder %s32, 0
    %p477 = por %p475, %p476
    %s478 = ssub.s32 %s33, %s45
    %s479 = ssub.s32 %s34, %s41
    %s480 = sor.u32 %s478, %s479
    %p481 = scmp.eq.s32.totalorder %s480, 0
    %s483 = sadd.s32 %s482, 1
    %s484 = scalar_select %p481, %s482, %s483
    %p487 = pneg %p481
    %p488 = scmp.eq.s32.totalorder %s26, 3
    %p489 = por %p487, %p488
    %p490 = scmp.ne.s32.totalorder %s482, %s485
    %p491 = scmp.eq.s32.totalorder %s26, 0
    %p492 = por %p490, %p491
    %p493 = scmp.ne.s32.totalorder %s482, %s485
    %p494 = scmp.eq.s32.totalorder %s31, 3
    %p495 = por %p493, %p494
    %p496 = scmp.ne.s32.totalorder %s485, %s486
    %p497 = scmp.eq.s32.totalorder %s31, 0
    %p498 = por %p496, %p497
    %p499 = scmp.ne.s32.totalorder %s485, %s486
    %p500 = scmp.eq.s32.totalorder %s32, 3
    %p501 = por %p499, %p500
    %p503 = scmp.ne.s32.totalorder %s486, %s502
    %p504 = scmp.eq.s32.totalorder %s32, 0
    %p505 = por %p503, %p504
    %p506 = scmp.le.s32.totalorder 1, %s26
    %p507 = scmp.lt.s32.totalorder %s26, 5
    %p508 = pnand %p506, %p507
    %p509 = pneg %p508
    // Predicated region
    $region9: #{rsf1_forward.1} parent=5 // pred_check
      _
    $region10: #{rsf1_forward.1} parent=5 // pred_check_branch
      %511 = sbr.rel (%p508) target = $region12
    $region11: #{rsf1_forward.1} parent=5 // pred_region
      %s512 = ssub.s32 %s26, 1
      // Predicated region
      $region13: #{rsf1_forward.1} parent=11 // pred_check
        %p513 = pneg %p113
      $region14: #{rsf1_forward.1} parent=11 // pred_check_branch
        %515 = sbr.rel (%p513) target = $region16
      $region15: #{rsf1_forward.1} parent=11 // pred_region
        _
      $region16: #{rsf1_forward.1} parent=11 // pred_fallthru
        _
      // Predicated region
      $region17: #{rsf1_forward.1} parent=11 // pred_check
        %p516 = pneg %p134
      $region18: #{rsf1_forward.1} parent=11 // pred_check_branch
        %518 = sbr.rel (%p516) target = $region20
      $region19: #{rsf1_forward.1} parent=11 // pred_region
        _
      $region20: #{rsf1_forward.1} parent=11 // pred_fallthru
        _
      // Predicated region
      $region21: #{rsf1_forward.1} parent=11 // pred_check
        %p519 = pneg %p155
      $region22: #{rsf1_forward.1} parent=11 // pred_check_branch
        %521 = sbr.rel (%p519) target = $region24
      $region23: #{rsf1_forward.1} parent=11 // pred_region
        _
      $region24: #{rsf1_forward.1} parent=11 // pred_fallthru
        _
      // Predicated region
      $region25: #{rsf1_forward.1} parent=11 // pred_check
        %p522 = pneg %p176
      $region26: #{rsf1_forward.1} parent=11 // pred_check_branch
        %524 = sbr.rel (%p522) target = $region28
      $region27: #{rsf1_forward.1} parent=11 // pred_region
        _
      $region28: #{rsf1_forward.1} parent=11 // pred_fallthru
        _
      // Predicated region
      $region29: #{rsf1_forward.1} parent=11 // pred_check
        %p525 = pneg %p197
      $region30: #{rsf1_forward.1} parent=11 // pred_check_branch
        %527 = sbr.rel (%p525) target = $region32
      $region31: #{rsf1_forward.1} parent=11 // pred_region
        _
      $region32: #{rsf1_forward.1} parent=11 // pred_fallthru
        _
      // Predicated region
      $region33: #{rsf1_forward.1} parent=11 // pred_check
        %p528 = pneg %p218
      $region34: #{rsf1_forward.1} parent=11 // pred_check_branch
        %530 = sbr.rel (%p528) target = $region36
      $region35: #{rsf1_forward.1} parent=11 // pred_region
        _
      $region36: #{rsf1_forward.1} parent=11 // pred_fallthru
        _
      // Predicated region
      $region37: #{rsf1_forward.1} parent=11 // pred_check
        %p531 = pneg %p239
      $region38: #{rsf1_forward.1} parent=11 // pred_check_branch
        %533 = sbr.rel (%p531) target = $region40
      $region39: #{rsf1_forward.1} parent=11 // pred_region
        _
      $region40: #{rsf1_forward.1} parent=11 // pred_fallthru
        _
      // Predicated region
      $region41: #{rsf1_forward.1} parent=11 // pred_check
        %p534 = pneg %p260
      $region42: #{rsf1_forward.1} parent=11 // pred_check_branch
        %536 = sbr.rel (%p534) target = $region44
      $region43: #{rsf1_forward.1} parent=11 // pred_region
        _
      $region44: #{rsf1_forward.1} parent=11 // pred_fallthru
        _
      // Predicated region
      $region45: #{rsf1_forward.1} parent=11 // pred_check
        %p537 = pneg %p281
      $region46: #{rsf1_forward.1} parent=11 // pred_check_branch
        %539 = sbr.rel (%p537) target = $region48
      $region47: #{rsf1_forward.1} parent=11 // pred_region
        _
      $region48: #{rsf1_forward.1} parent=11 // pred_fallthru
        _
      // Predicated region
      $region49: #{rsf1_forward.1} parent=11 // pred_check
        %p540 = pneg %p302
      $region50: #{rsf1_forward.1} parent=11 // pred_check_branch
        %542 = sbr.rel (%p540) target = $region52
      $region51: #{rsf1_forward.1} parent=11 // pred_region
        _
      $region52: #{rsf1_forward.1} parent=11 // pred_fallthru
        _
      // Predicated region
      $region53: #{rsf1_forward.1} parent=11 // pred_check
        %p543 = pneg %p323
      $region54: #{rsf1_forward.1} parent=11 // pred_check_branch
        %545 = sbr.rel (%p543) target = $region56
      $region55: #{rsf1_forward.1} parent=11 // pred_region
        _
      $region56: #{rsf1_forward.1} parent=11 // pred_fallthru
        _
      // Predicated region
      $region57: #{rsf1_forward.1} parent=11 // pred_check
        %p546 = pneg %p344
      $region58: #{rsf1_forward.1} parent=11 // pred_check_branch
        %548 = sbr.rel (%p546) target = $region60
      $region59: #{rsf1_forward.1} parent=11 // pred_region
        _
      $region60: #{rsf1_forward.1} parent=11 // pred_fallthru
        _
      // Predicated region
      $region61: #{rsf1_forward.1} parent=11 // pred_check
        %p549 = pneg %p365
      $region62: #{rsf1_forward.1} parent=11 // pred_check_branch
        %551 = sbr.rel (%p549) target = $region64
      $region63: #{rsf1_forward.1} parent=11 // pred_region
        _
      $region64: #{rsf1_forward.1} parent=11 // pred_fallthru
        _
      // Predicated region
      $region65: #{rsf1_forward.1} parent=11 // pred_check
        %p552 = pneg %p386
      $region66: #{rsf1_forward.1} parent=11 // pred_check_branch
        %554 = sbr.rel (%p552) target = $region68
      $region67: #{rsf1_forward.1} parent=11 // pred_region
        _
      $region68: #{rsf1_forward.1} parent=11 // pred_fallthru
        _
      // Predicated region
      $region69: #{rsf1_forward.1} parent=11 // pred_check
        %p555 = pneg %p407
      $region70: #{rsf1_forward.1} parent=11 // pred_check_branch
        %557 = sbr.rel (%p555) target = $region72
      $region71: #{rsf1_forward.1} parent=11 // pred_region
        _
      $region72: #{rsf1_forward.1} parent=11 // pred_fallthru
        _
      // Predicated region
      $region73: #{rsf1_forward.1} parent=11 // pred_check
        %p558 = pneg %p428
      $region74: #{rsf1_forward.1} parent=11 // pred_check_branch
        %560 = sbr.rel (%p558) target = $region76
      $region75: #{rsf1_forward.1} parent=11 // pred_region
        _
      $region76: #{rsf1_forward.1} parent=11 // pred_fallthru
        _
      // Predicated region
      $region77: #{rsf1_forward.1} parent=11 // pred_check
        %p561 = pneg %p449
      $region78: #{rsf1_forward.1} parent=11 // pred_check_branch
        %563 = sbr.rel (%p561) target = $region80
      $region79: #{rsf1_forward.1} parent=11 // pred_region
        _
      $region80: #{rsf1_forward.1} parent=11 // pred_fallthru
        _
      // Predicated region
      $region81: #{rsf1_forward.1} parent=11 // pred_check
        %p564 = pneg %p470
      $region82: #{rsf1_forward.1} parent=11 // pred_check_branch
        %566 = sbr.rel (%p564) target = $region84
      $region83: #{rsf1_forward.1} parent=11 // pred_region
        _
      $region84: #{rsf1_forward.1} parent=11 // pred_fallthru
        _
    $region12: #{rsf1_forward.1} parent=5 // pred_fallthru
      _
    %p567 = scmp.lt.s32.totalorder %s26, 4
    // Predicated region
    $region85: #{rsf1_forward.1} parent=5 // pred_check
      %p568 = pneg %p567
    $region86: #{rsf1_forward.1} parent=5 // pred_check_branch
      %570 = sbr.rel (%p568) target = $region88
    $region87: #{rsf1_forward.1} parent=5 // pred_region
      // Predicated region
      $region89: #{rsf1_forward.1} parent=87 // pred_check
        %p571 = pneg %p60
      $region90: #{rsf1_forward.1} parent=87 // pred_check_branch
        %573 = sbr.rel (%p571) target = $region92
      $region91: #{rsf1_forward.1} parent=87 // pred_region
        %s574 = smul.u32 16, %s34
        %p575 = scmp.lt.s32.totalorder %s33, 1
        %s576 = scalar_select %p575, %s33, 1
        %p577 = scmp.lt.s32.totalorder %s574, 31
        %s578 = scalar_select %p577, %s574, 31
        %s579 = smul.addr %s576, 32
        %s580 = sadd.s32 %s578, %s579
        %s581 = smul.addr %s580, 8
        %s582 = scalar_lea.vmem %s0, %s581
        %s583 = smul.u32 16, %s34
      $region92: #{rsf1_forward.1} parent=87 // pred_fallthru
        _
      // Predicated region
      $region93: #{rsf1_forward.1} parent=87 // pred_check
        %p584 = pneg %p86
      $region94: #{rsf1_forward.1} parent=87 // pred_check_branch
        %586 = sbr.rel (%p584) target = $region96
      $region95: #{rsf1_forward.1} parent=87 // pred_region
        %p587 = scmp.lt.s32.totalorder %s33, 1
        %s588 = scalar_select %p587, %s33, 1
        %s589 = smul.addr %s588, 32
        %s590 = smul.addr %s589, 8
        %s591 = scalar_lea.vmem %s1, %s590
      $region96: #{rsf1_forward.1} parent=87 // pred_fallthru
        _
    $region88: #{rsf1_forward.1} parent=5 // pred_fallthru
      _
    %p592 = scmp.le.s32.totalorder 1, %s26
    %p593 = scmp.lt.s32.totalorder %s26, 5
    %p594 = pnand %p592, %p593
    %p595 = pneg %p594
    // Predicated region
    $region97: #{rsf1_forward.1} parent=5 // pred_check
      _
    $region98: #{rsf1_forward.1} parent=5 // pred_check_branch
      %597 = sbr.rel (%p594) target = $region100
    $region99: #{rsf1_forward.1} parent=5 // pred_region
      %s598 = ssub.s32 %s26, 1
      %s599 = smul.u32 16, %s36
      %p600 = scmp.lt.s32.totalorder %s35, 1
      %s601 = scalar_select %p600, %s35, 1
      %p602 = scmp.lt.s32.totalorder %s599, 31
      %s603 = scalar_select %p602, %s599, 31
      %s604 = smul.addr %s601, 32
      %s605 = sadd.s32 %s603, %s604
      %s606 = smul.addr %s605, 8
      %s607 = scalar_lea.vmem %s0, %s606
      %p608 = pneg %p66
      %p609 = pneg %p63
      %p610 = scmp.lt.s32.totalorder %s35, 1
      %s611 = scalar_select %p610, %s35, 1
      %s612 = smul.addr %s611, 32
      %s613 = smul.addr %s612, 8
      %s614 = scalar_lea.vmem %s1, %s613
      %p615 = pneg %p92
      %p616 = pneg %p89
      %p617 = pneg %p113
      %p618 = pneg %p110
      %p619 = pneg %p134
      %p620 = pneg %p131
      %p621 = pneg %p155
      %p622 = pneg %p152
      %p623 = pneg %p176
      %p624 = pneg %p173
      %p625 = pneg %p197
      %p626 = pneg %p194
      %p627 = pneg %p218
      %p628 = pneg %p215
      %p629 = pneg %p239
      %p630 = pneg %p236
      %p631 = pneg %p260
      %p632 = pneg %p257
      %p633 = pneg %p281
      %p634 = pneg %p278
      %p635 = pneg %p302
      %p636 = pneg %p299
      %p637 = pneg %p323
      %p638 = pneg %p320
      %p639 = pneg %p344
      %p640 = pneg %p341
      %p641 = pneg %p365
      %p642 = pneg %p362
      %p643 = pneg %p386
      %p644 = pneg %p383
      %p645 = pneg %p407
      %p646 = pneg %p404
      %p647 = pneg %p428
      %p648 = pneg %p425
      %p649 = pneg %p449
      %p650 = pneg %p446
      %p651 = pneg %p470
      %p652 = pneg %p467
      %p653 = pneg %p498
      %p654 = pneg %p495
      %s655 = smul.u32 16, %s36
      %p656 = scmp.lt.s32.totalorder %s35, 1
      %s657 = scalar_select %p656, %s35, 1
      %p658 = scmp.lt.s32.totalorder %s655, 31
      %s659 = scalar_select %p658, %s655, 31
      %s660 = smul.addr %s657, 32
      %s661 = sadd.s32 %s659, %s660
      %s662 = smul.addr %s661, 8
      %s663 = scalar_lea.vmem %s20, %s662
      %s664 = smul.u32 16, %s36
      %p665 = scmp.lt.s32.totalorder %s35, 1
      %s666 = scalar_select %p665, %s35, 1
      %p667 = scmp.lt.s32.totalorder %s664, 31
      %s668 = scalar_select %p667, %s664, 31
      %s669 = smul.addr %s666, 32
      %s670 = sadd.s32 %s668, %s669
      %s671 = smul.addr %s670, 8
      %s672 = scalar_lea.vmem %s0, %s671
      %s673 = smul.u32 16, %s36
      %p674 = scmp.lt.s32.totalorder %s35, 1
      %s675 = scalar_select %p674, %s35, 1
      %s676 = smul.addr %s675, 32
      %s677 = smul.addr %s676, 8
      %s678 = scalar_lea.vmem %s1, %s677
      %s679 = smul.u32 16, %s36
      %p680 = scmp.lt.s32.totalorder %s35, 1
      %s681 = scalar_select %p680, %s35, 1
      %p682 = scmp.lt.s32.totalorder %s679, 31
      %s683 = scalar_select %p682, %s679, 31
      %s684 = smul.addr %s681, 32
      %s685 = sadd.s32 %s683, %s684
      %s686 = smul.addr %s685, 8
      %s687 = scalar_lea.vmem %s20, %s686
      %s688 = smul.u32 16, %s36
      %v690 = vld [vmem:[%s672] sm:$0xff]
      %v691 = vld [vmem:[%s672 + $0x8] sm:$0xff]
      %v692 = vld [vmem:[%s672 + $0x10] sm:$0xff]
      %v693 = vld [vmem:[%s672 + $0x18] sm:$0xff]
      %v694 = vld [vmem:[%s672 + $0x20] sm:$0xff]
      %v695 = vld [vmem:[%s672 + $0x28] sm:$0xff]
      %v696 = vld [vmem:[%s672 + $0x30] sm:$0xff]
      %v697 = vld [vmem:[%s672 + $0x38] sm:$0xff]
      %v698 = vld [vmem:[%s672 + $0x40] sm:$0xff]
      %v699 = vld [vmem:[%s672 + $0x48] sm:$0xff]
      %v700 = vld [vmem:[%s672 + $0x50] sm:$0xff]
      %v701 = vld [vmem:[%s672 + $0x58] sm:$0xff]
      %v702 = vld [vmem:[%s672 + $0x60] sm:$0xff]
      %v703 = vld [vmem:[%s672 + $0x68] sm:$0xff]
      %v704 = vld [vmem:[%s672 + $0x70] sm:$0xff]
      %v705 = vld [vmem:[%s672 + $0x78] sm:$0xff]
      %v706 = vld [vmem:[%s678] sm:$0xff]
      %v707 = vld [vmem:[%s678 + $0x8] sm:$0xff]
      %v708 = vld [vmem:[%s678 + $0x10] sm:$0xff]
      %v709 = vld [vmem:[%s678 + $0x18] sm:$0xff]
      %v710 = vld [vmem:[%s678 + $0x20] sm:$0xff]
      %v711 = vld [vmem:[%s678 + $0x28] sm:$0xff]
      %v712 = vld [vmem:[%s678 + $0x30] sm:$0xff]
      %v713 = vld [vmem:[%s678 + $0x38] sm:$0xff]
      %v714 = vld [vmem:[%s678 + $0x40] sm:$0xff]
      %v715 = vld [vmem:[%s678 + $0x48] sm:$0xff]
      %v716 = vld [vmem:[%s678 + $0x50] sm:$0xff]
      %v717 = vld [vmem:[%s678 + $0x58] sm:$0xff]
      %v718 = vld [vmem:[%s678 + $0x60] sm:$0xff]
      %v719 = vld [vmem:[%s678 + $0x68] sm:$0xff]
      %v720 = vld [vmem:[%s678 + $0x70] sm:$0xff]
      %v721 = vld [vmem:[%s678 + $0x78] sm:$0xff]
      %v722 = vld [vmem:[%s678 + $0x80] sm:$0xff]
      %v723 = vld [vmem:[%s678 + $0x88] sm:$0xff]
      %v724 = vld [vmem:[%s678 + $0x90] sm:$0xff]
      %v725 = vld [vmem:[%s678 + $0x98] sm:$0xff]
      %v726 = vld [vmem:[%s678 + $0xa0] sm:$0xff]
      %v727 = vld [vmem:[%s678 + $0xa8] sm:$0xff]
      %v728 = vld [vmem:[%s678 + $0xb0] sm:$0xff]
      %v729 = vld [vmem:[%s678 + $0xb8] sm:$0xff]
      %v730 = vld [vmem:[%s678 + $0xc0] sm:$0xff]
      %v731 = vld [vmem:[%s678 + $0xc8] sm:$0xff]
      %v732 = vld [vmem:[%s678 + $0xd0] sm:$0xff]
      %v733 = vld [vmem:[%s678 + $0xd8] sm:$0xff]
      %v734 = vld [vmem:[%s678 + $0xe0] sm:$0xff]
      %v735 = vld [vmem:[%s678 + $0xe8] sm:$0xff]
      %v736 = vld [vmem:[%s678 + $0xf0] sm:$0xff]
      %v737 = vld [vmem:[%s678 + $0xf8] sm:$0xff]
      %v738 = vld [vmem:[%s2] sm:$0xf]
      %v739 = vld [vmem:[%s2 + $0x4] sm:$0xf]
      %v740 = vld [vmem:[%s2 + $0x8] sm:$0xf]
      %v741 = vld [vmem:[%s2 + $0xc] sm:$0xf]
      %v742 = vld [vmem:[%s2 + $0x10] sm:$0xf]
      %v743 = vld [vmem:[%s2 + $0x14] sm:$0xf]
      %v744 = vld [vmem:[%s2 + $0x18] sm:$0xf]
      %v745 = vld [vmem:[%s2 + $0x1c] sm:$0xf]
      %v746 = vld [vmem:[%s2 + $0x20] sm:$0xf]
      %v747 = vld [vmem:[%s2 + $0x24] sm:$0xf]
      %v748 = vld [vmem:[%s2 + $0x28] sm:$0xf]
      %v749 = vld [vmem:[%s2 + $0x2c] sm:$0xf]
      %v750 = vld [vmem:[%s2 + $0x30] sm:$0xf]
      %v751 = vld [vmem:[%s2 + $0x34] sm:$0xf]
      %v752 = vld [vmem:[%s2 + $0x38] sm:$0xf]
      %v753 = vld [vmem:[%s2 + $0x3c] sm:$0xf]
      %v754 = vld [vmem:[%s3] sm:$0x1]
      %v755 = vld [vmem:[%s4] sm:$0xf]
      %v756 = vld [vmem:[%s4 + $0x4] sm:$0xf]
      %v757 = vld [vmem:[%s4 + $0x8] sm:$0xf]
      %v758 = vld [vmem:[%s4 + $0xc] sm:$0xf]
      %v759 = vld [vmem:[%s4 + $0x10] sm:$0xf]
      %v760 = vld [vmem:[%s4 + $0x14] sm:$0xf]
      %v761 = vld [vmem:[%s4 + $0x18] sm:$0xf]
      %v762 = vld [vmem:[%s4 + $0x1c] sm:$0xf]
      %v763 = vld [vmem:[%s5] sm:$0x1]
      %v764 = vpack.c.bf16 %v691, %v690
      %v765 = vpack.c.bf16 %v693, %v692
      %v766 = vpack.c.bf16 %v695, %v694
      %v767 = vpack.c.bf16 %v697, %v696
      %v768 = vpack.c.bf16 %v699, %v698
      %v769 = vpack.c.bf16 %v701, %v700
      %v770 = vpack.c.bf16 %v703, %v702
      %v771 = vpack.c.bf16 %v705, %v704
      %v773 = vlaneseq
      %v774 = vshrl.u32 %v773, 7
      %v775 = vsub.s32 0, %v774
      %v776 = vrot.slane %v754, %v775
      %v794 = vunpack.c.l.b16 %v738
      %v795 = vunpack.c.l.b16 %v739
      %v796 = vunpack.c.l.b16 %v740
      %v797 = vunpack.c.l.b16 %v741
      %v798 = vunpack.c.l.b16 %v742
      %v799 = vunpack.c.l.b16 %v743
      %v800 = vunpack.c.l.b16 %v744
      %v801 = vunpack.c.l.b16 %v745
      %v802 = vunpack.c.l.b16 %v746
      %v803 = vunpack.c.l.b16 %v747
      %v804 = vunpack.c.l.b16 %v748
      %v805 = vunpack.c.l.b16 %v749
      %v806 = vunpack.c.l.b16 %v750
      %v807 = vunpack.c.l.b16 %v751
      %v808 = vunpack.c.l.b16 %v752
      %v809 = vunpack.c.l.b16 %v753
      %v810 = vpack.c.b16 %v795, %v794
      %v811 = vpack.c.b16 %v797, %v796
      %v812 = vpack.c.b16 %v799, %v798
      %v813 = vpack.c.b16 %v801, %v800
      %v814 = vpack.c.b16 %v803, %v802
      %v815 = vpack.c.b16 %v805, %v804
      %v816 = vpack.c.b16 %v807, %v806
      %v817 = vpack.c.b16 %v809, %v808
      %826 = vmatprep.subr.bf16.mxu0 0
      %827 = vmatpush1.bf16.msra.mxu0 %v817
      %828 = vmatprep.subr.bf16.mxu0 0
      %829 = vmatpush1.bf16.msra.mxu0 %v816
      %830 = vmatprep.subr.bf16.mxu0 0
      %831 = vmatpush1.bf16.msra.mxu0 %v815
      %832 = vmatprep.subr.bf16.mxu0 0
      %833 = vmatpush1.bf16.msra.mxu0 %v814
      %834 = vmatprep.subr.bf16.mxu0 0
      %835 = vmatpush1.bf16.msra.mxu0 %v813
      %836 = vmatprep.subr.bf16.mxu0 0
      %837 = vmatpush1.bf16.msra.mxu0 %v812
      %838 = vmatprep.subr.bf16.mxu0 0
      %839 = vmatpush1.bf16.msra.mxu0 %v811
      %840 = vmatprep.subr.bf16.mxu0 0
      %841 = vmatpush1.bf16.msra.mxu0 %v810
      %842 = vmatprep.subr.bf16.mxu0 0
      %843 = vmatpush2.bf16.msra.mxu0 0
      %844 = vmatprep.subr.bf16.mxu0 0
      %845 = vmatpush2.bf16.msra.mxu0 0
      %846 = vmatprep.subr.bf16.mxu0 0
      %847 = vmatpush2.bf16.msra.mxu0 0
      %848 = vmatprep.subr.bf16.mxu0 0
      %849 = vmatpush2.bf16.msra.mxu0 0
      %850 = vmatprep.subr.bf16.mxu0 0
      %851 = vmatpush2.bf16.msra.mxu0 0
      %852 = vmatprep.subr.bf16.mxu0 0
      %853 = vmatpush2.bf16.msra.mxu0 0
      %854 = vmatprep.subr.bf16.mxu0 0
      %855 = vmatpush2.bf16.msra.mxu0 0
      %856 = vmatprep.subr.bf16.mxu0 0
      %857 = vmatpush2.bf16.msra.mxu0 0
      %858 = vmatprep.mubr.bf16.mxu0 0
      %859 = vmatmul.mubr.bf16.gmra.mxu0 %v764
      %v860 = vpop.f32.mrf.mxu0
      %v861 = vadd.f32 %v776, %v860
      %v862 = vpop.f32.mrf.mxu0
      %v863 = vpop.f32.mrf.mxu0
      %v864 = vadd.f32 %v776, %v863
      %v865 = vpop.f32.mrf.mxu0
      %866 = vmatprep.mubr.bf16.mxu0 0
      %867 = vmatmul.mubr.bf16.gmra.mxu0 %v765
      %v868 = vpop.f32.mrf.mxu0
      %v869 = vadd.f32 %v776, %v868
      %v870 = vpop.f32.mrf.mxu0
      %v871 = vpop.f32.mrf.mxu0
      %v872 = vadd.f32 %v776, %v871
      %v873 = vpop.f32.mrf.mxu0
      %874 = vmatprep.mubr.bf16.mxu0 0
      %875 = vmatmul.mubr.bf16.gmra.mxu0 %v766
      %v876 = vpop.f32.mrf.mxu0
      %v877 = vadd.f32 %v776, %v876
      %v878 = vpop.f32.mrf.mxu0
      %v879 = vpop.f32.mrf.mxu0
      %v880 = vadd.f32 %v776, %v879
      %v881 = vpop.f32.mrf.mxu0
      %882 = vmatprep.mubr.bf16.mxu0 0
      %883 = vmatmul.mubr.bf16.gmra.mxu0 %v767
      %v884 = vpop.f32.mrf.mxu0
      %v885 = vadd.f32 %v776, %v884
      %v886 = vpop.f32.mrf.mxu0
      %v887 = vpop.f32.mrf.mxu0
      %v888 = vadd.f32 %v776, %v887
      %v889 = vpop.f32.mrf.mxu0
      %890 = vmatprep.mubr.bf16.mxu0 0
      %891 = vmatmul.mubr.bf16.gmra.mxu0 %v768
      %v892 = vpop.f32.mrf.mxu0
      %v893 = vadd.f32 %v776, %v892
      %v894 = vpop.f32.mrf.mxu0
      %v895 = vpop.f32.mrf.mxu0
      %v896 = vadd.f32 %v776, %v895
      %v897 = vpop.f32.mrf.mxu0
      %898 = vmatprep.mubr.bf16.mxu0 0
      %899 = vmatmul.mubr.bf16.gmra.mxu0 %v769
      %v900 = vpop.f32.mrf.mxu0
      %v901 = vadd.f32 %v776, %v900
      %v902 = vpop.f32.mrf.mxu0
      %v903 = vpop.f32.mrf.mxu0
      %v904 = vadd.f32 %v776, %v903
      %v905 = vpop.f32.mrf.mxu0
      %906 = vmatprep.mubr.bf16.mxu0 0
      %907 = vmatmul.mubr.bf16.gmra.mxu0 %v770
      %v908 = vpop.f32.mrf.mxu0
      %v909 = vadd.f32 %v776, %v908
      %v910 = vpop.f32.mrf.mxu0
      %v911 = vpop.f32.mrf.mxu0
      %v912 = vadd.f32 %v776, %v911
      %v913 = vpop.f32.mrf.mxu0
      %914 = vmatprep.mubr.bf16.mxu0 0
      %915 = vmatmul.mubr.bf16.gmra.mxu0 %v771
      %v916 = vpop.f32.mrf.mxu0
      %v917 = vadd.f32 %v776, %v916
      %v918 = vpop.f32.mrf.mxu0
      %v919 = vpop.f32.mrf.mxu0
      %v920 = vadd.f32 %v776, %v919
      %v921 = vpop.f32.mrf.mxu0
      %922 = vdwg.mxu0
      %v923 = vmax.f32 %v861, 0.0
      %v924 = vmax.f32 %v864, 0.0
      %v925 = vmax.f32 %v869, 0.0
      %v926 = vmax.f32 %v872, 0.0
      %v927 = vmax.f32 %v877, 0.0
      %v928 = vmax.f32 %v880, 0.0
      %v929 = vmax.f32 %v885, 0.0
      %v930 = vmax.f32 %v888, 0.0
      %v931 = vmax.f32 %v893, 0.0
      %v932 = vmax.f32 %v896, 0.0
      %v933 = vmax.f32 %v901, 0.0
      %v934 = vmax.f32 %v904, 0.0
      %v935 = vmax.f32 %v909, 0.0
      %v936 = vmax.f32 %v912, 0.0
      %v937 = vmax.f32 %v917, 0.0
      %v938 = vmax.f32 %v920, 0.0
      %v939 = vpack.c.bf16 %v924, %v923
      %v940 = vpack.c.bf16 %v926, %v925
      %v941 = vpack.c.bf16 %v928, %v927
      %v942 = vpack.c.bf16 %v930, %v929
      %v943 = vpack.c.bf16 %v932, %v931
      %v944 = vpack.c.bf16 %v934, %v933
      %v945 = vpack.c.bf16 %v936, %v935
      %v946 = vpack.c.bf16 %v938, %v937
      %v948 = vlaneseq
      %v949 = vshrl.u32 %v948, 7
      %v950 = vsub.s32 0, %v949
      %v951 = vrot.slane %v763, %v950
      %v961 = vunpack.c.l.b16 %v755
      %v962 = vunpack.c.l.b16 %v756
      %v963 = vunpack.c.l.b16 %v757
      %v964 = vunpack.c.l.b16 %v758
      %v965 = vunpack.c.l.b16 %v759
      %v966 = vunpack.c.l.b16 %v760
      %v967 = vunpack.c.l.b16 %v761
      %v968 = vunpack.c.l.b16 %v762
      %v969 = vpack.c.b16 %v962, %v961
      %v970 = vpack.c.b16 %v964, %v963
      %v971 = vpack.c.b16 %v966, %v965
      %v972 = vpack.c.b16 %v968, %v967
      %vm977 = vcmask 523264
      %v979 = vsel %vm977, %v939, 0
      %v982 = vsel %vm977, %v940, 0
      %v985 = vsel %vm977, %v941, 0
      %v988 = vsel %vm977, %v942, 0
      %v991 = vsel %vm977, %v943, 0
      %v994 = vsel %vm977, %v944, 0
      %v997 = vsel %vm977, %v945, 0
      %v1000 = vsel %vm977, %v946, 0
      %1002 = vmatprep.subr.bf16.mxu0 0
      %1003 = vmatpush1.bf16.msra.mxu0 0
      %1004 = vmatprep.subr.bf16.mxu0 0
      %1005 = vmatpush1.bf16.msra.mxu0 0
      %1006 = vmatprep.subr.bf16.mxu0 0
      %1007 = vmatpush1.bf16.msra.mxu0 0
      %1008 = vmatprep.subr.bf16.mxu0 0
      %1009 = vmatpush1.bf16.msra.mxu0 0
      %1010 = vmatprep.subr.bf16.mxu0 0
      %1011 = vmatpush1.bf16.msra.mxu0 %v972
      %1012 = vmatprep.subr.bf16.mxu0 0
      %1013 = vmatpush1.bf16.msra.mxu0 %v971
      %1014 = vmatprep.subr.bf16.mxu0 0
      %1015 = vmatpush1.bf16.msra.mxu0 %v970
      %1016 = vmatprep.subr.bf16.mxu0 0
      %1017 = vmatpush1.bf16.msra.mxu0 %v969
      %1018 = vmatprep.subr.bf16.mxu0 0
      %1019 = vmatpush2.bf16.msra.mxu0 0
      %1020 = vmatprep.subr.bf16.mxu0 0
      %1021 = vmatpush2.bf16.msra.mxu0 0
      %1022 = vmatprep.subr.bf16.mxu0 0
      %1023 = vmatpush2.bf16.msra.mxu0 0
      %1024 = vmatprep.subr.bf16.mxu0 0
      %1025 = vmatpush2.bf16.msra.mxu0 0
      %1026 = vmatprep.subr.bf16.mxu0 0
      %1027 = vmatpush2.bf16.msra.mxu0 0
      %1028 = vmatprep.subr.bf16.mxu0 0
      %1029 = vmatpush2.bf16.msra.mxu0 0
      %1030 = vmatprep.subr.bf16.mxu0 0
      %1031 = vmatpush2.bf16.msra.mxu0 0
      %1032 = vmatprep.subr.bf16.mxu0 0
      %1033 = vmatpush2.bf16.msra.mxu0 0
      %1034 = vmatprep.mubr.bf16.mxu0 0
      %1035 = vmatmul.mubr.bf16.gmra.mxu0 %v979
      %v1036 = vpop.f32.mrf.mxu0
      %v1037 = vadd.f32 %v951, %v1036
      %v1038 = vpop.f32.mrf.mxu0
      %v1039 = vpop.f32.mrf.mxu0
      %v1040 = vadd.f32 %v951, %v1039
      %v1041 = vpop.f32.mrf.mxu0
      %1042 = vmatprep.mubr.bf16.mxu0 0
      %1043 = vmatmul.mubr.bf16.gmra.mxu0 %v982
      %v1044 = vpop.f32.mrf.mxu0
      %v1045 = vadd.f32 %v951, %v1044
      %v1046 = vpop.f32.mrf.mxu0
      %v1047 = vpop.f32.mrf.mxu0
      %v1048 = vadd.f32 %v951, %v1047
      %v1049 = vpop.f32.mrf.mxu0
      %1050 = vmatprep.mubr.bf16.mxu0 0
      %1051 = vmatmul.mubr.bf16.gmra.mxu0 %v985
      %v1052 = vpop.f32.mrf.mxu0
      %v1053 = vadd.f32 %v951, %v1052
      %v1054 = vpop.f32.mrf.mxu0
      %v1055 = vpop.f32.mrf.mxu0
      %v1056 = vadd.f32 %v951, %v1055
      %v1057 = vpop.f32.mrf.mxu0
      %1058 = vmatprep.mubr.bf16.mxu0 0
      %1059 = vmatmul.mubr.bf16.gmra.mxu0 %v988
      %v1060 = vpop.f32.mrf.mxu0
      %v1061 = vadd.f32 %v951, %v1060
      %v1062 = vpop.f32.mrf.mxu0
      %v1063 = vpop.f32.mrf.mxu0
      %v1064 = vadd.f32 %v951, %v1063
      %v1065 = vpop.f32.mrf.mxu0
      %1066 = vmatprep.mubr.bf16.mxu0 0
      %1067 = vmatmul.mubr.bf16.gmra.mxu0 %v991
      %v1068 = vpop.f32.mrf.mxu0
      %v1069 = vadd.f32 %v951, %v1068
      %v1070 = vpop.f32.mrf.mxu0
      %v1071 = vpop.f32.mrf.mxu0
      %v1072 = vadd.f32 %v951, %v1071
      %v1073 = vpop.f32.mrf.mxu0
      %1074 = vmatprep.mubr.bf16.mxu0 0
      %1075 = vmatmul.mubr.bf16.gmra.mxu0 %v994
      %v1076 = vpop.f32.mrf.mxu0
      %v1077 = vadd.f32 %v951, %v1076
      %v1078 = vpop.f32.mrf.mxu0
      %v1079 = vpop.f32.mrf.mxu0
      %v1080 = vadd.f32 %v951, %v1079
      %v1081 = vpop.f32.mrf.mxu0
      %1082 = vmatprep.mubr.bf16.mxu0 0
      %1083 = vmatmul.mubr.bf16.gmra.mxu0 %v997
      %v1084 = vpop.f32.mrf.mxu0
      %v1085 = vadd.f32 %v951, %v1084
      %v1086 = vpop.f32.mrf.mxu0
      %v1087 = vpop.f32.mrf.mxu0
      %v1088 = vadd.f32 %v951, %v1087
      %v1089 = vpop.f32.mrf.mxu0
      %1090 = vmatprep.mubr.bf16.mxu0 0
      %1091 = vmatmul.mubr.bf16.gmra.mxu0 %v1000
      %v1092 = vpop.f32.mrf.mxu0
      %v1093 = vadd.f32 %v951, %v1092
      %v1094 = vpop.f32.mrf.mxu0
      %v1095 = vpop.f32.mrf.mxu0
      %v1096 = vadd.f32 %v951, %v1095
      %v1097 = vpop.f32.mrf.mxu0
      %1098 = vdwg.mxu0
      %v1099 = vpack.c.bf16 %v707, %v706
      %v1100 = vpack.c.bf16 %v709, %v708
      %v1101 = vpack.c.bf16 %v711, %v710
      %v1102 = vpack.c.bf16 %v713, %v712
      %v1103 = vpack.c.bf16 %v715, %v714
      %v1104 = vpack.c.bf16 %v717, %v716
      %v1105 = vpack.c.bf16 %v719, %v718
      %v1106 = vpack.c.bf16 %v721, %v720
      %v1107 = vpack.c.bf16 %v723, %v722
      %v1108 = vpack.c.bf16 %v725, %v724
      %v1109 = vpack.c.bf16 %v727, %v726
      %v1110 = vpack.c.bf16 %v729, %v728
      %v1111 = vpack.c.bf16 %v731, %v730
      %v1112 = vpack.c.bf16 %v733, %v732
      %v1113 = vpack.c.bf16 %v735, %v734
      %v1114 = vpack.c.bf16 %v737, %v736
      %1115 = vmatprep.subr.bf16.mxu0 0
      %1116 = vmatpush1.bf16.msra.mxu0 %v817
      %1117 = vmatprep.subr.bf16.mxu0 0
      %1118 = vmatpush1.bf16.msra.mxu0 %v816
      %1119 = vmatprep.subr.bf16.mxu0 0
      %1120 = vmatpush1.bf16.msra.mxu0 %v815
      %1121 = vmatprep.subr.bf16.mxu0 0
      %1122 = vmatpush1.bf16.msra.mxu0 %v814
      %1123 = vmatprep.subr.bf16.mxu0 0
      %1124 = vmatpush1.bf16.msra.mxu0 %v813
      %1125 = vmatprep.subr.bf16.mxu0 0
      %1126 = vmatpush1.bf16.msra.mxu0 %v812
      %1127 = vmatprep.subr.bf16.mxu0 0
      %1128 = vmatpush1.bf16.msra.mxu0 %v811
      %1129 = vmatprep.subr.bf16.mxu0 0
      %1130 = vmatpush1.bf16.msra.mxu0 %v810
      %1131 = vmatprep.subr.bf16.mxu0 0
      %1132 = vmatpush2.bf16.msra.mxu0 0
      %1133 = vmatprep.subr.bf16.mxu0 0
      %1134 = vmatpush2.bf16.msra.mxu0 0
      %1135 = vmatprep.subr.bf16.mxu0 0
      %1136 = vmatpush2.bf16.msra.mxu0 0
      %1137 = vmatprep.subr.bf16.mxu0 0
      %1138 = vmatpush2.bf16.msra.mxu0 0
      %1139 = vmatprep.subr.bf16.mxu0 0
      %1140 = vmatpush2.bf16.msra.mxu0 0
      %1141 = vmatprep.subr.bf16.mxu0 0
      %1142 = vmatpush2.bf16.msra.mxu0 0
      %1143 = vmatprep.subr.bf16.mxu0 0
      %1144 = vmatpush2.bf16.msra.mxu0 0
      %1145 = vmatprep.subr.bf16.mxu0 0
      %1146 = vmatpush2.bf16.msra.mxu0 0
      %1147 = vmatprep.mubr.bf16.mxu0 0
      %1148 = vmatmul.mubr.bf16.gmra.mxu0 %v1099
      %v1149 = vpop.f32.mrf.mxu0
      %v1150 = vadd.f32 %v776, %v1149
      %v1151 = vpop.f32.mrf.mxu0
      %v1152 = vpop.f32.mrf.mxu0
      %v1153 = vadd.f32 %v776, %v1152
      %v1154 = vpop.f32.mrf.mxu0
      %1155 = vmatprep.mubr.bf16.mxu0 0
      %1156 = vmatmul.mubr.bf16.gmra.mxu0 %v1100
      %v1157 = vpop.f32.mrf.mxu0
      %v1158 = vadd.f32 %v776, %v1157
      %v1159 = vpop.f32.mrf.mxu0
      %v1160 = vpop.f32.mrf.mxu0
      %v1161 = vadd.f32 %v776, %v1160
      %v1162 = vpop.f32.mrf.mxu0
      %1163 = vmatprep.mubr.bf16.mxu0 0
      %1164 = vmatmul.mubr.bf16.gmra.mxu0 %v1101
      %v1165 = vpop.f32.mrf.mxu0
      %v1166 = vadd.f32 %v776, %v1165
      %v1167 = vpop.f32.mrf.mxu0
      %v1168 = vpop.f32.mrf.mxu0
      %v1169 = vadd.f32 %v776, %v1168
      %v1170 = vpop.f32.mrf.mxu0
      %1171 = vmatprep.mubr.bf16.mxu0 0
      %1172 = vmatmul.mubr.bf16.gmra.mxu0 %v1102
      %v1173 = vpop.f32.mrf.mxu0
      %v1174 = vadd.f32 %v776, %v1173
      %v1175 = vpop.f32.mrf.mxu0
      %v1176 = vpop.f32.mrf.mxu0
      %v1177 = vadd.f32 %v776, %v1176
      %v1178 = vpop.f32.mrf.mxu0
      %1179 = vmatprep.mubr.bf16.mxu0 0
      %1180 = vmatmul.mubr.bf16.gmra.mxu0 %v1103
      %v1181 = vpop.f32.mrf.mxu0
      %v1182 = vadd.f32 %v776, %v1181
      %v1183 = vpop.f32.mrf.mxu0
      %v1184 = vpop.f32.mrf.mxu0
      %v1185 = vadd.f32 %v776, %v1184
      %v1186 = vpop.f32.mrf.mxu0
      %1187 = vmatprep.mubr.bf16.mxu0 0
      %1188 = vmatmul.mubr.bf16.gmra.mxu0 %v1104
      %v1189 = vpop.f32.mrf.mxu0
      %v1190 = vadd.f32 %v776, %v1189
      %v1191 = vpop.f32.mrf.mxu0
      %v1192 = vpop.f32.mrf.mxu0
      %v1193 = vadd.f32 %v776, %v1192
      %v1194 = vpop.f32.mrf.mxu0
      %1195 = vmatprep.mubr.bf16.mxu0 0
      %1196 = vmatmul.mubr.bf16.gmra.mxu0 %v1105
      %v1197 = vpop.f32.mrf.mxu0
      %v1198 = vadd.f32 %v776, %v1197
      %v1199 = vpop.f32.mrf.mxu0
      %v1200 = vpop.f32.mrf.mxu0
      %v1201 = vadd.f32 %v776, %v1200
      %v1202 = vpop.f32.mrf.mxu0
      %1203 = vmatprep.mubr.bf16.mxu0 0
      %1204 = vmatmul.mubr.bf16.gmra.mxu0 %v1106
      %v1205 = vpop.f32.mrf.mxu0
      %v1206 = vadd.f32 %v776, %v1205
      %v1207 = vpop.f32.mrf.mxu0
      %v1208 = vpop.f32.mrf.mxu0
      %v1209 = vadd.f32 %v776, %v1208
      %v1210 = vpop.f32.mrf.mxu0
      %1211 = vmatprep.mubr.bf16.mxu0 0
      %1212 = vmatmul.mubr.bf16.gmra.mxu0 %v1107
      %v1213 = vpop.f32.mrf.mxu0
      %v1214 = vadd.f32 %v776, %v1213
      %v1215 = vpop.f32.mrf.mxu0
      %v1216 = vpop.f32.mrf.mxu0
      %v1217 = vadd.f32 %v776, %v1216
      %v1218 = vpop.f32.mrf.mxu0
      %1219 = vmatprep.mubr.bf16.mxu0 0
      %1220 = vmatmul.mubr.bf16.gmra.mxu0 %v1108
      %v1221 = vpop.f32.mrf.mxu0
      %v1222 = vadd.f32 %v776, %v1221
      %v1223 = vpop.f32.mrf.mxu0
      %v1224 = vpop.f32.mrf.mxu0
      %v1225 = vadd.f32 %v776, %v1224
      %v1226 = vpop.f32.mrf.mxu0
      %1227 = vmatprep.mubr.bf16.mxu0 0
      %1228 = vmatmul.mubr.bf16.gmra.mxu0 %v1109
      %v1229 = vpop.f32.mrf.mxu0
      %v1230 = vadd.f32 %v776, %v1229
      %v1231 = vpop.f32.mrf.mxu0
      %v1232 = vpop.f32.mrf.mxu0
      %v1233 = vadd.f32 %v776, %v1232
      %v1234 = vpop.f32.mrf.mxu0
      %1235 = vmatprep.mubr.bf16.mxu0 0
      %1236 = vmatmul.mubr.bf16.gmra.mxu0 %v1110
      %v1237 = vpop.f32.mrf.mxu0
      %v1238 = vadd.f32 %v776, %v1237
      %v1239 = vpop.f32.mrf.mxu0
      %v1240 = vpop.f32.mrf.mxu0
      %v1241 = vadd.f32 %v776, %v1240
      %v1242 = vpop.f32.mrf.mxu0
      %1243 = vmatprep.mubr.bf16.mxu0 0
      %1244 = vmatmul.mubr.bf16.gmra.mxu0 %v1111
      %v1245 = vpop.f32.mrf.mxu0
      %v1246 = vadd.f32 %v776, %v1245
      %v1247 = vpop.f32.mrf.mxu0
      %v1248 = vpop.f32.mrf.mxu0
      %v1249 = vadd.f32 %v776, %v1248
      %v1250 = vpop.f32.mrf.mxu0
      %1251 = vmatprep.mubr.bf16.mxu0 0
      %1252 = vmatmul.mubr.bf16.gmra.mxu0 %v1112
      %v1253 = vpop.f32.mrf.mxu0
      %v1254 = vadd.f32 %v776, %v1253
      %v1255 = vpop.f32.mrf.mxu0
      %v1256 = vpop.f32.mrf.mxu0
      %v1257 = vadd.f32 %v776, %v1256
      %v1258 = vpop.f32.mrf.mxu0
      %1259 = vmatprep.mubr.bf16.mxu0 0
      %1260 = vmatmul.mubr.bf16.gmra.mxu0 %v1113
      %v1261 = vpop.f32.mrf.mxu0
      %v1262 = vadd.f32 %v776, %v1261
      %v1263 = vpop.f32.mrf.mxu0
      %v1264 = vpop.f32.mrf.mxu0
      %v1265 = vadd.f32 %v776, %v1264
      %v1266 = vpop.f32.mrf.mxu0
      %1267 = vmatprep.mubr.bf16.mxu0 0
      %1268 = vmatmul.mubr.bf16.gmra.mxu0 %v1114
      %v1269 = vpop.f32.mrf.mxu0
      %v1270 = vadd.f32 %v776, %v1269
      %v1271 = vpop.f32.mrf.mxu0
      %v1272 = vpop.f32.mrf.mxu0
      %v1273 = vadd.f32 %v776, %v1272
      %v1274 = vpop.f32.mrf.mxu0
      %1275 = vdwg.mxu0
      %v1276 = vmax.f32 %v1150, 0.0
      %v1277 = vmax.f32 %v1153, 0.0
      %v1278 = vmax.f32 %v1158, 0.0
      %v1279 = vmax.f32 %v1161, 0.0
      %v1280 = vmax.f32 %v1166, 0.0
      %v1281 = vmax.f32 %v1169, 0.0
      %v1282 = vmax.f32 %v1174, 0.0
      %v1283 = vmax.f32 %v1177, 0.0
      %v1284 = vmax.f32 %v1182, 0.0
      %v1285 = vmax.f32 %v1185, 0.0
      %v1286 = vmax.f32 %v1190, 0.0
      %v1287 = vmax.f32 %v1193, 0.0
      %v1288 = vmax.f32 %v1198, 0.0
      %v1289 = vmax.f32 %v1201, 0.0
      %v1290 = vmax.f32 %v1206, 0.0
      %v1291 = vmax.f32 %v1209, 0.0
      %v1292 = vmax.f32 %v1214, 0.0
      %v1293 = vmax.f32 %v1217, 0.0
      %v1294 = vmax.f32 %v1222, 0.0
      %v1295 = vmax.f32 %v1225, 0.0
      %v1296 = vmax.f32 %v1230, 0.0
      %v1297 = vmax.f32 %v1233, 0.0
      %v1298 = vmax.f32 %v1238, 0.0
      %v1299 = vmax.f32 %v1241, 0.0
      %v1300 = vmax.f32 %v1246, 0.0
      %v1301 = vmax.f32 %v1249, 0.0
      %v1302 = vmax.f32 %v1254, 0.0
      %v1303 = vmax.f32 %v1257, 0.0
      %v1304 = vmax.f32 %v1262, 0.0
      %v1305 = vmax.f32 %v1265, 0.0
      %v1306 = vmax.f32 %v1270, 0.0
      %v1307 = vmax.f32 %v1273, 0.0
      %v1308 = vpack.c.bf16 %v1277, %v1276
      %v1309 = vpack.c.bf16 %v1279, %v1278
      %v1310 = vpack.c.bf16 %v1281, %v1280
      %v1311 = vpack.c.bf16 %v1283, %v1282
      %v1312 = vpack.c.bf16 %v1285, %v1284
      %v1313 = vpack.c.bf16 %v1287, %v1286
      %v1314 = vpack.c.bf16 %v1289, %v1288
      %v1315 = vpack.c.bf16 %v1291, %v1290
      %v1316 = vpack.c.bf16 %v1293, %v1292
      %v1317 = vpack.c.bf16 %v1295, %v1294
      %v1318 = vpack.c.bf16 %v1297, %v1296
      %v1319 = vpack.c.bf16 %v1299, %v1298
      %v1320 = vpack.c.bf16 %v1301, %v1300
      %v1321 = vpack.c.bf16 %v1303, %v1302
      %v1322 = vpack.c.bf16 %v1305, %v1304
      %v1323 = vpack.c.bf16 %v1307, %v1306
      %v1325 = vsel %vm977, %v1308, 0
      %v1328 = vsel %vm977, %v1309, 0
      %v1331 = vsel %vm977, %v1310, 0
      %v1334 = vsel %vm977, %v1311, 0
      %v1337 = vsel %vm977, %v1312, 0
      %v1340 = vsel %vm977, %v1313, 0
      %v1343 = vsel %vm977, %v1314, 0
      %v1346 = vsel %vm977, %v1315, 0
      %v1349 = vsel %vm977, %v1316, 0
      %v1352 = vsel %vm977, %v1317, 0
      %v1355 = vsel %vm977, %v1318, 0
      %v1358 = vsel %vm977, %v1319, 0
      %v1361 = vsel %vm977, %v1320, 0
      %v1364 = vsel %vm977, %v1321, 0
      %v1367 = vsel %vm977, %v1322, 0
      %v1370 = vsel %vm977, %v1323, 0
      %1372 = vmatprep.subr.bf16.mxu0 0
      %1373 = vmatpush1.bf16.msra.mxu0 0
      %1374 = vmatprep.subr.bf16.mxu0 0
      %1375 = vmatpush1.bf16.msra.mxu0 0
      %1376 = vmatprep.subr.bf16.mxu0 0
      %1377 = vmatpush1.bf16.msra.mxu0 0
      %1378 = vmatprep.subr.bf16.mxu0 0
      %1379 = vmatpush1.bf16.msra.mxu0 0
      %1380 = vmatprep.subr.bf16.mxu0 0
      %1381 = vmatpush1.bf16.msra.mxu0 %v972
      %1382 = vmatprep.subr.bf16.mxu0 0
      %1383 = vmatpush1.bf16.msra.mxu0 %v971
      %1384 = vmatprep.subr.bf16.mxu0 0
      %1385 = vmatpush1.bf16.msra.mxu0 %v970
      %1386 = vmatprep.subr.bf16.mxu0 0
      %1387 = vmatpush1.bf16.msra.mxu0 %v969
      %1388 = vmatprep.subr.bf16.mxu0 0
      %1389 = vmatpush2.bf16.msra.mxu0 0
      %1390 = vmatprep.subr.bf16.mxu0 0
      %1391 = vmatpush2.bf16.msra.mxu0 0
      %1392 = vmatprep.subr.bf16.mxu0 0
      %1393 = vmatpush2.bf16.msra.mxu0 0
      %1394 = vmatprep.subr.bf16.mxu0 0
      %1395 = vmatpush2.bf16.msra.mxu0 0
      %1396 = vmatprep.subr.bf16.mxu0 0
      %1397 = vmatpush2.bf16.msra.mxu0 0
      %1398 = vmatprep.subr.bf16.mxu0 0
      %1399 = vmatpush2.bf16.msra.mxu0 0
      %1400 = vmatprep.subr.bf16.mxu0 0
      %1401 = vmatpush2.bf16.msra.mxu0 0
      %1402 = vmatprep.subr.bf16.mxu0 0
      %1403 = vmatpush2.bf16.msra.mxu0 0
      %1404 = vmatprep.mubr.bf16.mxu0 0
      %1405 = vmatmul.mubr.bf16.gmra.mxu0 %v1325
      %v1406 = vpop.f32.mrf.mxu0
      %v1407 = vadd.f32 %v951, %v1406
      %v1408 = vpop.f32.mrf.mxu0
      %v1409 = vpop.f32.mrf.mxu0
      %v1410 = vadd.f32 %v951, %v1409
      %v1411 = vpop.f32.mrf.mxu0
      %1412 = vmatprep.mubr.bf16.mxu0 0
      %1413 = vmatmul.mubr.bf16.gmra.mxu0 %v1328
      %v1414 = vpop.f32.mrf.mxu0
      %v1415 = vadd.f32 %v951, %v1414
      %v1416 = vpop.f32.mrf.mxu0
      %v1417 = vpop.f32.mrf.mxu0
      %v1418 = vadd.f32 %v951, %v1417
      %v1419 = vpop.f32.mrf.mxu0
      %1420 = vmatprep.mubr.bf16.mxu0 0
      %1421 = vmatmul.mubr.bf16.gmra.mxu0 %v1331
      %v1422 = vpop.f32.mrf.mxu0
      %v1423 = vadd.f32 %v951, %v1422
      %v1424 = vpop.f32.mrf.mxu0
      %v1425 = vpop.f32.mrf.mxu0
      %v1426 = vadd.f32 %v951, %v1425
      %v1427 = vpop.f32.mrf.mxu0
      %1428 = vmatprep.mubr.bf16.mxu0 0
      %1429 = vmatmul.mubr.bf16.gmra.mxu0 %v1334
      %v1430 = vpop.f32.mrf.mxu0
      %v1431 = vadd.f32 %v951, %v1430
      %v1432 = vpop.f32.mrf.mxu0
      %v1433 = vpop.f32.mrf.mxu0
      %v1434 = vadd.f32 %v951, %v1433
      %v1435 = vpop.f32.mrf.mxu0
      %1436 = vmatprep.mubr.bf16.mxu0 0
      %1437 = vmatmul.mubr.bf16.gmra.mxu0 %v1337
      %v1438 = vpop.f32.mrf.mxu0
      %v1439 = vadd.f32 %v951, %v1438
      %v1440 = vpop.f32.mrf.mxu0
      %v1441 = vpop.f32.mrf.mxu0
      %v1442 = vadd.f32 %v951, %v1441
      %v1443 = vpop.f32.mrf.mxu0
      %1444 = vmatprep.mubr.bf16.mxu0 0
      %1445 = vmatmul.mubr.bf16.gmra.mxu0 %v1340
      %v1446 = vpop.f32.mrf.mxu0
      %v1447 = vadd.f32 %v951, %v1446
      %v1448 = vpop.f32.mrf.mxu0
      %v1449 = vpop.f32.mrf.mxu0
      %v1450 = vadd.f32 %v951, %v1449
      %v1451 = vpop.f32.mrf.mxu0
      %1452 = vmatprep.mubr.bf16.mxu0 0
      %1453 = vmatmul.mubr.bf16.gmra.mxu0 %v1343
      %v1454 = vpop.f32.mrf.mxu0
      %v1455 = vadd.f32 %v951, %v1454
      %v1456 = vpop.f32.mrf.mxu0
      %v1457 = vpop.f32.mrf.mxu0
      %v1458 = vadd.f32 %v951, %v1457
      %v1459 = vpop.f32.mrf.mxu0
      %1460 = vmatprep.mubr.bf16.mxu0 0
      %1461 = vmatmul.mubr.bf16.gmra.mxu0 %v1346
      %v1462 = vpop.f32.mrf.mxu0
      %v1463 = vadd.f32 %v951, %v1462
      %v1464 = vpop.f32.mrf.mxu0
      %v1465 = vpop.f32.mrf.mxu0
      %v1466 = vadd.f32 %v951, %v1465
      %v1467 = vpop.f32.mrf.mxu0
      %1468 = vmatprep.mubr.bf16.mxu0 0
      %1469 = vmatmul.mubr.bf16.gmra.mxu0 %v1349
      %v1470 = vpop.f32.mrf.mxu0
      %v1471 = vadd.f32 %v951, %v1470
      %v1472 = vpop.f32.mrf.mxu0
      %v1473 = vpop.f32.mrf.mxu0
      %v1474 = vadd.f32 %v951, %v1473
      %v1475 = vpop.f32.mrf.mxu0
      %1476 = vmatprep.mubr.bf16.mxu0 0
      %1477 = vmatmul.mubr.bf16.gmra.mxu0 %v1352
      %v1478 = vpop.f32.mrf.mxu0
      %v1479 = vadd.f32 %v951, %v1478
      %v1480 = vpop.f32.mrf.mxu0
      %v1481 = vpop.f32.mrf.mxu0
      %v1482 = vadd.f32 %v951, %v1481
      %v1483 = vpop.f32.mrf.mxu0
      %1484 = vmatprep.mubr.bf16.mxu0 0
      %1485 = vmatmul.mubr.bf16.gmra.mxu0 %v1355
      %v1486 = vpop.f32.mrf.mxu0
      %v1487 = vadd.f32 %v951, %v1486
      %v1488 = vpop.f32.mrf.mxu0
      %v1489 = vpop.f32.mrf.mxu0
      %v1490 = vadd.f32 %v951, %v1489
      %v1491 = vpop.f32.mrf.mxu0
      %1492 = vmatprep.mubr.bf16.mxu0 0
      %1493 = vmatmul.mubr.bf16.gmra.mxu0 %v1358
      %v1494 = vpop.f32.mrf.mxu0
      %v1495 = vadd.f32 %v951, %v1494
      %v1496 = vpop.f32.mrf.mxu0
      %v1497 = vpop.f32.mrf.mxu0
      %v1498 = vadd.f32 %v951, %v1497
      %v1499 = vpop.f32.mrf.mxu0
      %1500 = vmatprep.mubr.bf16.mxu0 0
      %1501 = vmatmul.mubr.bf16.gmra.mxu0 %v1361
      %v1502 = vpop.f32.mrf.mxu0
      %v1503 = vadd.f32 %v951, %v1502
      %v1504 = vpop.f32.mrf.mxu0
      %v1505 = vpop.f32.mrf.mxu0
      %v1506 = vadd.f32 %v951, %v1505
      %v1507 = vpop.f32.mrf.mxu0
      %1508 = vmatprep.mubr.bf16.mxu0 0
      %1509 = vmatmul.mubr.bf16.gmra.mxu0 %v1364
      %v1510 = vpop.f32.mrf.mxu0
      %v1511 = vadd.f32 %v951, %v1510
      %v1512 = vpop.f32.mrf.mxu0
      %v1513 = vpop.f32.mrf.mxu0
      %v1514 = vadd.f32 %v951, %v1513
      %v1515 = vpop.f32.mrf.mxu0
      %1516 = vmatprep.mubr.bf16.mxu0 0
      %1517 = vmatmul.mubr.bf16.gmra.mxu0 %v1367
      %v1518 = vpop.f32.mrf.mxu0
      %v1519 = vadd.f32 %v951, %v1518
      %v1520 = vpop.f32.mrf.mxu0
      %v1521 = vpop.f32.mrf.mxu0
      %v1522 = vadd.f32 %v951, %v1521
      %v1523 = vpop.f32.mrf.mxu0
      %1524 = vmatprep.mubr.bf16.mxu0 0
      %1525 = vmatmul.mubr.bf16.gmra.mxu0 %v1370
      %v1526 = vpop.f32.mrf.mxu0
      %v1527 = vadd.f32 %v951, %v1526
      %v1528 = vpop.f32.mrf.mxu0
      %v1529 = vpop.f32.mrf.mxu0
      %v1530 = vadd.f32 %v951, %v1529
      %v1531 = vpop.f32.mrf.mxu0
      %1532 = vdwg.mxu0
      %v1533 = vld [vmem:[%s6] sm:$0xf]
      %v1534 = vld [vmem:[%s6 + $0x4] sm:$0xf]
      %v1535 = vld [vmem:[%s6 + $0x8] sm:$0xf]
      %v1536 = vld [vmem:[%s6 + $0xc] sm:$0xf]
      %v1537 = vld [vmem:[%s6 + $0x10] sm:$0xf]
      %v1538 = vld [vmem:[%s6 + $0x14] sm:$0xf]
      %v1539 = vld [vmem:[%s6 + $0x18] sm:$0xf]
      %v1540 = vld [vmem:[%s6 + $0x1c] sm:$0xf]
      %v1541 = vld [vmem:[%s6 + $0x20] sm:$0xf]
      %v1542 = vld [vmem:[%s6 + $0x24] sm:$0xf]
      %v1543 = vld [vmem:[%s6 + $0x28] sm:$0xf]
      %v1544 = vld [vmem:[%s6 + $0x2c] sm:$0xf]
      %v1545 = vld [vmem:[%s6 + $0x30] sm:$0xf]
      %v1546 = vld [vmem:[%s6 + $0x34] sm:$0xf]
      %v1547 = vld [vmem:[%s6 + $0x38] sm:$0xf]
      %v1548 = vld [vmem:[%s6 + $0x3c] sm:$0xf]
      %v1549 = vld [vmem:[%s7] sm:$0x1]
      %v1550 = vld [vmem:[%s8] sm:$0xf]
      %v1551 = vld [vmem:[%s8 + $0x4] sm:$0xf]
      %v1552 = vld [vmem:[%s8 + $0x8] sm:$0xf]
      %v1553 = vld [vmem:[%s8 + $0xc] sm:$0xf]
      %v1554 = vld [vmem:[%s8 + $0x10] sm:$0xf]
      %v1555 = vld [vmem:[%s8 + $0x14] sm:$0xf]
      %v1556 = vld [vmem:[%s8 + $0x18] sm:$0xf]
      %v1557 = vld [vmem:[%s8 + $0x1c] sm:$0xf]
      %v1558 = vld [vmem:[%s9] sm:$0x1]
      %v1560 = vlaneseq
      %v1561 = vshrl.u32 %v1560, 7
      %v1562 = vsub.s32 0, %v1561
      %v1563 = vrot.slane %v1549, %v1562
      %v1581 = vunpack.c.l.b16 %v1533
      %v1582 = vunpack.c.l.b16 %v1534
      %v1583 = vunpack.c.l.b16 %v1535
      %v1584 = vunpack.c.l.b16 %v1536
      %v1585 = vunpack.c.l.b16 %v1537
      %v1586 = vunpack.c.l.b16 %v1538
      %v1587 = vunpack.c.l.b16 %v1539
      %v1588 = vunpack.c.l.b16 %v1540
      %v1589 = vunpack.c.l.b16 %v1541
      %v1590 = vunpack.c.l.b16 %v1542
      %v1591 = vunpack.c.l.b16 %v1543
      %v1592 = vunpack.c.l.b16 %v1544
      %v1593 = vunpack.c.l.b16 %v1545
      %v1594 = vunpack.c.l.b16 %v1546
      %v1595 = vunpack.c.l.b16 %v1547
      %v1596 = vunpack.c.l.b16 %v1548
      %v1597 = vpack.c.b16 %v1582, %v1581
      %v1598 = vpack.c.b16 %v1584, %v1583
      %v1599 = vpack.c.b16 %v1586, %v1585
      %v1600 = vpack.c.b16 %v1588, %v1587
      %v1601 = vpack.c.b16 %v1590, %v1589
      %v1602 = vpack.c.b16 %v1592, %v1591
      %v1603 = vpack.c.b16 %v1594, %v1593
      %v1604 = vpack.c.b16 %v1596, %v1595
      %1613 = vmatprep.subr.bf16.mxu0 0
      %1614 = vmatpush1.bf16.msra.mxu0 %v1604
      %1615 = vmatprep.subr.bf16.mxu0 0
      %1616 = vmatpush1.bf16.msra.mxu0 %v1603
      %1617 = vmatprep.subr.bf16.mxu0 0
      %1618 = vmatpush1.bf16.msra.mxu0 %v1602
      %1619 = vmatprep.subr.bf16.mxu0 0
      %1620 = vmatpush1.bf16.msra.mxu0 %v1601
      %1621 = vmatprep.subr.bf16.mxu0 0
      %1622 = vmatpush1.bf16.msra.mxu0 %v1600
      %1623 = vmatprep.subr.bf16.mxu0 0
      %1624 = vmatpush1.bf16.msra.mxu0 %v1599
      %1625 = vmatprep.subr.bf16.mxu0 0
      %1626 = vmatpush1.bf16.msra.mxu0 %v1598
      %1627 = vmatprep.subr.bf16.mxu0 0
      %1628 = vmatpush1.bf16.msra.mxu0 %v1597
      %1629 = vmatprep.subr.bf16.mxu0 0
      %1630 = vmatpush2.bf16.msra.mxu0 0
      %1631 = vmatprep.subr.bf16.mxu0 0
      %1632 = vmatpush2.bf16.msra.mxu0 0
      %1633 = vmatprep.subr.bf16.mxu0 0
      %1634 = vmatpush2.bf16.msra.mxu0 0
      %1635 = vmatprep.subr.bf16.mxu0 0
      %1636 = vmatpush2.bf16.msra.mxu0 0
      %1637 = vmatprep.subr.bf16.mxu0 0
      %1638 = vmatpush2.bf16.msra.mxu0 0
      %1639 = vmatprep.subr.bf16.mxu0 0
      %1640 = vmatpush2.bf16.msra.mxu0 0
      %1641 = vmatprep.subr.bf16.mxu0 0
      %1642 = vmatpush2.bf16.msra.mxu0 0
      %1643 = vmatprep.subr.bf16.mxu0 0
      %1644 = vmatpush2.bf16.msra.mxu0 0
      %1645 = vmatprep.mubr.bf16.mxu0 0
      %1646 = vmatmul.mubr.bf16.gmra.mxu0 %v764
      %v1647 = vpop.f32.mrf.mxu0
      %v1648 = vadd.f32 %v1563, %v1647
      %v1649 = vpop.f32.mrf.mxu0
      %v1650 = vpop.f32.mrf.mxu0
      %v1651 = vadd.f32 %v1563, %v1650
      %v1652 = vpop.f32.mrf.mxu0
      %1653 = vmatprep.mubr.bf16.mxu0 0
      %1654 = vmatmul.mubr.bf16.gmra.mxu0 %v765
      %v1655 = vpop.f32.mrf.mxu0
      %v1656 = vadd.f32 %v1563, %v1655
      %v1657 = vpop.f32.mrf.mxu0
      %v1658 = vpop.f32.mrf.mxu0
      %v1659 = vadd.f32 %v1563, %v1658
      %v1660 = vpop.f32.mrf.mxu0
      %1661 = vmatprep.mubr.bf16.mxu0 0
      %1662 = vmatmul.mubr.bf16.gmra.mxu0 %v766
      %v1663 = vpop.f32.mrf.mxu0
      %v1664 = vadd.f32 %v1563, %v1663
      %v1665 = vpop.f32.mrf.mxu0
      %v1666 = vpop.f32.mrf.mxu0
      %v1667 = vadd.f32 %v1563, %v1666
      %v1668 = vpop.f32.mrf.mxu0
      %1669 = vmatprep.mubr.bf16.mxu0 0
      %1670 = vmatmul.mubr.bf16.gmra.mxu0 %v767
      %v1671 = vpop.f32.mrf.mxu0
      %v1672 = vadd.f32 %v1563, %v1671
      %v1673 = vpop.f32.mrf.mxu0
      %v1674 = vpop.f32.mrf.mxu0
      %v1675 = vadd.f32 %v1563, %v1674
      %v1676 = vpop.f32.mrf.mxu0
      %1677 = vmatprep.mubr.bf16.mxu0 0
      %1678 = vmatmul.mubr.bf16.gmra.mxu0 %v768
      %v1679 = vpop.f32.mrf.mxu0
      %v1680 = vadd.f32 %v1563, %v1679
      %v1681 = vpop.f32.mrf.mxu0
      %v1682 = vpop.f32.mrf.mxu0
      %v1683 = vadd.f32 %v1563, %v1682
      %v1684 = vpop.f32.mrf.mxu0
      %1685 = vmatprep.mubr.bf16.mxu0 0
      %1686 = vmatmul.mubr.bf16.gmra.mxu0 %v769
      %v1687 = vpop.f32.mrf.mxu0
      %v1688 = vadd.f32 %v1563, %v1687
      %v1689 = vpop.f32.mrf.mxu0
      %v1690 = vpop.f32.mrf.mxu0
      %v1691 = vadd.f32 %v1563, %v1690
      %v1692 = vpop.f32.mrf.mxu0
      %1693 = vmatprep.mubr.bf16.mxu0 0
      %1694 = vmatmul.mubr.bf16.gmra.mxu0 %v770
      %v1695 = vpop.f32.mrf.mxu0
      %v1696 = vadd.f32 %v1563, %v1695
      %v1697 = vpop.f32.mrf.mxu0
      %v1698 = vpop.f32.mrf.mxu0
      %v1699 = vadd.f32 %v1563, %v1698
      %v1700 = vpop.f32.mrf.mxu0
      %1701 = vmatprep.mubr.bf16.mxu0 0
      %1702 = vmatmul.mubr.bf16.gmra.mxu0 %v771
      %v1703 = vpop.f32.mrf.mxu0
      %v1704 = vadd.f32 %v1563, %v1703
      %v1705 = vpop.f32.mrf.mxu0
      %v1706 = vpop.f32.mrf.mxu0
      %v1707 = vadd.f32 %v1563, %v1706
      %v1708 = vpop.f32.mrf.mxu0
      %1709 = vdwg.mxu0
      %v1710 = vmax.f32 %v1648, 0.0
      %v1711 = vmax.f32 %v1651, 0.0
      %v1712 = vmax.f32 %v1656, 0.0
      %v1713 = vmax.f32 %v1659, 0.0
      %v1714 = vmax.f32 %v1664, 0.0
      %v1715 = vmax.f32 %v1667, 0.0
      %v1716 = vmax.f32 %v1672, 0.0
      %v1717 = vmax.f32 %v1675, 0.0
      %v1718 = vmax.f32 %v1680, 0.0
      %v1719 = vmax.f32 %v1683, 0.0
      %v1720 = vmax.f32 %v1688, 0.0
      %v1721 = vmax.f32 %v1691, 0.0
      %v1722 = vmax.f32 %v1696, 0.0
      %v1723 = vmax.f32 %v1699, 0.0
      %v1724 = vmax.f32 %v1704, 0.0
      %v1725 = vmax.f32 %v1707, 0.0
      %v1726 = vpack.c.bf16 %v1711, %v1710
      %v1727 = vpack.c.bf16 %v1713, %v1712
      %v1728 = vpack.c.bf16 %v1715, %v1714
      %v1729 = vpack.c.bf16 %v1717, %v1716
      %v1730 = vpack.c.bf16 %v1719, %v1718
      %v1731 = vpack.c.bf16 %v1721, %v1720
      %v1732 = vpack.c.bf16 %v1723, %v1722
      %v1733 = vpack.c.bf16 %v1725, %v1724
      %v1735 = vlaneseq
      %v1736 = vshrl.u32 %v1735, 7
      %v1737 = vsub.s32 0, %v1736
      %v1738 = vrot.slane %v1558, %v1737
      %v1748 = vunpack.c.l.b16 %v1550
      %v1749 = vunpack.c.l.b16 %v1551
      %v1750 = vunpack.c.l.b16 %v1552
      %v1751 = vunpack.c.l.b16 %v1553
      %v1752 = vunpack.c.l.b16 %v1554
      %v1753 = vunpack.c.l.b16 %v1555
      %v1754 = vunpack.c.l.b16 %v1556
      %v1755 = vunpack.c.l.b16 %v1557
      %v1756 = vpack.c.b16 %v1749, %v1748
      %v1757 = vpack.c.b16 %v1751, %v1750
      %v1758 = vpack.c.b16 %v1753, %v1752
      %v1759 = vpack.c.b16 %v1755, %v1754
      %v1765 = vsel %vm977, %v1726, 0
      %v1768 = vsel %vm977, %v1727, 0
      %v1771 = vsel %vm977, %v1728, 0
      %v1774 = vsel %vm977, %v1729, 0
      %v1777 = vsel %vm977, %v1730, 0
      %v1780 = vsel %vm977, %v1731, 0
      %v1783 = vsel %vm977, %v1732, 0
      %v1786 = vsel %vm977, %v1733, 0
      %1788 = vmatprep.subr.bf16.mxu0 0
      %1789 = vmatpush1.bf16.msra.mxu0 0
      %1790 = vmatprep.subr.bf16.mxu0 0
      %1791 = vmatpush1.bf16.msra.mxu0 0
      %1792 = vmatprep.subr.bf16.mxu0 0
      %1793 = vmatpush1.bf16.msra.mxu0 0
      %1794 = vmatprep.subr.bf16.mxu0 0
      %1795 = vmatpush1.bf16.msra.mxu0 0
      %1796 = vmatprep.subr.bf16.mxu0 0
      %1797 = vmatpush1.bf16.msra.mxu0 %v1759
      %1798 = vmatprep.subr.bf16.mxu0 0
      %1799 = vmatpush1.bf16.msra.mxu0 %v1758
      %1800 = vmatprep.subr.bf16.mxu0 0
      %1801 = vmatpush1.bf16.msra.mxu0 %v1757
      %1802 = vmatprep.subr.bf16.mxu0 0
      %1803 = vmatpush1.bf16.msra.mxu0 %v1756
      %1804 = vmatprep.subr.bf16.mxu0 0
      %1805 = vmatpush2.bf16.msra.mxu0 0
      %1806 = vmatprep.subr.bf16.mxu0 0
      %1807 = vmatpush2.bf16.msra.mxu0 0
      %1808 = vmatprep.subr.bf16.mxu0 0
      %1809 = vmatpush2.bf16.msra.mxu0 0
      %1810 = vmatprep.subr.bf16.mxu0 0
      %1811 = vmatpush2.bf16.msra.mxu0 0
      %1812 = vmatprep.subr.bf16.mxu0 0
      %1813 = vmatpush2.bf16.msra.mxu0 0
      %1814 = vmatprep.subr.bf16.mxu0 0
      %1815 = vmatpush2.bf16.msra.mxu0 0
      %1816 = vmatprep.subr.bf16.mxu0 0
      %1817 = vmatpush2.bf16.msra.mxu0 0
      %1818 = vmatprep.subr.bf16.mxu0 0
      %1819 = vmatpush2.bf16.msra.mxu0 0
      %1820 = vmatprep.mubr.bf16.mxu0 0
      %1821 = vmatmul.mubr.bf16.gmra.mxu0 %v1765
      %v1822 = vpop.f32.mrf.mxu0
      %v1823 = vadd.f32 %v1738, %v1822
      %v1824 = vpop.f32.mrf.mxu0
      %v1825 = vpop.f32.mrf.mxu0
      %v1826 = vadd.f32 %v1738, %v1825
      %v1827 = vpop.f32.mrf.mxu0
      %1828 = vmatprep.mubr.bf16.mxu0 0
      %1829 = vmatmul.mubr.bf16.gmra.mxu0 %v1768
      %v1830 = vpop.f32.mrf.mxu0
      %v1831 = vadd.f32 %v1738, %v1830
      %v1832 = vpop.f32.mrf.mxu0
      %v1833 = vpop.f32.mrf.mxu0
      %v1834 = vadd.f32 %v1738, %v1833
      %v1835 = vpop.f32.mrf.mxu0
      %1836 = vmatprep.mubr.bf16.mxu0 0
      %1837 = vmatmul.mubr.bf16.gmra.mxu0 %v1771
      %v1838 = vpop.f32.mrf.mxu0
      %v1839 = vadd.f32 %v1738, %v1838
      %v1840 = vpop.f32.mrf.mxu0
      %v1841 = vpop.f32.mrf.mxu0
      %v1842 = vadd.f32 %v1738, %v1841
      %v1843 = vpop.f32.mrf.mxu0
      %1844 = vmatprep.mubr.bf16.mxu0 0
      %1845 = vmatmul.mubr.bf16.gmra.mxu0 %v1774
      %v1846 = vpop.f32.mrf.mxu0
      %v1847 = vadd.f32 %v1738, %v1846
      %v1848 = vpop.f32.mrf.mxu0
      %v1849 = vpop.f32.mrf.mxu0
      %v1850 = vadd.f32 %v1738, %v1849
      %v1851 = vpop.f32.mrf.mxu0
      %1852 = vmatprep.mubr.bf16.mxu0 0
      %1853 = vmatmul.mubr.bf16.gmra.mxu0 %v1777
      %v1854 = vpop.f32.mrf.mxu0
      %v1855 = vadd.f32 %v1738, %v1854
      %v1856 = vpop.f32.mrf.mxu0
      %v1857 = vpop.f32.mrf.mxu0
      %v1858 = vadd.f32 %v1738, %v1857
      %v1859 = vpop.f32.mrf.mxu0
      %1860 = vmatprep.mubr.bf16.mxu0 0
      %1861 = vmatmul.mubr.bf16.gmra.mxu0 %v1780
      %v1862 = vpop.f32.mrf.mxu0
      %v1863 = vadd.f32 %v1738, %v1862
      %v1864 = vpop.f32.mrf.mxu0
      %v1865 = vpop.f32.mrf.mxu0
      %v1866 = vadd.f32 %v1738, %v1865
      %v1867 = vpop.f32.mrf.mxu0
      %1868 = vmatprep.mubr.bf16.mxu0 0
      %1869 = vmatmul.mubr.bf16.gmra.mxu0 %v1783
      %v1870 = vpop.f32.mrf.mxu0
      %v1871 = vadd.f32 %v1738, %v1870
      %v1872 = vpop.f32.mrf.mxu0
      %v1873 = vpop.f32.mrf.mxu0
      %v1874 = vadd.f32 %v1738, %v1873
      %v1875 = vpop.f32.mrf.mxu0
      %1876 = vmatprep.mubr.bf16.mxu0 0
      %1877 = vmatmul.mubr.bf16.gmra.mxu0 %v1786
      %v1878 = vpop.f32.mrf.mxu0
      %v1879 = vadd.f32 %v1738, %v1878
      %v1880 = vpop.f32.mrf.mxu0
      %v1881 = vpop.f32.mrf.mxu0
      %v1882 = vadd.f32 %v1738, %v1881
      %v1883 = vpop.f32.mrf.mxu0
      %1884 = vdwg.mxu0
      %v1885 = vpack.c.bf16 %v1040, %v1037
      %v1886 = vpack.c.bf16 %v1048, %v1045
      %v1887 = vpack.c.bf16 %v1056, %v1053
      %v1888 = vpack.c.bf16 %v1064, %v1061
      %v1889 = vpack.c.bf16 %v1072, %v1069
      %v1890 = vpack.c.bf16 %v1080, %v1077
      %v1891 = vpack.c.bf16 %v1088, %v1085
      %v1892 = vpack.c.bf16 %v1096, %v1093
      %v1893 = vpack.c.bf16 %v1410, %v1407
      %v1894 = vpack.c.bf16 %v1418, %v1415
      %v1895 = vpack.c.bf16 %v1426, %v1423
      %v1896 = vpack.c.bf16 %v1434, %v1431
      %v1897 = vpack.c.bf16 %v1442, %v1439
      %v1898 = vpack.c.bf16 %v1450, %v1447
      %v1899 = vpack.c.bf16 %v1458, %v1455
      %v1900 = vpack.c.bf16 %v1466, %v1463
      %v1901 = vpack.c.bf16 %v1474, %v1471
      %v1902 = vpack.c.bf16 %v1482, %v1479
      %v1903 = vpack.c.bf16 %v1490, %v1487
      %v1904 = vpack.c.bf16 %v1498, %v1495
      %v1905 = vpack.c.bf16 %v1506, %v1503
      %v1906 = vpack.c.bf16 %v1514, %v1511
      %v1907 = vpack.c.bf16 %v1522, %v1519
      %v1908 = vpack.c.bf16 %v1530, %v1527
      %1909 = vmatprep.subr.bf16.mxu0 0
      %1910 = vmatpush1.bf16.xpose.msra.mxu0 %v1900
      %1911 = vmatprep.subr.bf16.mxu0 0
      %1912 = vmatpush1.bf16.xpose.msra.mxu0 %v1899
      %1913 = vmatprep.subr.bf16.mxu0 0
      %1914 = vmatpush1.bf16.xpose.msra.mxu0 %v1898
      %1915 = vmatprep.subr.bf16.mxu0 0
      %1916 = vmatpush1.bf16.xpose.msra.mxu0 %v1897
      %1917 = vmatprep.subr.bf16.mxu0 0
      %1918 = vmatpush1.bf16.xpose.msra.mxu0 %v1896
      %1919 = vmatprep.subr.bf16.mxu0 0
      %1920 = vmatpush1.bf16.xpose.msra.mxu0 %v1895
      %1921 = vmatprep.subr.bf16.mxu0 0
      %1922 = vmatpush1.bf16.xpose.msra.mxu0 %v1894
      %1923 = vmatprep.subr.bf16.mxu0 0
      %1924 = vmatpush1.bf16.xpose.msra.mxu0 %v1893
      %1925 = vmatprep.subr.bf16.mxu0 0
      %1926 = vmatpush2.bf16.xpose.msra.mxu0 %v1908
      %1927 = vmatprep.subr.bf16.mxu0 0
      %1928 = vmatpush2.bf16.xpose.msra.mxu0 %v1907
      %1929 = vmatprep.subr.bf16.mxu0 0
      %1930 = vmatpush2.bf16.xpose.msra.mxu0 %v1906
      %1931 = vmatprep.subr.bf16.mxu0 0
      %1932 = vmatpush2.bf16.xpose.msra.mxu0 %v1905
      %1933 = vmatprep.subr.bf16.mxu0 0
      %1934 = vmatpush2.bf16.xpose.msra.mxu0 %v1904
      %1935 = vmatprep.subr.bf16.mxu0 0
      %1936 = vmatpush2.bf16.xpose.msra.mxu0 %v1903
      %1937 = vmatprep.subr.bf16.mxu0 0
      %1938 = vmatpush2.bf16.xpose.msra.mxu0 %v1902
      %1939 = vmatprep.subr.bf16.mxu0 0
      %1940 = vmatpush2.bf16.xpose.msra.mxu0 %v1901
      %1941 = vmatprep.mubr.bf16.mxu0 0
      %1942 = vmatmul.mubr.bf16.gmra.mxu0 %v1885
      %v1943 = vpop.f32.mrf.mxu0
      %v1944 = vadd.f32 0.0, %v1943
      %v1945 = vpop.f32.mrf.mxu0
      %v1946 = vadd.f32 0.0, %v1945
      %v1947 = vpop.f32.mrf.mxu0
      %v1948 = vadd.f32 0.0, %v1947
      %v1949 = vpop.f32.mrf.mxu0
      %v1950 = vadd.f32 0.0, %v1949
      %1951 = vmatprep.mubr.bf16.mxu0 0
      %1952 = vmatmul.mubr.bf16.gmra.mxu0 %v1886
      %v1953 = vpop.f32.mrf.mxu0
      %v1954 = vadd.f32 0.0, %v1953
      %v1955 = vpop.f32.mrf.mxu0
      %v1956 = vadd.f32 0.0, %v1955
      %v1957 = vpop.f32.mrf.mxu0
      %v1958 = vadd.f32 0.0, %v1957
      %v1959 = vpop.f32.mrf.mxu0
      %v1960 = vadd.f32 0.0, %v1959
      %1961 = vmatprep.mubr.bf16.mxu0 0
      %1962 = vmatmul.mubr.bf16.gmra.mxu0 %v1887
      %v1963 = vpop.f32.mrf.mxu0
      %v1964 = vadd.f32 0.0, %v1963
      %v1965 = vpop.f32.mrf.mxu0
      %v1966 = vadd.f32 0.0, %v1965
      %v1967 = vpop.f32.mrf.mxu0
      %v1968 = vadd.f32 0.0, %v1967
      %v1969 = vpop.f32.mrf.mxu0
      %v1970 = vadd.f32 0.0, %v1969
      %1971 = vmatprep.mubr.bf16.mxu0 0
      %1972 = vmatmul.mubr.bf16.gmra.mxu0 %v1888
      %v1973 = vpop.f32.mrf.mxu0
      %v1974 = vadd.f32 0.0, %v1973
      %v1975 = vpop.f32.mrf.mxu0
      %v1976 = vadd.f32 0.0, %v1975
      %v1977 = vpop.f32.mrf.mxu0
      %v1978 = vadd.f32 0.0, %v1977
      %v1979 = vpop.f32.mrf.mxu0
      %v1980 = vadd.f32 0.0, %v1979
      %1981 = vmatprep.mubr.bf16.mxu0 0
      %1982 = vmatmul.mubr.bf16.gmra.mxu0 %v1889
      %v1983 = vpop.f32.mrf.mxu0
      %v1984 = vadd.f32 0.0, %v1983
      %v1985 = vpop.f32.mrf.mxu0
      %v1986 = vadd.f32 0.0, %v1985
      %v1987 = vpop.f32.mrf.mxu0
      %v1988 = vadd.f32 0.0, %v1987
      %v1989 = vpop.f32.mrf.mxu0
      %v1990 = vadd.f32 0.0, %v1989
      %1991 = vmatprep.mubr.bf16.mxu0 0
      %1992 = vmatmul.mubr.bf16.gmra.mxu0 %v1890
      %v1993 = vpop.f32.mrf.mxu0
      %v1994 = vadd.f32 0.0, %v1993
      %v1995 = vpop.f32.mrf.mxu0
      %v1996 = vadd.f32 0.0, %v1995
      %v1997 = vpop.f32.mrf.mxu0
      %v1998 = vadd.f32 0.0, %v1997
      %v1999 = vpop.f32.mrf.mxu0
      %v2000 = vadd.f32 0.0, %v1999
      %2001 = vmatprep.mubr.bf16.mxu0 0
      %2002 = vmatmul.mubr.bf16.gmra.mxu0 %v1891
      %v2003 = vpop.f32.mrf.mxu0
      %v2004 = vadd.f32 0.0, %v2003
      %v2005 = vpop.f32.mrf.mxu0
      %v2006 = vadd.f32 0.0, %v2005
      %v2007 = vpop.f32.mrf.mxu0
      %v2008 = vadd.f32 0.0, %v2007
      %v2009 = vpop.f32.mrf.mxu0
      %v2010 = vadd.f32 0.0, %v2009
      %2011 = vmatprep.mubr.bf16.mxu0 0
      %2012 = vmatmul.mubr.bf16.gmra.mxu0 %v1892
      %v2013 = vpop.f32.mrf.mxu0
      %v2014 = vadd.f32 0.0, %v2013
      %v2015 = vpop.f32.mrf.mxu0
      %v2016 = vadd.f32 0.0, %v2015
      %v2017 = vpop.f32.mrf.mxu0
      %v2018 = vadd.f32 0.0, %v2017
      %v2019 = vpop.f32.mrf.mxu0
      %v2020 = vadd.f32 0.0, %v2019
      %2021 = vdwg.mxu0
      %v2022 = vmul.f32 %v1944, 0.088388346
      %v2023 = vmul.f32 %v1946, 0.088388346
      %v2024 = vmul.f32 %v1948, 0.088388346
      %v2025 = vmul.f32 %v1950, 0.088388346
      %v2026 = vmul.f32 %v1954, 0.088388346
      %v2027 = vmul.f32 %v1956, 0.088388346
      %v2028 = vmul.f32 %v1958, 0.088388346
      %v2029 = vmul.f32 %v1960, 0.088388346
      %v2030 = vmul.f32 %v1964, 0.088388346
      %v2031 = vmul.f32 %v1966, 0.088388346
      %v2032 = vmul.f32 %v1968, 0.088388346
      %v2033 = vmul.f32 %v1970, 0.088388346
      %v2034 = vmul.f32 %v1974, 0.088388346
      %v2035 = vmul.f32 %v1976, 0.088388346
      %v2036 = vmul.f32 %v1978, 0.088388346
      %v2037 = vmul.f32 %v1980, 0.088388346
      %v2038 = vmul.f32 %v1984, 0.088388346
      %v2039 = vmul.f32 %v1986, 0.088388346
      %v2040 = vmul.f32 %v1988, 0.088388346
      %v2041 = vmul.f32 %v1990, 0.088388346
      %v2042 = vmul.f32 %v1994, 0.088388346
      %v2043 = vmul.f32 %v1996, 0.088388346
      %v2044 = vmul.f32 %v1998, 0.088388346
      %v2045 = vmul.f32 %v2000, 0.088388346
      %v2046 = vmul.f32 %v2004, 0.088388346
      %v2047 = vmul.f32 %v2006, 0.088388346
      %v2048 = vmul.f32 %v2008, 0.088388346
      %v2049 = vmul.f32 %v2010, 0.088388346
      %v2050 = vmul.f32 %v2014, 0.088388346
      %v2051 = vmul.f32 %v2016, 0.088388346
      %v2052 = vmul.f32 %v2018, 0.088388346
      %v2053 = vmul.f32 %v2020, 0.088388346
      %2054 = vst [vmem:[#allocation2] sm:$0xff] %v2022
      %2055 = vst [vmem:[#allocation2 + $0x8] sm:$0xff] %v2023
      %2056 = vst [vmem:[#allocation2 + $0x10] sm:$0xff] %v2024
      %2057 = vst [vmem:[#allocation2 + $0x18] sm:$0xff] %v2025
      %2058 = vst [vmem:[#allocation2 + $0x20] sm:$0xff] %v2026
      %2059 = vst [vmem:[#allocation2 + $0x28] sm:$0xff] %v2027
      %2060 = vst [vmem:[#allocation2 + $0x30] sm:$0xff] %v2028
      %2061 = vst [vmem:[#allocation2 + $0x38] sm:$0xff] %v2029
      %2062 = vst [vmem:[#allocation2 + $0x40] sm:$0xff] %v2030
      %2063 = vst [vmem:[#allocation2 + $0x48] sm:$0xff] %v2031
      %2064 = vst [vmem:[#allocation2 + $0x50] sm:$0xff] %v2032
      %2065 = vst [vmem:[#allocation2 + $0x58] sm:$0xff] %v2033
      %2066 = vst [vmem:[#allocation2 + $0x60] sm:$0xff] %v2034
      %2067 = vst [vmem:[#allocation2 + $0x68] sm:$0xff] %v2035
      %2068 = vst [vmem:[#allocation2 + $0x70] sm:$0xff] %v2036
      %2069 = vst [vmem:[#allocation2 + $0x78] sm:$0xff] %v2037
      %2070 = vst [vmem:[#allocation2 + $0x80] sm:$0xff] %v2038
      %2071 = vst [vmem:[#allocation2 + $0x88] sm:$0xff] %v2039
      %2072 = vst [vmem:[#allocation2 + $0x90] sm:$0xff] %v2040
      %2073 = vst [vmem:[#allocation2 + $0x98] sm:$0xff] %v2041
      %2074 = vst [vmem:[#allocation2 + $0xa0] sm:$0xff] %v2042
      %2075 = vst [vmem:[#allocation2 + $0xa8] sm:$0xff] %v2043
      %2076 = vst [vmem:[#allocation2 + $0xb0] sm:$0xff] %v2044
      %2077 = vst [vmem:[#allocation2 + $0xb8] sm:$0xff] %v2045
      %2078 = vst [vmem:[#allocation2 + $0xc0] sm:$0xff] %v2046
      %2079 = vst [vmem:[#allocation2 + $0xc8] sm:$0xff] %v2047
      %2080 = vst [vmem:[#allocation2 + $0xd0] sm:$0xff] %v2048
      %2081 = vst [vmem:[#allocation2 + $0xd8] sm:$0xff] %v2049
      %2082 = vst [vmem:[#allocation2 + $0xe0] sm:$0xff] %v2050
      %2083 = vst [vmem:[#allocation2 + $0xe8] sm:$0xff] %v2051
      %2084 = vst [vmem:[#allocation2 + $0xf0] sm:$0xff] %v2052
      %2085 = vst [vmem:[#allocation2 + $0xf8] sm:$0xff] %v2053
      %v2086 = vtanh.pop %v1823
      %v2087 = vtanh.pop %v1826
      %v2088 = vtanh.pop %v1831
      %v2089 = vtanh.pop %v1834
      %v2090 = vtanh.pop %v1839
      %v2091 = vtanh.pop %v1842
      %v2092 = vtanh.pop %v1847
      %v2093 = vtanh.pop %v1850
      %v2094 = vtanh.pop %v1855
      %v2095 = vtanh.pop %v1858
      %v2096 = vtanh.pop %v1863
      %v2097 = vtanh.pop %v1866
      %v2098 = vtanh.pop %v1871
      %v2099 = vtanh.pop %v1874
      %v2100 = vtanh.pop %v1879
      %v2101 = vtanh.pop %v1882
      %2102 = vst.msk [vmem:[#allocation3] sm:$0xff] %vm977, %v2086
      %2103 = vst.msk [vmem:[#allocation3 + $0x8] sm:$0xff] %vm977, %v2087
      %2104 = vst.msk [vmem:[#allocation3 + $0x10] sm:$0xff] %vm977, %v2088
      %2105 = vst.msk [vmem:[#allocation3 + $0x18] sm:$0xff] %vm977, %v2089
      %2106 = vst.msk [vmem:[#allocation3 + $0x20] sm:$0xff] %vm977, %v2090
      %2107 = vst.msk [vmem:[#allocation3 + $0x28] sm:$0xff] %vm977, %v2091
      %2108 = vst.msk [vmem:[#allocation3 + $0x30] sm:$0xff] %vm977, %v2092
      %2109 = vst.msk [vmem:[#allocation3 + $0x38] sm:$0xff] %vm977, %v2093
      %2110 = vst.msk [vmem:[#allocation3 + $0x40] sm:$0xff] %vm977, %v2094
      %2111 = vst.msk [vmem:[#allocation3 + $0x48] sm:$0xff] %vm977, %v2095
      %2112 = vst.msk [vmem:[#allocation3 + $0x50] sm:$0xff] %vm977, %v2096
      %2113 = vst.msk [vmem:[#allocation3 + $0x58] sm:$0xff] %vm977, %v2097
      %2114 = vst.msk [vmem:[#allocation3 + $0x60] sm:$0xff] %vm977, %v2098
      %2115 = vst.msk [vmem:[#allocation3 + $0x68] sm:$0xff] %vm977, %v2099
      %2116 = vst.msk [vmem:[#allocation3 + $0x70] sm:$0xff] %vm977, %v2100
      %2117 = vst.msk [vmem:[#allocation3 + $0x78] sm:$0xff] %vm977, %v2101
      %v2118 = vmax.f32 %v1823, 0.0
      %v2119 = vmax.f32 %v1826, 0.0
      %v2120 = vmax.f32 %v1831, 0.0
      %v2121 = vmax.f32 %v1834, 0.0
      %v2122 = vmax.f32 %v1839, 0.0
      %v2123 = vmax.f32 %v1842, 0.0
      %v2124 = vmax.f32 %v1847, 0.0
      %v2125 = vmax.f32 %v1850, 0.0
      %v2126 = vmax.f32 %v1855, 0.0
      %v2127 = vmax.f32 %v1858, 0.0
      %v2128 = vmax.f32 %v1863, 0.0
      %v2129 = vmax.f32 %v1866, 0.0
      %v2130 = vmax.f32 %v1871, 0.0
      %v2131 = vmax.f32 %v1874, 0.0
      %v2132 = vmax.f32 %v1879, 0.0
      %v2133 = vmax.f32 %v1882, 0.0
      %v2134 = vpack.c.bf16 %v2119, %v2118
      %v2135 = vpack.c.bf16 %v2121, %v2120
      %v2136 = vpack.c.bf16 %v2123, %v2122
      %v2137 = vpack.c.bf16 %v2125, %v2124
      %v2138 = vpack.c.bf16 %v2127, %v2126
      %v2139 = vpack.c.bf16 %v2129, %v2128
      %v2140 = vpack.c.bf16 %v2131, %v2130
      %v2141 = vpack.c.bf16 %v2133, %v2132
      %v2142 = vld [vmem:[%s10] sm:$0xff]
      %v2143 = vld [vmem:[%s10 + $0x8] sm:$0xff]
      %v2144 = vld [vmem:[%s10 + $0x10] sm:$0xff]
      %v2145 = vld [vmem:[%s10 + $0x18] sm:$0xff]
      %v2146 = vld [vmem:[%s10 + $0x20] sm:$0xff]
      %v2147 = vld [vmem:[%s10 + $0x28] sm:$0xff]
      %v2148 = vld [vmem:[%s10 + $0x30] sm:$0xff]
      %v2149 = vld [vmem:[%s10 + $0x38] sm:$0xff]
      %v2150 = vld [vmem:[%s11] sm:$0x3]
      %v2152 = vlaneseq
      %v2153 = vshrl.u32 %v2152, 7
      %v2154 = vsub.s32 0, %v2153
      %v2155 = vrot.slane %v2150, %v2154
      %v2156 = vlaneseq
      %v2157 = vshrl.u32 %v2156, 7
      %v2158 = vsub.s32 1, %v2157
      %v2159 = vrot.slane %v2150, %v2158
      %2170 = vrot.lane.b32.xlu0 %v2134, 64
      %v2171 = vpop.permute.xlu0 %2170
      %2172 = vrot.lane.b32.xlu0 %v2135, 64
      %v2173 = vpop.permute.xlu0 %2172
      %2174 = vrot.lane.b32.xlu0 %v2136, 64
      %v2175 = vpop.permute.xlu0 %2174
      %2176 = vrot.lane.b32.xlu0 %v2137, 64
      %v2177 = vpop.permute.xlu0 %2176
      %2178 = vrot.lane.b32.xlu0 %v2138, 64
      %v2179 = vpop.permute.xlu0 %2178
      %2180 = vrot.lane.b32.xlu0 %v2139, 64
      %v2181 = vpop.permute.xlu0 %2180
      %2182 = vrot.lane.b32.xlu0 %v2140, 64
      %v2183 = vpop.permute.xlu0 %2182
      %2184 = vrot.lane.b32.xlu0 %v2141, 64
      %v2185 = vpop.permute.xlu0 %2184
      %v2194 = vunpack.c.l.b16 %v2142
      %v2195 = vunpack.c.h.b16 %v2142
      %v2196 = vunpack.c.l.b16 %v2143
      %v2197 = vunpack.c.h.b16 %v2143
      %v2198 = vunpack.c.l.b16 %v2144
      %v2199 = vunpack.c.h.b16 %v2144
      %v2200 = vunpack.c.l.b16 %v2145
      %v2201 = vunpack.c.h.b16 %v2145
      %v2202 = vunpack.c.l.b16 %v2146
      %v2203 = vunpack.c.h.b16 %v2146
      %v2204 = vunpack.c.l.b16 %v2147
      %v2205 = vunpack.c.h.b16 %v2147
      %v2206 = vunpack.c.l.b16 %v2148
      %v2207 = vunpack.c.h.b16 %v2148
      %v2208 = vunpack.c.l.b16 %v2149
      %v2209 = vunpack.c.h.b16 %v2149
      %v2210 = vpack.c.b16 %v2196, %v2194
      %v2211 = vpack.c.b16 %v2197, %v2195
      %v2212 = vpack.c.b16 %v2200, %v2198
      %v2213 = vpack.c.b16 %v2201, %v2199
      %v2214 = vpack.c.b16 %v2204, %v2202
      %v2215 = vpack.c.b16 %v2205, %v2203
      %v2216 = vpack.c.b16 %v2208, %v2206
      %v2217 = vpack.c.b16 %v2209, %v2207
      %v2227 = vsel %vm977, %v2171, 0
      %v2230 = vsel %vm977, %v2173, 0
      %v2233 = vsel %vm977, %v2175, 0
      %v2236 = vsel %vm977, %v2177, 0
      %v2239 = vsel %vm977, %v2179, 0
      %v2242 = vsel %vm977, %v2181, 0
      %v2245 = vsel %vm977, %v2183, 0
      %v2248 = vsel %vm977, %v2185, 0
      %2250 = vmatprep.subr.bf16.mxu0 0
      %2251 = vmatpush1.bf16.msra.mxu0 0
      %2252 = vmatprep.subr.bf16.mxu0 0
      %2253 = vmatpush1.bf16.msra.mxu0 0
      %2254 = vmatprep.subr.bf16.mxu0 0
      %2255 = vmatpush1.bf16.msra.mxu0 0
      %2256 = vmatprep.subr.bf16.mxu0 0
      %2257 = vmatpush1.bf16.msra.mxu0 0
      %2258 = vmatprep.subr.bf16.mxu0 %v2217
      %2259 = vmatpush1.bf16.msra.mxu0 %v2216
      %2260 = vmatprep.subr.bf16.mxu0 %v2215
      %2261 = vmatpush1.bf16.msra.mxu0 %v2214
      %2262 = vmatprep.subr.bf16.mxu0 %v2213
      %2263 = vmatpush1.bf16.msra.mxu0 %v2212
      %2264 = vmatprep.subr.bf16.mxu0 %v2211
      %2265 = vmatpush1.bf16.msra.mxu0 %v2210
      %2266 = vmatprep.subr.bf16.mxu0 0
      %2267 = vmatpush2.bf16.msra.mxu0 0
      %2268 = vmatprep.subr.bf16.mxu0 0
      %2269 = vmatpush2.bf16.msra.mxu0 0
      %2270 = vmatprep.subr.bf16.mxu0 0
      %2271 = vmatpush2.bf16.msra.mxu0 0
      %2272 = vmatprep.subr.bf16.mxu0 0
      %2273 = vmatpush2.bf16.msra.mxu0 0
      %2274 = vmatprep.subr.bf16.mxu0 0
      %2275 = vmatpush2.bf16.msra.mxu0 0
      %2276 = vmatprep.subr.bf16.mxu0 0
      %2277 = vmatpush2.bf16.msra.mxu0 0
      %2278 = vmatprep.subr.bf16.mxu0 0
      %2279 = vmatpush2.bf16.msra.mxu0 0
      %2280 = vmatprep.subr.bf16.mxu0 0
      %2281 = vmatpush2.bf16.msra.mxu0 0
      %2282 = vmatprep.mubr.bf16.mxu0 0
      %2283 = vmatmul.mubr.bf16.gmra.mxu0 %v2227
      %v2284 = vpop.f32.mrf.mxu0
      %v2285 = vadd.f32 %v2155, %v2284
      %v2286 = vpop.f32.mrf.mxu0
      %v2287 = vadd.f32 %v2159, %v2286
      %v2288 = vpop.f32.mrf.mxu0
      %v2289 = vadd.f32 %v2155, %v2288
      %v2290 = vpop.f32.mrf.mxu0
      %v2291 = vadd.f32 %v2159, %v2290
      %2292 = vmatprep.mubr.bf16.mxu0 0
      %2293 = vmatmul.mubr.bf16.gmra.mxu0 %v2230
      %v2294 = vpop.f32.mrf.mxu0
      %v2295 = vadd.f32 %v2155, %v2294
      %v2296 = vpop.f32.mrf.mxu0
      %v2297 = vadd.f32 %v2159, %v2296
      %v2298 = vpop.f32.mrf.mxu0
      %v2299 = vadd.f32 %v2155, %v2298
      %v2300 = vpop.f32.mrf.mxu0
      %v2301 = vadd.f32 %v2159, %v2300
      %2302 = vmatprep.mubr.bf16.mxu0 0
      %2303 = vmatmul.mubr.bf16.gmra.mxu0 %v2233
      %v2304 = vpop.f32.mrf.mxu0
      %v2305 = vadd.f32 %v2155, %v2304
      %v2306 = vpop.f32.mrf.mxu0
      %v2307 = vadd.f32 %v2159, %v2306
      %v2308 = vpop.f32.mrf.mxu0
      %v2309 = vadd.f32 %v2155, %v2308
      %v2310 = vpop.f32.mrf.mxu0
      %v2311 = vadd.f32 %v2159, %v2310
      %2312 = vmatprep.mubr.bf16.mxu0 0
      %2313 = vmatmul.mubr.bf16.gmra.mxu0 %v2236
      %v2314 = vpop.f32.mrf.mxu0
      %v2315 = vadd.f32 %v2155, %v2314
      %v2316 = vpop.f32.mrf.mxu0
      %v2317 = vadd.f32 %v2159, %v2316
      %v2318 = vpop.f32.mrf.mxu0
      %v2319 = vadd.f32 %v2155, %v2318
      %v2320 = vpop.f32.mrf.mxu0
      %v2321 = vadd.f32 %v2159, %v2320
      %2322 = vmatprep.mubr.bf16.mxu0 0
      %2323 = vmatmul.mubr.bf16.gmra.mxu0 %v2239
      %v2324 = vpop.f32.mrf.mxu0
      %v2325 = vadd.f32 %v2155, %v2324
      %v2326 = vpop.f32.mrf.mxu0
      %v2327 = vadd.f32 %v2159, %v2326
      %v2328 = vpop.f32.mrf.mxu0
      %v2329 = vadd.f32 %v2155, %v2328
      %v2330 = vpop.f32.mrf.mxu0
      %v2331 = vadd.f32 %v2159, %v2330
      %2332 = vmatprep.mubr.bf16.mxu0 0
      %2333 = vmatmul.mubr.bf16.gmra.mxu0 %v2242
      %v2334 = vpop.f32.mrf.mxu0
      %v2335 = vadd.f32 %v2155, %v2334
      %v2336 = vpop.f32.mrf.mxu0
      %v2337 = vadd.f32 %v2159, %v2336
      %v2338 = vpop.f32.mrf.mxu0
      %v2339 = vadd.f32 %v2155, %v2338
      %v2340 = vpop.f32.mrf.mxu0
      %v2341 = vadd.f32 %v2159, %v2340
      %2342 = vmatprep.mubr.bf16.mxu0 0
      %2343 = vmatmul.mubr.bf16.gmra.mxu0 %v2245
      %v2344 = vpop.f32.mrf.mxu0
      %v2345 = vadd.f32 %v2155, %v2344
      %v2346 = vpop.f32.mrf.mxu0
      %v2347 = vadd.f32 %v2159, %v2346
      %v2348 = vpop.f32.mrf.mxu0
      %v2349 = vadd.f32 %v2155, %v2348
      %v2350 = vpop.f32.mrf.mxu0
      %v2351 = vadd.f32 %v2159, %v2350
      %2352 = vmatprep.mubr.bf16.mxu0 0
      %2353 = vmatmul.mubr.bf16.gmra.mxu0 %v2248
      %v2354 = vpop.f32.mrf.mxu0
      %v2355 = vadd.f32 %v2155, %v2354
      %v2356 = vpop.f32.mrf.mxu0
      %v2357 = vadd.f32 %v2159, %v2356
      %v2358 = vpop.f32.mrf.mxu0
      %v2359 = vadd.f32 %v2155, %v2358
      %v2360 = vpop.f32.mrf.mxu0
      %v2361 = vadd.f32 %v2159, %v2360
      %2362 = vdwg.mxu0
      %2363 = vst [vmem:[#allocation5] sm:$0xff] %v2285
      %2364 = vst [vmem:[#allocation5 + $0x8] sm:$0xff] %v2287
      %2365 = vst [vmem:[#allocation5 + $0x10] sm:$0xff] %v2289
      %2366 = vst [vmem:[#allocation5 + $0x18] sm:$0xff] %v2291
      %2367 = vst [vmem:[#allocation5 + $0x20] sm:$0xff] %v2295
      %2368 = vst [vmem:[#allocation5 + $0x28] sm:$0xff] %v2297
      %2369 = vst [vmem:[#allocation5 + $0x30] sm:$0xff] %v2299
      %2370 = vst [vmem:[#allocation5 + $0x38] sm:$0xff] %v2301
      %2371 = vst [vmem:[#allocation5 + $0x40] sm:$0xff] %v2305
      %2372 = vst [vmem:[#allocation5 + $0x48] sm:$0xff] %v2307
      %2373 = vst [vmem:[#allocation5 + $0x50] sm:$0xff] %v2309
      %2374 = vst [vmem:[#allocation5 + $0x58] sm:$0xff] %v2311
      %2375 = vst [vmem:[#allocation5 + $0x60] sm:$0xff] %v2315
      %2376 = vst [vmem:[#allocation5 + $0x68] sm:$0xff] %v2317
      %2377 = vst [vmem:[#allocation5 + $0x70] sm:$0xff] %v2319
      %2378 = vst [vmem:[#allocation5 + $0x78] sm:$0xff] %v2321
      %2379 = vst [vmem:[#allocation5 + $0x80] sm:$0xff] %v2325
      %2380 = vst [vmem:[#allocation5 + $0x88] sm:$0xff] %v2327
      %2381 = vst [vmem:[#allocation5 + $0x90] sm:$0xff] %v2329
      %2382 = vst [vmem:[#allocation5 + $0x98] sm:$0xff] %v2331
      %2383 = vst [vmem:[#allocation5 + $0xa0] sm:$0xff] %v2335
      %2384 = vst [vmem:[#allocation5 + $0xa8] sm:$0xff] %v2337
      %2385 = vst [vmem:[#allocation5 + $0xb0] sm:$0xff] %v2339
      %2386 = vst [vmem:[#allocation5 + $0xb8] sm:$0xff] %v2341
      %2387 = vst [vmem:[#allocation5 + $0xc0] sm:$0xff] %v2345
      %2388 = vst [vmem:[#allocation5 + $0xc8] sm:$0xff] %v2347
      %2389 = vst [vmem:[#allocation5 + $0xd0] sm:$0xff] %v2349
      %2390 = vst [vmem:[#allocation5 + $0xd8] sm:$0xff] %v2351
      %2391 = vst [vmem:[#allocation5 + $0xe0] sm:$0xff] %v2355
      %2392 = vst [vmem:[#allocation5 + $0xe8] sm:$0xff] %v2357
      %2393 = vst [vmem:[#allocation5 + $0xf0] sm:$0xff] %v2359
      %2394 = vst [vmem:[#allocation5 + $0xf8] sm:$0xff] %v2361
      %v2395 = vlaneseq
      %v2396 = vand.u32 %v2395, 127
      %v2397 = vmul.f32 %v706, %v706
      %v2398 = vmul.f32 %v707, %v707
      %v2399 = vmul.f32 %v708, %v708
      %v2400 = vmul.f32 %v709, %v709
      %v2401 = vmul.f32 %v710, %v710
      %v2402 = vmul.f32 %v711, %v711
      %v2403 = vmul.f32 %v712, %v712
      %v2404 = vmul.f32 %v713, %v713
      %v2405 = vmul.f32 %v714, %v714
      %v2406 = vmul.f32 %v715, %v715
      %v2407 = vmul.f32 %v716, %v716
      %v2408 = vmul.f32 %v717, %v717
      %v2409 = vmul.f32 %v718, %v718
      %v2410 = vmul.f32 %v719, %v719
      %v2411 = vmul.f32 %v720, %v720
      %v2412 = vmul.f32 %v721, %v721
      %v2413 = vmul.f32 %v722, %v722
      %v2414 = vmul.f32 %v723, %v723
      %v2415 = vmul.f32 %v724, %v724
      %v2416 = vmul.f32 %v725, %v725
      %v2417 = vmul.f32 %v726, %v726
      %v2418 = vmul.f32 %v727, %v727
      %v2419 = vmul.f32 %v728, %v728
      %v2420 = vmul.f32 %v729, %v729
      %v2421 = vmul.f32 %v730, %v730
      %v2422 = vmul.f32 %v731, %v731
      %v2423 = vmul.f32 %v732, %v732
      %v2424 = vmul.f32 %v733, %v733
      %v2425 = vmul.f32 %v734, %v734
      %v2426 = vmul.f32 %v735, %v735
      %v2427 = vmul.f32 %v736, %v736
      %v2428 = vmul.f32 %v737, %v737
      %2429 = vadd.xlane.f32.xlu0 %v2397
      %v2430 = vpop.xlane.xlu0 %2429
      %2431 = vadd.xlane.f32.xlu0 %v2398
      %v2432 = vpop.xlane.xlu0 %2431
      %2433 = vadd.xlane.f32.xlu0 %v2399
      %v2434 = vpop.xlane.xlu0 %2433
      %2435 = vadd.xlane.f32.xlu0 %v2400
      %v2436 = vpop.xlane.xlu0 %2435
      %2437 = vadd.xlane.f32.xlu0 %v2401
      %v2438 = vpop.xlane.xlu0 %2437
      %2439 = vadd.xlane.f32.xlu0 %v2402
      %v2440 = vpop.xlane.xlu0 %2439
      %2441 = vadd.xlane.f32.xlu0 %v2403
      %v2442 = vpop.xlane.xlu0 %2441
      %2443 = vadd.xlane.f32.xlu0 %v2404
      %v2444 = vpop.xlane.xlu0 %2443
      %2445 = vadd.xlane.f32.xlu0 %v2405
      %v2446 = vpop.xlane.xlu0 %2445
      %2447 = vadd.xlane.f32.xlu0 %v2406
      %v2448 = vpop.xlane.xlu0 %2447
      %2449 = vadd.xlane.f32.xlu0 %v2407
      %v2450 = vpop.xlane.xlu0 %2449
      %2451 = vadd.xlane.f32.xlu0 %v2408
      %v2452 = vpop.xlane.xlu0 %2451
      %2453 = vadd.xlane.f32.xlu0 %v2409
      %v2454 = vpop.xlane.xlu0 %2453
      %2455 = vadd.xlane.f32.xlu0 %v2410
      %v2456 = vpop.xlane.xlu0 %2455
      %2457 = vadd.xlane.f32.xlu0 %v2411
      %v2458 = vpop.xlane.xlu0 %2457
      %2459 = vadd.xlane.f32.xlu0 %v2412
      %v2460 = vpop.xlane.xlu0 %2459
      %2461 = vadd.xlane.f32.xlu0 %v2413
      %v2462 = vpop.xlane.xlu0 %2461
      %2463 = vadd.xlane.f32.xlu0 %v2414
      %v2464 = vpop.xlane.xlu0 %2463
      %2465 = vadd.xlane.f32.xlu0 %v2415
      %v2466 = vpop.xlane.xlu0 %2465
      %2467 = vadd.xlane.f32.xlu0 %v2416
      %v2468 = vpop.xlane.xlu0 %2467
      %2469 = vadd.xlane.f32.xlu0 %v2417
      %v2470 = vpop.xlane.xlu0 %2469
      %2471 = vadd.xlane.f32.xlu0 %v2418
      %v2472 = vpop.xlane.xlu0 %2471
      %2473 = vadd.xlane.f32.xlu0 %v2419
      %v2474 = vpop.xlane.xlu0 %2473
      %2475 = vadd.xlane.f32.xlu0 %v2420
      %v2476 = vpop.xlane.xlu0 %2475
      %2477 = vadd.xlane.f32.xlu0 %v2421
      %v2478 = vpop.xlane.xlu0 %2477
      %2479 = vadd.xlane.f32.xlu0 %v2422
      %v2480 = vpop.xlane.xlu0 %2479
      %2481 = vadd.xlane.f32.xlu0 %v2423
      %v2482 = vpop.xlane.xlu0 %2481
      %2483 = vadd.xlane.f32.xlu0 %v2424
      %v2484 = vpop.xlane.xlu0 %2483
      %2485 = vadd.xlane.f32.xlu0 %v2425
      %v2486 = vpop.xlane.xlu0 %2485
      %2487 = vadd.xlane.f32.xlu0 %v2426
      %v2488 = vpop.xlane.xlu0 %2487
      %2489 = vadd.xlane.f32.xlu0 %v2427
      %v2490 = vpop.xlane.xlu0 %2489
      %2491 = vadd.xlane.f32.xlu0 %v2428
      %v2492 = vpop.xlane.xlu0 %2491
      %vm2493 = vcmp.eq.s32.totalorder %v2396, 3
      %v2494 = vmul.f32 %v706, -2.0
      %v2495 = vmul.f32 %v707, -2.0
      %v2496 = vmul.f32 %v708, -2.0
      %v2497 = vmul.f32 %v709, -2.0
      %v2498 = vmul.f32 %v710, -2.0
      %v2499 = vmul.f32 %v711, -2.0
      %v2500 = vmul.f32 %v712, -2.0
      %v2501 = vmul.f32 %v713, -2.0
      %v2502 = vmul.f32 %v714, -2.0
      %v2503 = vmul.f32 %v715, -2.0
      %v2504 = vmul.f32 %v716, -2.0
      %v2505 = vmul.f32 %v717, -2.0
      %v2506 = vmul.f32 %v718, -2.0
      %v2507 = vmul.f32 %v719, -2.0
      %v2508 = vmul.f32 %v720, -2.0
      %v2509 = vmul.f32 %v721, -2.0
      %v2510 = vmul.f32 %v722, -2.0
      %v2511 = vmul.f32 %v723, -2.0
      %v2512 = vmul.f32 %v724, -2.0
      %v2513 = vmul.f32 %v725, -2.0
      %v2514 = vmul.f32 %v726, -2.0
      %v2515 = vmul.f32 %v727, -2.0
      %v2516 = vmul.f32 %v728, -2.0
      %v2517 = vmul.f32 %v729, -2.0
      %v2518 = vmul.f32 %v730, -2.0
      %v2519 = vmul.f32 %v731, -2.0
      %v2520 = vmul.f32 %v732, -2.0
      %v2521 = vmul.f32 %v733, -2.0
      %v2522 = vmul.f32 %v734, -2.0
      %v2523 = vmul.f32 %v735, -2.0
      %v2524 = vmul.f32 %v736, -2.0
      %v2525 = vmul.f32 %v737, -2.0
      %v2526 = vsel %vm2493, 1, 0
      %vm2527 = vcmp.eq.s32.totalorder %v2526, 1
      %v2528 = vsel %vm2527, %v2430, %v2494
      %v2529 = vsel %vm2527, %v2432, %v2495
      %v2530 = vsel %vm2527, %v2434, %v2496
      %v2531 = vsel %vm2527, %v2436, %v2497
      %v2532 = vsel %vm2527, %v2438, %v2498
      %v2533 = vsel %vm2527, %v2440, %v2499
      %v2534 = vsel %vm2527, %v2442, %v2500
      %v2535 = vsel %vm2527, %v2444, %v2501
      %v2536 = vsel %vm2527, %v2446, %v2502
      %v2537 = vsel %vm2527, %v2448, %v2503
      %v2538 = vsel %vm2527, %v2450, %v2504
      %v2539 = vsel %vm2527, %v2452, %v2505
      %v2540 = vsel %vm2527, %v2454, %v2506
      %v2541 = vsel %vm2527, %v2456, %v2507
      %v2542 = vsel %vm2527, %v2458, %v2508
      %v2543 = vsel %vm2527, %v2460, %v2509
      %v2544 = vsel %vm2527, %v2462, %v2510
      %v2545 = vsel %vm2527, %v2464, %v2511
      %v2546 = vsel %vm2527, %v2466, %v2512
      %v2547 = vsel %vm2527, %v2468, %v2513
      %v2548 = vsel %vm2527, %v2470, %v2514
      %v2549 = vsel %vm2527, %v2472, %v2515
      %v2550 = vsel %vm2527, %v2474, %v2516
      %v2551 = vsel %vm2527, %v2476, %v2517
      %v2552 = vsel %vm2527, %v2478, %v2518
      %v2553 = vsel %vm2527, %v2480, %v2519
      %v2554 = vsel %vm2527, %v2482, %v2520
      %v2555 = vsel %vm2527, %v2484, %v2521
      %v2556 = vsel %vm2527, %v2486, %v2522
      %v2557 = vsel %vm2527, %v2488, %v2523
      %v2558 = vsel %vm2527, %v2490, %v2524
      %v2559 = vsel %vm2527, %v2492, %v2525
      %2560 = vst [vmem:[#allocation6] sm:$0xff] %v2528
      %2561 = vst [vmem:[#allocation6 + $0x8] sm:$0xff] %v2529
      %2562 = vst [vmem:[#allocation6 + $0x10] sm:$0xff] %v2530
      %2563 = vst [vmem:[#allocation6 + $0x18] sm:$0xff] %v2531
      %2564 = vst [vmem:[#allocation6 + $0x20] sm:$0xff] %v2532
      %2565 = vst [vmem:[#allocation6 + $0x28] sm:$0xff] %v2533
      %2566 = vst [vmem:[#allocation6 + $0x30] sm:$0xff] %v2534
      %2567 = vst [vmem:[#allocation6 + $0x38] sm:$0xff] %v2535
      %2568 = vst [vmem:[#allocation6 + $0x40] sm:$0xff] %v2536
      %2569 = vst [vmem:[#allocation6 + $0x48] sm:$0xff] %v2537
      %2570 = vst [vmem:[#allocation6 + $0x50] sm:$0xff] %v2538
      %2571 = vst [vmem:[#allocation6 + $0x58] sm:$0xff] %v2539
      %2572 = vst [vmem:[#allocation6 + $0x60] sm:$0xff] %v2540
      %2573 = vst [vmem:[#allocation6 + $0x68] sm:$0xff] %v2541
      %2574 = vst [vmem:[#allocation6 + $0x70] sm:$0xff] %v2542
      %2575 = vst [vmem:[#allocation6 + $0x78] sm:$0xff] %v2543
      %2576 = vst [vmem:[#allocation6 + $0x80] sm:$0xff] %v2544
      %2577 = vst [vmem:[#allocation6 + $0x88] sm:$0xff] %v2545
      %2578 = vst [vmem:[#allocation6 + $0x90] sm:$0xff] %v2546
      %2579 = vst [vmem:[#allocation6 + $0x98] sm:$0xff] %v2547
      %2580 = vst [vmem:[#allocation6 + $0xa0] sm:$0xff] %v2548
      %2581 = vst [vmem:[#allocation6 + $0xa8] sm:$0xff] %v2549
      %2582 = vst [vmem:[#allocation6 + $0xb0] sm:$0xff] %v2550
      %2583 = vst [vmem:[#allocation6 + $0xb8] sm:$0xff] %v2551
      %2584 = vst [vmem:[#allocation6 + $0xc0] sm:$0xff] %v2552
      %2585 = vst [vmem:[#allocation6 + $0xc8] sm:$0xff] %v2553
      %2586 = vst [vmem:[#allocation6 + $0xd0] sm:$0xff] %v2554
      %2587 = vst [vmem:[#allocation6 + $0xd8] sm:$0xff] %v2555
      %2588 = vst [vmem:[#allocation6 + $0xe0] sm:$0xff] %v2556
      %2589 = vst [vmem:[#allocation6 + $0xe8] sm:$0xff] %v2557
      %2590 = vst [vmem:[#allocation6 + $0xf0] sm:$0xff] %v2558
      %2591 = vst [vmem:[#allocation6 + $0xf8] sm:$0xff] %v2559
      %v2592 = vsel %vm2527, 1.0, %v690
      %v2593 = vsel %vm2527, 1.0, %v691
      %v2594 = vsel %vm2527, 1.0, %v692
      %v2595 = vsel %vm2527, 1.0, %v693
      %v2596 = vsel %vm2527, 1.0, %v694
      %v2597 = vsel %vm2527, 1.0, %v695
      %v2598 = vsel %vm2527, 1.0, %v696
      %v2599 = vsel %vm2527, 1.0, %v697
      %v2600 = vsel %vm2527, 1.0, %v698
      %v2601 = vsel %vm2527, 1.0, %v699
      %v2602 = vsel %vm2527, 1.0, %v700
      %v2603 = vsel %vm2527, 1.0, %v701
      %v2604 = vsel %vm2527, 1.0, %v702
      %v2605 = vsel %vm2527, 1.0, %v703
      %v2606 = vsel %vm2527, 1.0, %v704
      %v2607 = vsel %vm2527, 1.0, %v705
      %2608 = vst [vmem:[#allocation4] sm:$0xff] %v2592
      %2609 = vst [vmem:[#allocation4 + $0x8] sm:$0xff] %v2593
      %2610 = vst [vmem:[#allocation4 + $0x10] sm:$0xff] %v2594
      %2611 = vst [vmem:[#allocation4 + $0x18] sm:$0xff] %v2595
      %2612 = vst [vmem:[#allocation4 + $0x20] sm:$0xff] %v2596
      %2613 = vst [vmem:[#allocation4 + $0x28] sm:$0xff] %v2597
      %2614 = vst [vmem:[#allocation4 + $0x30] sm:$0xff] %v2598
      %2615 = vst [vmem:[#allocation4 + $0x38] sm:$0xff] %v2599
      %2616 = vst [vmem:[#allocation4 + $0x40] sm:$0xff] %v2600
      %2617 = vst [vmem:[#allocation4 + $0x48] sm:$0xff] %v2601
      %2618 = vst [vmem:[#allocation4 + $0x50] sm:$0xff] %v2602
      %2619 = vst [vmem:[#allocation4 + $0x58] sm:$0xff] %v2603
      %2620 = vst [vmem:[#allocation4 + $0x60] sm:$0xff] %v2604
      %2621 = vst [vmem:[#allocation4 + $0x68] sm:$0xff] %v2605
      %2622 = vst [vmem:[#allocation4 + $0x70] sm:$0xff] %v2606
      %2623 = vst [vmem:[#allocation4 + $0x78] sm:$0xff] %v2607
      %vm2624 = vcmp.ne.s32.totalorder %v2396, 3
      %v2625 = vsel %vm2624, 1, 0
      %v2626 = vcvt.s32.f32 %v2625
      loop: start=0, step=1, limit=8
      $region101: #{rsf1_forward.1} parent=99 // loop_pre_header
        _
      $region102: #{rsf1_forward.1} parent=99 // loop_header
        %s2628 = sphi 0, %s2632
        %p2629 = scmp.ge.s32.totalorder %s2628, 8
      $region103: #{rsf1_forward.1} parent=99 // loop_header_branch
        %2631 = sbr.rel (%p2629) target = $region107
      $region104: #{rsf1_forward.1} parent=99 // loop_body
        %v2633 = vld [vmem:[#allocation4] sm:$0xff]
        %v2634 = vld [vmem:[#allocation4 + $0x8] sm:$0xff]
        %v2635 = vld [vmem:[#allocation4 + $0x10] sm:$0xff]
        %v2636 = vld [vmem:[#allocation4 + $0x18] sm:$0xff]
        %v2637 = vld [vmem:[#allocation4 + $0x20] sm:$0xff]
        %v2638 = vld [vmem:[#allocation4 + $0x28] sm:$0xff]
        %v2639 = vld [vmem:[#allocation4 + $0x30] sm:$0xff]
        %v2640 = vld [vmem:[#allocation4 + $0x38] sm:$0xff]
        %v2641 = vld [vmem:[#allocation4 + $0x40] sm:$0xff]
        %v2642 = vld [vmem:[#allocation4 + $0x48] sm:$0xff]
        %v2643 = vld [vmem:[#allocation4 + $0x50] sm:$0xff]
        %v2644 = vld [vmem:[#allocation4 + $0x58] sm:$0xff]
        %v2645 = vld [vmem:[#allocation4 + $0x60] sm:$0xff]
        %v2646 = vld [vmem:[#allocation4 + $0x68] sm:$0xff]
        %v2647 = vld [vmem:[#allocation4 + $0x70] sm:$0xff]
        %v2648 = vld [vmem:[#allocation4 + $0x78] sm:$0xff]
        %v2649 = vld [vmem:[#allocation3] sm:$0xff]
        %v2650 = vld [vmem:[#allocation3 + $0x8] sm:$0xff]
        %v2651 = vld [vmem:[#allocation3 + $0x10] sm:$0xff]
        %v2652 = vld [vmem:[#allocation3 + $0x18] sm:$0xff]
        %v2653 = vld [vmem:[#allocation3 + $0x20] sm:$0xff]
        %v2654 = vld [vmem:[#allocation3 + $0x28] sm:$0xff]
        %v2655 = vld [vmem:[#allocation3 + $0x30] sm:$0xff]
        %v2656 = vld [vmem:[#allocation3 + $0x38] sm:$0xff]
        %v2657 = vld [vmem:[#allocation3 + $0x40] sm:$0xff]
        %v2658 = vld [vmem:[#allocation3 + $0x48] sm:$0xff]
        %v2659 = vld [vmem:[#allocation3 + $0x50] sm:$0xff]
        %v2660 = vld [vmem:[#allocation3 + $0x58] sm:$0xff]
        %v2661 = vld [vmem:[#allocation3 + $0x60] sm:$0xff]
        %v2662 = vld [vmem:[#allocation3 + $0x68] sm:$0xff]
        %v2663 = vld [vmem:[#allocation3 + $0x70] sm:$0xff]
        %v2664 = vld [vmem:[#allocation3 + $0x78] sm:$0xff]
        %v2665 = vld [vmem:[#allocation2] sm:$0xff]
        %v2666 = vld [vmem:[#allocation2 + $0x8] sm:$0xff]
        %v2667 = vld [vmem:[#allocation2 + $0x10] sm:$0xff]
        %v2668 = vld [vmem:[#allocation2 + $0x18] sm:$0xff]
        %v2669 = vld [vmem:[#allocation2 + $0x20] sm:$0xff]
        %v2670 = vld [vmem:[#allocation2 + $0x28] sm:$0xff]
        %v2671 = vld [vmem:[#allocation2 + $0x30] sm:$0xff]
        %v2672 = vld [vmem:[#allocation2 + $0x38] sm:$0xff]
        %v2673 = vld [vmem:[#allocation2 + $0x40] sm:$0xff]
        %v2674 = vld [vmem:[#allocation2 + $0x48] sm:$0xff]
        %v2675 = vld [vmem:[#allocation2 + $0x50] sm:$0xff]
        %v2676 = vld [vmem:[#allocation2 + $0x58] sm:$0xff]
        %v2677 = vld [vmem:[#allocation2 + $0x60] sm:$0xff]
        %v2678 = vld [vmem:[#allocation2 + $0x68] sm:$0xff]
        %v2679 = vld [vmem:[#allocation2 + $0x70] sm:$0xff]
        %v2680 = vld [vmem:[#allocation2 + $0x78] sm:$0xff]
        %v2681 = vld [vmem:[#allocation2 + $0x80] sm:$0xff]
        %v2682 = vld [vmem:[#allocation2 + $0x88] sm:$0xff]
        %v2683 = vld [vmem:[#allocation2 + $0x90] sm:$0xff]
        %v2684 = vld [vmem:[#allocation2 + $0x98] sm:$0xff]
        %v2685 = vld [vmem:[#allocation2 + $0xa0] sm:$0xff]
        %v2686 = vld [vmem:[#allocation2 + $0xa8] sm:$0xff]
        %v2687 = vld [vmem:[#allocation2 + $0xb0] sm:$0xff]
        %v2688 = vld [vmem:[#allocation2 + $0xb8] sm:$0xff]
        %v2689 = vld [vmem:[#allocation2 + $0xc0] sm:$0xff]
        %v2690 = vld [vmem:[#allocation2 + $0xc8] sm:$0xff]
        %v2691 = vld [vmem:[#allocation2 + $0xd0] sm:$0xff]
        %v2692 = vld [vmem:[#allocation2 + $0xd8] sm:$0xff]
        %v2693 = vld [vmem:[#allocation2 + $0xe0] sm:$0xff]
        %v2694 = vld [vmem:[#allocation2 + $0xe8] sm:$0xff]
        %v2695 = vld [vmem:[#allocation2 + $0xf0] sm:$0xff]
        %v2696 = vld [vmem:[#allocation2 + $0xf8] sm:$0xff]
        %v2697 = vld [vmem:[#allocation6] sm:$0xff]
        %v2698 = vld [vmem:[#allocation6 + $0x8] sm:$0xff]
        %v2699 = vld [vmem:[#allocation6 + $0x10] sm:$0xff]
        %v2700 = vld [vmem:[#allocation6 + $0x18] sm:$0xff]
        %v2701 = vld [vmem:[#allocation6 + $0x20] sm:$0xff]
        %v2702 = vld [vmem:[#allocation6 + $0x28] sm:$0xff]
        %v2703 = vld [vmem:[#allocation6 + $0x30] sm:$0xff]
        %v2704 = vld [vmem:[#allocation6 + $0x38] sm:$0xff]
        %v2705 = vld [vmem:[#allocation6 + $0x40] sm:$0xff]
        %v2706 = vld [vmem:[#allocation6 + $0x48] sm:$0xff]
        %v2707 = vld [vmem:[#allocation6 + $0x50] sm:$0xff]
        %v2708 = vld [vmem:[#allocation6 + $0x58] sm:$0xff]
        %v2709 = vld [vmem:[#allocation6 + $0x60] sm:$0xff]
        %v2710 = vld [vmem:[#allocation6 + $0x68] sm:$0xff]
        %v2711 = vld [vmem:[#allocation6 + $0x70] sm:$0xff]
        %v2712 = vld [vmem:[#allocation6 + $0x78] sm:$0xff]
        %v2713 = vld [vmem:[#allocation6 + $0x80] sm:$0xff]
        %v2714 = vld [vmem:[#allocation6 + $0x88] sm:$0xff]
        %v2715 = vld [vmem:[#allocation6 + $0x90] sm:$0xff]
        %v2716 = vld [vmem:[#allocation6 + $0x98] sm:$0xff]
        %v2717 = vld [vmem:[#allocation6 + $0xa0] sm:$0xff]
        %v2718 = vld [vmem:[#allocation6 + $0xa8] sm:$0xff]
        %v2719 = vld [vmem:[#allocation6 + $0xb0] sm:$0xff]
        %v2720 = vld [vmem:[#allocation6 + $0xb8] sm:$0xff]
        %v2721 = vld [vmem:[#allocation6 + $0xc0] sm:$0xff]
        %v2722 = vld [vmem:[#allocation6 + $0xc8] sm:$0xff]
        %v2723 = vld [vmem:[#allocation6 + $0xd0] sm:$0xff]
        %v2724 = vld [vmem:[#allocation6 + $0xd8] sm:$0xff]
        %v2725 = vld [vmem:[#allocation6 + $0xe0] sm:$0xff]
        %v2726 = vld [vmem:[#allocation6 + $0xe8] sm:$0xff]
        %v2727 = vld [vmem:[#allocation6 + $0xf0] sm:$0xff]
        %v2728 = vld [vmem:[#allocation6 + $0xf8] sm:$0xff]
        %2729 = vmatprep.subr.mxu0 0.0
        %2730 = vmatpush1.xpose.msra.mxu0 %v2712
        %2731 = vmatprep.subr.mxu0 0.0
        %2732 = vmatpush1.xpose.msra.mxu0 %v2711
        %2733 = vmatprep.subr.mxu0 0.0
        %2734 = vmatpush1.xpose.msra.mxu0 %v2710
        %2735 = vmatprep.subr.mxu0 0.0
        %2736 = vmatpush1.xpose.msra.mxu0 %v2709
        %2737 = vmatprep.subr.mxu0 0.0
        %2738 = vmatpush1.xpose.msra.mxu0 %v2708
        %2739 = vmatprep.subr.mxu0 0.0
        %2740 = vmatpush1.xpose.msra.mxu0 %v2707
        %2741 = vmatprep.subr.mxu0 0.0
        %2742 = vmatpush1.xpose.msra.mxu0 %v2706
        %2743 = vmatprep.subr.mxu0 0.0
        %2744 = vmatpush1.xpose.msra.mxu0 %v2705
        %2745 = vmatprep.subr.mxu0 0.0
        %2746 = vmatpush1.xpose.msra.mxu0 %v2704
        %2747 = vmatprep.subr.mxu0 0.0
        %2748 = vmatpush1.xpose.msra.mxu0 %v2703
        %2749 = vmatprep.subr.mxu0 0.0
        %2750 = vmatpush1.xpose.msra.mxu0 %v2702
        %2751 = vmatprep.subr.mxu0 0.0
        %2752 = vmatpush1.xpose.msra.mxu0 %v2701
        %2753 = vmatprep.subr.mxu0 0.0
        %2754 = vmatpush1.xpose.msra.mxu0 %v2700
        %2755 = vmatprep.subr.mxu0 0.0
        %2756 = vmatpush1.xpose.msra.mxu0 %v2699
        %2757 = vmatprep.subr.mxu0 0.0
        %2758 = vmatpush1.xpose.msra.mxu0 %v2698
        %2759 = vmatprep.subr.mxu0 0.0
        %2760 = vmatpush1.xpose.msra.mxu0 %v2697
        %2761 = vmatprep.subr.mxu0 0.0
        %2762 = vmatpush2.xpose.msra.mxu0 %v2728
        %2763 = vmatprep.subr.mxu0 0.0
        %2764 = vmatpush2.xpose.msra.mxu0 %v2727
        %2765 = vmatprep.subr.mxu0 0.0
        %2766 = vmatpush2.xpose.msra.mxu0 %v2726
        %2767 = vmatprep.subr.mxu0 0.0
        %2768 = vmatpush2.xpose.msra.mxu0 %v2725
        %2769 = vmatprep.subr.mxu0 0.0
        %2770 = vmatpush2.xpose.msra.mxu0 %v2724
        %2771 = vmatprep.subr.mxu0 0.0
        %2772 = vmatpush2.xpose.msra.mxu0 %v2723
        %2773 = vmatprep.subr.mxu0 0.0
        %2774 = vmatpush2.xpose.msra.mxu0 %v2722
        %2775 = vmatprep.subr.mxu0 0.0
        %2776 = vmatpush2.xpose.msra.mxu0 %v2721
        %2777 = vmatprep.subr.mxu0 0.0
        %2778 = vmatpush2.xpose.msra.mxu0 %v2720
        %2779 = vmatprep.subr.mxu0 0.0
        %2780 = vmatpush2.xpose.msra.mxu0 %v2719
        %2781 = vmatprep.subr.mxu0 0.0
        %2782 = vmatpush2.xpose.msra.mxu0 %v2718
        %2783 = vmatprep.subr.mxu0 0.0
        %2784 = vmatpush2.xpose.msra.mxu0 %v2717
        %2785 = vmatprep.subr.mxu0 0.0
        %2786 = vmatpush2.xpose.msra.mxu0 %v2716
        %2787 = vmatprep.subr.mxu0 0.0
        %2788 = vmatpush2.xpose.msra.mxu0 %v2715
        %2789 = vmatprep.subr.mxu0 0.0
        %2790 = vmatpush2.xpose.msra.mxu0 %v2714
        %2791 = vmatprep.subr.mxu0 0.0
        %2792 = vmatpush2.xpose.msra.mxu0 %v2713
        %2793 = vmatprep.mubr.f32.mxu0 0.0
        %2794 = vmatmul.mubr.f32.gmra.mxu0 %v2633
        %v2795 = vpop.f32.mrf.mxu0
        %v2796 = vadd.f32 0.0, %v2795
        %v2797 = vpop.f32.mrf.mxu0
        %v2798 = vadd.f32 0.0, %v2797
        %2799 = vmatprep.mubr.f32.mxu0 0.0
        %2800 = vmatmul.mubr.f32.gmra.mxu0 %v2634
        %v2801 = vpop.f32.mrf.mxu0
        %v2802 = vadd.f32 0.0, %v2801
        %v2803 = vpop.f32.mrf.mxu0
        %v2804 = vadd.f32 0.0, %v2803
        %2805 = vmatprep.mubr.f32.mxu0 0.0
        %2806 = vmatmul.mubr.f32.gmra.mxu0 %v2635
        %v2807 = vpop.f32.mrf.mxu0
        %v2808 = vadd.f32 0.0, %v2807
        %v2809 = vpop.f32.mrf.mxu0
        %v2810 = vadd.f32 0.0, %v2809
        %2811 = vmatprep.mubr.f32.mxu0 0.0
        %2812 = vmatmul.mubr.f32.gmra.mxu0 %v2636
        %v2813 = vpop.f32.mrf.mxu0
        %v2814 = vadd.f32 0.0, %v2813
        %v2815 = vpop.f32.mrf.mxu0
        %v2816 = vadd.f32 0.0, %v2815
        %2817 = vmatprep.mubr.f32.mxu0 0.0
        %2818 = vmatmul.mubr.f32.gmra.mxu0 %v2637
        %v2819 = vpop.f32.mrf.mxu0
        %v2820 = vadd.f32 0.0, %v2819
        %v2821 = vpop.f32.mrf.mxu0
        %v2822 = vadd.f32 0.0, %v2821
        %2823 = vmatprep.mubr.f32.mxu0 0.0
        %2824 = vmatmul.mubr.f32.gmra.mxu0 %v2638
        %v2825 = vpop.f32.mrf.mxu0
        %v2826 = vadd.f32 0.0, %v2825
        %v2827 = vpop.f32.mrf.mxu0
        %v2828 = vadd.f32 0.0, %v2827
        %2829 = vmatprep.mubr.f32.mxu0 0.0
        %2830 = vmatmul.mubr.f32.gmra.mxu0 %v2639
        %v2831 = vpop.f32.mrf.mxu0
        %v2832 = vadd.f32 0.0, %v2831
        %v2833 = vpop.f32.mrf.mxu0
        %v2834 = vadd.f32 0.0, %v2833
        %2835 = vmatprep.mubr.f32.mxu0 0.0
        %2836 = vmatmul.mubr.f32.gmra.mxu0 %v2640
        %v2837 = vpop.f32.mrf.mxu0
        %v2838 = vadd.f32 0.0, %v2837
        %v2839 = vpop.f32.mrf.mxu0
        %v2840 = vadd.f32 0.0, %v2839
        %2841 = vmatprep.mubr.f32.mxu0 0.0
        %2842 = vmatmul.mubr.f32.gmra.mxu0 %v2641
        %v2843 = vpop.f32.mrf.mxu0
        %v2844 = vadd.f32 0.0, %v2843
        %v2845 = vpop.f32.mrf.mxu0
        %v2846 = vadd.f32 0.0, %v2845
        %2847 = vmatprep.mubr.f32.mxu0 0.0
        %2848 = vmatmul.mubr.f32.gmra.mxu0 %v2642
        %v2849 = vpop.f32.mrf.mxu0
        %v2850 = vadd.f32 0.0, %v2849
        %v2851 = vpop.f32.mrf.mxu0
        %v2852 = vadd.f32 0.0, %v2851
        %2853 = vmatprep.mubr.f32.mxu0 0.0
        %2854 = vmatmul.mubr.f32.gmra.mxu0 %v2643
        %v2855 = vpop.f32.mrf.mxu0
        %v2856 = vadd.f32 0.0, %v2855
        %v2857 = vpop.f32.mrf.mxu0
        %v2858 = vadd.f32 0.0, %v2857
        %2859 = vmatprep.mubr.f32.mxu0 0.0
        %2860 = vmatmul.mubr.f32.gmra.mxu0 %v2644
        %v2861 = vpop.f32.mrf.mxu0
        %v2862 = vadd.f32 0.0, %v2861
        %v2863 = vpop.f32.mrf.mxu0
        %v2864 = vadd.f32 0.0, %v2863
        %2865 = vmatprep.mubr.f32.mxu0 0.0
        %2866 = vmatmul.mubr.f32.gmra.mxu0 %v2645
        %v2867 = vpop.f32.mrf.mxu0
        %v2868 = vadd.f32 0.0, %v2867
        %v2869 = vpop.f32.mrf.mxu0
        %v2870 = vadd.f32 0.0, %v2869
        %2871 = vmatprep.mubr.f32.mxu0 0.0
        %2872 = vmatmul.mubr.f32.gmra.mxu0 %v2646
        %v2873 = vpop.f32.mrf.mxu0
        %v2874 = vadd.f32 0.0, %v2873
        %v2875 = vpop.f32.mrf.mxu0
        %v2876 = vadd.f32 0.0, %v2875
        %2877 = vmatprep.mubr.f32.mxu0 0.0
        %2878 = vmatmul.mubr.f32.gmra.mxu0 %v2647
        %v2879 = vpop.f32.mrf.mxu0
        %v2880 = vadd.f32 0.0, %v2879
        %v2881 = vpop.f32.mrf.mxu0
        %v2882 = vadd.f32 0.0, %v2881
        %2883 = vmatprep.mubr.f32.mxu0 0.0
        %2884 = vmatmul.mubr.f32.gmra.mxu0 %v2648
        %v2885 = vpop.f32.mrf.mxu0
        %v2886 = vadd.f32 0.0, %v2885
        %v2887 = vpop.f32.mrf.mxu0
        %v2888 = vadd.f32 0.0, %v2887
        %2889 = vdwg.mxu0
        %v2890 = vmin.f32 %v2796, %v2798
        %2891 = vmin.xlane.f32.xlu0 %v2890
        %v2892 = vpop.xlane.xlu0 %2891
        %v2893 = vmin.f32 %v2802, %v2804
        %2894 = vmin.xlane.f32.xlu0 %v2893
        %v2895 = vpop.xlane.xlu0 %2894
        %v2896 = vmin.f32 %v2808, %v2810
        %2897 = vmin.xlane.f32.xlu0 %v2896
        %v2898 = vpop.xlane.xlu0 %2897
        %v2899 = vmin.f32 %v2814, %v2816
        %2900 = vmin.xlane.f32.xlu0 %v2899
        %v2901 = vpop.xlane.xlu0 %2900
        %v2902 = vmin.f32 %v2820, %v2822
        %2903 = vmin.xlane.f32.xlu0 %v2902
        %v2904 = vpop.xlane.xlu0 %2903
        %v2905 = vmin.f32 %v2826, %v2828
        %2906 = vmin.xlane.f32.xlu0 %v2905
        %v2907 = vpop.xlane.xlu0 %2906
        %v2908 = vmin.f32 %v2832, %v2834
        %2909 = vmin.xlane.f32.xlu0 %v2908
        %v2910 = vpop.xlane.xlu0 %2909
        %v2911 = vmin.f32 %v2838, %v2840
        %2912 = vmin.xlane.f32.xlu0 %v2911
        %v2913 = vpop.xlane.xlu0 %2912
        %v2914 = vmin.f32 %v2844, %v2846
        %2915 = vmin.xlane.f32.xlu0 %v2914
        %v2916 = vpop.xlane.xlu0 %2915
        %v2917 = vmin.f32 %v2850, %v2852
        %2918 = vmin.xlane.f32.xlu0 %v2917
        %v2919 = vpop.xlane.xlu0 %2918
        %v2920 = vmin.f32 %v2856, %v2858
        %2921 = vmin.xlane.f32.xlu0 %v2920
        %v2922 = vpop.xlane.xlu0 %2921
        %v2923 = vmin.f32 %v2862, %v2864
        %2924 = vmin.xlane.f32.xlu0 %v2923
        %v2925 = vpop.xlane.xlu0 %2924
        %v2926 = vmin.f32 %v2868, %v2870
        %2927 = vmin.xlane.f32.xlu0 %v2926
        %v2928 = vpop.xlane.xlu0 %2927
        %v2929 = vmin.f32 %v2874, %v2876
        %2930 = vmin.xlane.f32.xlu0 %v2929
        %v2931 = vpop.xlane.xlu0 %2930
        %v2932 = vmin.f32 %v2880, %v2882
        %2933 = vmin.xlane.f32.xlu0 %v2932
        %v2934 = vpop.xlane.xlu0 %2933
        %v2935 = vmin.f32 %v2886, %v2888
        %2936 = vmin.xlane.f32.xlu0 %v2935
        %v2937 = vpop.xlane.xlu0 %2936
        %v2938 = vsub.f32 %v2796, %v2892
        %v2939 = vsub.f32 %v2798, %v2892
        %v2940 = vsub.f32 %v2802, %v2895
        %v2941 = vsub.f32 %v2804, %v2895
        %v2942 = vsub.f32 %v2808, %v2898
        %v2943 = vsub.f32 %v2810, %v2898
        %v2944 = vsub.f32 %v2814, %v2901
        %v2945 = vsub.f32 %v2816, %v2901
        %v2946 = vsub.f32 %v2820, %v2904
        %v2947 = vsub.f32 %v2822, %v2904
        %v2948 = vsub.f32 %v2826, %v2907
        %v2949 = vsub.f32 %v2828, %v2907
        %v2950 = vsub.f32 %v2832, %v2910
        %v2951 = vsub.f32 %v2834, %v2910
        %v2952 = vsub.f32 %v2838, %v2913
        %v2953 = vsub.f32 %v2840, %v2913
        %v2954 = vsub.f32 %v2844, %v2916
        %v2955 = vsub.f32 %v2846, %v2916
        %v2956 = vsub.f32 %v2850, %v2919
        %v2957 = vsub.f32 %v2852, %v2919
        %v2958 = vsub.f32 %v2856, %v2922
        %v2959 = vsub.f32 %v2858, %v2922
        %v2960 = vsub.f32 %v2862, %v2925
        %v2961 = vsub.f32 %v2864, %v2925
        %v2962 = vsub.f32 %v2868, %v2928
        %v2963 = vsub.f32 %v2870, %v2928
        %v2964 = vsub.f32 %v2874, %v2931
        %v2965 = vsub.f32 %v2876, %v2931
        %v2966 = vsub.f32 %v2880, %v2934
        %v2967 = vsub.f32 %v2882, %v2934
        %v2968 = vsub.f32 %v2886, %v2937
        %v2969 = vsub.f32 %v2888, %v2937
        %v2970 = vmul.f32 %v2938, -1.0
        %v2971 = vmul.f32 %v2939, -1.0
        %v2972 = vmul.f32 %v2940, -1.0
        %v2973 = vmul.f32 %v2941, -1.0
        %v2974 = vmul.f32 %v2942, -1.0
        %v2975 = vmul.f32 %v2943, -1.0
        %v2976 = vmul.f32 %v2944, -1.0
        %v2977 = vmul.f32 %v2945, -1.0
        %v2978 = vmul.f32 %v2946, -1.0
        %v2979 = vmul.f32 %v2947, -1.0
        %v2980 = vmul.f32 %v2948, -1.0
        %v2981 = vmul.f32 %v2949, -1.0
        %v2982 = vmul.f32 %v2950, -1.0
        %v2983 = vmul.f32 %v2951, -1.0
        %v2984 = vmul.f32 %v2952, -1.0
        %v2985 = vmul.f32 %v2953, -1.0
        %v2986 = vmul.f32 %v2954, -1.0
        %v2987 = vmul.f32 %v2955, -1.0
        %v2988 = vmul.f32 %v2956, -1.0
        %v2989 = vmul.f32 %v2957, -1.0
        %v2990 = vmul.f32 %v2958, -1.0
        %v2991 = vmul.f32 %v2959, -1.0
        %v2992 = vmul.f32 %v2960, -1.0
        %v2993 = vmul.f32 %v2961, -1.0
        %v2994 = vmul.f32 %v2962, -1.0
        %v2995 = vmul.f32 %v2963, -1.0
        %v2996 = vmul.f32 %v2964, -1.0
        %v2997 = vmul.f32 %v2965, -1.0
        %v2998 = vmul.f32 %v2966, -1.0
        %v2999 = vmul.f32 %v2967, -1.0
        %v3000 = vmul.f32 %v2968, -1.0
        %v3001 = vmul.f32 %v2969, -1.0
        %v3002 = vmul.f32 %v2970, 1.442695
        %v3003 = vpow.pop %v3002
        %v3004 = vmul.f32 %v2971, 1.442695
        %v3005 = vpow.pop %v3004
        %v3006 = vmul.f32 %v2972, 1.442695
        %v3007 = vpow.pop %v3006
        %v3008 = vmul.f32 %v2973, 1.442695
        %v3009 = vpow.pop %v3008
        %v3010 = vmul.f32 %v2974, 1.442695
        %v3011 = vpow.pop %v3010
        %v3012 = vmul.f32 %v2975, 1.442695
        %v3013 = vpow.pop %v3012
        %v3014 = vmul.f32 %v2976, 1.442695
        %v3015 = vpow.pop %v3014
        %v3016 = vmul.f32 %v2977, 1.442695
        %v3017 = vpow.pop %v3016
        %v3018 = vmul.f32 %v2978, 1.442695
        %v3019 = vpow.pop %v3018
        %v3020 = vmul.f32 %v2979, 1.442695
        %v3021 = vpow.pop %v3020
        %v3022 = vmul.f32 %v2980, 1.442695
        %v3023 = vpow.pop %v3022
        %v3024 = vmul.f32 %v2981, 1.442695
        %v3025 = vpow.pop %v3024
        %v3026 = vmul.f32 %v2982, 1.442695
        %v3027 = vpow.pop %v3026
        %v3028 = vmul.f32 %v2983, 1.442695
        %v3029 = vpow.pop %v3028
        %v3030 = vmul.f32 %v2984, 1.442695
        %v3031 = vpow.pop %v3030
        %v3032 = vmul.f32 %v2985, 1.442695
        %v3033 = vpow.pop %v3032
        %v3034 = vmul.f32 %v2986, 1.442695
        %v3035 = vpow.pop %v3034
        %v3036 = vmul.f32 %v2987, 1.442695
        %v3037 = vpow.pop %v3036
        %v3038 = vmul.f32 %v2988, 1.442695
        %v3039 = vpow.pop %v3038
        %v3040 = vmul.f32 %v2989, 1.442695
        %v3041 = vpow.pop %v3040
        %v3042 = vmul.f32 %v2990, 1.442695
        %v3043 = vpow.pop %v3042
        %v3044 = vmul.f32 %v2991, 1.442695
        %v3045 = vpow.pop %v3044
        %v3046 = vmul.f32 %v2992, 1.442695
        %v3047 = vpow.pop %v3046
        %v3048 = vmul.f32 %v2993, 1.442695
        %v3049 = vpow.pop %v3048
        %v3050 = vmul.f32 %v2994, 1.442695
        %v3051 = vpow.pop %v3050
        %v3052 = vmul.f32 %v2995, 1.442695
        %v3053 = vpow.pop %v3052
        %v3054 = vmul.f32 %v2996, 1.442695
        %v3055 = vpow.pop %v3054
        %v3056 = vmul.f32 %v2997, 1.442695
        %v3057 = vpow.pop %v3056
        %v3058 = vmul.f32 %v2998, 1.442695
        %v3059 = vpow.pop %v3058
        %v3060 = vmul.f32 %v2999, 1.442695
        %v3061 = vpow.pop %v3060
        %v3062 = vmul.f32 %v3000, 1.442695
        %v3063 = vpow.pop %v3062
        %v3064 = vmul.f32 %v3001, 1.442695
        %v3065 = vpow.pop %v3064
        %v3066 = vld [vmem:[#allocation5] sm:$0xff]
        %v3067 = vld [vmem:[#allocation5 + $0x8] sm:$0xff]
        %v3068 = vld [vmem:[#allocation5 + $0x10] sm:$0xff]
        %v3069 = vld [vmem:[#allocation5 + $0x18] sm:$0xff]
        %v3070 = vld [vmem:[#allocation5 + $0x20] sm:$0xff]
        %v3071 = vld [vmem:[#allocation5 + $0x28] sm:$0xff]
        %v3072 = vld [vmem:[#allocation5 + $0x30] sm:$0xff]
        %v3073 = vld [vmem:[#allocation5 + $0x38] sm:$0xff]
        %v3074 = vld [vmem:[#allocation5 + $0x40] sm:$0xff]
        %v3075 = vld [vmem:[#allocation5 + $0x48] sm:$0xff]
        %v3076 = vld [vmem:[#allocation5 + $0x50] sm:$0xff]
        %v3077 = vld [vmem:[#allocation5 + $0x58] sm:$0xff]
        %v3078 = vld [vmem:[#allocation5 + $0x60] sm:$0xff]
        %v3079 = vld [vmem:[#allocation5 + $0x68] sm:$0xff]
        %v3080 = vld [vmem:[#allocation5 + $0x70] sm:$0xff]
        %v3081 = vld [vmem:[#allocation5 + $0x78] sm:$0xff]
        %v3082 = vld [vmem:[#allocation5 + $0x80] sm:$0xff]
        %v3083 = vld [vmem:[#allocation5 + $0x88] sm:$0xff]
        %v3084 = vld [vmem:[#allocation5 + $0x90] sm:$0xff]
        %v3085 = vld [vmem:[#allocation5 + $0x98] sm:$0xff]
        %v3086 = vld [vmem:[#allocation5 + $0xa0] sm:$0xff]
        %v3087 = vld [vmem:[#allocation5 + $0xa8] sm:$0xff]
        %v3088 = vld [vmem:[#allocation5 + $0xb0] sm:$0xff]
        %v3089 = vld [vmem:[#allocation5 + $0xb8] sm:$0xff]
        %v3090 = vld [vmem:[#allocation5 + $0xc0] sm:$0xff]
        %v3091 = vld [vmem:[#allocation5 + $0xc8] sm:$0xff]
        %v3092 = vld [vmem:[#allocation5 + $0xd0] sm:$0xff]
        %v3093 = vld [vmem:[#allocation5 + $0xd8] sm:$0xff]
        %v3094 = vld [vmem:[#allocation5 + $0xe0] sm:$0xff]
        %v3095 = vld [vmem:[#allocation5 + $0xe8] sm:$0xff]
        %v3096 = vld [vmem:[#allocation5 + $0xf0] sm:$0xff]
        %v3097 = vld [vmem:[#allocation5 + $0xf8] sm:$0xff]
        %v3098 = vld [vmem:[%s15] sm:$0x77]
        %v3099 = vmul.f32 %v3003, %v2665
        %v3100 = vmul.f32 %v3005, %v2666
        %v3101 = vmul.f32 %v3007, %v2667
        %v3102 = vmul.f32 %v3009, %v2668
        %v3103 = vmul.f32 %v3011, %v2669
        %v3104 = vmul.f32 %v3013, %v2670
        %v3105 = vmul.f32 %v3015, %v2671
        %v3106 = vmul.f32 %v3017, %v2672
        %v3107 = vmul.f32 %v3019, %v2673
        %v3108 = vmul.f32 %v3021, %v2674
        %v3109 = vmul.f32 %v3023, %v2675
        %v3110 = vmul.f32 %v3025, %v2676
        %v3111 = vmul.f32 %v3027, %v2677
        %v3112 = vmul.f32 %v3029, %v2678
        %v3113 = vmul.f32 %v3031, %v2679
        %v3114 = vmul.f32 %v3033, %v2680
        %v3115 = vmul.f32 %v3035, %v2681
        %v3116 = vmul.f32 %v3037, %v2682
        %v3117 = vmul.f32 %v3039, %v2683
        %v3118 = vmul.f32 %v3041, %v2684
        %v3119 = vmul.f32 %v3043, %v2685
        %v3120 = vmul.f32 %v3045, %v2686
        %v3121 = vmul.f32 %v3047, %v2687
        %v3122 = vmul.f32 %v3049, %v2688
        %v3123 = vmul.f32 %v3051, %v2689
        %v3124 = vmul.f32 %v3053, %v2690
        %v3125 = vmul.f32 %v3055, %v2691
        %v3126 = vmul.f32 %v3057, %v2692
        %v3127 = vmul.f32 %v3059, %v2693
        %v3128 = vmul.f32 %v3061, %v2694
        %v3129 = vmul.f32 %v3063, %v2695
        %v3130 = vmul.f32 %v3065, %v2696
        %v3131 = vadd.f32 %v3099, %v3100
        %3132 = vadd.xlane.f32.xlu0 %v3131
        %v3133 = vpop.xlane.xlu0 %3132
        %v3134 = vadd.f32 %v3101, %v3102
        %3135 = vadd.xlane.f32.xlu0 %v3134
        %v3136 = vpop.xlane.xlu0 %3135
        %v3137 = vadd.f32 %v3103, %v3104
        %3138 = vadd.xlane.f32.xlu0 %v3137
        %v3139 = vpop.xlane.xlu0 %3138
        %v3140 = vadd.f32 %v3105, %v3106
        %3141 = vadd.xlane.f32.xlu0 %v3140
        %v3142 = vpop.xlane.xlu0 %3141
        %v3143 = vadd.f32 %v3107, %v3108
        %3144 = vadd.xlane.f32.xlu0 %v3143
        %v3145 = vpop.xlane.xlu0 %3144
        %v3146 = vadd.f32 %v3109, %v3110
        %3147 = vadd.xlane.f32.xlu0 %v3146
        %v3148 = vpop.xlane.xlu0 %3147
        %v3149 = vadd.f32 %v3111, %v3112
        %3150 = vadd.xlane.f32.xlu0 %v3149
        %v3151 = vpop.xlane.xlu0 %3150
        %v3152 = vadd.f32 %v3113, %v3114
        %3153 = vadd.xlane.f32.xlu0 %v3152
        %v3154 = vpop.xlane.xlu0 %3153
        %v3155 = vadd.f32 %v3115, %v3116
        %3156 = vadd.xlane.f32.xlu0 %v3155
        %v3157 = vpop.xlane.xlu0 %3156
        %v3158 = vadd.f32 %v3117, %v3118
        %3159 = vadd.xlane.f32.xlu0 %v3158
        %v3160 = vpop.xlane.xlu0 %3159
        %v3161 = vadd.f32 %v3119, %v3120
        %3162 = vadd.xlane.f32.xlu0 %v3161
        %v3163 = vpop.xlane.xlu0 %3162
        %v3164 = vadd.f32 %v3121, %v3122
        %3165 = vadd.xlane.f32.xlu0 %v3164
        %v3166 = vpop.xlane.xlu0 %3165
        %v3167 = vadd.f32 %v3123, %v3124
        %3168 = vadd.xlane.f32.xlu0 %v3167
        %v3169 = vpop.xlane.xlu0 %3168
        %v3170 = vadd.f32 %v3125, %v3126
        %3171 = vadd.xlane.f32.xlu0 %v3170
        %v3172 = vpop.xlane.xlu0 %3171
        %v3173 = vadd.f32 %v3127, %v3128
        %3174 = vadd.xlane.f32.xlu0 %v3173
        %v3175 = vpop.xlane.xlu0 %3174
        %v3176 = vadd.f32 %v3129, %v3130
        %3177 = vadd.xlane.f32.xlu0 %v3176
        %v3178 = vpop.xlane.xlu0 %3177
        %v3179 = vadd.f32 %v3003, %v3005
        %3180 = vadd.xlane.f32.xlu0 %v3179
        %v3181 = vpop.xlane.xlu0 %3180
        %v3182 = vadd.f32 %v3007, %v3009
        %3183 = vadd.xlane.f32.xlu0 %v3182
        %v3184 = vpop.xlane.xlu0 %3183
        %v3185 = vadd.f32 %v3011, %v3013
        %3186 = vadd.xlane.f32.xlu0 %v3185
        %v3187 = vpop.xlane.xlu0 %3186
        %v3188 = vadd.f32 %v3015, %v3017
        %3189 = vadd.xlane.f32.xlu0 %v3188
        %v3190 = vpop.xlane.xlu0 %3189
        %v3191 = vadd.f32 %v3019, %v3021
        %3192 = vadd.xlane.f32.xlu0 %v3191
        %v3193 = vpop.xlane.xlu0 %3192
        %v3194 = vadd.f32 %v3023, %v3025
        %3195 = vadd.xlane.f32.xlu0 %v3194
        %v3196 = vpop.xlane.xlu0 %3195
        %v3197 = vadd.f32 %v3027, %v3029
        %3198 = vadd.xlane.f32.xlu0 %v3197
        %v3199 = vpop.xlane.xlu0 %3198
        %v3200 = vadd.f32 %v3031, %v3033
        %3201 = vadd.xlane.f32.xlu0 %v3200
        %v3202 = vpop.xlane.xlu0 %3201
        %v3203 = vadd.f32 %v3035, %v3037
        %3204 = vadd.xlane.f32.xlu0 %v3203
        %v3205 = vpop.xlane.xlu0 %3204
        %v3206 = vadd.f32 %v3039, %v3041
        %3207 = vadd.xlane.f32.xlu0 %v3206
        %v3208 = vpop.xlane.xlu0 %3207
        %v3209 = vadd.f32 %v3043, %v3045
        %3210 = vadd.xlane.f32.xlu0 %v3209
        %v3211 = vpop.xlane.xlu0 %3210
        %v3212 = vadd.f32 %v3047, %v3049
        %3213 = vadd.xlane.f32.xlu0 %v3212
        %v3214 = vpop.xlane.xlu0 %3213
        %v3215 = vadd.f32 %v3051, %v3053
        %3216 = vadd.xlane.f32.xlu0 %v3215
        %v3217 = vpop.xlane.xlu0 %3216
        %v3218 = vadd.f32 %v3055, %v3057
        %3219 = vadd.xlane.f32.xlu0 %v3218
        %v3220 = vpop.xlane.xlu0 %3219
        %v3221 = vadd.f32 %v3059, %v3061
        %3222 = vadd.xlane.f32.xlu0 %v3221
        %v3223 = vpop.xlane.xlu0 %3222
        %v3224 = vadd.f32 %v3063, %v3065
        %3225 = vadd.xlane.f32.xlu0 %v3224
        %v3226 = vpop.xlane.xlu0 %3225
        %v3227 = vrcp.pop %v3181
        %v3228 = vrcp.pop %v3184
        %v3229 = vrcp.pop %v3187
        %v3230 = vrcp.pop %v3190
        %v3231 = vrcp.pop %v3193
        %v3232 = vrcp.pop %v3196
        %v3233 = vrcp.pop %v3199
        %v3234 = vrcp.pop %v3202
        %v3235 = vrcp.pop %v3205
        %v3236 = vrcp.pop %v3208
        %v3237 = vrcp.pop %v3211
        %v3238 = vrcp.pop %v3214
        %v3239 = vrcp.pop %v3217
        %v3240 = vrcp.pop %v3220
        %v3241 = vrcp.pop %v3223
        %v3242 = vrcp.pop %v3226
        %v3243 = vmul.f32 %v3133, %v3227
        %v3244 = vmul.f32 %v3136, %v3228
        %v3245 = vmul.f32 %v3139, %v3229
        %v3246 = vmul.f32 %v3142, %v3230
        %v3247 = vmul.f32 %v3145, %v3231
        %v3248 = vmul.f32 %v3148, %v3232
        %v3249 = vmul.f32 %v3151, %v3233
        %v3250 = vmul.f32 %v3154, %v3234
        %v3251 = vmul.f32 %v3157, %v3235
        %v3252 = vmul.f32 %v3160, %v3236
        %v3253 = vmul.f32 %v3163, %v3237
        %v3254 = vmul.f32 %v3166, %v3238
        %v3255 = vmul.f32 %v3169, %v3239
        %v3256 = vmul.f32 %v3172, %v3240
        %v3257 = vmul.f32 %v3175, %v3241
        %v3258 = vmul.f32 %v3178, %v3242
        %v3260 = vlaneseq
        %v3261 = vshrl.u32 %v3260, 7
        %v3262 = vsub.s32 2, %v3261
        %v3263 = vrot.slane %v3098, %v3262
        %v3264 = vlaneseq
        %v3265 = vshrl.u32 %v3264, 7
        %v3266 = vsub.s32 6, %v3265
        %v3267 = vrot.slane %v3098, %v3266
        %v3270 = vlaneseq
        %v3271 = vshrl.u32 %v3270, 7
        %v3272 = vsub.s32 2, %v3271
        %v3273 = vrot.slane %v3263, %v3272
        %v3274 = vlaneseq
        %v3275 = vshrl.u32 %v3274, 7
        %v3276 = vsub.s32 2, %v3275
        %v3277 = vrot.slane %v3267, %v3276
        %v3278 = vmul.f32 %v3243, %v3273
        %v3279 = vmul.f32 %v3243, %v3277
        %v3280 = vmul.f32 %v3244, %v3273
        %v3281 = vmul.f32 %v3244, %v3277
        %v3282 = vmul.f32 %v3245, %v3273
        %v3283 = vmul.f32 %v3245, %v3277
        %v3284 = vmul.f32 %v3246, %v3273
        %v3285 = vmul.f32 %v3246, %v3277
        %v3286 = vmul.f32 %v3247, %v3273
        %v3287 = vmul.f32 %v3247, %v3277
        %v3288 = vmul.f32 %v3248, %v3273
        %v3289 = vmul.f32 %v3248, %v3277
        %v3290 = vmul.f32 %v3249, %v3273
        %v3291 = vmul.f32 %v3249, %v3277
        %v3292 = vmul.f32 %v3250, %v3273
        %v3293 = vmul.f32 %v3250, %v3277
        %v3294 = vmul.f32 %v3251, %v3273
        %v3295 = vmul.f32 %v3251, %v3277
        %v3296 = vmul.f32 %v3252, %v3273
        %v3297 = vmul.f32 %v3252, %v3277
        %v3298 = vmul.f32 %v3253, %v3273
        %v3299 = vmul.f32 %v3253, %v3277
        %v3300 = vmul.f32 %v3254, %v3273
        %v3301 = vmul.f32 %v3254, %v3277
        %v3302 = vmul.f32 %v3255, %v3273
        %v3303 = vmul.f32 %v3255, %v3277
        %v3304 = vmul.f32 %v3256, %v3273
        %v3305 = vmul.f32 %v3256, %v3277
        %v3306 = vmul.f32 %v3257, %v3273
        %v3307 = vmul.f32 %v3257, %v3277
        %v3308 = vmul.f32 %v3258, %v3273
        %v3309 = vmul.f32 %v3258, %v3277
        %v3310 = vadd.f32 %v3066, %v3278
        %v3311 = vadd.f32 %v3067, %v3279
        %v3312 = vadd.f32 %v3068, %v3280
        %v3313 = vadd.f32 %v3069, %v3281
        %v3314 = vadd.f32 %v3070, %v3282
        %v3315 = vadd.f32 %v3071, %v3283
        %v3316 = vadd.f32 %v3072, %v3284
        %v3317 = vadd.f32 %v3073, %v3285
        %v3318 = vadd.f32 %v3074, %v3286
        %v3319 = vadd.f32 %v3075, %v3287
        %v3320 = vadd.f32 %v3076, %v3288
        %v3321 = vadd.f32 %v3077, %v3289
        %v3322 = vadd.f32 %v3078, %v3290
        %v3323 = vadd.f32 %v3079, %v3291
        %v3324 = vadd.f32 %v3080, %v3292
        %v3325 = vadd.f32 %v3081, %v3293
        %v3326 = vadd.f32 %v3082, %v3294
        %v3327 = vadd.f32 %v3083, %v3295
        %v3328 = vadd.f32 %v3084, %v3296
        %v3329 = vadd.f32 %v3085, %v3297
        %v3330 = vadd.f32 %v3086, %v3298
        %v3331 = vadd.f32 %v3087, %v3299
        %v3332 = vadd.f32 %v3088, %v3300
        %v3333 = vadd.f32 %v3089, %v3301
        %v3334 = vadd.f32 %v3090, %v3302
        %v3335 = vadd.f32 %v3091, %v3303
        %v3336 = vadd.f32 %v3092, %v3304
        %v3337 = vadd.f32 %v3093, %v3305
        %v3338 = vadd.f32 %v3094, %v3306
        %v3339 = vadd.f32 %v3095, %v3307
        %v3340 = vadd.f32 %v3096, %v3308
        %v3341 = vadd.f32 %v3097, %v3309
        %v3342 = vmul.f32 %v3003, %v3003
        %v3343 = vmul.f32 %v3005, %v3005
        %v3344 = vmul.f32 %v3007, %v3007
        %v3345 = vmul.f32 %v3009, %v3009
        %v3346 = vmul.f32 %v3011, %v3011
        %v3347 = vmul.f32 %v3013, %v3013
        %v3348 = vmul.f32 %v3015, %v3015
        %v3349 = vmul.f32 %v3017, %v3017
        %v3350 = vmul.f32 %v3019, %v3019
        %v3351 = vmul.f32 %v3021, %v3021
        %v3352 = vmul.f32 %v3023, %v3023
        %v3353 = vmul.f32 %v3025, %v3025
        %v3354 = vmul.f32 %v3027, %v3027
        %v3355 = vmul.f32 %v3029, %v3029
        %v3356 = vmul.f32 %v3031, %v3031
        %v3357 = vmul.f32 %v3033, %v3033
        %v3358 = vmul.f32 %v3035, %v3035
        %v3359 = vmul.f32 %v3037, %v3037
        %v3360 = vmul.f32 %v3039, %v3039
        %v3361 = vmul.f32 %v3041, %v3041
        %v3362 = vmul.f32 %v3043, %v3043
        %v3363 = vmul.f32 %v3045, %v3045
        %v3364 = vmul.f32 %v3047, %v3047
        %v3365 = vmul.f32 %v3049, %v3049
        %v3366 = vmul.f32 %v3051, %v3051
        %v3367 = vmul.f32 %v3053, %v3053
        %v3368 = vmul.f32 %v3055, %v3055
        %v3369 = vmul.f32 %v3057, %v3057
        %v3370 = vmul.f32 %v3059, %v3059
        %v3371 = vmul.f32 %v3061, %v3061
        %v3372 = vmul.f32 %v3063, %v3063
        %v3373 = vmul.f32 %v3065, %v3065
        %v3374 = vmul.f32 %v3342, %v2665
        %v3375 = vmul.f32 %v3343, %v2666
        %v3376 = vmul.f32 %v3344, %v2667
        %v3377 = vmul.f32 %v3345, %v2668
        %v3378 = vmul.f32 %v3346, %v2669
        %v3379 = vmul.f32 %v3347, %v2670
        %v3380 = vmul.f32 %v3348, %v2671
        %v3381 = vmul.f32 %v3349, %v2672
        %v3382 = vmul.f32 %v3350, %v2673
        %v3383 = vmul.f32 %v3351, %v2674
        %v3384 = vmul.f32 %v3352, %v2675
        %v3385 = vmul.f32 %v3353, %v2676
        %v3386 = vmul.f32 %v3354, %v2677
        %v3387 = vmul.f32 %v3355, %v2678
        %v3388 = vmul.f32 %v3356, %v2679
        %v3389 = vmul.f32 %v3357, %v2680
        %v3390 = vmul.f32 %v3358, %v2681
        %v3391 = vmul.f32 %v3359, %v2682
        %v3392 = vmul.f32 %v3360, %v2683
        %v3393 = vmul.f32 %v3361, %v2684
        %v3394 = vmul.f32 %v3362, %v2685
        %v3395 = vmul.f32 %v3363, %v2686
        %v3396 = vmul.f32 %v3364, %v2687
        %v3397 = vmul.f32 %v3365, %v2688
        %v3398 = vmul.f32 %v3366, %v2689
        %v3399 = vmul.f32 %v3367, %v2690
        %v3400 = vmul.f32 %v3368, %v2691
        %v3401 = vmul.f32 %v3369, %v2692
        %v3402 = vmul.f32 %v3370, %v2693
        %v3403 = vmul.f32 %v3371, %v2694
        %v3404 = vmul.f32 %v3372, %v2695
        %v3405 = vmul.f32 %v3373, %v2696
        %v3406 = vadd.f32 %v3374, %v3375
        %3407 = vadd.xlane.f32.xlu0 %v3406
        %v3408 = vpop.xlane.xlu0 %3407
        %v3409 = vadd.f32 %v3376, %v3377
        %3410 = vadd.xlane.f32.xlu0 %v3409
        %v3411 = vpop.xlane.xlu0 %3410
        %v3412 = vadd.f32 %v3378, %v3379
        %3413 = vadd.xlane.f32.xlu0 %v3412
        %v3414 = vpop.xlane.xlu0 %3413
        %v3415 = vadd.f32 %v3380, %v3381
        %3416 = vadd.xlane.f32.xlu0 %v3415
        %v3417 = vpop.xlane.xlu0 %3416
        %v3418 = vadd.f32 %v3382, %v3383
        %3419 = vadd.xlane.f32.xlu0 %v3418
        %v3420 = vpop.xlane.xlu0 %3419
        %v3421 = vadd.f32 %v3384, %v3385
        %3422 = vadd.xlane.f32.xlu0 %v3421
        %v3423 = vpop.xlane.xlu0 %3422
        %v3424 = vadd.f32 %v3386, %v3387
        %3425 = vadd.xlane.f32.xlu0 %v3424
        %v3426 = vpop.xlane.xlu0 %3425
        %v3427 = vadd.f32 %v3388, %v3389
        %3428 = vadd.xlane.f32.xlu0 %v3427
        %v3429 = vpop.xlane.xlu0 %3428
        %v3430 = vadd.f32 %v3390, %v3391
        %3431 = vadd.xlane.f32.xlu0 %v3430
        %v3432 = vpop.xlane.xlu0 %3431
        %v3433 = vadd.f32 %v3392, %v3393
        %3434 = vadd.xlane.f32.xlu0 %v3433
        %v3435 = vpop.xlane.xlu0 %3434
        %v3436 = vadd.f32 %v3394, %v3395
        %3437 = vadd.xlane.f32.xlu0 %v3436
        %v3438 = vpop.xlane.xlu0 %3437
        %v3439 = vadd.f32 %v3396, %v3397
        %3440 = vadd.xlane.f32.xlu0 %v3439
        %v3441 = vpop.xlane.xlu0 %3440
        %v3442 = vadd.f32 %v3398, %v3399
        %3443 = vadd.xlane.f32.xlu0 %v3442
        %v3444 = vpop.xlane.xlu0 %3443
        %v3445 = vadd.f32 %v3400, %v3401
        %3446 = vadd.xlane.f32.xlu0 %v3445
        %v3447 = vpop.xlane.xlu0 %3446
        %v3448 = vadd.f32 %v3402, %v3403
        %3449 = vadd.xlane.f32.xlu0 %v3448
        %v3450 = vpop.xlane.xlu0 %3449
        %v3451 = vadd.f32 %v3404, %v3405
        %3452 = vadd.xlane.f32.xlu0 %v3451
        %v3453 = vpop.xlane.xlu0 %3452
        %v3454 = vadd.f32 %v3342, %v3343
        %3455 = vadd.xlane.f32.xlu0 %v3454
        %v3456 = vpop.xlane.xlu0 %3455
        %v3457 = vadd.f32 %v3344, %v3345
        %3458 = vadd.xlane.f32.xlu0 %v3457
        %v3459 = vpop.xlane.xlu0 %3458
        %v3460 = vadd.f32 %v3346, %v3347
        %3461 = vadd.xlane.f32.xlu0 %v3460
        %v3462 = vpop.xlane.xlu0 %3461
        %v3463 = vadd.f32 %v3348, %v3349
        %3464 = vadd.xlane.f32.xlu0 %v3463
        %v3465 = vpop.xlane.xlu0 %3464
        %v3466 = vadd.f32 %v3350, %v3351
        %3467 = vadd.xlane.f32.xlu0 %v3466
        %v3468 = vpop.xlane.xlu0 %3467
        %v3469 = vadd.f32 %v3352, %v3353
        %3470 = vadd.xlane.f32.xlu0 %v3469
        %v3471 = vpop.xlane.xlu0 %3470
        %v3472 = vadd.f32 %v3354, %v3355
        %3473 = vadd.xlane.f32.xlu0 %v3472
        %v3474 = vpop.xlane.xlu0 %3473
        %v3475 = vadd.f32 %v3356, %v3357
        %3476 = vadd.xlane.f32.xlu0 %v3475
        %v3477 = vpop.xlane.xlu0 %3476
        %v3478 = vadd.f32 %v3358, %v3359
        %3479 = vadd.xlane.f32.xlu0 %v3478
        %v3480 = vpop.xlane.xlu0 %3479
        %v3481 = vadd.f32 %v3360, %v3361
        %3482 = vadd.xlane.f32.xlu0 %v3481
        %v3483 = vpop.xlane.xlu0 %3482
        %v3484 = vadd.f32 %v3362, %v3363
        %3485 = vadd.xlane.f32.xlu0 %v3484
        %v3486 = vpop.xlane.xlu0 %3485
        %v3487 = vadd.f32 %v3364, %v3365
        %3488 = vadd.xlane.f32.xlu0 %v3487
        %v3489 = vpop.xlane.xlu0 %3488
        %v3490 = vadd.f32 %v3366, %v3367
        %3491 = vadd.xlane.f32.xlu0 %v3490
        %v3492 = vpop.xlane.xlu0 %3491
        %v3493 = vadd.f32 %v3368, %v3369
        %3494 = vadd.xlane.f32.xlu0 %v3493
        %v3495 = vpop.xlane.xlu0 %3494
        %v3496 = vadd.f32 %v3370, %v3371
        %3497 = vadd.xlane.f32.xlu0 %v3496
        %v3498 = vpop.xlane.xlu0 %3497
        %v3499 = vadd.f32 %v3372, %v3373
        %3500 = vadd.xlane.f32.xlu0 %v3499
        %v3501 = vpop.xlane.xlu0 %3500
        %v3502 = vrcp.pop %v3456
        %v3503 = vrcp.pop %v3459
        %v3504 = vrcp.pop %v3462
        %v3505 = vrcp.pop %v3465
        %v3506 = vrcp.pop %v3468
        %v3507 = vrcp.pop %v3471
        %v3508 = vrcp.pop %v3474
        %v3509 = vrcp.pop %v3477
        %v3510 = vrcp.pop %v3480
        %v3511 = vrcp.pop %v3483
        %v3512 = vrcp.pop %v3486
        %v3513 = vrcp.pop %v3489
        %v3514 = vrcp.pop %v3492
        %v3515 = vrcp.pop %v3495
        %v3516 = vrcp.pop %v3498
        %v3517 = vrcp.pop %v3501
        %v3518 = vmul.f32 %v3408, %v3502
        %v3519 = vmul.f32 %v3411, %v3503
        %v3520 = vmul.f32 %v3414, %v3504
        %v3521 = vmul.f32 %v3417, %v3505
        %v3522 = vmul.f32 %v3420, %v3506
        %v3523 = vmul.f32 %v3423, %v3507
        %v3524 = vmul.f32 %v3426, %v3508
        %v3525 = vmul.f32 %v3429, %v3509
        %v3526 = vmul.f32 %v3432, %v3510
        %v3527 = vmul.f32 %v3435, %v3511
        %v3528 = vmul.f32 %v3438, %v3512
        %v3529 = vmul.f32 %v3441, %v3513
        %v3530 = vmul.f32 %v3444, %v3514
        %v3531 = vmul.f32 %v3447, %v3515
        %v3532 = vmul.f32 %v3450, %v3516
        %v3533 = vmul.f32 %v3453, %v3517
        %v3534 = vlaneseq
        %v3535 = vshrl.u32 %v3534, 7
        %v3536 = vsub.s32 1, %v3535
        %v3537 = vrot.slane %v3098, %v3536
        %v3538 = vlaneseq
        %v3539 = vshrl.u32 %v3538, 7
        %v3540 = vsub.s32 5, %v3539
        %v3541 = vrot.slane %v3098, %v3540
        %v3544 = vlaneseq
        %v3545 = vshrl.u32 %v3544, 7
        %v3546 = vsub.s32 1, %v3545
        %v3547 = vrot.slane %v3537, %v3546
        %v3548 = vlaneseq
        %v3549 = vshrl.u32 %v3548, 7
        %v3550 = vsub.s32 1, %v3549
        %v3551 = vrot.slane %v3541, %v3550
        %v3552 = vmul.f32 %v3518, %v3547
        %v3553 = vmul.f32 %v3518, %v3551
        %v3554 = vmul.f32 %v3519, %v3547
        %v3555 = vmul.f32 %v3519, %v3551
        %v3556 = vmul.f32 %v3520, %v3547
        %v3557 = vmul.f32 %v3520, %v3551
        %v3558 = vmul.f32 %v3521, %v3547
        %v3559 = vmul.f32 %v3521, %v3551
        %v3560 = vmul.f32 %v3522, %v3547
        %v3561 = vmul.f32 %v3522, %v3551
        %v3562 = vmul.f32 %v3523, %v3547
        %v3563 = vmul.f32 %v3523, %v3551
        %v3564 = vmul.f32 %v3524, %v3547
        %v3565 = vmul.f32 %v3524, %v3551
        %v3566 = vmul.f32 %v3525, %v3547
        %v3567 = vmul.f32 %v3525, %v3551
        %v3568 = vmul.f32 %v3526, %v3547
        %v3569 = vmul.f32 %v3526, %v3551
        %v3570 = vmul.f32 %v3527, %v3547
        %v3571 = vmul.f32 %v3527, %v3551
        %v3572 = vmul.f32 %v3528, %v3547
        %v3573 = vmul.f32 %v3528, %v3551
        %v3574 = vmul.f32 %v3529, %v3547
        %v3575 = vmul.f32 %v3529, %v3551
        %v3576 = vmul.f32 %v3530, %v3547
        %v3577 = vmul.f32 %v3530, %v3551
        %v3578 = vmul.f32 %v3531, %v3547
        %v3579 = vmul.f32 %v3531, %v3551
        %v3580 = vmul.f32 %v3532, %v3547
        %v3581 = vmul.f32 %v3532, %v3551
        %v3582 = vmul.f32 %v3533, %v3547
        %v3583 = vmul.f32 %v3533, %v3551
        %v3584 = vadd.f32 %v3310, %v3552
        %v3585 = vadd.f32 %v3311, %v3553
        %v3586 = vadd.f32 %v3312, %v3554
        %v3587 = vadd.f32 %v3313, %v3555
        %v3588 = vadd.f32 %v3314, %v3556
        %v3589 = vadd.f32 %v3315, %v3557
        %v3590 = vadd.f32 %v3316, %v3558
        %v3591 = vadd.f32 %v3317, %v3559
        %v3592 = vadd.f32 %v3318, %v3560
        %v3593 = vadd.f32 %v3319, %v3561
        %v3594 = vadd.f32 %v3320, %v3562
        %v3595 = vadd.f32 %v3321, %v3563
        %v3596 = vadd.f32 %v3322, %v3564
        %v3597 = vadd.f32 %v3323, %v3565
        %v3598 = vadd.f32 %v3324, %v3566
        %v3599 = vadd.f32 %v3325, %v3567
        %v3600 = vadd.f32 %v3326, %v3568
        %v3601 = vadd.f32 %v3327, %v3569
        %v3602 = vadd.f32 %v3328, %v3570
        %v3603 = vadd.f32 %v3329, %v3571
        %v3604 = vadd.f32 %v3330, %v3572
        %v3605 = vadd.f32 %v3331, %v3573
        %v3606 = vadd.f32 %v3332, %v3574
        %v3607 = vadd.f32 %v3333, %v3575
        %v3608 = vadd.f32 %v3334, %v3576
        %v3609 = vadd.f32 %v3335, %v3577
        %v3610 = vadd.f32 %v3336, %v3578
        %v3611 = vadd.f32 %v3337, %v3579
        %v3612 = vadd.f32 %v3338, %v3580
        %v3613 = vadd.f32 %v3339, %v3581
        %v3614 = vadd.f32 %v3340, %v3582
        %v3615 = vadd.f32 %v3341, %v3583
        %v3616 = vmul.f32 %v3342, %v3342
        %v3617 = vmul.f32 %v3343, %v3343
        %v3618 = vmul.f32 %v3344, %v3344
        %v3619 = vmul.f32 %v3345, %v3345
        %v3620 = vmul.f32 %v3346, %v3346
        %v3621 = vmul.f32 %v3347, %v3347
        %v3622 = vmul.f32 %v3348, %v3348
        %v3623 = vmul.f32 %v3349, %v3349
        %v3624 = vmul.f32 %v3350, %v3350
        %v3625 = vmul.f32 %v3351, %v3351
        %v3626 = vmul.f32 %v3352, %v3352
        %v3627 = vmul.f32 %v3353, %v3353
        %v3628 = vmul.f32 %v3354, %v3354
        %v3629 = vmul.f32 %v3355, %v3355
        %v3630 = vmul.f32 %v3356, %v3356
        %v3631 = vmul.f32 %v3357, %v3357
        %v3632 = vmul.f32 %v3358, %v3358
        %v3633 = vmul.f32 %v3359, %v3359
        %v3634 = vmul.f32 %v3360, %v3360
        %v3635 = vmul.f32 %v3361, %v3361
        %v3636 = vmul.f32 %v3362, %v3362
        %v3637 = vmul.f32 %v3363, %v3363
        %v3638 = vmul.f32 %v3364, %v3364
        %v3639 = vmul.f32 %v3365, %v3365
        %v3640 = vmul.f32 %v3366, %v3366
        %v3641 = vmul.f32 %v3367, %v3367
        %v3642 = vmul.f32 %v3368, %v3368
        %v3643 = vmul.f32 %v3369, %v3369
        %v3644 = vmul.f32 %v3370, %v3370
        %v3645 = vmul.f32 %v3371, %v3371
        %v3646 = vmul.f32 %v3372, %v3372
        %v3647 = vmul.f32 %v3373, %v3373
        %v3648 = vmul.f32 %v3616, %v2665
        %v3649 = vmul.f32 %v3617, %v2666
        %v3650 = vmul.f32 %v3618, %v2667
        %v3651 = vmul.f32 %v3619, %v2668
        %v3652 = vmul.f32 %v3620, %v2669
        %v3653 = vmul.f32 %v3621, %v2670
        %v3654 = vmul.f32 %v3622, %v2671
        %v3655 = vmul.f32 %v3623, %v2672
        %v3656 = vmul.f32 %v3624, %v2673
        %v3657 = vmul.f32 %v3625, %v2674
        %v3658 = vmul.f32 %v3626, %v2675
        %v3659 = vmul.f32 %v3627, %v2676
        %v3660 = vmul.f32 %v3628, %v2677
        %v3661 = vmul.f32 %v3629, %v2678
        %v3662 = vmul.f32 %v3630, %v2679
        %v3663 = vmul.f32 %v3631, %v2680
        %v3664 = vmul.f32 %v3632, %v2681
        %v3665 = vmul.f32 %v3633, %v2682
        %v3666 = vmul.f32 %v3634, %v2683
        %v3667 = vmul.f32 %v3635, %v2684
        %v3668 = vmul.f32 %v3636, %v2685
        %v3669 = vmul.f32 %v3637, %v2686
        %v3670 = vmul.f32 %v3638, %v2687
        %v3671 = vmul.f32 %v3639, %v2688
        %v3672 = vmul.f32 %v3640, %v2689
        %v3673 = vmul.f32 %v3641, %v2690
        %v3674 = vmul.f32 %v3642, %v2691
        %v3675 = vmul.f32 %v3643, %v2692
        %v3676 = vmul.f32 %v3644, %v2693
        %v3677 = vmul.f32 %v3645, %v2694
        %v3678 = vmul.f32 %v3646, %v2695
        %v3679 = vmul.f32 %v3647, %v2696
        %v3680 = vadd.f32 %v3648, %v3649
        %3681 = vadd.xlane.f32.xlu0 %v3680
        %v3682 = vpop.xlane.xlu0 %3681
        %v3683 = vadd.f32 %v3650, %v3651
        %3684 = vadd.xlane.f32.xlu0 %v3683
        %v3685 = vpop.xlane.xlu0 %3684
        %v3686 = vadd.f32 %v3652, %v3653
        %3687 = vadd.xlane.f32.xlu0 %v3686
        %v3688 = vpop.xlane.xlu0 %3687
        %v3689 = vadd.f32 %v3654, %v3655
        %3690 = vadd.xlane.f32.xlu0 %v3689
        %v3691 = vpop.xlane.xlu0 %3690
        %v3692 = vadd.f32 %v3656, %v3657
        %3693 = vadd.xlane.f32.xlu0 %v3692
        %v3694 = vpop.xlane.xlu0 %3693
        %v3695 = vadd.f32 %v3658, %v3659
        %3696 = vadd.xlane.f32.xlu0 %v3695
        %v3697 = vpop.xlane.xlu0 %3696
        %v3698 = vadd.f32 %v3660, %v3661
        %3699 = vadd.xlane.f32.xlu0 %v3698
        %v3700 = vpop.xlane.xlu0 %3699
        %v3701 = vadd.f32 %v3662, %v3663
        %3702 = vadd.xlane.f32.xlu0 %v3701
        %v3703 = vpop.xlane.xlu0 %3702
        %v3704 = vadd.f32 %v3664, %v3665
        %3705 = vadd.xlane.f32.xlu0 %v3704
        %v3706 = vpop.xlane.xlu0 %3705
        %v3707 = vadd.f32 %v3666, %v3667
        %3708 = vadd.xlane.f32.xlu0 %v3707
        %v3709 = vpop.xlane.xlu0 %3708
        %v3710 = vadd.f32 %v3668, %v3669
        %3711 = vadd.xlane.f32.xlu0 %v3710
        %v3712 = vpop.xlane.xlu0 %3711
        %v3713 = vadd.f32 %v3670, %v3671
        %3714 = vadd.xlane.f32.xlu0 %v3713
        %v3715 = vpop.xlane.xlu0 %3714
        %v3716 = vadd.f32 %v3672, %v3673
        %3717 = vadd.xlane.f32.xlu0 %v3716
        %v3718 = vpop.xlane.xlu0 %3717
        %v3719 = vadd.f32 %v3674, %v3675
        %3720 = vadd.xlane.f32.xlu0 %v3719
        %v3721 = vpop.xlane.xlu0 %3720
        %v3722 = vadd.f32 %v3676, %v3677
        %3723 = vadd.xlane.f32.xlu0 %v3722
        %v3724 = vpop.xlane.xlu0 %3723
        %v3725 = vadd.f32 %v3678, %v3679
        %3726 = vadd.xlane.f32.xlu0 %v3725
        %v3727 = vpop.xlane.xlu0 %3726
        %v3728 = vadd.f32 %v3616, %v3617
        %3729 = vadd.xlane.f32.xlu0 %v3728
        %v3730 = vpop.xlane.xlu0 %3729
        %v3731 = vadd.f32 %v3618, %v3619
        %3732 = vadd.xlane.f32.xlu0 %v3731
        %v3733 = vpop.xlane.xlu0 %3732
        %v3734 = vadd.f32 %v3620, %v3621
        %3735 = vadd.xlane.f32.xlu0 %v3734
        %v3736 = vpop.xlane.xlu0 %3735
        %v3737 = vadd.f32 %v3622, %v3623
        %3738 = vadd.xlane.f32.xlu0 %v3737
        %v3739 = vpop.xlane.xlu0 %3738
        %v3740 = vadd.f32 %v3624, %v3625
        %3741 = vadd.xlane.f32.xlu0 %v3740
        %v3742 = vpop.xlane.xlu0 %3741
        %v3743 = vadd.f32 %v3626, %v3627
        %3744 = vadd.xlane.f32.xlu0 %v3743
        %v3745 = vpop.xlane.xlu0 %3744
        %v3746 = vadd.f32 %v3628, %v3629
        %3747 = vadd.xlane.f32.xlu0 %v3746
        %v3748 = vpop.xlane.xlu0 %3747
        %v3749 = vadd.f32 %v3630, %v3631
        %3750 = vadd.xlane.f32.xlu0 %v3749
        %v3751 = vpop.xlane.xlu0 %3750
        %v3752 = vadd.f32 %v3632, %v3633
        %3753 = vadd.xlane.f32.xlu0 %v3752
        %v3754 = vpop.xlane.xlu0 %3753
        %v3755 = vadd.f32 %v3634, %v3635
        %3756 = vadd.xlane.f32.xlu0 %v3755
        %v3757 = vpop.xlane.xlu0 %3756
        %v3758 = vadd.f32 %v3636, %v3637
        %3759 = vadd.xlane.f32.xlu0 %v3758
        %v3760 = vpop.xlane.xlu0 %3759
        %v3761 = vadd.f32 %v3638, %v3639
        %3762 = vadd.xlane.f32.xlu0 %v3761
        %v3763 = vpop.xlane.xlu0 %3762
        %v3764 = vadd.f32 %v3640, %v3641
        %3765 = vadd.xlane.f32.xlu0 %v3764
        %v3766 = vpop.xlane.xlu0 %3765
        %v3767 = vadd.f32 %v3642, %v3643
        %3768 = vadd.xlane.f32.xlu0 %v3767
        %v3769 = vpop.xlane.xlu0 %3768
        %v3770 = vadd.f32 %v3644, %v3645
        %3771 = vadd.xlane.f32.xlu0 %v3770
        %v3772 = vpop.xlane.xlu0 %3771
        %v3773 = vadd.f32 %v3646, %v3647
        %3774 = vadd.xlane.f32.xlu0 %v3773
        %v3775 = vpop.xlane.xlu0 %3774
        %v3776 = vrcp.pop %v3730
        %v3777 = vrcp.pop %v3733
        %v3778 = vrcp.pop %v3736
        %v3779 = vrcp.pop %v3739
        %v3780 = vrcp.pop %v3742
        %v3781 = vrcp.pop %v3745
        %v3782 = vrcp.pop %v3748
        %v3783 = vrcp.pop %v3751
        %v3784 = vrcp.pop %v3754
        %v3785 = vrcp.pop %v3757
        %v3786 = vrcp.pop %v3760
        %v3787 = vrcp.pop %v3763
        %v3788 = vrcp.pop %v3766
        %v3789 = vrcp.pop %v3769
        %v3790 = vrcp.pop %v3772
        %v3791 = vrcp.pop %v3775
        %v3792 = vmul.f32 %v3682, %v3776
        %v3793 = vmul.f32 %v3685, %v3777
        %v3794 = vmul.f32 %v3688, %v3778
        %v3795 = vmul.f32 %v3691, %v3779
        %v3796 = vmul.f32 %v3694, %v3780
        %v3797 = vmul.f32 %v3697, %v3781
        %v3798 = vmul.f32 %v3700, %v3782
        %v3799 = vmul.f32 %v3703, %v3783
        %v3800 = vmul.f32 %v3706, %v3784
        %v3801 = vmul.f32 %v3709, %v3785
        %v3802 = vmul.f32 %v3712, %v3786
        %v3803 = vmul.f32 %v3715, %v3787
        %v3804 = vmul.f32 %v3718, %v3788
        %v3805 = vmul.f32 %v3721, %v3789
        %v3806 = vmul.f32 %v3724, %v3790
        %v3807 = vmul.f32 %v3727, %v3791
        %v3808 = vlaneseq
        %v3809 = vshrl.u32 %v3808, 7
        %v3810 = vsub.s32 0, %v3809
        %v3811 = vrot.slane %v3098, %v3810
        %v3812 = vlaneseq
        %v3813 = vshrl.u32 %v3812, 7
        %v3814 = vsub.s32 4, %v3813
        %v3815 = vrot.slane %v3098, %v3814
        %v3818 = vlaneseq
        %v3819 = vshrl.u32 %v3818, 7
        %v3820 = vsub.s32 0, %v3819
        %v3821 = vrot.slane %v3811, %v3820
        %v3822 = vlaneseq
        %v3823 = vshrl.u32 %v3822, 7
        %v3824 = vsub.s32 0, %v3823
        %v3825 = vrot.slane %v3815, %v3824
        %v3826 = vmul.f32 %v3792, %v3821
        %v3827 = vmul.f32 %v3792, %v3825
        %v3828 = vmul.f32 %v3793, %v3821
        %v3829 = vmul.f32 %v3793, %v3825
        %v3830 = vmul.f32 %v3794, %v3821
        %v3831 = vmul.f32 %v3794, %v3825
        %v3832 = vmul.f32 %v3795, %v3821
        %v3833 = vmul.f32 %v3795, %v3825
        %v3834 = vmul.f32 %v3796, %v3821
        %v3835 = vmul.f32 %v3796, %v3825
        %v3836 = vmul.f32 %v3797, %v3821
        %v3837 = vmul.f32 %v3797, %v3825
        %v3838 = vmul.f32 %v3798, %v3821
        %v3839 = vmul.f32 %v3798, %v3825
        %v3840 = vmul.f32 %v3799, %v3821
        %v3841 = vmul.f32 %v3799, %v3825
        %v3842 = vmul.f32 %v3800, %v3821
        %v3843 = vmul.f32 %v3800, %v3825
        %v3844 = vmul.f32 %v3801, %v3821
        %v3845 = vmul.f32 %v3801, %v3825
        %v3846 = vmul.f32 %v3802, %v3821
        %v3847 = vmul.f32 %v3802, %v3825
        %v3848 = vmul.f32 %v3803, %v3821
        %v3849 = vmul.f32 %v3803, %v3825
        %v3850 = vmul.f32 %v3804, %v3821
        %v3851 = vmul.f32 %v3804, %v3825
        %v3852 = vmul.f32 %v3805, %v3821
        %v3853 = vmul.f32 %v3805, %v3825
        %v3854 = vmul.f32 %v3806, %v3821
        %v3855 = vmul.f32 %v3806, %v3825
        %v3856 = vmul.f32 %v3807, %v3821
        %v3857 = vmul.f32 %v3807, %v3825
        %v3858 = vadd.f32 %v3584, %v3826
        %v3859 = vadd.f32 %v3585, %v3827
        %v3860 = vadd.f32 %v3586, %v3828
        %v3861 = vadd.f32 %v3587, %v3829
        %v3862 = vadd.f32 %v3588, %v3830
        %v3863 = vadd.f32 %v3589, %v3831
        %v3864 = vadd.f32 %v3590, %v3832
        %v3865 = vadd.f32 %v3591, %v3833
        %v3866 = vadd.f32 %v3592, %v3834
        %v3867 = vadd.f32 %v3593, %v3835
        %v3868 = vadd.f32 %v3594, %v3836
        %v3869 = vadd.f32 %v3595, %v3837
        %v3870 = vadd.f32 %v3596, %v3838
        %v3871 = vadd.f32 %v3597, %v3839
        %v3872 = vadd.f32 %v3598, %v3840
        %v3873 = vadd.f32 %v3599, %v3841
        %v3874 = vadd.f32 %v3600, %v3842
        %v3875 = vadd.f32 %v3601, %v3843
        %v3876 = vadd.f32 %v3602, %v3844
        %v3877 = vadd.f32 %v3603, %v3845
        %v3878 = vadd.f32 %v3604, %v3846
        %v3879 = vadd.f32 %v3605, %v3847
        %v3880 = vadd.f32 %v3606, %v3848
        %v3881 = vadd.f32 %v3607, %v3849
        %v3882 = vadd.f32 %v3608, %v3850
        %v3883 = vadd.f32 %v3609, %v3851
        %v3884 = vadd.f32 %v3610, %v3852
        %v3885 = vadd.f32 %v3611, %v3853
        %v3886 = vadd.f32 %v3612, %v3854
        %v3887 = vadd.f32 %v3613, %v3855
        %v3888 = vadd.f32 %v3614, %v3856
        %v3889 = vadd.f32 %v3615, %v3857
        %v3890 = vsub.f32 %v2633, %v690
        %v3891 = vsub.f32 %v2634, %v691
        %v3892 = vsub.f32 %v2635, %v692
        %v3893 = vsub.f32 %v2636, %v693
        %v3894 = vsub.f32 %v2637, %v694
        %v3895 = vsub.f32 %v2638, %v695
        %v3896 = vsub.f32 %v2639, %v696
        %v3897 = vsub.f32 %v2640, %v697
        %v3898 = vsub.f32 %v2641, %v698
        %v3899 = vsub.f32 %v2642, %v699
        %v3900 = vsub.f32 %v2643, %v700
        %v3901 = vsub.f32 %v2644, %v701
        %v3902 = vsub.f32 %v2645, %v702
        %v3903 = vsub.f32 %v2646, %v703
        %v3904 = vsub.f32 %v2647, %v704
        %v3905 = vsub.f32 %v2648, %v705
        %v3906 = vpack.c.bf16 %v3891, %v3890
        %v3907 = vpack.c.bf16 %v3893, %v3892
        %v3908 = vpack.c.bf16 %v3895, %v3894
        %v3909 = vpack.c.bf16 %v3897, %v3896
        %v3910 = vpack.c.bf16 %v3899, %v3898
        %v3911 = vpack.c.bf16 %v3901, %v3900
        %v3912 = vpack.c.bf16 %v3903, %v3902
        %v3913 = vpack.c.bf16 %v3905, %v3904
        %v3914 = vld [vmem:[%s12] sm:$0xff]
        %v3915 = vld [vmem:[%s12 + $0x8] sm:$0xff]
        %v3916 = vld [vmem:[%s12 + $0x10] sm:$0xff]
        %v3917 = vld [vmem:[%s12 + $0x18] sm:$0xff]
        %v3918 = vld [vmem:[%s12 + $0x20] sm:$0xff]
        %v3919 = vld [vmem:[%s12 + $0x28] sm:$0xff]
        %v3920 = vld [vmem:[%s12 + $0x30] sm:$0xff]
        %v3921 = vld [vmem:[%s12 + $0x38] sm:$0xff]
        %v3922 = vld [vmem:[%s12 + $0x40] sm:$0xff]
        %v3923 = vld [vmem:[%s12 + $0x48] sm:$0xff]
        %v3924 = vld [vmem:[%s12 + $0x50] sm:$0xff]
        %v3925 = vld [vmem:[%s12 + $0x58] sm:$0xff]
        %v3926 = vld [vmem:[%s12 + $0x60] sm:$0xff]
        %v3927 = vld [vmem:[%s12 + $0x68] sm:$0xff]
        %v3928 = vld [vmem:[%s12 + $0x70] sm:$0xff]
        %v3929 = vld [vmem:[%s12 + $0x78] sm:$0xff]
        %v3946 = vunpack.c.l.b16 %v3914
        %v3947 = vunpack.c.h.b16 %v3914
        %v3948 = vunpack.c.l.b16 %v3915
        %v3949 = vunpack.c.h.b16 %v3915
        %v3950 = vunpack.c.l.b16 %v3916
        %v3951 = vunpack.c.h.b16 %v3916
        %v3952 = vunpack.c.l.b16 %v3917
        %v3953 = vunpack.c.h.b16 %v3917
        %v3954 = vunpack.c.l.b16 %v3918
        %v3955 = vunpack.c.h.b16 %v3918
        %v3956 = vunpack.c.l.b16 %v3919
        %v3957 = vunpack.c.h.b16 %v3919
        %v3958 = vunpack.c.l.b16 %v3920
        %v3959 = vunpack.c.h.b16 %v3920
        %v3960 = vunpack.c.l.b16 %v3921
        %v3961 = vunpack.c.h.b16 %v3921
        %v3962 = vunpack.c.l.b16 %v3922
        %v3963 = vunpack.c.h.b16 %v3922
        %v3964 = vunpack.c.l.b16 %v3923
        %v3965 = vunpack.c.h.b16 %v3923
        %v3966 = vunpack.c.l.b16 %v3924
        %v3967 = vunpack.c.h.b16 %v3924
        %v3968 = vunpack.c.l.b16 %v3925
        %v3969 = vunpack.c.h.b16 %v3925
        %v3970 = vunpack.c.l.b16 %v3926
        %v3971 = vunpack.c.h.b16 %v3926
        %v3972 = vunpack.c.l.b16 %v3927
        %v3973 = vunpack.c.h.b16 %v3927
        %v3974 = vunpack.c.l.b16 %v3928
        %v3975 = vunpack.c.h.b16 %v3928
        %v3976 = vunpack.c.l.b16 %v3929
        %v3977 = vunpack.c.h.b16 %v3929
        %v3978 = vpack.c.b16 %v3948, %v3946
        %v3979 = vpack.c.b16 %v3949, %v3947
        %v3980 = vpack.c.b16 %v3952, %v3950
        %v3981 = vpack.c.b16 %v3953, %v3951
        %v3982 = vpack.c.b16 %v3956, %v3954
        %v3983 = vpack.c.b16 %v3957, %v3955
        %v3984 = vpack.c.b16 %v3960, %v3958
        %v3985 = vpack.c.b16 %v3961, %v3959
        %v3986 = vpack.c.b16 %v3964, %v3962
        %v3987 = vpack.c.b16 %v3965, %v3963
        %v3988 = vpack.c.b16 %v3968, %v3966
        %v3989 = vpack.c.b16 %v3969, %v3967
        %v3990 = vpack.c.b16 %v3972, %v3970
        %v3991 = vpack.c.b16 %v3973, %v3971
        %v3992 = vpack.c.b16 %v3976, %v3974
        %v3993 = vpack.c.b16 %v3977, %v3975
        %4010 = vmatprep.subr.bf16.mxu0 %v3993
        %4011 = vmatpush1.bf16.msra.mxu0 %v3992
        %4012 = vmatprep.subr.bf16.mxu0 %v3991
        %4013 = vmatpush1.bf16.msra.mxu0 %v3990
        %4014 = vmatprep.subr.bf16.mxu0 %v3989
        %4015 = vmatpush1.bf16.msra.mxu0 %v3988
        %4016 = vmatprep.subr.bf16.mxu0 %v3987
        %4017 = vmatpush1.bf16.msra.mxu0 %v3986
        %4018 = vmatprep.subr.bf16.mxu0 %v3985
        %4019 = vmatpush1.bf16.msra.mxu0 %v3984
        %4020 = vmatprep.subr.bf16.mxu0 %v3983
        %4021 = vmatpush1.bf16.msra.mxu0 %v3982
        %4022 = vmatprep.subr.bf16.mxu0 %v3981
        %4023 = vmatpush1.bf16.msra.mxu0 %v3980
        %4024 = vmatprep.subr.bf16.mxu0 %v3979
        %4025 = vmatpush1.bf16.msra.mxu0 %v3978
        %4026 = vmatprep.subr.bf16.mxu0 0
        %4027 = vmatpush2.bf16.msra.mxu0 0
        %4028 = vmatprep.subr.bf16.mxu0 0
        %4029 = vmatpush2.bf16.msra.mxu0 0
        %4030 = vmatprep.subr.bf16.mxu0 0
        %4031 = vmatpush2.bf16.msra.mxu0 0
        %4032 = vmatprep.subr.bf16.mxu0 0
        %4033 = vmatpush2.bf16.msra.mxu0 0
        %4034 = vmatprep.subr.bf16.mxu0 0
        %4035 = vmatpush2.bf16.msra.mxu0 0
        %4036 = vmatprep.subr.bf16.mxu0 0
        %4037 = vmatpush2.bf16.msra.mxu0 0
        %4038 = vmatprep.subr.bf16.mxu0 0
        %4039 = vmatpush2.bf16.msra.mxu0 0
        %4040 = vmatprep.subr.bf16.mxu0 0
        %4041 = vmatpush2.bf16.msra.mxu0 0
        %4042 = vmatprep.mubr.bf16.mxu0 0
        %4043 = vmatmul.mubr.bf16.gmra.mxu0 %v3906
        %v4044 = vpop.f32.mrf.mxu0
        %v4045 = vadd.f32 0.0, %v4044
        %v4046 = vpop.f32.mrf.mxu0
        %v4047 = vadd.f32 0.0, %v4046
        %v4048 = vpop.f32.mrf.mxu0
        %v4049 = vadd.f32 0.0, %v4048
        %v4050 = vpop.f32.mrf.mxu0
        %v4051 = vadd.f32 0.0, %v4050
        %4052 = vmatprep.mubr.bf16.mxu0 0
        %4053 = vmatmul.mubr.bf16.gmra.mxu0 %v3907
        %v4054 = vpop.f32.mrf.mxu0
        %v4055 = vadd.f32 0.0, %v4054
        %v4056 = vpop.f32.mrf.mxu0
        %v4057 = vadd.f32 0.0, %v4056
        %v4058 = vpop.f32.mrf.mxu0
        %v4059 = vadd.f32 0.0, %v4058
        %v4060 = vpop.f32.mrf.mxu0
        %v4061 = vadd.f32 0.0, %v4060
        %4062 = vmatprep.mubr.bf16.mxu0 0
        %4063 = vmatmul.mubr.bf16.gmra.mxu0 %v3908
        %v4064 = vpop.f32.mrf.mxu0
        %v4065 = vadd.f32 0.0, %v4064
        %v4066 = vpop.f32.mrf.mxu0
        %v4067 = vadd.f32 0.0, %v4066
        %v4068 = vpop.f32.mrf.mxu0
        %v4069 = vadd.f32 0.0, %v4068
        %v4070 = vpop.f32.mrf.mxu0
        %v4071 = vadd.f32 0.0, %v4070
        %4072 = vmatprep.mubr.bf16.mxu0 0
        %4073 = vmatmul.mubr.bf16.gmra.mxu0 %v3909
        %v4074 = vpop.f32.mrf.mxu0
        %v4075 = vadd.f32 0.0, %v4074
        %v4076 = vpop.f32.mrf.mxu0
        %v4077 = vadd.f32 0.0, %v4076
        %v4078 = vpop.f32.mrf.mxu0
        %v4079 = vadd.f32 0.0, %v4078
        %v4080 = vpop.f32.mrf.mxu0
        %v4081 = vadd.f32 0.0, %v4080
        %4082 = vmatprep.mubr.bf16.mxu0 0
        %4083 = vmatmul.mubr.bf16.gmra.mxu0 %v3910
        %v4084 = vpop.f32.mrf.mxu0
        %v4085 = vadd.f32 0.0, %v4084
        %v4086 = vpop.f32.mrf.mxu0
        %v4087 = vadd.f32 0.0, %v4086
        %v4088 = vpop.f32.mrf.mxu0
        %v4089 = vadd.f32 0.0, %v4088
        %v4090 = vpop.f32.mrf.mxu0
        %v4091 = vadd.f32 0.0, %v4090
        %4092 = vmatprep.mubr.bf16.mxu0 0
        %4093 = vmatmul.mubr.bf16.gmra.mxu0 %v3911
        %v4094 = vpop.f32.mrf.mxu0
        %v4095 = vadd.f32 0.0, %v4094
        %v4096 = vpop.f32.mrf.mxu0
        %v4097 = vadd.f32 0.0, %v4096
        %v4098 = vpop.f32.mrf.mxu0
        %v4099 = vadd.f32 0.0, %v4098
        %v4100 = vpop.f32.mrf.mxu0
        %v4101 = vadd.f32 0.0, %v4100
        %4102 = vmatprep.mubr.bf16.mxu0 0
        %4103 = vmatmul.mubr.bf16.gmra.mxu0 %v3912
        %v4104 = vpop.f32.mrf.mxu0
        %v4105 = vadd.f32 0.0, %v4104
        %v4106 = vpop.f32.mrf.mxu0
        %v4107 = vadd.f32 0.0, %v4106
        %v4108 = vpop.f32.mrf.mxu0
        %v4109 = vadd.f32 0.0, %v4108
        %v4110 = vpop.f32.mrf.mxu0
        %v4111 = vadd.f32 0.0, %v4110
        %4112 = vmatprep.mubr.bf16.mxu0 0
        %4113 = vmatmul.mubr.bf16.gmra.mxu0 %v3913
        %v4114 = vpop.f32.mrf.mxu0
        %v4115 = vadd.f32 0.0, %v4114
        %v4116 = vpop.f32.mrf.mxu0
        %v4117 = vadd.f32 0.0, %v4116
        %v4118 = vpop.f32.mrf.mxu0
        %v4119 = vadd.f32 0.0, %v4118
        %v4120 = vpop.f32.mrf.mxu0
        %v4121 = vadd.f32 0.0, %v4120
        %4122 = vdwg.mxu0
        %v4123 = vadd.f32 %v3858, %v4045
        %v4124 = vadd.f32 %v3859, %v4047
        %v4125 = vadd.f32 %v3860, %v4049
        %v4126 = vadd.f32 %v3861, %v4051
        %v4127 = vadd.f32 %v3862, %v4055
        %v4128 = vadd.f32 %v3863, %v4057
        %v4129 = vadd.f32 %v3864, %v4059
        %v4130 = vadd.f32 %v3865, %v4061
        %v4131 = vadd.f32 %v3866, %v4065
        %v4132 = vadd.f32 %v3867, %v4067
        %v4133 = vadd.f32 %v3868, %v4069
        %v4134 = vadd.f32 %v3869, %v4071
        %v4135 = vadd.f32 %v3870, %v4075
        %v4136 = vadd.f32 %v3871, %v4077
        %v4137 = vadd.f32 %v3872, %v4079
        %v4138 = vadd.f32 %v3873, %v4081
        %v4139 = vadd.f32 %v3874, %v4085
        %v4140 = vadd.f32 %v3875, %v4087
        %v4141 = vadd.f32 %v3876, %v4089
        %v4142 = vadd.f32 %v3877, %v4091
        %v4143 = vadd.f32 %v3878, %v4095
        %v4144 = vadd.f32 %v3879, %v4097
        %v4145 = vadd.f32 %v3880, %v4099
        %v4146 = vadd.f32 %v3881, %v4101
        %v4147 = vadd.f32 %v3882, %v4105
        %v4148 = vadd.f32 %v3883, %v4107
        %v4149 = vadd.f32 %v3884, %v4109
        %v4150 = vadd.f32 %v3885, %v4111
        %v4151 = vadd.f32 %v3886, %v4115
        %v4152 = vadd.f32 %v3887, %v4117
        %v4153 = vadd.f32 %v3888, %v4119
        %v4154 = vadd.f32 %v3889, %v4121
        %v4155 = vpack.c.bf16 %v2650, %v2649
        %v4156 = vpack.c.bf16 %v2652, %v2651
        %v4157 = vpack.c.bf16 %v2654, %v2653
        %v4158 = vpack.c.bf16 %v2656, %v2655
        %v4159 = vpack.c.bf16 %v2658, %v2657
        %v4160 = vpack.c.bf16 %v2660, %v2659
        %v4161 = vpack.c.bf16 %v2662, %v2661
        %v4162 = vpack.c.bf16 %v2664, %v2663
        %v4163 = vld [vmem:[%s13] sm:$0xff]
        %v4164 = vld [vmem:[%s13 + $0x8] sm:$0xff]
        %v4165 = vld [vmem:[%s13 + $0x10] sm:$0xff]
        %v4166 = vld [vmem:[%s13 + $0x18] sm:$0xff]
        %v4167 = vld [vmem:[%s13 + $0x20] sm:$0xff]
        %v4168 = vld [vmem:[%s13 + $0x28] sm:$0xff]
        %v4169 = vld [vmem:[%s13 + $0x30] sm:$0xff]
        %v4170 = vld [vmem:[%s13 + $0x38] sm:$0xff]
        %v4179 = vunpack.c.l.b16 %v4163
        %v4180 = vunpack.c.h.b16 %v4163
        %v4181 = vunpack.c.l.b16 %v4164
        %v4182 = vunpack.c.h.b16 %v4164
        %v4183 = vunpack.c.l.b16 %v4165
        %v4184 = vunpack.c.h.b16 %v4165
        %v4185 = vunpack.c.l.b16 %v4166
        %v4186 = vunpack.c.h.b16 %v4166
        %v4187 = vunpack.c.l.b16 %v4167
        %v4188 = vunpack.c.h.b16 %v4167
        %v4189 = vunpack.c.l.b16 %v4168
        %v4190 = vunpack.c.h.b16 %v4168
        %v4191 = vunpack.c.l.b16 %v4169
        %v4192 = vunpack.c.h.b16 %v4169
        %v4193 = vunpack.c.l.b16 %v4170
        %v4194 = vunpack.c.h.b16 %v4170
        %v4195 = vpack.c.b16 %v4181, %v4179
        %v4196 = vpack.c.b16 %v4182, %v4180
        %v4197 = vpack.c.b16 %v4185, %v4183
        %v4198 = vpack.c.b16 %v4186, %v4184
        %v4199 = vpack.c.b16 %v4189, %v4187
        %v4200 = vpack.c.b16 %v4190, %v4188
        %v4201 = vpack.c.b16 %v4193, %v4191
        %v4202 = vpack.c.b16 %v4194, %v4192
        %v4212 = vsel %vm977, %v4155, 0
        %v4215 = vsel %vm977, %v4156, 0
        %v4218 = vsel %vm977, %v4157, 0
        %v4221 = vsel %vm977, %v4158, 0
        %v4224 = vsel %vm977, %v4159, 0
        %v4227 = vsel %vm977, %v4160, 0
        %v4230 = vsel %vm977, %v4161, 0
        %v4233 = vsel %vm977, %v4162, 0
        %4235 = vmatprep.subr.bf16.mxu0 0
        %4236 = vmatpush1.bf16.msra.mxu0 0
        %4237 = vmatprep.subr.bf16.mxu0 0
        %4238 = vmatpush1.bf16.msra.mxu0 0
        %4239 = vmatprep.subr.bf16.mxu0 0
        %4240 = vmatpush1.bf16.msra.mxu0 0
        %4241 = vmatprep.subr.bf16.mxu0 0
        %4242 = vmatpush1.bf16.msra.mxu0 0
        %4243 = vmatprep.subr.bf16.mxu0 %v4202
        %4244 = vmatpush1.bf16.msra.mxu0 %v4201
        %4245 = vmatprep.subr.bf16.mxu0 %v4200
        %4246 = vmatpush1.bf16.msra.mxu0 %v4199
        %4247 = vmatprep.subr.bf16.mxu0 %v4198
        %4248 = vmatpush1.bf16.msra.mxu0 %v4197
        %4249 = vmatprep.subr.bf16.mxu0 %v4196
        %4250 = vmatpush1.bf16.msra.mxu0 %v4195
        %4251 = vmatprep.subr.bf16.mxu0 0
        %4252 = vmatpush2.bf16.msra.mxu0 0
        %4253 = vmatprep.subr.bf16.mxu0 0
        %4254 = vmatpush2.bf16.msra.mxu0 0
        %4255 = vmatprep.subr.bf16.mxu0 0
        %4256 = vmatpush2.bf16.msra.mxu0 0
        %4257 = vmatprep.subr.bf16.mxu0 0
        %4258 = vmatpush2.bf16.msra.mxu0 0
        %4259 = vmatprep.subr.bf16.mxu0 0
        %4260 = vmatpush2.bf16.msra.mxu0 0
        %4261 = vmatprep.subr.bf16.mxu0 0
        %4262 = vmatpush2.bf16.msra.mxu0 0
        %4263 = vmatprep.subr.bf16.mxu0 0
        %4264 = vmatpush2.bf16.msra.mxu0 0
        %4265 = vmatprep.subr.bf16.mxu0 0
        %4266 = vmatpush2.bf16.msra.mxu0 0
        %4267 = vmatprep.mubr.bf16.mxu0 0
        %4268 = vmatmul.mubr.bf16.gmra.mxu0 %v4212
        %v4269 = vpop.f32.mrf.mxu0
        %v4270 = vadd.f32 0.0, %v4269
        %v4271 = vpop.f32.mrf.mxu0
        %v4272 = vadd.f32 0.0, %v4271
        %v4273 = vpop.f32.mrf.mxu0
        %v4274 = vadd.f32 0.0, %v4273
        %v4275 = vpop.f32.mrf.mxu0
        %v4276 = vadd.f32 0.0, %v4275
        %4277 = vmatprep.mubr.bf16.mxu0 0
        %4278 = vmatmul.mubr.bf16.gmra.mxu0 %v4215
        %v4279 = vpop.f32.mrf.mxu0
        %v4280 = vadd.f32 0.0, %v4279
        %v4281 = vpop.f32.mrf.mxu0
        %v4282 = vadd.f32 0.0, %v4281
        %v4283 = vpop.f32.mrf.mxu0
        %v4284 = vadd.f32 0.0, %v4283
        %v4285 = vpop.f32.mrf.mxu0
        %v4286 = vadd.f32 0.0, %v4285
        %4287 = vmatprep.mubr.bf16.mxu0 0
        %4288 = vmatmul.mubr.bf16.gmra.mxu0 %v4218
        %v4289 = vpop.f32.mrf.mxu0
        %v4290 = vadd.f32 0.0, %v4289
        %v4291 = vpop.f32.mrf.mxu0
        %v4292 = vadd.f32 0.0, %v4291
        %v4293 = vpop.f32.mrf.mxu0
        %v4294 = vadd.f32 0.0, %v4293
        %v4295 = vpop.f32.mrf.mxu0
        %v4296 = vadd.f32 0.0, %v4295
        %4297 = vmatprep.mubr.bf16.mxu0 0
        %4298 = vmatmul.mubr.bf16.gmra.mxu0 %v4221
        %v4299 = vpop.f32.mrf.mxu0
        %v4300 = vadd.f32 0.0, %v4299
        %v4301 = vpop.f32.mrf.mxu0
        %v4302 = vadd.f32 0.0, %v4301
        %v4303 = vpop.f32.mrf.mxu0
        %v4304 = vadd.f32 0.0, %v4303
        %v4305 = vpop.f32.mrf.mxu0
        %v4306 = vadd.f32 0.0, %v4305
        %4307 = vmatprep.mubr.bf16.mxu0 0
        %4308 = vmatmul.mubr.bf16.gmra.mxu0 %v4224
        %v4309 = vpop.f32.mrf.mxu0
        %v4310 = vadd.f32 0.0, %v4309
        %v4311 = vpop.f32.mrf.mxu0
        %v4312 = vadd.f32 0.0, %v4311
        %v4313 = vpop.f32.mrf.mxu0
        %v4314 = vadd.f32 0.0, %v4313
        %v4315 = vpop.f32.mrf.mxu0
        %v4316 = vadd.f32 0.0, %v4315
        %4317 = vmatprep.mubr.bf16.mxu0 0
        %4318 = vmatmul.mubr.bf16.gmra.mxu0 %v4227
        %v4319 = vpop.f32.mrf.mxu0
        %v4320 = vadd.f32 0.0, %v4319
        %v4321 = vpop.f32.mrf.mxu0
        %v4322 = vadd.f32 0.0, %v4321
        %v4323 = vpop.f32.mrf.mxu0
        %v4324 = vadd.f32 0.0, %v4323
        %v4325 = vpop.f32.mrf.mxu0
        %v4326 = vadd.f32 0.0, %v4325
        %4327 = vmatprep.mubr.bf16.mxu0 0
        %4328 = vmatmul.mubr.bf16.gmra.mxu0 %v4230
        %v4329 = vpop.f32.mrf.mxu0
        %v4330 = vadd.f32 0.0, %v4329
        %v4331 = vpop.f32.mrf.mxu0
        %v4332 = vadd.f32 0.0, %v4331
        %v4333 = vpop.f32.mrf.mxu0
        %v4334 = vadd.f32 0.0, %v4333
        %v4335 = vpop.f32.mrf.mxu0
        %v4336 = vadd.f32 0.0, %v4335
        %4337 = vmatprep.mubr.bf16.mxu0 0
        %4338 = vmatmul.mubr.bf16.gmra.mxu0 %v4233
        %v4339 = vpop.f32.mrf.mxu0
        %v4340 = vadd.f32 0.0, %v4339
        %v4341 = vpop.f32.mrf.mxu0
        %v4342 = vadd.f32 0.0, %v4341
        %v4343 = vpop.f32.mrf.mxu0
        %v4344 = vadd.f32 0.0, %v4343
        %v4345 = vpop.f32.mrf.mxu0
        %v4346 = vadd.f32 0.0, %v4345
        %4347 = vdwg.mxu0
        %v4348 = vadd.f32 %v4123, %v4270
        %v4349 = vadd.f32 %v4124, %v4272
        %v4350 = vadd.f32 %v4125, %v4274
        %v4351 = vadd.f32 %v4126, %v4276
        %v4352 = vadd.f32 %v4127, %v4280
        %v4353 = vadd.f32 %v4128, %v4282
        %v4354 = vadd.f32 %v4129, %v4284
        %v4355 = vadd.f32 %v4130, %v4286
        %v4356 = vadd.f32 %v4131, %v4290
        %v4357 = vadd.f32 %v4132, %v4292
        %v4358 = vadd.f32 %v4133, %v4294
        %v4359 = vadd.f32 %v4134, %v4296
        %v4360 = vadd.f32 %v4135, %v4300
        %v4361 = vadd.f32 %v4136, %v4302
        %v4362 = vadd.f32 %v4137, %v4304
        %v4363 = vadd.f32 %v4138, %v4306
        %v4364 = vadd.f32 %v4139, %v4310
        %v4365 = vadd.f32 %v4140, %v4312
        %v4366 = vadd.f32 %v4141, %v4314
        %v4367 = vadd.f32 %v4142, %v4316
        %v4368 = vadd.f32 %v4143, %v4320
        %v4369 = vadd.f32 %v4144, %v4322
        %v4370 = vadd.f32 %v4145, %v4324
        %v4371 = vadd.f32 %v4146, %v4326
        %v4372 = vadd.f32 %v4147, %v4330
        %v4373 = vadd.f32 %v4148, %v4332
        %v4374 = vadd.f32 %v4149, %v4334
        %v4375 = vadd.f32 %v4150, %v4336
        %v4376 = vadd.f32 %v4151, %v4340
        %v4377 = vadd.f32 %v4152, %v4342
        %v4378 = vadd.f32 %v4153, %v4344
        %v4379 = vadd.f32 %v4154, %v4346
        %v4380 = vxor.u32 %v4348, 2147483648
        %v4381 = vxor.u32 %v4350, 2147483648
        %v4382 = vxor.u32 %v4352, 2147483648
        %v4383 = vxor.u32 %v4354, 2147483648
        %v4384 = vxor.u32 %v4356, 2147483648
        %v4385 = vxor.u32 %v4358, 2147483648
        %v4386 = vxor.u32 %v4360, 2147483648
        %v4387 = vxor.u32 %v4362, 2147483648
        %v4388 = vxor.u32 %v4364, 2147483648
        %v4389 = vxor.u32 %v4366, 2147483648
        %v4390 = vxor.u32 %v4368, 2147483648
        %v4391 = vxor.u32 %v4370, 2147483648
        %v4392 = vxor.u32 %v4372, 2147483648
        %v4393 = vxor.u32 %v4374, 2147483648
        %v4394 = vxor.u32 %v4376, 2147483648
        %v4395 = vxor.u32 %v4378, 2147483648
        %v4396 = vmul.f32 %v4380, 1.442695
        %v4397 = vpow.pop %v4396
        %v4398 = vmul.f32 %v4381, 1.442695
        %v4399 = vpow.pop %v4398
        %v4400 = vmul.f32 %v4382, 1.442695
        %v4401 = vpow.pop %v4400
        %v4402 = vmul.f32 %v4383, 1.442695
        %v4403 = vpow.pop %v4402
        %v4404 = vmul.f32 %v4384, 1.442695
        %v4405 = vpow.pop %v4404
        %v4406 = vmul.f32 %v4385, 1.442695
        %v4407 = vpow.pop %v4406
        %v4408 = vmul.f32 %v4386, 1.442695
        %v4409 = vpow.pop %v4408
        %v4410 = vmul.f32 %v4387, 1.442695
        %v4411 = vpow.pop %v4410
        %v4412 = vmul.f32 %v4388, 1.442695
        %v4413 = vpow.pop %v4412
        %v4414 = vmul.f32 %v4389, 1.442695
        %v4415 = vpow.pop %v4414
        %v4416 = vmul.f32 %v4390, 1.442695
        %v4417 = vpow.pop %v4416
        %v4418 = vmul.f32 %v4391, 1.442695
        %v4419 = vpow.pop %v4418
        %v4420 = vmul.f32 %v4392, 1.442695
        %v4421 = vpow.pop %v4420
        %v4422 = vmul.f32 %v4393, 1.442695
        %v4423 = vpow.pop %v4422
        %v4424 = vmul.f32 %v4394, 1.442695
        %v4425 = vpow.pop %v4424
        %v4426 = vmul.f32 %v4395, 1.442695
        %v4427 = vpow.pop %v4426
        %v4428 = vadd.f32 %v4397, 1.0
        %v4429 = vadd.f32 %v4399, 1.0
        %v4430 = vadd.f32 %v4401, 1.0
        %v4431 = vadd.f32 %v4403, 1.0
        %v4432 = vadd.f32 %v4405, 1.0
        %v4433 = vadd.f32 %v4407, 1.0
        %v4434 = vadd.f32 %v4409, 1.0
        %v4435 = vadd.f32 %v4411, 1.0
        %v4436 = vadd.f32 %v4413, 1.0
        %v4437 = vadd.f32 %v4415, 1.0
        %v4438 = vadd.f32 %v4417, 1.0
        %v4439 = vadd.f32 %v4419, 1.0
        %v4440 = vadd.f32 %v4421, 1.0
        %v4441 = vadd.f32 %v4423, 1.0
        %v4442 = vadd.f32 %v4425, 1.0
        %v4443 = vadd.f32 %v4427, 1.0
        %v4444 = vrcp.pop %v4428
        %v4445 = vmul.f32 1.0, %v4444
        %v4446 = vrcp.pop %v4429
        %v4447 = vmul.f32 1.0, %v4446
        %v4448 = vrcp.pop %v4430
        %v4449 = vmul.f32 1.0, %v4448
        %v4450 = vrcp.pop %v4431
        %v4451 = vmul.f32 1.0, %v4450
        %v4452 = vrcp.pop %v4432
        %v4453 = vmul.f32 1.0, %v4452
        %v4454 = vrcp.pop %v4433
        %v4455 = vmul.f32 1.0, %v4454
        %v4456 = vrcp.pop %v4434
        %v4457 = vmul.f32 1.0, %v4456
        %v4458 = vrcp.pop %v4435
        %v4459 = vmul.f32 1.0, %v4458
        %v4460 = vrcp.pop %v4436
        %v4461 = vmul.f32 1.0, %v4460
        %v4462 = vrcp.pop %v4437
        %v4463 = vmul.f32 1.0, %v4462
        %v4464 = vrcp.pop %v4438
        %v4465 = vmul.f32 1.0, %v4464
        %v4466 = vrcp.pop %v4439
        %v4467 = vmul.f32 1.0, %v4466
        %v4468 = vrcp.pop %v4440
        %v4469 = vmul.f32 1.0, %v4468
        %v4470 = vrcp.pop %v4441
        %v4471 = vmul.f32 1.0, %v4470
        %v4472 = vrcp.pop %v4442
        %v4473 = vmul.f32 1.0, %v4472
        %v4474 = vrcp.pop %v4443
        %v4475 = vmul.f32 1.0, %v4474
        %4492 = vrot.lane.b32.xlu0 %v2649, 64
        %v4493 = vpop.permute.xlu0 %4492
        %4494 = vrot.lane.b32.xlu0 %v2650, 64
        %v4495 = vpop.permute.xlu0 %4494
        %4496 = vrot.lane.b32.xlu0 %v2651, 64
        %v4497 = vpop.permute.xlu0 %4496
        %4498 = vrot.lane.b32.xlu0 %v2652, 64
        %v4499 = vpop.permute.xlu0 %4498
        %4500 = vrot.lane.b32.xlu0 %v2653, 64
        %v4501 = vpop.permute.xlu0 %4500
        %4502 = vrot.lane.b32.xlu0 %v2654, 64
        %v4503 = vpop.permute.xlu0 %4502
        %4504 = vrot.lane.b32.xlu0 %v2655, 64
        %v4505 = vpop.permute.xlu0 %4504
        %4506 = vrot.lane.b32.xlu0 %v2656, 64
        %v4507 = vpop.permute.xlu0 %4506
        %4508 = vrot.lane.b32.xlu0 %v2657, 64
        %v4509 = vpop.permute.xlu0 %4508
        %4510 = vrot.lane.b32.xlu0 %v2658, 64
        %v4511 = vpop.permute.xlu0 %4510
        %4512 = vrot.lane.b32.xlu0 %v2659, 64
        %v4513 = vpop.permute.xlu0 %4512
        %4514 = vrot.lane.b32.xlu0 %v2660, 64
        %v4515 = vpop.permute.xlu0 %4514
        %4516 = vrot.lane.b32.xlu0 %v2661, 64
        %v4517 = vpop.permute.xlu0 %4516
        %4518 = vrot.lane.b32.xlu0 %v2662, 64
        %v4519 = vpop.permute.xlu0 %4518
        %4520 = vrot.lane.b32.xlu0 %v2663, 64
        %v4521 = vpop.permute.xlu0 %4520
        %4522 = vrot.lane.b32.xlu0 %v2664, 64
        %v4523 = vpop.permute.xlu0 %4522
        %v4540 = vmul.f32 %v4445, %v4493
        %v4541 = vmul.f32 %v4447, %v4495
        %v4542 = vmul.f32 %v4449, %v4497
        %v4543 = vmul.f32 %v4451, %v4499
        %v4544 = vmul.f32 %v4453, %v4501
        %v4545 = vmul.f32 %v4455, %v4503
        %v4546 = vmul.f32 %v4457, %v4505
        %v4547 = vmul.f32 %v4459, %v4507
        %v4548 = vmul.f32 %v4461, %v4509
        %v4549 = vmul.f32 %v4463, %v4511
        %v4550 = vmul.f32 %v4465, %v4513
        %v4551 = vmul.f32 %v4467, %v4515
        %v4552 = vmul.f32 %v4469, %v4517
        %v4553 = vmul.f32 %v4471, %v4519
        %v4554 = vmul.f32 %v4473, %v4521
        %v4555 = vmul.f32 %v4475, %v4523
        %v4556 = vpack.c.bf16 %v4541, %v4540
        %v4557 = vpack.c.bf16 %v4543, %v4542
        %v4558 = vpack.c.bf16 %v4545, %v4544
        %v4559 = vpack.c.bf16 %v4547, %v4546
        %v4560 = vpack.c.bf16 %v4549, %v4548
        %v4561 = vpack.c.bf16 %v4551, %v4550
        %v4562 = vpack.c.bf16 %v4553, %v4552
        %v4563 = vpack.c.bf16 %v4555, %v4554
        %v4564 = vld [vmem:[%s14] sm:$0xf]
        %v4565 = vld [vmem:[%s14 + $0x4] sm:$0xf]
        %v4566 = vld [vmem:[%s14 + $0x8] sm:$0xf]
        %v4567 = vld [vmem:[%s14 + $0xc] sm:$0xf]
        %v4568 = vld [vmem:[%s14 + $0x10] sm:$0xf]
        %v4569 = vld [vmem:[%s14 + $0x14] sm:$0xf]
        %v4570 = vld [vmem:[%s14 + $0x18] sm:$0xf]
        %v4571 = vld [vmem:[%s14 + $0x1c] sm:$0xf]
        %4580 = vrot.lane.b32.xlu0 %v4556, 64
        %v4581 = vpop.permute.xlu0 %4580
        %4582 = vrot.lane.b32.xlu0 %v4557, 64
        %v4583 = vpop.permute.xlu0 %4582
        %4584 = vrot.lane.b32.xlu0 %v4558, 64
        %v4585 = vpop.permute.xlu0 %4584
        %4586 = vrot.lane.b32.xlu0 %v4559, 64
        %v4587 = vpop.permute.xlu0 %4586
        %4588 = vrot.lane.b32.xlu0 %v4560, 64
        %v4589 = vpop.permute.xlu0 %4588
        %4590 = vrot.lane.b32.xlu0 %v4561, 64
        %v4591 = vpop.permute.xlu0 %4590
        %4592 = vrot.lane.b32.xlu0 %v4562, 64
        %v4593 = vpop.permute.xlu0 %4592
        %4594 = vrot.lane.b32.xlu0 %v4563, 64
        %v4595 = vpop.permute.xlu0 %4594
        %v4604 = vunpack.c.l.b16 %v4564
        %v4605 = vunpack.c.l.b16 %v4565
        %v4606 = vunpack.c.l.b16 %v4566
        %v4607 = vunpack.c.l.b16 %v4567
        %v4608 = vunpack.c.l.b16 %v4568
        %v4609 = vunpack.c.l.b16 %v4569
        %v4610 = vunpack.c.l.b16 %v4570
        %v4611 = vunpack.c.l.b16 %v4571
        %v4612 = vpack.c.b16 %v4605, %v4604
        %v4613 = vpack.c.b16 %v4607, %v4606
        %v4614 = vpack.c.b16 %v4609, %v4608
        %v4615 = vpack.c.b16 %v4611, %v4610
        %v4621 = vsel %vm977, %v4581, 0
        %v4624 = vsel %vm977, %v4583, 0
        %v4627 = vsel %vm977, %v4585, 0
        %v4630 = vsel %vm977, %v4587, 0
        %v4633 = vsel %vm977, %v4589, 0
        %v4636 = vsel %vm977, %v4591, 0
        %v4639 = vsel %vm977, %v4593, 0
        %v4642 = vsel %vm977, %v4595, 0
        %4644 = vmatprep.subr.bf16.mxu0 0
        %4645 = vmatpush1.bf16.msra.mxu0 0
        %4646 = vmatprep.subr.bf16.mxu0 0
        %4647 = vmatpush1.bf16.msra.mxu0 0
        %4648 = vmatprep.subr.bf16.mxu0 0
        %4649 = vmatpush1.bf16.msra.mxu0 0
        %4650 = vmatprep.subr.bf16.mxu0 0
        %4651 = vmatpush1.bf16.msra.mxu0 0
        %4652 = vmatprep.subr.bf16.mxu0 0
        %4653 = vmatpush1.bf16.msra.mxu0 %v4615
        %4654 = vmatprep.subr.bf16.mxu0 0
        %4655 = vmatpush1.bf16.msra.mxu0 %v4614
        %4656 = vmatprep.subr.bf16.mxu0 0
        %4657 = vmatpush1.bf16.msra.mxu0 %v4613
        %4658 = vmatprep.subr.bf16.mxu0 0
        %4659 = vmatpush1.bf16.msra.mxu0 %v4612
        %4660 = vmatprep.subr.bf16.mxu0 0
        %4661 = vmatpush2.bf16.msra.mxu0 0
        %4662 = vmatprep.subr.bf16.mxu0 0
        %4663 = vmatpush2.bf16.msra.mxu0 0
        %4664 = vmatprep.subr.bf16.mxu0 0
        %4665 = vmatpush2.bf16.msra.mxu0 0
        %4666 = vmatprep.subr.bf16.mxu0 0
        %4667 = vmatpush2.bf16.msra.mxu0 0
        %4668 = vmatprep.subr.bf16.mxu0 0
        %4669 = vmatpush2.bf16.msra.mxu0 0
        %4670 = vmatprep.subr.bf16.mxu0 0
        %4671 = vmatpush2.bf16.msra.mxu0 0
        %4672 = vmatprep.subr.bf16.mxu0 0
        %4673 = vmatpush2.bf16.msra.mxu0 0
        %4674 = vmatprep.subr.bf16.mxu0 0
        %4675 = vmatpush2.bf16.msra.mxu0 0
        %4676 = vmatprep.mubr.bf16.mxu0 0
        %4677 = vmatmul.mubr.bf16.gmra.mxu0 %v4621
        %v4678 = vpop.f32.mrf.mxu0
        %v4679 = vadd.f32 0.0, %v4678
        %v4680 = vpop.f32.mrf.mxu0
        %v4681 = vpop.f32.mrf.mxu0
        %v4682 = vadd.f32 0.0, %v4681
        %v4683 = vpop.f32.mrf.mxu0
        %4684 = vmatprep.mubr.bf16.mxu0 0
        %4685 = vmatmul.mubr.bf16.gmra.mxu0 %v4624
        %v4686 = vpop.f32.mrf.mxu0
        %v4687 = vadd.f32 0.0, %v4686
        %v4688 = vpop.f32.mrf.mxu0
        %v4689 = vpop.f32.mrf.mxu0
        %v4690 = vadd.f32 0.0, %v4689
        %v4691 = vpop.f32.mrf.mxu0
        %4692 = vmatprep.mubr.bf16.mxu0 0
        %4693 = vmatmul.mubr.bf16.gmra.mxu0 %v4627
        %v4694 = vpop.f32.mrf.mxu0
        %v4695 = vadd.f32 0.0, %v4694
        %v4696 = vpop.f32.mrf.mxu0
        %v4697 = vpop.f32.mrf.mxu0
        %v4698 = vadd.f32 0.0, %v4697
        %v4699 = vpop.f32.mrf.mxu0
        %4700 = vmatprep.mubr.bf16.mxu0 0
        %4701 = vmatmul.mubr.bf16.gmra.mxu0 %v4630
        %v4702 = vpop.f32.mrf.mxu0
        %v4703 = vadd.f32 0.0, %v4702
        %v4704 = vpop.f32.mrf.mxu0
        %v4705 = vpop.f32.mrf.mxu0
        %v4706 = vadd.f32 0.0, %v4705
        %v4707 = vpop.f32.mrf.mxu0
        %4708 = vmatprep.mubr.bf16.mxu0 0
        %4709 = vmatmul.mubr.bf16.gmra.mxu0 %v4633
        %v4710 = vpop.f32.mrf.mxu0
        %v4711 = vadd.f32 0.0, %v4710
        %v4712 = vpop.f32.mrf.mxu0
        %v4713 = vpop.f32.mrf.mxu0
        %v4714 = vadd.f32 0.0, %v4713
        %v4715 = vpop.f32.mrf.mxu0
        %4716 = vmatprep.mubr.bf16.mxu0 0
        %4717 = vmatmul.mubr.bf16.gmra.mxu0 %v4636
        %v4718 = vpop.f32.mrf.mxu0
        %v4719 = vadd.f32 0.0, %v4718
        %v4720 = vpop.f32.mrf.mxu0
        %v4721 = vpop.f32.mrf.mxu0
        %v4722 = vadd.f32 0.0, %v4721
        %v4723 = vpop.f32.mrf.mxu0
        %4724 = vmatprep.mubr.bf16.mxu0 0
        %4725 = vmatmul.mubr.bf16.gmra.mxu0 %v4639
        %v4726 = vpop.f32.mrf.mxu0
        %v4727 = vadd.f32 0.0, %v4726
        %v4728 = vpop.f32.mrf.mxu0
        %v4729 = vpop.f32.mrf.mxu0
        %v4730 = vadd.f32 0.0, %v4729
        %v4731 = vpop.f32.mrf.mxu0
        %4732 = vmatprep.mubr.bf16.mxu0 0
        %4733 = vmatmul.mubr.bf16.gmra.mxu0 %v4642
        %v4734 = vpop.f32.mrf.mxu0
        %v4735 = vadd.f32 0.0, %v4734
        %v4736 = vpop.f32.mrf.mxu0
        %v4737 = vpop.f32.mrf.mxu0
        %v4738 = vadd.f32 0.0, %v4737
        %v4739 = vpop.f32.mrf.mxu0
        %4740 = vdwg.mxu0
        %v4741 = vadd.f32 %v4349, %v4679
        %v4742 = vadd.f32 %v4351, %v4682
        %v4743 = vadd.f32 %v4353, %v4687
        %v4744 = vadd.f32 %v4355, %v4690
        %v4745 = vadd.f32 %v4357, %v4695
        %v4746 = vadd.f32 %v4359, %v4698
        %v4747 = vadd.f32 %v4361, %v4703
        %v4748 = vadd.f32 %v4363, %v4706
        %v4749 = vadd.f32 %v4365, %v4711
        %v4750 = vadd.f32 %v4367, %v4714
        %v4751 = vadd.f32 %v4369, %v4719
        %v4752 = vadd.f32 %v4371, %v4722
        %v4753 = vadd.f32 %v4373, %v4727
        %v4754 = vadd.f32 %v4375, %v4730
        %v4755 = vadd.f32 %v4377, %v4735
        %v4756 = vadd.f32 %v4379, %v4738
        %v4757 = vtanh.pop %v4741
        %v4758 = vtanh.pop %v4742
        %v4759 = vtanh.pop %v4743
        %v4760 = vtanh.pop %v4744
        %v4761 = vtanh.pop %v4745
        %v4762 = vtanh.pop %v4746
        %v4763 = vtanh.pop %v4747
        %v4764 = vtanh.pop %v4748
        %v4765 = vtanh.pop %v4749
        %v4766 = vtanh.pop %v4750
        %v4767 = vtanh.pop %v4751
        %v4768 = vtanh.pop %v4752
        %v4769 = vtanh.pop %v4753
        %v4770 = vtanh.pop %v4754
        %v4771 = vtanh.pop %v4755
        %v4772 = vtanh.pop %v4756
        %v4773 = vsub.f32 1.0, %v4445
        %v4774 = vsub.f32 1.0, %v4447
        %v4775 = vsub.f32 1.0, %v4449
        %v4776 = vsub.f32 1.0, %v4451
        %v4777 = vsub.f32 1.0, %v4453
        %v4778 = vsub.f32 1.0, %v4455
        %v4779 = vsub.f32 1.0, %v4457
        %v4780 = vsub.f32 1.0, %v4459
        %v4781 = vsub.f32 1.0, %v4461
        %v4782 = vsub.f32 1.0, %v4463
        %v4783 = vsub.f32 1.0, %v4465
        %v4784 = vsub.f32 1.0, %v4467
        %v4785 = vsub.f32 1.0, %v4469
        %v4786 = vsub.f32 1.0, %v4471
        %v4787 = vsub.f32 1.0, %v4473
        %v4788 = vsub.f32 1.0, %v4475
        %v4789 = vmul.f32 %v4773, %v2649
        %v4790 = vmul.f32 %v4774, %v2650
        %v4791 = vmul.f32 %v4775, %v2651
        %v4792 = vmul.f32 %v4776, %v2652
        %v4793 = vmul.f32 %v4777, %v2653
        %v4794 = vmul.f32 %v4778, %v2654
        %v4795 = vmul.f32 %v4779, %v2655
        %v4796 = vmul.f32 %v4780, %v2656
        %v4797 = vmul.f32 %v4781, %v2657
        %v4798 = vmul.f32 %v4782, %v2658
        %v4799 = vmul.f32 %v4783, %v2659
        %v4800 = vmul.f32 %v4784, %v2660
        %v4801 = vmul.f32 %v4785, %v2661
        %v4802 = vmul.f32 %v4786, %v2662
        %v4803 = vmul.f32 %v4787, %v2663
        %v4804 = vmul.f32 %v4788, %v2664
        %v4805 = vmul.f32 %v4445, %v4757
        %v4806 = vmul.f32 %v4447, %v4758
        %v4807 = vmul.f32 %v4449, %v4759
        %v4808 = vmul.f32 %v4451, %v4760
        %v4809 = vmul.f32 %v4453, %v4761
        %v4810 = vmul.f32 %v4455, %v4762
        %v4811 = vmul.f32 %v4457, %v4763
        %v4812 = vmul.f32 %v4459, %v4764
        %v4813 = vmul.f32 %v4461, %v4765
        %v4814 = vmul.f32 %v4463, %v4766
        %v4815 = vmul.f32 %v4465, %v4767
        %v4816 = vmul.f32 %v4467, %v4768
        %v4817 = vmul.f32 %v4469, %v4769
        %v4818 = vmul.f32 %v4471, %v4770
        %v4819 = vmul.f32 %v4473, %v4771
        %v4820 = vmul.f32 %v4475, %v4772
        %v4821 = vadd.f32 %v4789, %v4805
        %v4822 = vadd.f32 %v4790, %v4806
        %v4823 = vadd.f32 %v4791, %v4807
        %v4824 = vadd.f32 %v4792, %v4808
        %v4825 = vadd.f32 %v4793, %v4809
        %v4826 = vadd.f32 %v4794, %v4810
        %v4827 = vadd.f32 %v4795, %v4811
        %v4828 = vadd.f32 %v4796, %v4812
        %v4829 = vadd.f32 %v4797, %v4813
        %v4830 = vadd.f32 %v4798, %v4814
        %v4831 = vadd.f32 %v4799, %v4815
        %v4832 = vadd.f32 %v4800, %v4816
        %v4833 = vadd.f32 %v4801, %v4817
        %v4834 = vadd.f32 %v4802, %v4818
        %v4835 = vadd.f32 %v4803, %v4819
        %v4836 = vadd.f32 %v4804, %v4820
        %v4837 = vpack.c.bf16 %v4822, %v4821
        %v4838 = vpack.c.bf16 %v4824, %v4823
        %v4839 = vpack.c.bf16 %v4826, %v4825
        %v4840 = vpack.c.bf16 %v4828, %v4827
        %v4841 = vpack.c.bf16 %v4830, %v4829
        %v4842 = vpack.c.bf16 %v4832, %v4831
        %v4843 = vpack.c.bf16 %v4834, %v4833
        %v4844 = vpack.c.bf16 %v4836, %v4835
        %v4845 = vld [vmem:[%s16] sm:$0xf]
        %v4846 = vld [vmem:[%s16 + $0x4] sm:$0xf]
        %v4847 = vld [vmem:[%s16 + $0x8] sm:$0xf]
        %v4848 = vld [vmem:[%s16 + $0xc] sm:$0xf]
        %v4849 = vld [vmem:[%s16 + $0x10] sm:$0xf]
        %v4850 = vld [vmem:[%s16 + $0x14] sm:$0xf]
        %v4851 = vld [vmem:[%s16 + $0x18] sm:$0xf]
        %v4852 = vld [vmem:[%s16 + $0x1c] sm:$0xf]
        %v4853 = vld [vmem:[%s17] sm:$0x1]
        %v4855 = vlaneseq
        %v4856 = vshrl.u32 %v4855, 7
        %v4857 = vsub.s32 0, %v4856
        %v4858 = vrot.slane %v4853, %v4857
        %v4868 = vunpack.c.l.b16 %v4845
        %v4869 = vunpack.c.l.b16 %v4846
        %v4870 = vunpack.c.l.b16 %v4847
        %v4871 = vunpack.c.l.b16 %v4848
        %v4872 = vunpack.c.l.b16 %v4849
        %v4873 = vunpack.c.l.b16 %v4850
        %v4874 = vunpack.c.l.b16 %v4851
        %v4875 = vunpack.c.l.b16 %v4852
        %v4876 = vpack.c.b16 %v4869, %v4868
        %v4877 = vpack.c.b16 %v4871, %v4870
        %v4878 = vpack.c.b16 %v4873, %v4872
        %v4879 = vpack.c.b16 %v4875, %v4874
        %v4885 = vsel %vm977, %v4837, 0
        %v4888 = vsel %vm977, %v4838, 0
        %v4891 = vsel %vm977, %v4839, 0
        %v4894 = vsel %vm977, %v4840, 0
        %v4897 = vsel %vm977, %v4841, 0
        %v4900 = vsel %vm977, %v4842, 0
        %v4903 = vsel %vm977, %v4843, 0
        %v4906 = vsel %vm977, %v4844, 0
        %4908 = vmatprep.subr.bf16.mxu0 0
        %4909 = vmatpush1.bf16.msra.mxu0 0
        %4910 = vmatprep.subr.bf16.mxu0 0
        %4911 = vmatpush1.bf16.msra.mxu0 0
        %4912 = vmatprep.subr.bf16.mxu0 0
        %4913 = vmatpush1.bf16.msra.mxu0 0
        %4914 = vmatprep.subr.bf16.mxu0 0
        %4915 = vmatpush1.bf16.msra.mxu0 0
        %4916 = vmatprep.subr.bf16.mxu0 0
        %4917 = vmatpush1.bf16.msra.mxu0 %v4879
        %4918 = vmatprep.subr.bf16.mxu0 0
        %4919 = vmatpush1.bf16.msra.mxu0 %v4878
        %4920 = vmatprep.subr.bf16.mxu0 0
        %4921 = vmatpush1.bf16.msra.mxu0 %v4877
        %4922 = vmatprep.subr.bf16.mxu0 0
        %4923 = vmatpush1.bf16.msra.mxu0 %v4876
        %4924 = vmatprep.subr.bf16.mxu0 0
        %4925 = vmatpush2.bf16.msra.mxu0 0
        %4926 = vmatprep.subr.bf16.mxu0 0
        %4927 = vmatpush2.bf16.msra.mxu0 0
        %4928 = vmatprep.subr.bf16.mxu0 0
        %4929 = vmatpush2.bf16.msra.mxu0 0
        %4930 = vmatprep.subr.bf16.mxu0 0
        %4931 = vmatpush2.bf16.msra.mxu0 0
        %4932 = vmatprep.subr.bf16.mxu0 0
        %4933 = vmatpush2.bf16.msra.mxu0 0
        %4934 = vmatprep.subr.bf16.mxu0 0
        %4935 = vmatpush2.bf16.msra.mxu0 0
        %4936 = vmatprep.subr.bf16.mxu0 0
        %4937 = vmatpush2.bf16.msra.mxu0 0
        %4938 = vmatprep.subr.bf16.mxu0 0
        %4939 = vmatpush2.bf16.msra.mxu0 0
        %4940 = vmatprep.mubr.bf16.mxu0 0
        %4941 = vmatmul.mubr.bf16.gmra.mxu0 %v4885
        %v4942 = vpop.f32.mrf.mxu0
        %v4943 = vadd.f32 %v4858, %v4942
        %v4944 = vpop.f32.mrf.mxu0
        %v4945 = vpop.f32.mrf.mxu0
        %v4946 = vadd.f32 %v4858, %v4945
        %v4947 = vpop.f32.mrf.mxu0
        %4948 = vmatprep.mubr.bf16.mxu0 0
        %4949 = vmatmul.mubr.bf16.gmra.mxu0 %v4888
        %v4950 = vpop.f32.mrf.mxu0
        %v4951 = vadd.f32 %v4858, %v4950
        %v4952 = vpop.f32.mrf.mxu0
        %v4953 = vpop.f32.mrf.mxu0
        %v4954 = vadd.f32 %v4858, %v4953
        %v4955 = vpop.f32.mrf.mxu0
        %4956 = vmatprep.mubr.bf16.mxu0 0
        %4957 = vmatmul.mubr.bf16.gmra.mxu0 %v4891
        %v4958 = vpop.f32.mrf.mxu0
        %v4959 = vadd.f32 %v4858, %v4958
        %v4960 = vpop.f32.mrf.mxu0
        %v4961 = vpop.f32.mrf.mxu0
        %v4962 = vadd.f32 %v4858, %v4961
        %v4963 = vpop.f32.mrf.mxu0
        %4964 = vmatprep.mubr.bf16.mxu0 0
        %4965 = vmatmul.mubr.bf16.gmra.mxu0 %v4894
        %v4966 = vpop.f32.mrf.mxu0
        %v4967 = vadd.f32 %v4858, %v4966
        %v4968 = vpop.f32.mrf.mxu0
        %v4969 = vpop.f32.mrf.mxu0
        %v4970 = vadd.f32 %v4858, %v4969
        %v4971 = vpop.f32.mrf.mxu0
        %4972 = vmatprep.mubr.bf16.mxu0 0
        %4973 = vmatmul.mubr.bf16.gmra.mxu0 %v4897
        %v4974 = vpop.f32.mrf.mxu0
        %v4975 = vadd.f32 %v4858, %v4974
        %v4976 = vpop.f32.mrf.mxu0
        %v4977 = vpop.f32.mrf.mxu0
        %v4978 = vadd.f32 %v4858, %v4977
        %v4979 = vpop.f32.mrf.mxu0
        %4980 = vmatprep.mubr.bf16.mxu0 0
        %4981 = vmatmul.mubr.bf16.gmra.mxu0 %v4900
        %v4982 = vpop.f32.mrf.mxu0
        %v4983 = vadd.f32 %v4858, %v4982
        %v4984 = vpop.f32.mrf.mxu0
        %v4985 = vpop.f32.mrf.mxu0
        %v4986 = vadd.f32 %v4858, %v4985
        %v4987 = vpop.f32.mrf.mxu0
        %4988 = vmatprep.mubr.bf16.mxu0 0
        %4989 = vmatmul.mubr.bf16.gmra.mxu0 %v4903
        %v4990 = vpop.f32.mrf.mxu0
        %v4991 = vadd.f32 %v4858, %v4990
        %v4992 = vpop.f32.mrf.mxu0
        %v4993 = vpop.f32.mrf.mxu0
        %v4994 = vadd.f32 %v4858, %v4993
        %v4995 = vpop.f32.mrf.mxu0
        %4996 = vmatprep.mubr.bf16.mxu0 0
        %4997 = vmatmul.mubr.bf16.gmra.mxu0 %v4906
        %v4998 = vpop.f32.mrf.mxu0
        %v4999 = vadd.f32 %v4858, %v4998
        %v5000 = vpop.f32.mrf.mxu0
        %v5001 = vpop.f32.mrf.mxu0
        %v5002 = vadd.f32 %v4858, %v5001
        %v5003 = vpop.f32.mrf.mxu0
        %5004 = vdwg.mxu0
        %v5005 = vmax.f32 %v4943, 0.0
        %v5006 = vmax.f32 %v4946, 0.0
        %v5007 = vmax.f32 %v4951, 0.0
        %v5008 = vmax.f32 %v4954, 0.0
        %v5009 = vmax.f32 %v4959, 0.0
        %v5010 = vmax.f32 %v4962, 0.0
        %v5011 = vmax.f32 %v4967, 0.0
        %v5012 = vmax.f32 %v4970, 0.0
        %v5013 = vmax.f32 %v4975, 0.0
        %v5014 = vmax.f32 %v4978, 0.0
        %v5015 = vmax.f32 %v4983, 0.0
        %v5016 = vmax.f32 %v4986, 0.0
        %v5017 = vmax.f32 %v4991, 0.0
        %v5018 = vmax.f32 %v4994, 0.0
        %v5019 = vmax.f32 %v4999, 0.0
        %v5020 = vmax.f32 %v5002, 0.0
        %v5021 = vpack.c.bf16 %v5006, %v5005
        %v5022 = vpack.c.bf16 %v5008, %v5007
        %v5023 = vpack.c.bf16 %v5010, %v5009
        %v5024 = vpack.c.bf16 %v5012, %v5011
        %v5025 = vpack.c.bf16 %v5014, %v5013
        %v5026 = vpack.c.bf16 %v5016, %v5015
        %v5027 = vpack.c.bf16 %v5018, %v5017
        %v5028 = vpack.c.bf16 %v5020, %v5019
        %v5029 = vld [vmem:[%s18] sm:$0xf]
        %v5030 = vld [vmem:[%s18 + $0x4] sm:$0xf]
        %v5031 = vld [vmem:[%s18 + $0x8] sm:$0xf]
        %v5032 = vld [vmem:[%s18 + $0xc] sm:$0xf]
        %v5033 = vld [vmem:[%s18 + $0x10] sm:$0xf]
        %v5034 = vld [vmem:[%s18 + $0x14] sm:$0xf]
        %v5035 = vld [vmem:[%s18 + $0x18] sm:$0xf]
        %v5036 = vld [vmem:[%s18 + $0x1c] sm:$0xf]
        %v5037 = vld [vmem:[%s19] sm:$0x1]
        %v5039 = vlaneseq
        %v5040 = vshrl.u32 %v5039, 7
        %v5041 = vsub.s32 0, %v5040
        %v5042 = vrot.slane %v5037, %v5041
        %v5052 = vunpack.c.l.b16 %v5029
        %v5053 = vunpack.c.l.b16 %v5030
        %v5054 = vunpack.c.l.b16 %v5031
        %v5055 = vunpack.c.l.b16 %v5032
        %v5056 = vunpack.c.l.b16 %v5033
        %v5057 = vunpack.c.l.b16 %v5034
        %v5058 = vunpack.c.l.b16 %v5035
        %v5059 = vunpack.c.l.b16 %v5036
        %v5060 = vpack.c.b16 %v5053, %v5052
        %v5061 = vpack.c.b16 %v5055, %v5054
        %v5062 = vpack.c.b16 %v5057, %v5056
        %v5063 = vpack.c.b16 %v5059, %v5058
        %v5069 = vsel %vm977, %v5021, 0
        %v5072 = vsel %vm977, %v5022, 0
        %v5075 = vsel %vm977, %v5023, 0
        %v5078 = vsel %vm977, %v5024, 0
        %v5081 = vsel %vm977, %v5025, 0
        %v5084 = vsel %vm977, %v5026, 0
        %v5087 = vsel %vm977, %v5027, 0
        %v5090 = vsel %vm977, %v5028, 0
        %5092 = vmatprep.subr.bf16.mxu0 0
        %5093 = vmatpush1.bf16.msra.mxu0 0
        %5094 = vmatprep.subr.bf16.mxu0 0
        %5095 = vmatpush1.bf16.msra.mxu0 0
        %5096 = vmatprep.subr.bf16.mxu0 0
        %5097 = vmatpush1.bf16.msra.mxu0 0
        %5098 = vmatprep.subr.bf16.mxu0 0
        %5099 = vmatpush1.bf16.msra.mxu0 0
        %5100 = vmatprep.subr.bf16.mxu0 0
        %5101 = vmatpush1.bf16.msra.mxu0 %v5063
        %5102 = vmatprep.subr.bf16.mxu0 0
        %5103 = vmatpush1.bf16.msra.mxu0 %v5062
        %5104 = vmatprep.subr.bf16.mxu0 0
        %5105 = vmatpush1.bf16.msra.mxu0 %v5061
        %5106 = vmatprep.subr.bf16.mxu0 0
        %5107 = vmatpush1.bf16.msra.mxu0 %v5060
        %5108 = vmatprep.subr.bf16.mxu0 0
        %5109 = vmatpush2.bf16.msra.mxu0 0
        %5110 = vmatprep.subr.bf16.mxu0 0
        %5111 = vmatpush2.bf16.msra.mxu0 0
        %5112 = vmatprep.subr.bf16.mxu0 0
        %5113 = vmatpush2.bf16.msra.mxu0 0
        %5114 = vmatprep.subr.bf16.mxu0 0
        %5115 = vmatpush2.bf16.msra.mxu0 0
        %5116 = vmatprep.subr.bf16.mxu0 0
        %5117 = vmatpush2.bf16.msra.mxu0 0
        %5118 = vmatprep.subr.bf16.mxu0 0
        %5119 = vmatpush2.bf16.msra.mxu0 0
        %5120 = vmatprep.subr.bf16.mxu0 0
        %5121 = vmatpush2.bf16.msra.mxu0 0
        %5122 = vmatprep.subr.bf16.mxu0 0
        %5123 = vmatpush2.bf16.msra.mxu0 0
        %5124 = vmatprep.mubr.bf16.mxu0 0
        %5125 = vmatmul.mubr.bf16.gmra.mxu0 %v5069
        %v5126 = vpop.f32.mrf.mxu0
        %v5127 = vadd.f32 %v5042, %v5126
        %v5128 = vpop.f32.mrf.mxu0
        %v5129 = vpop.f32.mrf.mxu0
        %v5130 = vadd.f32 %v5042, %v5129
        %v5131 = vpop.f32.mrf.mxu0
        %5132 = vmatprep.mubr.bf16.mxu0 0
        %5133 = vmatmul.mubr.bf16.gmra.mxu0 %v5072
        %v5134 = vpop.f32.mrf.mxu0
        %v5135 = vadd.f32 %v5042, %v5134
        %v5136 = vpop.f32.mrf.mxu0
        %v5137 = vpop.f32.mrf.mxu0
        %v5138 = vadd.f32 %v5042, %v5137
        %v5139 = vpop.f32.mrf.mxu0
        %5140 = vmatprep.mubr.bf16.mxu0 0
        %5141 = vmatmul.mubr.bf16.gmra.mxu0 %v5075
        %v5142 = vpop.f32.mrf.mxu0
        %v5143 = vadd.f32 %v5042, %v5142
        %v5144 = vpop.f32.mrf.mxu0
        %v5145 = vpop.f32.mrf.mxu0
        %v5146 = vadd.f32 %v5042, %v5145
        %v5147 = vpop.f32.mrf.mxu0
        %5148 = vmatprep.mubr.bf16.mxu0 0
        %5149 = vmatmul.mubr.bf16.gmra.mxu0 %v5078
        %v5150 = vpop.f32.mrf.mxu0
        %v5151 = vadd.f32 %v5042, %v5150
        %v5152 = vpop.f32.mrf.mxu0
        %v5153 = vpop.f32.mrf.mxu0
        %v5154 = vadd.f32 %v5042, %v5153
        %v5155 = vpop.f32.mrf.mxu0
        %5156 = vmatprep.mubr.bf16.mxu0 0
        %5157 = vmatmul.mubr.bf16.gmra.mxu0 %v5081
        %v5158 = vpop.f32.mrf.mxu0
        %v5159 = vadd.f32 %v5042, %v5158
        %v5160 = vpop.f32.mrf.mxu0
        %v5161 = vpop.f32.mrf.mxu0
        %v5162 = vadd.f32 %v5042, %v5161
        %v5163 = vpop.f32.mrf.mxu0
        %5164 = vmatprep.mubr.bf16.mxu0 0
        %5165 = vmatmul.mubr.bf16.gmra.mxu0 %v5084
        %v5166 = vpop.f32.mrf.mxu0
        %v5167 = vadd.f32 %v5042, %v5166
        %v5168 = vpop.f32.mrf.mxu0
        %v5169 = vpop.f32.mrf.mxu0
        %v5170 = vadd.f32 %v5042, %v5169
        %v5171 = vpop.f32.mrf.mxu0
        %5172 = vmatprep.mubr.bf16.mxu0 0
        %5173 = vmatmul.mubr.bf16.gmra.mxu0 %v5087
        %v5174 = vpop.f32.mrf.mxu0
        %v5175 = vadd.f32 %v5042, %v5174
        %v5176 = vpop.f32.mrf.mxu0
        %v5177 = vpop.f32.mrf.mxu0
        %v5178 = vadd.f32 %v5042, %v5177
        %v5179 = vpop.f32.mrf.mxu0
        %5180 = vmatprep.mubr.bf16.mxu0 0
        %5181 = vmatmul.mubr.bf16.gmra.mxu0 %v5090
        %v5182 = vpop.f32.mrf.mxu0
        %v5183 = vadd.f32 %v5042, %v5182
        %v5184 = vpop.f32.mrf.mxu0
        %v5185 = vpop.f32.mrf.mxu0
        %v5186 = vadd.f32 %v5042, %v5185
        %v5187 = vpop.f32.mrf.mxu0
        %5188 = vdwg.mxu0
        %v5189 = vadd.f32 %v2633, %v5127
        %v5190 = vadd.f32 %v2634, %v5130
        %v5191 = vadd.f32 %v2635, %v5135
        %v5192 = vadd.f32 %v2636, %v5138
        %v5193 = vadd.f32 %v2637, %v5143
        %v5194 = vadd.f32 %v2638, %v5146
        %v5195 = vadd.f32 %v2639, %v5151
        %v5196 = vadd.f32 %v2640, %v5154
        %v5197 = vadd.f32 %v2641, %v5159
        %v5198 = vadd.f32 %v2642, %v5162
        %v5199 = vadd.f32 %v2643, %v5167
        %v5200 = vadd.f32 %v2644, %v5170
        %v5201 = vadd.f32 %v2645, %v5175
        %v5202 = vadd.f32 %v2646, %v5178
        %v5203 = vadd.f32 %v2647, %v5183
        %v5204 = vadd.f32 %v2648, %v5186
        %5205 = vst.msk [vmem:[#allocation3] sm:$0xff] %vm977, %v4821
        %5206 = vst.msk [vmem:[#allocation3 + $0x8] sm:$0xff] %vm977, %v4822
        %5207 = vst.msk [vmem:[#allocation3 + $0x10] sm:$0xff] %vm977, %v4823
        %5208 = vst.msk [vmem:[#allocation3 + $0x18] sm:$0xff] %vm977, %v4824
        %5209 = vst.msk [vmem:[#allocation3 + $0x20] sm:$0xff] %vm977, %v4825
        %5210 = vst.msk [vmem:[#allocation3 + $0x28] sm:$0xff] %vm977, %v4826
        %5211 = vst.msk [vmem:[#allocation3 + $0x30] sm:$0xff] %vm977, %v4827
        %5212 = vst.msk [vmem:[#allocation3 + $0x38] sm:$0xff] %vm977, %v4828
        %5213 = vst.msk [vmem:[#allocation3 + $0x40] sm:$0xff] %vm977, %v4829
        %5214 = vst.msk [vmem:[#allocation3 + $0x48] sm:$0xff] %vm977, %v4830
        %5215 = vst.msk [vmem:[#allocation3 + $0x50] sm:$0xff] %vm977, %v4831
        %5216 = vst.msk [vmem:[#allocation3 + $0x58] sm:$0xff] %vm977, %v4832
        %5217 = vst.msk [vmem:[#allocation3 + $0x60] sm:$0xff] %vm977, %v4833
        %5218 = vst.msk [vmem:[#allocation3 + $0x68] sm:$0xff] %vm977, %v4834
        %5219 = vst.msk [vmem:[#allocation3 + $0x70] sm:$0xff] %vm977, %v4835
        %5220 = vst.msk [vmem:[#allocation3 + $0x78] sm:$0xff] %vm977, %v4836
        %5221 = vst [vmem:[#allocation4] sm:$0xff] %v5189
        %5222 = vst [vmem:[#allocation4 + $0x8] sm:$0xff] %v5190
        %5223 = vst [vmem:[#allocation4 + $0x10] sm:$0xff] %v5191
        %5224 = vst [vmem:[#allocation4 + $0x18] sm:$0xff] %v5192
        %5225 = vst [vmem:[#allocation4 + $0x20] sm:$0xff] %v5193
        %5226 = vst [vmem:[#allocation4 + $0x28] sm:$0xff] %v5194
        %5227 = vst [vmem:[#allocation4 + $0x30] sm:$0xff] %v5195
        %5228 = vst [vmem:[#allocation4 + $0x38] sm:$0xff] %v5196
        %5229 = vst [vmem:[#allocation4 + $0x40] sm:$0xff] %v5197
        %5230 = vst [vmem:[#allocation4 + $0x48] sm:$0xff] %v5198
        %5231 = vst [vmem:[#allocation4 + $0x50] sm:$0xff] %v5199
        %5232 = vst [vmem:[#allocation4 + $0x58] sm:$0xff] %v5200
        %5233 = vst [vmem:[#allocation4 + $0x60] sm:$0xff] %v5201
        %5234 = vst [vmem:[#allocation4 + $0x68] sm:$0xff] %v5202
        %5235 = vst [vmem:[#allocation4 + $0x70] sm:$0xff] %v5203
        %5236 = vst [vmem:[#allocation4 + $0x78] sm:$0xff] %v5204
        %v5237 = vsub.f32 %v5189, %v690
        %v5238 = vsub.f32 %v5190, %v691
        %v5239 = vsub.f32 %v5191, %v692
        %v5240 = vsub.f32 %v5192, %v693
        %v5241 = vsub.f32 %v5193, %v694
        %v5242 = vsub.f32 %v5194, %v695
        %v5243 = vsub.f32 %v5195, %v696
        %v5244 = vsub.f32 %v5196, %v697
        %v5245 = vsub.f32 %v5197, %v698
        %v5246 = vsub.f32 %v5198, %v699
        %v5247 = vsub.f32 %v5199, %v700
        %v5248 = vsub.f32 %v5200, %v701
        %v5249 = vsub.f32 %v5201, %v702
        %v5250 = vsub.f32 %v5202, %v703
        %v5251 = vsub.f32 %v5203, %v704
        %v5252 = vsub.f32 %v5204, %v705
        %v5253 = vmul.f32 %v5237, %v2626
        %v5254 = vmul.f32 %v5238, %v2626
        %v5255 = vmul.f32 %v5239, %v2626
        %v5256 = vmul.f32 %v5240, %v2626
        %v5257 = vmul.f32 %v5241, %v2626
        %v5258 = vmul.f32 %v5242, %v2626
        %v5259 = vmul.f32 %v5243, %v2626
        %v5260 = vmul.f32 %v5244, %v2626
        %v5261 = vmul.f32 %v5245, %v2626
        %v5262 = vmul.f32 %v5246, %v2626
        %v5263 = vmul.f32 %v5247, %v2626
        %v5264 = vmul.f32 %v5248, %v2626
        %v5265 = vmul.f32 %v5249, %v2626
        %v5266 = vmul.f32 %v5250, %v2626
        %v5267 = vmul.f32 %v5251, %v2626
        %v5268 = vmul.f32 %v5252, %v2626
        %s5269 = smul.u32 %s2628, 128
        %s5270 = scalar_lea.vmem [#allocation7], %s5269
        %5271 = vst [vmem:[%s5270] sm:$0xff] %v5253
        %5272 = vst [vmem:[%s5270 + $0x8] sm:$0xff] %v5254
        %5273 = vst [vmem:[%s5270 + $0x10] sm:$0xff] %v5255
        %5274 = vst [vmem:[%s5270 + $0x18] sm:$0xff] %v5256
        %5275 = vst [vmem:[%s5270 + $0x20] sm:$0xff] %v5257
        %5276 = vst [vmem:[%s5270 + $0x28] sm:$0xff] %v5258
        %5277 = vst [vmem:[%s5270 + $0x30] sm:$0xff] %v5259
        %5278 = vst [vmem:[%s5270 + $0x38] sm:$0xff] %v5260
        %5279 = vst [vmem:[%s5270 + $0x40] sm:$0xff] %v5261
        %5280 = vst [vmem:[%s5270 + $0x48] sm:$0xff] %v5262
        %5281 = vst [vmem:[%s5270 + $0x50] sm:$0xff] %v5263
        %5282 = vst [vmem:[%s5270 + $0x58] sm:$0xff] %v5264
        %5283 = vst [vmem:[%s5270 + $0x60] sm:$0xff] %v5265
        %5284 = vst [vmem:[%s5270 + $0x68] sm:$0xff] %v5266
        %5285 = vst [vmem:[%s5270 + $0x70] sm:$0xff] %v5267
        %5286 = vst [vmem:[%s5270 + $0x78] sm:$0xff] %v5268
      $region105: #{rsf1_forward.1} parent=99 // loop_footer
        %s2632 = sadd.s32 1, %s2628
      $region106: #{rsf1_forward.1} parent=99 // loop_footer_branch
        %2627 = sbr.rel target = $region102
      $region107: #{rsf1_forward.1} parent=99 // loop_exit
        _
      %v5287 = vld [vmem:[#allocation7] sm:$0xff]
      %v5288 = vld [vmem:[#allocation7 + $0x8] sm:$0xff]
      %v5289 = vld [vmem:[#allocation7 + $0x10] sm:$0xff]
      %v5290 = vld [vmem:[#allocation7 + $0x18] sm:$0xff]
      %v5291 = vld [vmem:[#allocation7 + $0x20] sm:$0xff]
      %v5292 = vld [vmem:[#allocation7 + $0x28] sm:$0xff]
      %v5293 = vld [vmem:[#allocation7 + $0x30] sm:$0xff]
      %v5294 = vld [vmem:[#allocation7 + $0x38] sm:$0xff]
      %v5295 = vld [vmem:[#allocation7 + $0x40] sm:$0xff]
      %v5296 = vld [vmem:[#allocation7 + $0x48] sm:$0xff]
      %v5297 = vld [vmem:[#allocation7 + $0x50] sm:$0xff]
      %v5298 = vld [vmem:[#allocation7 + $0x58] sm:$0xff]
      %v5299 = vld [vmem:[#allocation7 + $0x60] sm:$0xff]
      %v5300 = vld [vmem:[#allocation7 + $0x68] sm:$0xff]
      %v5301 = vld [vmem:[#allocation7 + $0x70] sm:$0xff]
      %v5302 = vld [vmem:[#allocation7 + $0x78] sm:$0xff]
      %vm5303 = vcmask 130048
      %5304 = vst.msk [vmem:[%s687] sm:$0xff] %vm5303, %v5287
      %5305 = vst.msk [vmem:[%s687 + $0x8] sm:$0xff] %vm5303, %v5288
      %5306 = vst.msk [vmem:[%s687 + $0x10] sm:$0xff] %vm5303, %v5289
      %5307 = vst.msk [vmem:[%s687 + $0x18] sm:$0xff] %vm5303, %v5290
      %5308 = vst.msk [vmem:[%s687 + $0x20] sm:$0xff] %vm5303, %v5291
      %5309 = vst.msk [vmem:[%s687 + $0x28] sm:$0xff] %vm5303, %v5292
      %5310 = vst.msk [vmem:[%s687 + $0x30] sm:$0xff] %vm5303, %v5293
      %5311 = vst.msk [vmem:[%s687 + $0x38] sm:$0xff] %vm5303, %v5294
      %5312 = vst.msk [vmem:[%s687 + $0x40] sm:$0xff] %vm5303, %v5295
      %5313 = vst.msk [vmem:[%s687 + $0x48] sm:$0xff] %vm5303, %v5296
      %5314 = vst.msk [vmem:[%s687 + $0x50] sm:$0xff] %vm5303, %v5297
      %5315 = vst.msk [vmem:[%s687 + $0x58] sm:$0xff] %vm5303, %v5298
      %5316 = vst.msk [vmem:[%s687 + $0x60] sm:$0xff] %vm5303, %v5299
      %5317 = vst.msk [vmem:[%s687 + $0x68] sm:$0xff] %vm5303, %v5300
      %5318 = vst.msk [vmem:[%s687 + $0x70] sm:$0xff] %vm5303, %v5301
      %5319 = vst.msk [vmem:[%s687 + $0x78] sm:$0xff] %vm5303, %v5302
      %s5320 = scalar_lea.vmem [#allocation7], 128
      %v5321 = vld [vmem:[%s5320] sm:$0xff]
      %v5322 = vld [vmem:[%s5320 + $0x8] sm:$0xff]
      %v5323 = vld [vmem:[%s5320 + $0x10] sm:$0xff]
      %v5324 = vld [vmem:[%s5320 + $0x18] sm:$0xff]
      %v5325 = vld [vmem:[%s5320 + $0x20] sm:$0xff]
      %v5326 = vld [vmem:[%s5320 + $0x28] sm:$0xff]
      %v5327 = vld [vmem:[%s5320 + $0x30] sm:$0xff]
      %v5328 = vld [vmem:[%s5320 + $0x38] sm:$0xff]
      %v5329 = vld [vmem:[%s5320 + $0x40] sm:$0xff]
      %v5330 = vld [vmem:[%s5320 + $0x48] sm:$0xff]
      %v5331 = vld [vmem:[%s5320 + $0x50] sm:$0xff]
      %v5332 = vld [vmem:[%s5320 + $0x58] sm:$0xff]
      %v5333 = vld [vmem:[%s5320 + $0x60] sm:$0xff]
      %v5334 = vld [vmem:[%s5320 + $0x68] sm:$0xff]
      %v5335 = vld [vmem:[%s5320 + $0x70] sm:$0xff]
      %v5336 = vld [vmem:[%s5320 + $0x78] sm:$0xff]
      %5353 = vrot.lane.b32.xlu0 %v5321, 16
      %v5354 = vpop.permute.xlu0 %5353
      %5355 = vrot.lane.b32.xlu0 %v5322, 16
      %v5356 = vpop.permute.xlu0 %5355
      %5357 = vrot.lane.b32.xlu0 %v5323, 16
      %v5358 = vpop.permute.xlu0 %5357
      %5359 = vrot.lane.b32.xlu0 %v5324, 16
      %v5360 = vpop.permute.xlu0 %5359
      %5361 = vrot.lane.b32.xlu0 %v5325, 16
      %v5362 = vpop.permute.xlu0 %5361
      %5363 = vrot.lane.b32.xlu0 %v5326, 16
      %v5364 = vpop.permute.xlu0 %5363
      %5365 = vrot.lane.b32.xlu0 %v5327, 16
      %v5366 = vpop.permute.xlu0 %5365
      %5367 = vrot.lane.b32.xlu0 %v5328, 16
      %v5368 = vpop.permute.xlu0 %5367
      %5369 = vrot.lane.b32.xlu0 %v5329, 16
      %v5370 = vpop.permute.xlu0 %5369
      %5371 = vrot.lane.b32.xlu0 %v5330, 16
      %v5372 = vpop.permute.xlu0 %5371
      %5373 = vrot.lane.b32.xlu0 %v5331, 16
      %v5374 = vpop.permute.xlu0 %5373
      %5375 = vrot.lane.b32.xlu0 %v5332, 16
      %v5376 = vpop.permute.xlu0 %5375
      %5377 = vrot.lane.b32.xlu0 %v5333, 16
      %v5378 = vpop.permute.xlu0 %5377
      %5379 = vrot.lane.b32.xlu0 %v5334, 16
      %v5380 = vpop.permute.xlu0 %5379
      %5381 = vrot.lane.b32.xlu0 %v5335, 16
      %v5382 = vpop.permute.xlu0 %5381
      %5383 = vrot.lane.b32.xlu0 %v5336, 16
      %v5384 = vpop.permute.xlu0 %5383
      %vm5401 = vcmask 261248
      %5402 = vst.msk [vmem:[%s687] sm:$0xff] %vm5401, %v5354
      %5403 = vst.msk [vmem:[%s687 + $0x8] sm:$0xff] %vm5401, %v5356
      %5404 = vst.msk [vmem:[%s687 + $0x10] sm:$0xff] %vm5401, %v5358
      %5405 = vst.msk [vmem:[%s687 + $0x18] sm:$0xff] %vm5401, %v5360
      %5406 = vst.msk [vmem:[%s687 + $0x20] sm:$0xff] %vm5401, %v5362
      %5407 = vst.msk [vmem:[%s687 + $0x28] sm:$0xff] %vm5401, %v5364
      %5408 = vst.msk [vmem:[%s687 + $0x30] sm:$0xff] %vm5401, %v5366
      %5409 = vst.msk [vmem:[%s687 + $0x38] sm:$0xff] %vm5401, %v5368
      %5410 = vst.msk [vmem:[%s687 + $0x40] sm:$0xff] %vm5401, %v5370
      %5411 = vst.msk [vmem:[%s687 + $0x48] sm:$0xff] %vm5401, %v5372
      %5412 = vst.msk [vmem:[%s687 + $0x50] sm:$0xff] %vm5401, %v5374
      %5413 = vst.msk [vmem:[%s687 + $0x58] sm:$0xff] %vm5401, %v5376
      %5414 = vst.msk [vmem:[%s687 + $0x60] sm:$0xff] %vm5401, %v5378
      %5415 = vst.msk [vmem:[%s687 + $0x68] sm:$0xff] %vm5401, %v5380
      %5416 = vst.msk [vmem:[%s687 + $0x70] sm:$0xff] %vm5401, %v5382
      %5417 = vst.msk [vmem:[%s687 + $0x78] sm:$0xff] %vm5401, %v5384
      %s5418 = scalar_lea.vmem [#allocation7], 256
      %v5419 = vld [vmem:[%s5418] sm:$0xff]
      %v5420 = vld [vmem:[%s5418 + $0x8] sm:$0xff]
      %v5421 = vld [vmem:[%s5418 + $0x10] sm:$0xff]
      %v5422 = vld [vmem:[%s5418 + $0x18] sm:$0xff]
      %v5423 = vld [vmem:[%s5418 + $0x20] sm:$0xff]
      %v5424 = vld [vmem:[%s5418 + $0x28] sm:$0xff]
      %v5425 = vld [vmem:[%s5418 + $0x30] sm:$0xff]
      %v5426 = vld [vmem:[%s5418 + $0x38] sm:$0xff]
      %v5427 = vld [vmem:[%s5418 + $0x40] sm:$0xff]
      %v5428 = vld [vmem:[%s5418 + $0x48] sm:$0xff]
      %v5429 = vld [vmem:[%s5418 + $0x50] sm:$0xff]
      %v5430 = vld [vmem:[%s5418 + $0x58] sm:$0xff]
      %v5431 = vld [vmem:[%s5418 + $0x60] sm:$0xff]
      %v5432 = vld [vmem:[%s5418 + $0x68] sm:$0xff]
      %v5433 = vld [vmem:[%s5418 + $0x70] sm:$0xff]
      %v5434 = vld [vmem:[%s5418 + $0x78] sm:$0xff]
      %5451 = vrot.lane.b32.xlu0 %v5419, 32
      %v5452 = vpop.permute.xlu0 %5451
      %5453 = vrot.lane.b32.xlu0 %v5420, 32
      %v5454 = vpop.permute.xlu0 %5453
      %5455 = vrot.lane.b32.xlu0 %v5421, 32
      %v5456 = vpop.permute.xlu0 %5455
      %5457 = vrot.lane.b32.xlu0 %v5422, 32
      %v5458 = vpop.permute.xlu0 %5457
      %5459 = vrot.lane.b32.xlu0 %v5423, 32
      %v5460 = vpop.permute.xlu0 %5459
      %5461 = vrot.lane.b32.xlu0 %v5424, 32
      %v5462 = vpop.permute.xlu0 %5461
      %5463 = vrot.lane.b32.xlu0 %v5425, 32
      %v5464 = vpop.permute.xlu0 %5463
      %5465 = vrot.lane.b32.xlu0 %v5426, 32
      %v5466 = vpop.permute.xlu0 %5465
      %5467 = vrot.lane.b32.xlu0 %v5427, 32
      %v5468 = vpop.permute.xlu0 %5467
      %5469 = vrot.lane.b32.xlu0 %v5428, 32
      %v5470 = vpop.permute.xlu0 %5469
      %5471 = vrot.lane.b32.xlu0 %v5429, 32
      %v5472 = vpop.permute.xlu0 %5471
      %5473 = vrot.lane.b32.xlu0 %v5430, 32
      %v5474 = vpop.permute.xlu0 %5473
      %5475 = vrot.lane.b32.xlu0 %v5431, 32
      %v5476 = vpop.permute.xlu0 %5475
      %5477 = vrot.lane.b32.xlu0 %v5432, 32
      %v5478 = vpop.permute.xlu0 %5477
      %5479 = vrot.lane.b32.xlu0 %v5433, 32
      %v5480 = vpop.permute.xlu0 %5479
      %5481 = vrot.lane.b32.xlu0 %v5434, 32
      %v5482 = vpop.permute.xlu0 %5481
      %vm5499 = vcmask 392448
      %5500 = vst.msk [vmem:[%s687] sm:$0xff] %vm5499, %v5452
      %5501 = vst.msk [vmem:[%s687 + $0x8] sm:$0xff] %vm5499, %v5454
      %5502 = vst.msk [vmem:[%s687 + $0x10] sm:$0xff] %vm5499, %v5456
      %5503 = vst.msk [vmem:[%s687 + $0x18] sm:$0xff] %vm5499, %v5458
      %5504 = vst.msk [vmem:[%s687 + $0x20] sm:$0xff] %vm5499, %v5460
      %5505 = vst.msk [vmem:[%s687 + $0x28] sm:$0xff] %vm5499, %v5462
      %5506 = vst.msk [vmem:[%s687 + $0x30] sm:$0xff] %vm5499, %v5464
      %5507 = vst.msk [vmem:[%s687 + $0x38] sm:$0xff] %vm5499, %v5466
      %5508 = vst.msk [vmem:[%s687 + $0x40] sm:$0xff] %vm5499, %v5468
      %5509 = vst.msk [vmem:[%s687 + $0x48] sm:$0xff] %vm5499, %v5470
      %5510 = vst.msk [vmem:[%s687 + $0x50] sm:$0xff] %vm5499, %v5472
      %5511 = vst.msk [vmem:[%s687 + $0x58] sm:$0xff] %vm5499, %v5474
      %5512 = vst.msk [vmem:[%s687 + $0x60] sm:$0xff] %vm5499, %v5476
      %5513 = vst.msk [vmem:[%s687 + $0x68] sm:$0xff] %vm5499, %v5478
      %5514 = vst.msk [vmem:[%s687 + $0x70] sm:$0xff] %vm5499, %v5480
      %5515 = vst.msk [vmem:[%s687 + $0x78] sm:$0xff] %vm5499, %v5482
      %s5516 = scalar_lea.vmem [#allocation7], 384
      %v5517 = vld [vmem:[%s5516] sm:$0xff]
      %v5518 = vld [vmem:[%s5516 + $0x8] sm:$0xff]
      %v5519 = vld [vmem:[%s5516 + $0x10] sm:$0xff]
      %v5520 = vld [vmem:[%s5516 + $0x18] sm:$0xff]
      %v5521 = vld [vmem:[%s5516 + $0x20] sm:$0xff]
      %v5522 = vld [vmem:[%s5516 + $0x28] sm:$0xff]
      %v5523 = vld [vmem:[%s5516 + $0x30] sm:$0xff]
      %v5524 = vld [vmem:[%s5516 + $0x38] sm:$0xff]
      %v5525 = vld [vmem:[%s5516 + $0x40] sm:$0xff]
      %v5526 = vld [vmem:[%s5516 + $0x48] sm:$0xff]
      %v5527 = vld [vmem:[%s5516 + $0x50] sm:$0xff]
      %v5528 = vld [vmem:[%s5516 + $0x58] sm:$0xff]
      %v5529 = vld [vmem:[%s5516 + $0x60] sm:$0xff]
      %v5530 = vld [vmem:[%s5516 + $0x68] sm:$0xff]
      %v5531 = vld [vmem:[%s5516 + $0x70] sm:$0xff]
      %v5532 = vld [vmem:[%s5516 + $0x78] sm:$0xff]
      %5549 = vrot.lane.b32.xlu0 %v5517, 48
      %v5550 = vpop.permute.xlu0 %5549
      %5551 = vrot.lane.b32.xlu0 %v5518, 48
      %v5552 = vpop.permute.xlu0 %5551
      %5553 = vrot.lane.b32.xlu0 %v5519, 48
      %v5554 = vpop.permute.xlu0 %5553
      %5555 = vrot.lane.b32.xlu0 %v5520, 48
      %v5556 = vpop.permute.xlu0 %5555
      %5557 = vrot.lane.b32.xlu0 %v5521, 48
      %v5558 = vpop.permute.xlu0 %5557
      %5559 = vrot.lane.b32.xlu0 %v5522, 48
      %v5560 = vpop.permute.xlu0 %5559
      %5561 = vrot.lane.b32.xlu0 %v5523, 48
      %v5562 = vpop.permute.xlu0 %5561
      %5563 = vrot.lane.b32.xlu0 %v5524, 48
      %v5564 = vpop.permute.xlu0 %5563
      %5565 = vrot.lane.b32.xlu0 %v5525, 48
      %v5566 = vpop.permute.xlu0 %5565
      %5567 = vrot.lane.b32.xlu0 %v5526, 48
      %v5568 = vpop.permute.xlu0 %5567
      %5569 = vrot.lane.b32.xlu0 %v5527, 48
      %v5570 = vpop.permute.xlu0 %5569
      %5571 = vrot.lane.b32.xlu0 %v5528, 48
      %v5572 = vpop.permute.xlu0 %5571
      %5573 = vrot.lane.b32.xlu0 %v5529, 48
      %v5574 = vpop.permute.xlu0 %5573
      %5575 = vrot.lane.b32.xlu0 %v5530, 48
      %v5576 = vpop.permute.xlu0 %5575
      %5577 = vrot.lane.b32.xlu0 %v5531, 48
      %v5578 = vpop.permute.xlu0 %5577
      %5579 = vrot.lane.b32.xlu0 %v5532, 48
      %v5580 = vpop.permute.xlu0 %5579
      %vm5597 = vcmask 523648
      %5598 = vst.msk [vmem:[%s687] sm:$0xff] %vm5597, %v5550
      %5599 = vst.msk [vmem:[%s687 + $0x8] sm:$0xff] %vm5597, %v5552
      %5600 = vst.msk [vmem:[%s687 + $0x10] sm:$0xff] %vm5597, %v5554
      %5601 = vst.msk [vmem:[%s687 + $0x18] sm:$0xff] %vm5597, %v5556
      %5602 = vst.msk [vmem:[%s687 + $0x20] sm:$0xff] %vm5597, %v5558
      %5603 = vst.msk [vmem:[%s687 + $0x28] sm:$0xff] %vm5597, %v5560
      %5604 = vst.msk [vmem:[%s687 + $0x30] sm:$0xff] %vm5597, %v5562
      %5605 = vst.msk [vmem:[%s687 + $0x38] sm:$0xff] %vm5597, %v5564
      %5606 = vst.msk [vmem:[%s687 + $0x40] sm:$0xff] %vm5597, %v5566
      %5607 = vst.msk [vmem:[%s687 + $0x48] sm:$0xff] %vm5597, %v5568
      %5608 = vst.msk [vmem:[%s687 + $0x50] sm:$0xff] %vm5597, %v5570
      %5609 = vst.msk [vmem:[%s687 + $0x58] sm:$0xff] %vm5597, %v5572
      %5610 = vst.msk [vmem:[%s687 + $0x60] sm:$0xff] %vm5597, %v5574
      %5611 = vst.msk [vmem:[%s687 + $0x68] sm:$0xff] %vm5597, %v5576
      %5612 = vst.msk [vmem:[%s687 + $0x70] sm:$0xff] %vm5597, %v5578
      %5613 = vst.msk [vmem:[%s687 + $0x78] sm:$0xff] %vm5597, %v5580
      %s5614 = scalar_lea.vmem [#allocation7], 512
      %v5615 = vld [vmem:[%s5614] sm:$0xff]
      %v5616 = vld [vmem:[%s5614 + $0x8] sm:$0xff]
      %v5617 = vld [vmem:[%s5614 + $0x10] sm:$0xff]
      %v5618 = vld [vmem:[%s5614 + $0x18] sm:$0xff]
      %v5619 = vld [vmem:[%s5614 + $0x20] sm:$0xff]
      %v5620 = vld [vmem:[%s5614 + $0x28] sm:$0xff]
      %v5621 = vld [vmem:[%s5614 + $0x30] sm:$0xff]
      %v5622 = vld [vmem:[%s5614 + $0x38] sm:$0xff]
      %v5623 = vld [vmem:[%s5614 + $0x40] sm:$0xff]
      %v5624 = vld [vmem:[%s5614 + $0x48] sm:$0xff]
      %v5625 = vld [vmem:[%s5614 + $0x50] sm:$0xff]
      %v5626 = vld [vmem:[%s5614 + $0x58] sm:$0xff]
      %v5627 = vld [vmem:[%s5614 + $0x60] sm:$0xff]
      %v5628 = vld [vmem:[%s5614 + $0x68] sm:$0xff]
      %v5629 = vld [vmem:[%s5614 + $0x70] sm:$0xff]
      %v5630 = vld [vmem:[%s5614 + $0x78] sm:$0xff]
      %5647 = vrot.lane.b32.xlu0 %v5615, 64
      %v5648 = vpop.permute.xlu0 %5647
      %5649 = vrot.lane.b32.xlu0 %v5616, 64
      %v5650 = vpop.permute.xlu0 %5649
      %5651 = vrot.lane.b32.xlu0 %v5617, 64
      %v5652 = vpop.permute.xlu0 %5651
      %5653 = vrot.lane.b32.xlu0 %v5618, 64
      %v5654 = vpop.permute.xlu0 %5653
      %5655 = vrot.lane.b32.xlu0 %v5619, 64
      %v5656 = vpop.permute.xlu0 %5655
      %5657 = vrot.lane.b32.xlu0 %v5620, 64
      %v5658 = vpop.permute.xlu0 %5657
      %5659 = vrot.lane.b32.xlu0 %v5621, 64
      %v5660 = vpop.permute.xlu0 %5659
      %5661 = vrot.lane.b32.xlu0 %v5622, 64
      %v5662 = vpop.permute.xlu0 %5661
      %5663 = vrot.lane.b32.xlu0 %v5623, 64
      %v5664 = vpop.permute.xlu0 %5663
      %5665 = vrot.lane.b32.xlu0 %v5624, 64
      %v5666 = vpop.permute.xlu0 %5665
      %5667 = vrot.lane.b32.xlu0 %v5625, 64
      %v5668 = vpop.permute.xlu0 %5667
      %5669 = vrot.lane.b32.xlu0 %v5626, 64
      %v5670 = vpop.permute.xlu0 %5669
      %5671 = vrot.lane.b32.xlu0 %v5627, 64
      %v5672 = vpop.permute.xlu0 %5671
      %5673 = vrot.lane.b32.xlu0 %v5628, 64
      %v5674 = vpop.permute.xlu0 %5673
      %5675 = vrot.lane.b32.xlu0 %v5629, 64
      %v5676 = vpop.permute.xlu0 %5675
      %5677 = vrot.lane.b32.xlu0 %v5630, 64
      %v5678 = vpop.permute.xlu0 %5677
      %vm5695 = vcmask 654848
      %5696 = vst.msk [vmem:[%s687] sm:$0xff] %vm5695, %v5648
      %5697 = vst.msk [vmem:[%s687 + $0x8] sm:$0xff] %vm5695, %v5650
      %5698 = vst.msk [vmem:[%s687 + $0x10] sm:$0xff] %vm5695, %v5652
      %5699 = vst.msk [vmem:[%s687 + $0x18] sm:$0xff] %vm5695, %v5654
      %5700 = vst.msk [vmem:[%s687 + $0x20] sm:$0xff] %vm5695, %v5656
      %5701 = vst.msk [vmem:[%s687 + $0x28] sm:$0xff] %vm5695, %v5658
      %5702 = vst.msk [vmem:[%s687 + $0x30] sm:$0xff] %vm5695, %v5660
      %5703 = vst.msk [vmem:[%s687 + $0x38] sm:$0xff] %vm5695, %v5662
      %5704 = vst.msk [vmem:[%s687 + $0x40] sm:$0xff] %vm5695, %v5664
      %5705 = vst.msk [vmem:[%s687 + $0x48] sm:$0xff] %vm5695, %v5666
      %5706 = vst.msk [vmem:[%s687 + $0x50] sm:$0xff] %vm5695, %v5668
      %5707 = vst.msk [vmem:[%s687 + $0x58] sm:$0xff] %vm5695, %v5670
      %5708 = vst.msk [vmem:[%s687 + $0x60] sm:$0xff] %vm5695, %v5672
      %5709 = vst.msk [vmem:[%s687 + $0x68] sm:$0xff] %vm5695, %v5674
      %5710 = vst.msk [vmem:[%s687 + $0x70] sm:$0xff] %vm5695, %v5676
      %5711 = vst.msk [vmem:[%s687 + $0x78] sm:$0xff] %vm5695, %v5678
      %s5712 = scalar_lea.vmem [#allocation7], 640
      %v5713 = vld [vmem:[%s5712] sm:$0xff]
      %v5714 = vld [vmem:[%s5712 + $0x8] sm:$0xff]
      %v5715 = vld [vmem:[%s5712 + $0x10] sm:$0xff]
      %v5716 = vld [vmem:[%s5712 + $0x18] sm:$0xff]
      %v5717 = vld [vmem:[%s5712 + $0x20] sm:$0xff]
      %v5718 = vld [vmem:[%s5712 + $0x28] sm:$0xff]
      %v5719 = vld [vmem:[%s5712 + $0x30] sm:$0xff]
      %v5720 = vld [vmem:[%s5712 + $0x38] sm:$0xff]
      %v5721 = vld [vmem:[%s5712 + $0x40] sm:$0xff]
      %v5722 = vld [vmem:[%s5712 + $0x48] sm:$0xff]
      %v5723 = vld [vmem:[%s5712 + $0x50] sm:$0xff]
      %v5724 = vld [vmem:[%s5712 + $0x58] sm:$0xff]
      %v5725 = vld [vmem:[%s5712 + $0x60] sm:$0xff]
      %v5726 = vld [vmem:[%s5712 + $0x68] sm:$0xff]
      %v5727 = vld [vmem:[%s5712 + $0x70] sm:$0xff]
      %v5728 = vld [vmem:[%s5712 + $0x78] sm:$0xff]
      %5745 = vrot.lane.b32.xlu0 %v5713, 80
      %v5746 = vpop.permute.xlu0 %5745
      %5747 = vrot.lane.b32.xlu0 %v5714, 80
      %v5748 = vpop.permute.xlu0 %5747
      %5749 = vrot.lane.b32.xlu0 %v5715, 80
      %v5750 = vpop.permute.xlu0 %5749
      %5751 = vrot.lane.b32.xlu0 %v5716, 80
      %v5752 = vpop.permute.xlu0 %5751
      %5753 = vrot.lane.b32.xlu0 %v5717, 80
      %v5754 = vpop.permute.xlu0 %5753
      %5755 = vrot.lane.b32.xlu0 %v5718, 80
      %v5756 = vpop.permute.xlu0 %5755
      %5757 = vrot.lane.b32.xlu0 %v5719, 80
      %v5758 = vpop.permute.xlu0 %5757
      %5759 = vrot.lane.b32.xlu0 %v5720, 80
      %v5760 = vpop.permute.xlu0 %5759
      %5761 = vrot.lane.b32.xlu0 %v5721, 80
      %v5762 = vpop.permute.xlu0 %5761
      %5763 = vrot.lane.b32.xlu0 %v5722, 80
      %v5764 = vpop.permute.xlu0 %5763
      %5765 = vrot.lane.b32.xlu0 %v5723, 80
      %v5766 = vpop.permute.xlu0 %5765
      %5767 = vrot.lane.b32.xlu0 %v5724, 80
      %v5768 = vpop.permute.xlu0 %5767
      %5769 = vrot.lane.b32.xlu0 %v5725, 80
      %v5770 = vpop.permute.xlu0 %5769
      %5771 = vrot.lane.b32.xlu0 %v5726, 80
      %v5772 = vpop.permute.xlu0 %5771
      %5773 = vrot.lane.b32.xlu0 %v5727, 80
      %v5774 = vpop.permute.xlu0 %5773
      %5775 = vrot.lane.b32.xlu0 %v5728, 80
      %v5776 = vpop.permute.xlu0 %5775
      %vm5793 = vcmask 786048
      %5794 = vst.msk [vmem:[%s687] sm:$0xff] %vm5793, %v5746
      %5795 = vst.msk [vmem:[%s687 + $0x8] sm:$0xff] %vm5793, %v5748
      %5796 = vst.msk [vmem:[%s687 + $0x10] sm:$0xff] %vm5793, %v5750
      %5797 = vst.msk [vmem:[%s687 + $0x18] sm:$0xff] %vm5793, %v5752
      %5798 = vst.msk [vmem:[%s687 + $0x20] sm:$0xff] %vm5793, %v5754
      %5799 = vst.msk [vmem:[%s687 + $0x28] sm:$0xff] %vm5793, %v5756
      %5800 = vst.msk [vmem:[%s687 + $0x30] sm:$0xff] %vm5793, %v5758
      %5801 = vst.msk [vmem:[%s687 + $0x38] sm:$0xff] %vm5793, %v5760
      %5802 = vst.msk [vmem:[%s687 + $0x40] sm:$0xff] %vm5793, %v5762
      %5803 = vst.msk [vmem:[%s687 + $0x48] sm:$0xff] %vm5793, %v5764
      %5804 = vst.msk [vmem:[%s687 + $0x50] sm:$0xff] %vm5793, %v5766
      %5805 = vst.msk [vmem:[%s687 + $0x58] sm:$0xff] %vm5793, %v5768
      %5806 = vst.msk [vmem:[%s687 + $0x60] sm:$0xff] %vm5793, %v5770
      %5807 = vst.msk [vmem:[%s687 + $0x68] sm:$0xff] %vm5793, %v5772
      %5808 = vst.msk [vmem:[%s687 + $0x70] sm:$0xff] %vm5793, %v5774
      %5809 = vst.msk [vmem:[%s687 + $0x78] sm:$0xff] %vm5793, %v5776
      %s5810 = scalar_lea.vmem [#allocation7], 768
      %v5811 = vld [vmem:[%s5810] sm:$0xff]
      %v5812 = vld [vmem:[%s5810 + $0x8] sm:$0xff]
      %v5813 = vld [vmem:[%s5810 + $0x10] sm:$0xff]
      %v5814 = vld [vmem:[%s5810 + $0x18] sm:$0xff]
      %v5815 = vld [vmem:[%s5810 + $0x20] sm:$0xff]
      %v5816 = vld [vmem:[%s5810 + $0x28] sm:$0xff]
      %v5817 = vld [vmem:[%s5810 + $0x30] sm:$0xff]
      %v5818 = vld [vmem:[%s5810 + $0x38] sm:$0xff]
      %v5819 = vld [vmem:[%s5810 + $0x40] sm:$0xff]
      %v5820 = vld [vmem:[%s5810 + $0x48] sm:$0xff]
      %v5821 = vld [vmem:[%s5810 + $0x50] sm:$0xff]
      %v5822 = vld [vmem:[%s5810 + $0x58] sm:$0xff]
      %v5823 = vld [vmem:[%s5810 + $0x60] sm:$0xff]
      %v5824 = vld [vmem:[%s5810 + $0x68] sm:$0xff]
      %v5825 = vld [vmem:[%s5810 + $0x70] sm:$0xff]
      %v5826 = vld [vmem:[%s5810 + $0x78] sm:$0xff]
      %5843 = vrot.lane.b32.xlu0 %v5811, 96
      %v5844 = vpop.permute.xlu0 %5843
      %5845 = vrot.lane.b32.xlu0 %v5812, 96
      %v5846 = vpop.permute.xlu0 %5845
      %5847 = vrot.lane.b32.xlu0 %v5813, 96
      %v5848 = vpop.permute.xlu0 %5847
      %5849 = vrot.lane.b32.xlu0 %v5814, 96
      %v5850 = vpop.permute.xlu0 %5849
      %5851 = vrot.lane.b32.xlu0 %v5815, 96
      %v5852 = vpop.permute.xlu0 %5851
      %5853 = vrot.lane.b32.xlu0 %v5816, 96
      %v5854 = vpop.permute.xlu0 %5853
      %5855 = vrot.lane.b32.xlu0 %v5817, 96
      %v5856 = vpop.permute.xlu0 %5855
      %5857 = vrot.lane.b32.xlu0 %v5818, 96
      %v5858 = vpop.permute.xlu0 %5857
      %5859 = vrot.lane.b32.xlu0 %v5819, 96
      %v5860 = vpop.permute.xlu0 %5859
      %5861 = vrot.lane.b32.xlu0 %v5820, 96
      %v5862 = vpop.permute.xlu0 %5861
      %5863 = vrot.lane.b32.xlu0 %v5821, 96
      %v5864 = vpop.permute.xlu0 %5863
      %5865 = vrot.lane.b32.xlu0 %v5822, 96
      %v5866 = vpop.permute.xlu0 %5865
      %5867 = vrot.lane.b32.xlu0 %v5823, 96
      %v5868 = vpop.permute.xlu0 %5867
      %5869 = vrot.lane.b32.xlu0 %v5824, 96
      %v5870 = vpop.permute.xlu0 %5869
      %5871 = vrot.lane.b32.xlu0 %v5825, 96
      %v5872 = vpop.permute.xlu0 %5871
      %5873 = vrot.lane.b32.xlu0 %v5826, 96
      %v5874 = vpop.permute.xlu0 %5873
      %vm5891 = vcmask 917248
      %5892 = vst.msk [vmem:[%s687] sm:$0xff] %vm5891, %v5844
      %5893 = vst.msk [vmem:[%s687 + $0x8] sm:$0xff] %vm5891, %v5846
      %5894 = vst.msk [vmem:[%s687 + $0x10] sm:$0xff] %vm5891, %v5848
      %5895 = vst.msk [vmem:[%s687 + $0x18] sm:$0xff] %vm5891, %v5850
      %5896 = vst.msk [vmem:[%s687 + $0x20] sm:$0xff] %vm5891, %v5852
      %5897 = vst.msk [vmem:[%s687 + $0x28] sm:$0xff] %vm5891, %v5854
      %5898 = vst.msk [vmem:[%s687 + $0x30] sm:$0xff] %vm5891, %v5856
      %5899 = vst.msk [vmem:[%s687 + $0x38] sm:$0xff] %vm5891, %v5858
      %5900 = vst.msk [vmem:[%s687 + $0x40] sm:$0xff] %vm5891, %v5860
      %5901 = vst.msk [vmem:[%s687 + $0x48] sm:$0xff] %vm5891, %v5862
      %5902 = vst.msk [vmem:[%s687 + $0x50] sm:$0xff] %vm5891, %v5864
      %5903 = vst.msk [vmem:[%s687 + $0x58] sm:$0xff] %vm5891, %v5866
      %5904 = vst.msk [vmem:[%s687 + $0x60] sm:$0xff] %vm5891, %v5868
      %5905 = vst.msk [vmem:[%s687 + $0x68] sm:$0xff] %vm5891, %v5870
      %5906 = vst.msk [vmem:[%s687 + $0x70] sm:$0xff] %vm5891, %v5872
      %5907 = vst.msk [vmem:[%s687 + $0x78] sm:$0xff] %vm5891, %v5874
      %s5908 = scalar_lea.vmem [#allocation7], 896
      %v5909 = vld [vmem:[%s5908] sm:$0xff]
      %v5910 = vld [vmem:[%s5908 + $0x8] sm:$0xff]
      %v5911 = vld [vmem:[%s5908 + $0x10] sm:$0xff]
      %v5912 = vld [vmem:[%s5908 + $0x18] sm:$0xff]
      %v5913 = vld [vmem:[%s5908 + $0x20] sm:$0xff]
      %v5914 = vld [vmem:[%s5908 + $0x28] sm:$0xff]
      %v5915 = vld [vmem:[%s5908 + $0x30] sm:$0xff]
      %v5916 = vld [vmem:[%s5908 + $0x38] sm:$0xff]
      %v5917 = vld [vmem:[%s5908 + $0x40] sm:$0xff]
      %v5918 = vld [vmem:[%s5908 + $0x48] sm:$0xff]
      %v5919 = vld [vmem:[%s5908 + $0x50] sm:$0xff]
      %v5920 = vld [vmem:[%s5908 + $0x58] sm:$0xff]
      %v5921 = vld [vmem:[%s5908 + $0x60] sm:$0xff]
      %v5922 = vld [vmem:[%s5908 + $0x68] sm:$0xff]
      %v5923 = vld [vmem:[%s5908 + $0x70] sm:$0xff]
      %v5924 = vld [vmem:[%s5908 + $0x78] sm:$0xff]
      %5941 = vrot.lane.b32.xlu0 %v5909, 112
      %v5942 = vpop.permute.xlu0 %5941
      %5943 = vrot.lane.b32.xlu0 %v5910, 112
      %v5944 = vpop.permute.xlu0 %5943
      %5945 = vrot.lane.b32.xlu0 %v5911, 112
      %v5946 = vpop.permute.xlu0 %5945
      %5947 = vrot.lane.b32.xlu0 %v5912, 112
      %v5948 = vpop.permute.xlu0 %5947
      %5949 = vrot.lane.b32.xlu0 %v5913, 112
      %v5950 = vpop.permute.xlu0 %5949
      %5951 = vrot.lane.b32.xlu0 %v5914, 112
      %v5952 = vpop.permute.xlu0 %5951
      %5953 = vrot.lane.b32.xlu0 %v5915, 112
      %v5954 = vpop.permute.xlu0 %5953
      %5955 = vrot.lane.b32.xlu0 %v5916, 112
      %v5956 = vpop.permute.xlu0 %5955
      %5957 = vrot.lane.b32.xlu0 %v5917, 112
      %v5958 = vpop.permute.xlu0 %5957
      %5959 = vrot.lane.b32.xlu0 %v5918, 112
      %v5960 = vpop.permute.xlu0 %5959
      %5961 = vrot.lane.b32.xlu0 %v5919, 112
      %v5962 = vpop.permute.xlu0 %5961
      %5963 = vrot.lane.b32.xlu0 %v5920, 112
      %v5964 = vpop.permute.xlu0 %5963
      %5965 = vrot.lane.b32.xlu0 %v5921, 112
      %v5966 = vpop.permute.xlu0 %5965
      %5967 = vrot.lane.b32.xlu0 %v5922, 112
      %v5968 = vpop.permute.xlu0 %5967
      %5969 = vrot.lane.b32.xlu0 %v5923, 112
      %v5970 = vpop.permute.xlu0 %5969
      %5971 = vrot.lane.b32.xlu0 %v5924, 112
      %v5972 = vpop.permute.xlu0 %5971
      %vm5989 = vcmask 1048448
      %5990 = vst.msk [vmem:[%s687] sm:$0xff] %vm5989, %v5942
      %5991 = vst.msk [vmem:[%s687 + $0x8] sm:$0xff] %vm5989, %v5944
      %5992 = vst.msk [vmem:[%s687 + $0x10] sm:$0xff] %vm5989, %v5946
      %5993 = vst.msk [vmem:[%s687 + $0x18] sm:$0xff] %vm5989, %v5948
      %5994 = vst.msk [vmem:[%s687 + $0x20] sm:$0xff] %vm5989, %v5950
      %5995 = vst.msk [vmem:[%s687 + $0x28] sm:$0xff] %vm5989, %v5952
      %5996 = vst.msk [vmem:[%s687 + $0x30] sm:$0xff] %vm5989, %v5954
      %5997 = vst.msk [vmem:[%s687 + $0x38] sm:$0xff] %vm5989, %v5956
      %5998 = vst.msk [vmem:[%s687 + $0x40] sm:$0xff] %vm5989, %v5958
      %5999 = vst.msk [vmem:[%s687 + $0x48] sm:$0xff] %vm5989, %v5960
      %6000 = vst.msk [vmem:[%s687 + $0x50] sm:$0xff] %vm5989, %v5962
      %6001 = vst.msk [vmem:[%s687 + $0x58] sm:$0xff] %vm5989, %v5964
      %6002 = vst.msk [vmem:[%s687 + $0x60] sm:$0xff] %vm5989, %v5966
      %6003 = vst.msk [vmem:[%s687 + $0x68] sm:$0xff] %vm5989, %v5968
      %6004 = vst.msk [vmem:[%s687 + $0x70] sm:$0xff] %vm5989, %v5970
      %6005 = vst.msk [vmem:[%s687 + $0x78] sm:$0xff] %vm5989, %v5972
      %s6006 = smul.u32 16, %s36
      %p6007 = scmp.lt.s32.totalorder %s35, 1
      %s6008 = scalar_select %p6007, %s35, 1
      %p6009 = scmp.lt.s32.totalorder %s6006, 31
      %s6010 = scalar_select %p6009, %s6006, 31
      %s6011 = smul.addr %s6008, 32
      %s6012 = sadd.s32 %s6010, %s6011
      %s6013 = smul.addr %s6012, 8
      %s6014 = scalar_lea.vmem %s20, %s6013
      // Predicated region
      $region108: #{rsf1_forward.1} parent=99 // pred_check
        %p6015 = pneg %p495
      $region109: #{rsf1_forward.1} parent=99 // pred_check_branch
        %6017 = sbr.rel (%p6015) target = $region111
      $region110: #{rsf1_forward.1} parent=99 // pred_region
        %s6018 = smul.u32 16, %s36
      $region111: #{rsf1_forward.1} parent=99 // pred_fallthru
        _
    $region100: #{rsf1_forward.1} parent=5 // pred_fallthru
      _
    %p6019 = scmp.le.s32.totalorder 2, %s26
    // Predicated region
    $region112: #{rsf1_forward.1} parent=5 // pred_check
      %p6020 = pneg %p6019
    $region113: #{rsf1_forward.1} parent=5 // pred_check_branch
      %6022 = sbr.rel (%p6020) target = $region115
    $region114: #{rsf1_forward.1} parent=5 // pred_region
      %s6023 = ssub.s32 %s26, 2
      // Predicated region
      $region116: #{rsf1_forward.1} parent=114 // pred_check
        %p6024 = pneg %p501
      $region117: #{rsf1_forward.1} parent=114 // pred_check_branch
        %6026 = sbr.rel (%p6024) target = $region119
      $region118: #{rsf1_forward.1} parent=114 // pred_region
        %s6027 = smul.u32 16, %s38
        %p6028 = scmp.lt.s32.totalorder %s37, 1
        %s6029 = scalar_select %p6028, %s37, 1
        %p6030 = scmp.lt.s32.totalorder %s6027, 31
        %s6031 = scalar_select %p6030, %s6027, 31
        %s6032 = smul.addr %s6029, 32
        %s6033 = sadd.s32 %s6031, %s6032
        %s6034 = smul.addr %s6033, 8
        %s6035 = scalar_lea.vmem %s20, %s6034
      $region119: #{rsf1_forward.1} parent=114 // pred_fallthru
        _
    $region115: #{rsf1_forward.1} parent=5 // pred_fallthru
      _
  $region6: #{rsf1_forward.1} parent=0 // loop_footer
    %s30 = sadd.s32 1, %s26
  $region7: #{rsf1_forward.1} parent=0 // loop_footer_branch
    %25 = sbr.rel target = $region3
  $region8: #{rsf1_forward.1} parent=0 // loop_exit
    _

</llo_original>
